<compile_context>
chip_gen: v7x
topology: tpu7x:2x2x1
jax: 0.10.0
libtpu: 0.0.40
codegen_flags: <defaults>
</compile_context>

<pallas_src>
import jax
import jax.numpy as jnp
from jax.experimental import pallas as pl
from jax.experimental.pallas import tpu as pltpu

N_NEURONS = 2000  # matches the PyTorch module


def _round_up(x, m):
    return (x + m - 1) // m * m


# ---------------------------------------------------------------------------
# Fused kernel: the whole 6-layer MLP in one pallas_call.
# grid = (L hidden layers, J output-column tiles); weights streamed, acts resident.
# ---------------------------------------------------------------------------
def fused_mlp_kernel(x_ref, w1_ref, b1_ref, w_ref, b_ref, wout_ref, bout_ref,
                     o_ref, buf_a, buf_b, acc_ref):
    # Views:
    #   x_ref:    (Mp, K0p)   f32   padded network input (resident)
    #   w1_ref:   (K0p, Np)   f32   layer_1 weight (resident, tiny)
    #   b1_ref:   (1, Np)     f32   layer_1 bias
    #   w_ref:    (Np, tn)    bf16  hidden-layer weight column block (streamed)
    #   b_ref:    (1, tn)     f32   hidden-layer bias slice
    #   wout_ref: (1, tn)     f32   layer_out weight, lane-dense
    #   bout_ref: (1, 1)      f32   layer_out bias
    #   o_ref:    (Mp, 1)     f32   output
    #   buf_a/b:  (J, Mp, tn) f32   ping-pong activation buffers (VMEM scratch)
    #   acc_ref:  (Mp, 1)     f32   fused layer_out accumulator (VMEM scratch)
    l = pl.program_id(0)                 # hidden layer index (layers 2..5)
    j = pl.program_id(1)                 # output-column tile index
    last_l = pl.num_programs(0) - 1
    last_j = pl.num_programs(1) - 1
    J = buf_a.shape[0]                   # static: column tiles == K chunks (square layers)
    tn = w_ref.shape[-1]
    Mp = x_ref.shape[0]

    # --- Prologue (grid step (0,0)): layer_1 + ReLU into the ping buffer; init acc.
    @pl.when(jnp.logical_and(l == 0, j == 0))
    def _():
        x = x_ref[...]
        for jj in range(J):                                   # static unroll
            h = jnp.dot(x, w1_ref[:, jj * tn:(jj + 1) * tn],
                        preferred_element_type=jnp.float32)
            buf_a[jj] = jnp.maximum(h + b1_ref[:, jj * tn:(jj + 1) * tn], 0.0)
        acc_ref[...] = jnp.broadcast_to(bout_ref[...], acc_ref.shape)

    # --- Hidden layer l, columns [j*tn, (j+1)*tn): read ping, write pong.
    #     K is chunked statically so scratch reads use static indices only and the
    #     f32 up-cast temp stays at one (tn, tn) chunk.
    def hidden_step(src, dst):
        acc = jnp.zeros((Mp, tn), jnp.float32)
        for jj in range(J):                                   # static unroll
            w_chunk = w_ref[jj * tn:(jj + 1) * tn, :].astype(jnp.float32)
            acc += jnp.dot(src[jj], w_chunk, preferred_element_type=jnp.float32)
        y = jnp.maximum(acc + b_ref[...], 0.0)
        dst[j] = y
        # Fold layer_out (2000 -> 1) into the last hidden layer: VPU mul + lane sum
        # (VPU/XLU slots are idle; avoids streaming a 128x zero-padded last weight).
        @pl.when(l == last_l)
        def _():
            acc_ref[...] += jnp.sum(y * wout_ref[...], axis=-1, keepdims=True)

    @pl.when(l % 2 == 0)
    def _():
        hidden_step(buf_a, buf_b)

    @pl.when(l % 2 == 1)
    def _():
        hidden_step(buf_b, buf_a)

    # --- Write the (Mp, 1) result once, at the very last grid step.
    @pl.when(jnp.logical_and(l == last_l, j == last_j))
    def _():
        o_ref[...] = acc_ref[...]


# ---------------------------------------------------------------------------
# Parameters
# ---------------------------------------------------------------------------
def init_params(key, num_features, n_neurons=N_NEURONS):
    """PyTorch-style init: U(-1/sqrt(fan_in), 1/sqrt(fan_in)); unpadded shapes."""
    dims = [num_features] + [n_neurons] * 5 + [1]
    params = []
    for i in range(6):
        fan_in, fan_out = dims[i], dims[i + 1]
        key, kw, kb = jax.random.split(key, 3)
        bound = 1.0 / jnp.sqrt(jnp.float32(fan_in))
        w = jax.random.uniform(kw, (fan_in, fan_out), jnp.float32,
                               minval=-bound, maxval=bound)
        b = jax.random.uniform(kb, (fan_out,), jnp.float32,
                               minval=-bound, maxval=bound)
        params.append((w, b))
    return params


def pad_params(params):
    """One-time packing: pad to aligned shapes, cast the big hidden weights to bf16."""
    w1, b1 = params[0]
    K0, N1 = w1.shape
    K0p = _round_up(K0, 8)        # first-layer K padded only to the sublane quantum
    Np = _round_up(N1, 128)       # hidden width 2000 -> 2048

    w1p = jnp.zeros((K0p, Np), jnp.float32).at[:K0, :N1].set(w1)
    b1p = jnp.zeros((1, Np), jnp.float32).at[0, :N1].set(b1)

    Ws, Bs = [], []
    for w, b in params[1:5]:
        K, N = w.shape
        wp = jnp.zeros((Np, Np), jnp.float32).at[:K, :N].set(w)
        bp = jnp.zeros((1, Np), jnp.float32).at[0, :N].set(b)
        Ws.append(wp.astype(jnp.bfloat16))   # stream hidden weights in bf16 (2x less HBM)
        Bs.append(bp)
    W = jnp.stack(Ws)                        # (4, Np, Np) bf16
    B = jnp.stack(Bs)                        # (4, 1, Np)  f32

    w6, b6 = params[5]                       # (N, 1), (1,)
    w6p = jnp.zeros((1, Np), jnp.float32).at[0, :w6.shape[0]].set(w6[:, 0])  # lane-dense
    b6p = jnp.reshape(b6, (1, 1)).astype(jnp.float32)

    return dict(w1=w1p, b1=b1p, W=W, B=B, w_out=w6p, b_out=b6p)


# ---------------------------------------------------------------------------
# Forward passes
# ---------------------------------------------------------------------------
def multiple_regression_forward(pp, x, *, tn=512):
    """Fused Pallas forward.  x: (batch, num_features) f32 -> (batch, 1) f32."""
    M, K0 = x.shape
    w1, b1, W, B = pp["w1"], pp["b1"], pp["W"], pp["B"]
    w_out, b_out = pp["w_out"], pp["b_out"]
    K0p, Np = w1.shape
    L = W.shape[0]
    assert Np % tn == 0
    J = Np // tn
    Mp = max(_round_up(M, 8), 8)

    xp = jnp.zeros((Mp, K0p), jnp.float32).at[:M, :K0].set(x)

    flops = 2 * Mp * K0p * Np + 2 * L * Mp * Np * Np + 2 * Mp * Np
    bytes_accessed = (xp.size + w1.size + b1.size + B.size + w_out.size
                      + b_out.size + Mp) * 4 + W.size * 2

    out = pl.pallas_call(
        fused_mlp_kernel,
        out_shape=jax.ShapeDtypeStruct((Mp, 1), jnp.float32),
        grid_spec=pltpu.PrefetchScalarGridSpec(
            num_scalar_prefetch=0,
            grid=(L, J),
            in_specs=[
                pl.BlockSpec((Mp, K0p), lambda l, j: (0, 0)),          # x: resident
                pl.BlockSpec((K0p, Np), lambda l, j: (0, 0)),          # w1: resident
                pl.BlockSpec((1, Np), lambda l, j: (0, 0)),            # b1: resident
                pl.BlockSpec((None, Np, tn), lambda l, j: (l, 0, j)),  # W: streamed bf16
                pl.BlockSpec((None, 1, tn), lambda l, j: (l, 0, j)),   # B slice
                pl.BlockSpec((1, tn), lambda l, j: (0, j)),            # w_out slice
                pl.BlockSpec((1, 1), lambda l, j: (0, 0)),             # b_out
            ],
            out_specs=pl.BlockSpec((Mp, 1), lambda l, j: (0, 0)),
            scratch_shapes=[
                pltpu.VMEM((J, Mp, tn), jnp.float32),   # ping activation buffer
                pltpu.VMEM((J, Mp, tn), jnp.float32),   # pong activation buffer
                pltpu.VMEM((Mp, 1), jnp.float32),       # fused layer_out accumulator
            ],
        ),
        compiler_params=pltpu.CompilerParams(
            # Scratch carries state across grid steps -> must stay single-core/serial.
            dimension_semantics=("arbitrary", "arbitrary"),
        ),
        cost_estimate=pl.CostEstimate(
            flops=flops, transcendentals=0, bytes_accessed=bytes_accessed),
    )(xp, w1, b1, W, B, w_out, b_out)
    return out[:M, :]


def multiple_regression_reference(params, x, *, bf16_hidden=False):
    """Pure-JAX reference.  bf16_hidden=True mimics the kernel's bf16 weight stream."""
    h = x
    for i, (w, b) in enumerate(params[:5]):
        if bf16_hidden and i >= 1:
            w = w.astype(jnp.bfloat16).astype(jnp.float32)
        h = jnp.maximum(h @ w + b, 0.0)
    w, b = params[5]
    return h @ w + b


if __name__ == "__main__":
    key = jax.random.PRNGKey(0)
    k_params, k_x = jax.random.split(key)

    batch = 8
    num_features = 4  # Griewank-style low-dimensional input

    params = init_params(k_params, num_features)
    pp = pad_params(params)  # one-time pad + bf16 cast, reused every forward

    x = jax.random.normal(k_x, (batch, num_features), jnp.float32)

    fwd = jax.jit(multiple_regression_forward)
    y = jax.block_until_ready(fwd(pp, x))
    assert y.shape == (batch, 1), y.shape

    # Tight check vs. a reference using the same bf16-quantized hidden weights.
    y_ref_q = multiple_regression_reference(params, x, bf16_hidden=True)
    err_q = float(jnp.max(jnp.abs(y - y_ref_q)))
    assert jnp.allclose(y, y_ref_q, rtol=1e-2, atol=1e-2), err_q

    # Loose semantic check vs. the full-f32 module (bf16 weight quantization only).
    y_ref = multiple_regression_reference(params, x, bf16_hidden=False)
    err_f32 = float(jnp.max(jnp.abs(y - y_ref)))
    assert jnp.allclose(y, y_ref, rtol=5e-2, atol=5e-2), err_f32

    print("KERNEL_OK")
</pallas_src>

<mosaic_0001>
module attributes {stable_mosaic.version = 11 : i64} {
  func.func @fused_mlp_kernel(%arg0: i32, %arg1: i32, %arg2: memref<8x8xf32, #tpu.memory_space<vmem>>, %arg3: memref<8x2048xf32, #tpu.memory_space<vmem>>, %arg4: memref<1x2048xf32, #tpu.memory_space<vmem>>, %arg5: memref<1x2048x512xbf16, #tpu.memory_space<vmem>>, %arg6: memref<1x1x512xf32, #tpu.memory_space<vmem>>, %arg7: memref<1x512xf32, #tpu.memory_space<vmem>>, %arg8: memref<1x1xf32, #tpu.memory_space<vmem>>, %arg9: memref<8x1xf32, #tpu.memory_space<vmem>>, %arg10: memref<4x8x512xf32, #tpu.memory_space<vmem>>, %arg11: memref<4x8x512xf32, #tpu.memory_space<vmem>>, %arg12: memref<8x1xf32, #tpu.memory_space<vmem>>) attributes {dimension_semantics = [#tpu.dimension_semantics<arbitrary>, #tpu.dimension_semantics<arbitrary>], iteration_bounds = array<i64: 4, 4>, scalar_prefetch = 0 : i64, scratch_operands = 3 : i64, tpu.core_type = #tpu.core_type<tc>, window_params = [{pipeline_mode = #tpu.pipeline_mode<synchronous>, transform_indices = @transform_0, window_bounds = array<i64: 8, 8>}, {pipeline_mode = #tpu.pipeline_mode<synchronous>, transform_indices = @transform_1, window_bounds = array<i64: 8, 2048>}, {pipeline_mode = #tpu.pipeline_mode<synchronous>, transform_indices = @transform_2, window_bounds = array<i64: 1, 2048>}, {transform_indices = @transform_3, window_bounds = array<i64: 1, 2048, 512>}, {transform_indices = @transform_4, window_bounds = array<i64: 1, 1, 512>}, {transform_indices = @transform_5, window_bounds = array<i64: 1, 512>}, {pipeline_mode = #tpu.pipeline_mode<synchronous>, transform_indices = @transform_6, window_bounds = array<i64: 1, 1>}, {pipeline_mode = #tpu.pipeline_mode<synchronous>, transform_indices = @transform_7, window_bounds = array<i64: 8, 1>}]} {
    %c0_i32 = arith.constant 0 : i32
    %0 = arith.cmpi eq, %arg0, %c0_i32 : i32
    %c0_i32_0 = arith.constant 0 : i32
    %1 = arith.cmpi eq, %arg1, %c0_i32_0 : i32
    %2 = arith.andi %0, %1 : i1
    %3 = arith.extui %2 : i1 to i32
    %c0_i32_1 = arith.constant 0 : i32
    %4 = arith.cmpi ne, %3, %c0_i32_1 : i32
    scf.if %4 {
      %c0 = arith.constant 0 : index
      %c0_18 = arith.constant 0 : index
      %36 = vector.load %arg2[%c0, %c0_18] : memref<8x8xf32, #tpu.memory_space<vmem>>, vector<8x8xf32>
      %c0_19 = arith.constant 0 : index
      %c0_20 = arith.constant 0 : index
      %37 = vector.load %arg3[%c0_19, %c0_20] : memref<8x2048xf32, #tpu.memory_space<vmem>>, vector<8x512xf32>
      %cst = arith.constant dense<0.000000e+00> : vector<8x512xf32>
      %38 = tpu.matmul %36, %37, %cst {dimension_numbers = #tpu.dot_dimension_numbers<[1], [0], [0], [1], [0, 0, 1, 1], [], []>} : vector<8x8xf32>, vector<8x512xf32>, vector<8x512xf32> -> vector<8x512xf32>
      %c0_21 = arith.constant 0 : index
      %c0_22 = arith.constant 0 : index
      %39 = vector.load %arg4[%c0_21, %c0_22] : memref<1x2048xf32, #tpu.memory_space<vmem>>, vector<1x512xf32>
      %40 = vector.broadcast %39 : vector<1x512xf32> to vector<8x512xf32>
      %41 = arith.addf %38, %40 : vector<8x512xf32>
      %cst_23 = arith.constant 0.000000e+00 : f32
      %42 = vector.broadcast %cst_23 : f32 to vector<8x512xf32>
      %43 = arith.maximumf %41, %42 : vector<8x512xf32>
      %c0_24 = arith.constant 0 : index
      %c0_25 = arith.constant 0 : index
      %c0_26 = arith.constant 0 : index
      %44 = vector.load %arg10[%c0_24, %c0_25, %c0_26] : memref<4x8x512xf32, #tpu.memory_space<vmem>>, vector<1x8x512xf32>
      %45 = vector.shape_cast %44 : vector<1x8x512xf32> to vector<8x512xf32>
      %46 = vector.shape_cast %43 : vector<8x512xf32> to vector<1x8x512xf32>
      tpu.vector_store %arg10[%c0_24, %c0_25, %c0_26], %46 {strides = array<i32>} : memref<4x8x512xf32, #tpu.memory_space<vmem>>, vector<1x8x512xf32>,
      %c0_27 = arith.constant 0 : index
      %c512 = arith.constant 512 : index
      %47 = vector.load %arg3[%c0_27, %c512] : memref<8x2048xf32, #tpu.memory_space<vmem>>, vector<8x512xf32>
      %cst_28 = arith.constant dense<0.000000e+00> : vector<8x512xf32>
      %48 = tpu.matmul %36, %47, %cst_28 {dimension_numbers = #tpu.dot_dimension_numbers<[1], [0], [0], [1], [0, 0, 1, 1], [], []>} : vector<8x8xf32>, vector<8x512xf32>, vector<8x512xf32> -> vector<8x512xf32>
      %c0_29 = arith.constant 0 : index
      %c512_30 = arith.constant 512 : index
      %49 = vector.load %arg4[%c0_29, %c512_30] : memref<1x2048xf32, #tpu.memory_space<vmem>>, vector<1x512xf32>
      %50 = vector.broadcast %49 : vector<1x512xf32> to vector<8x512xf32>
      %51 = arith.addf %48, %50 : vector<8x512xf32>
      %cst_31 = arith.constant 0.000000e+00 : f32
      %52 = vector.broadcast %cst_31 : f32 to vector<8x512xf32>
      %53 = arith.maximumf %51, %52 : vector<8x512xf32>
      %c1 = arith.constant 1 : index
      %c0_32 = arith.constant 0 : index
      %c0_33 = arith.constant 0 : index
      %54 = vector.load %arg10[%c1, %c0_32, %c0_33] : memref<4x8x512xf32, #tpu.memory_space<vmem>>, vector<1x8x512xf32>
      %55 = vector.shape_cast %54 : vector<1x8x512xf32> to vector<8x512xf32>
      %56 = vector.shape_cast %53 : vector<8x512xf32> to vector<1x8x512xf32>
      tpu.vector_store %arg10[%c1, %c0_32, %c0_33], %56 {strides = array<i32>} : memref<4x8x512xf32, #tpu.memory_space<vmem>>, vector<1x8x512xf32>,
      %c0_34 = arith.constant 0 : index
      %c1024 = arith.constant 1024 : index
      %57 = vector.load %arg3[%c0_34, %c1024] : memref<8x2048xf32, #tpu.memory_space<vmem>>, vector<8x512xf32>
      %cst_35 = arith.constant dense<0.000000e+00> : vector<8x512xf32>
      %58 = tpu.matmul %36, %57, %cst_35 {dimension_numbers = #tpu.dot_dimension_numbers<[1], [0], [0], [1], [0, 0, 1, 1], [], []>} : vector<8x8xf32>, vector<8x512xf32>, vector<8x512xf32> -> vector<8x512xf32>
      %c0_36 = arith.constant 0 : index
      %c1024_37 = arith.constant 1024 : index
      %59 = vector.load %arg4[%c0_36, %c1024_37] : memref<1x2048xf32, #tpu.memory_space<vmem>>, vector<1x512xf32>
      %60 = vector.broadcast %59 : vector<1x512xf32> to vector<8x512xf32>
      %61 = arith.addf %58, %60 : vector<8x512xf32>
      %cst_38 = arith.constant 0.000000e+00 : f32
      %62 = vector.broadcast %cst_38 : f32 to vector<8x512xf32>
      %63 = arith.maximumf %61, %62 : vector<8x512xf32>
      %c2 = arith.constant 2 : index
      %c0_39 = arith.constant 0 : index
      %c0_40 = arith.constant 0 : index
      %64 = vector.load %arg10[%c2, %c0_39, %c0_40] : memref<4x8x512xf32, #tpu.memory_space<vmem>>, vector<1x8x512xf32>
      %65 = vector.shape_cast %64 : vector<1x8x512xf32> to vector<8x512xf32>
      %66 = vector.shape_cast %63 : vector<8x512xf32> to vector<1x8x512xf32>
      tpu.vector_store %arg10[%c2, %c0_39, %c0_40], %66 {strides = array<i32>} : memref<4x8x512xf32, #tpu.memory_space<vmem>>, vector<1x8x512xf32>,
      %c0_41 = arith.constant 0 : index
      %c1536 = arith.constant 1536 : index
      %67 = vector.load %arg3[%c0_41, %c1536] : memref<8x2048xf32, #tpu.memory_space<vmem>>, vector<8x512xf32>
      %cst_42 = arith.constant dense<0.000000e+00> : vector<8x512xf32>
      %68 = tpu.matmul %36, %67, %cst_42 {dimension_numbers = #tpu.dot_dimension_numbers<[1], [0], [0], [1], [0, 0, 1, 1], [], []>} : vector<8x8xf32>, vector<8x512xf32>, vector<8x512xf32> -> vector<8x512xf32>
      %c0_43 = arith.constant 0 : index
      %c1536_44 = arith.constant 1536 : index
      %69 = vector.load %arg4[%c0_43, %c1536_44] : memref<1x2048xf32, #tpu.memory_space<vmem>>, vector<1x512xf32>
      %70 = vector.broadcast %69 : vector<1x512xf32> to vector<8x512xf32>
      %71 = arith.addf %68, %70 : vector<8x512xf32>
      %cst_45 = arith.constant 0.000000e+00 : f32
      %72 = vector.broadcast %cst_45 : f32 to vector<8x512xf32>
      %73 = arith.maximumf %71, %72 : vector<8x512xf32>
      %c3 = arith.constant 3 : index
      %c0_46 = arith.constant 0 : index
      %c0_47 = arith.constant 0 : index
      %74 = vector.load %arg10[%c3, %c0_46, %c0_47] : memref<4x8x512xf32, #tpu.memory_space<vmem>>, vector<1x8x512xf32>
      %75 = vector.shape_cast %74 : vector<1x8x512xf32> to vector<8x512xf32>
      %76 = vector.shape_cast %73 : vector<8x512xf32> to vector<1x8x512xf32>
      tpu.vector_store %arg10[%c3, %c0_46, %c0_47], %76 {strides = array<i32>} : memref<4x8x512xf32, #tpu.memory_space<vmem>>, vector<1x8x512xf32>,
      %c0_48 = arith.constant 0 : index
      %c0_49 = arith.constant 0 : index
      %77 = vector.load %arg8[%c0_48, %c0_49] : memref<1x1xf32, #tpu.memory_space<vmem>>, vector<1x1xf32>
      %78 = vector.shape_cast %77 : vector<1x1xf32> to vector<1x1xf32>
      %79 = vector.broadcast %78 : vector<1x1xf32> to vector<8x1xf32>
      %c0_50 = arith.constant 0 : index
      %c0_51 = arith.constant 0 : index
      %80 = vector.load %arg12[%c0_50, %c0_51] : memref<8x1xf32, #tpu.memory_space<vmem>>, vector<8x1xf32>
      tpu.vector_store %arg12[%c0_50, %c0_51], %79 {strides = array<i32>} : memref<8x1xf32, #tpu.memory_space<vmem>>, vector<8x1xf32>,
    } else {
    }
    %c2_i32 = arith.constant 2 : i32
    %c0_i32_2 = arith.constant 0 : i32
    %5 = arith.cmpi eq, %c2_i32, %c0_i32_2 : i32
    %c1_i32 = arith.constant 1 : i32
    %6 = arith.select %5, %c1_i32, %c2_i32 : i32
    %7 = arith.remsi %arg0, %6 : i32
    %c0_i32_3 = arith.constant 0 : i32
    %8 = arith.cmpi ne, %7, %c0_i32_3 : i32
    %c0_i32_4 = arith.constant 0 : i32
    %9 = arith.cmpi slt, %7, %c0_i32_4 : i32
    %c0_i32_5 = arith.constant 0 : i32
    %10 = arith.cmpi slt, %6, %c0_i32_5 : i32
    %11 = arith.xori %9, %10 : i1
    %12 = arith.andi %11, %8 : i1
    %13 = arith.addi %7, %6 : i32
    %14 = arith.select %12, %13, %7 : i32
    %c0_i32_6 = arith.constant 0 : i32
    %15 = arith.cmpi eq, %14, %c0_i32_6 : i32
    %16 = arith.extui %15 : i1 to i32
    %c0_i32_7 = arith.constant 0 : i32
    %17 = arith.cmpi ne, %16, %c0_i32_7 : i32
    scf.if %17 {
      %cst = arith.constant 0.000000e+00 : f32
      %36 = vector.broadcast %cst : f32 to vector<8x512xf32>
      %c0 = arith.constant 0 : index
      %c0_18 = arith.constant 0 : index
      %c0_19 = arith.constant 0 : index
      %37 = vector.load %arg5[%c0, %c0_18, %c0_19] : memref<1x2048x512xbf16, #tpu.memory_space<vmem>>, vector<1x512x512xbf16>
      %38 = vector.shape_cast %37 : vector<1x512x512xbf16> to vector<512x512xbf16>
      %39 = arith.extf %38 : vector<512x512xbf16> to vector<512x512xf32>
      %c0_20 = arith.constant 0 : index
      %c0_21 = arith.constant 0 : index
      %c0_22 = arith.constant 0 : index
      %40 = vector.load %arg10[%c0_20, %c0_21, %c0_22] : memref<4x8x512xf32, #tpu.memory_space<vmem>>, vector<1x8x512xf32>
      %41 = vector.shape_cast %40 : vector<1x8x512xf32> to vector<8x512xf32>
      %cst_23 = arith.constant dense<0.000000e+00> : vector<8x512xf32>
      %42 = tpu.matmul %41, %39, %cst_23 {dimension_numbers = #tpu.dot_dimension_numbers<[1], [0], [0], [1], [0, 0, 1, 1], [], []>} : vector<8x512xf32>, vector<512x512xf32>, vector<8x512xf32> -> vector<8x512xf32>
      %43 = arith.addf %36, %42 : vector<8x512xf32>
      %c0_24 = arith.constant 0 : index
      %c512 = arith.constant 512 : index
      %c0_25 = arith.constant 0 : index
      %44 = vector.load %arg5[%c0_24, %c512, %c0_25] : memref<1x2048x512xbf16, #tpu.memory_space<vmem>>, vector<1x512x512xbf16>
      %45 = vector.shape_cast %44 : vector<1x512x512xbf16> to vector<512x512xbf16>
      %46 = arith.extf %45 : vector<512x512xbf16> to vector<512x512xf32>
      %c1 = arith.constant 1 : index
      %c0_26 = arith.constant 0 : index
      %c0_27 = arith.constant 0 : index
      %47 = vector.load %arg10[%c1, %c0_26, %c0_27] : memref<4x8x512xf32, #tpu.memory_space<vmem>>, vector<1x8x512xf32>
      %48 = vector.shape_cast %47 : vector<1x8x512xf32> to vector<8x512xf32>
      %cst_28 = arith.constant dense<0.000000e+00> : vector<8x512xf32>
      %49 = tpu.matmul %48, %46, %cst_28 {dimension_numbers = #tpu.dot_dimension_numbers<[1], [0], [0], [1], [0, 0, 1, 1], [], []>} : vector<8x512xf32>, vector<512x512xf32>, vector<8x512xf32> -> vector<8x512xf32>
      %50 = arith.addf %43, %49 : vector<8x512xf32>
      %c0_29 = arith.constant 0 : index
      %c1024 = arith.constant 1024 : index
      %c0_30 = arith.constant 0 : index
      %51 = vector.load %arg5[%c0_29, %c1024, %c0_30] : memref<1x2048x512xbf16, #tpu.memory_space<vmem>>, vector<1x512x512xbf16>
      %52 = vector.shape_cast %51 : vector<1x512x512xbf16> to vector<512x512xbf16>
      %53 = arith.extf %52 : vector<512x512xbf16> to vector<512x512xf32>
      %c2 = arith.constant 2 : index
      %c0_31 = arith.constant 0 : index
      %c0_32 = arith.constant 0 : index
      %54 = vector.load %arg10[%c2, %c0_31, %c0_32] : memref<4x8x512xf32, #tpu.memory_space<vmem>>, vector<1x8x512xf32>
      %55 = vector.shape_cast %54 : vector<1x8x512xf32> to vector<8x512xf32>
      %cst_33 = arith.constant dense<0.000000e+00> : vector<8x512xf32>
      %56 = tpu.matmul %55, %53, %cst_33 {dimension_numbers = #tpu.dot_dimension_numbers<[1], [0], [0], [1], [0, 0, 1, 1], [], []>} : vector<8x512xf32>, vector<512x512xf32>, vector<8x512xf32> -> vector<8x512xf32>
      %57 = arith.addf %50, %56 : vector<8x512xf32>
      %c0_34 = arith.constant 0 : index
      %c1536 = arith.constant 1536 : index
      %c0_35 = arith.constant 0 : index
      %58 = vector.load %arg5[%c0_34, %c1536, %c0_35] : memref<1x2048x512xbf16, #tpu.memory_space<vmem>>, vector<1x512x512xbf16>
      %59 = vector.shape_cast %58 : vector<1x512x512xbf16> to vector<512x512xbf16>
      %60 = arith.extf %59 : vector<512x512xbf16> to vector<512x512xf32>
      %c3 = arith.constant 3 : index
      %c0_36 = arith.constant 0 : index
      %c0_37 = arith.constant 0 : index
      %61 = vector.load %arg10[%c3, %c0_36, %c0_37] : memref<4x8x512xf32, #tpu.memory_space<vmem>>, vector<1x8x512xf32>
      %62 = vector.shape_cast %61 : vector<1x8x512xf32> to vector<8x512xf32>
      %cst_38 = arith.constant dense<0.000000e+00> : vector<8x512xf32>
      %63 = tpu.matmul %62, %60, %cst_38 {dimension_numbers = #tpu.dot_dimension_numbers<[1], [0], [0], [1], [0, 0, 1, 1], [], []>} : vector<8x512xf32>, vector<512x512xf32>, vector<8x512xf32> -> vector<8x512xf32>
      %64 = arith.addf %57, %63 : vector<8x512xf32>
      %c0_39 = arith.constant 0 : index
      %c0_40 = arith.constant 0 : index
      %c0_41 = arith.constant 0 : index
      %65 = vector.load %arg6[%c0_39, %c0_40, %c0_41] : memref<1x1x512xf32, #tpu.memory_space<vmem>>, vector<1x1x512xf32>
      %66 = vector.shape_cast %65 : vector<1x1x512xf32> to vector<1x512xf32>
      %67 = vector.broadcast %66 : vector<1x512xf32> to vector<8x512xf32>
      %68 = arith.addf %64, %67 : vector<8x512xf32>
      %cst_42 = arith.constant 0.000000e+00 : f32
      %69 = vector.broadcast %cst_42 : f32 to vector<8x512xf32>
      %70 = arith.maximumf %68, %69 : vector<8x512xf32>
      %71 = arith.index_cast %arg1 : i32 to index
      %c0_43 = arith.constant 0 : index
      %c0_44 = arith.constant 0 : index
      %72 = vector.load %arg11[%71, %c0_43, %c0_44] : memref<4x8x512xf32, #tpu.memory_space<vmem>>, vector<1x8x512xf32>
      %73 = vector.shape_cast %72 : vector<1x8x512xf32> to vector<8x512xf32>
      %74 = vector.shape_cast %70 : vector<8x512xf32> to vector<1x8x512xf32>
      tpu.vector_store %arg11[%71, %c0_43, %c0_44], %74 {strides = array<i32>} : memref<4x8x512xf32, #tpu.memory_space<vmem>>, vector<1x8x512xf32>,
      %c3_i32_45 = arith.constant 3 : i32
      %75 = arith.cmpi eq, %arg0, %c3_i32_45 : i32
      %76 = arith.extui %75 : i1 to i32
      %c0_i32_46 = arith.constant 0 : i32
      %77 = arith.cmpi ne, %76, %c0_i32_46 : i32
      scf.if %77 {
        %c0_47 = arith.constant 0 : index
        %c0_48 = arith.constant 0 : index
        %78 = vector.load %arg12[%c0_47, %c0_48] : memref<8x1xf32, #tpu.memory_space<vmem>>, vector<8x1xf32>
        %c0_49 = arith.constant 0 : index
        %c0_50 = arith.constant 0 : index
        %79 = vector.load %arg7[%c0_49, %c0_50] : memref<1x512xf32, #tpu.memory_space<vmem>>, vector<1x512xf32>
        %80 = vector.broadcast %79 : vector<1x512xf32> to vector<8x512xf32>
        %81 = arith.mulf %70, %80 : vector<8x512xf32>
        %cst_51 = arith.constant dense<0.000000e+00> : vector<8xf32>
        %82 = vector.multi_reduction <add>, %81, %cst_51 [1] : vector<8x512xf32> to vector<8xf32>
        %83 = vector.shape_cast %82 : vector<8xf32> to vector<8x1xf32>
        %84 = arith.addf %78, %83 : vector<8x1xf32>
        %c0_52 = arith.constant 0 : index
        %c0_53 = arith.constant 0 : index
        %85 = vector.load %arg12[%c0_52, %c0_53] : memref<8x1xf32, #tpu.memory_space<vmem>>, vector<8x1xf32>
        tpu.vector_store %arg12[%c0_52, %c0_53], %84 {strides = array<i32>} : memref<8x1xf32, #tpu.memory_space<vmem>>, vector<8x1xf32>,
      } else {
      }
    } else {
    }
    %c2_i32_8 = arith.constant 2 : i32
    %c0_i32_9 = arith.constant 0 : i32
    %18 = arith.cmpi eq, %c2_i32_8, %c0_i32_9 : i32
    %c1_i32_10 = arith.constant 1 : i32
    %19 = arith.select %18, %c1_i32_10, %c2_i32_8 : i32
    %20 = arith.remsi %arg0, %19 : i32
    %c0_i32_11 = arith.constant 0 : i32
    %21 = arith.cmpi ne, %20, %c0_i32_11 : i32
    %c0_i32_12 = arith.constant 0 : i32
    %22 = arith.cmpi slt, %20, %c0_i32_12 : i32
    %c0_i32_13 = arith.constant 0 : i32
    %23 = arith.cmpi slt, %19, %c0_i32_13 : i32
    %24 = arith.xori %22, %23 : i1
    %25 = arith.andi %24, %21 : i1
    %26 = arith.addi %20, %19 : i32
    %27 = arith.select %25, %26, %20 : i32
    %c1_i32_14 = arith.constant 1 : i32
    %28 = arith.cmpi eq, %27, %c1_i32_14 : i32
    %29 = arith.extui %28 : i1 to i32
    %c0_i32_15 = arith.constant 0 : i32
    %30 = arith.cmpi ne, %29, %c0_i32_15 : i32
    scf.if %30 {
      %cst = arith.constant 0.000000e+00 : f32
      %36 = vector.broadcast %cst : f32 to vector<8x512xf32>
      %c0 = arith.constant 0 : index
      %c0_18 = arith.constant 0 : index
      %c0_19 = arith.constant 0 : index
      %37 = vector.load %arg5[%c0, %c0_18, %c0_19] : memref<1x2048x512xbf16, #tpu.memory_space<vmem>>, vector<1x512x512xbf16>
      %38 = vector.shape_cast %37 : vector<1x512x512xbf16> to vector<512x512xbf16>
      %39 = arith.extf %38 : vector<512x512xbf16> to vector<512x512xf32>
      %c0_20 = arith.constant 0 : index
      %c0_21 = arith.constant 0 : index
      %c0_22 = arith.constant 0 : index
      %40 = vector.load %arg11[%c0_20, %c0_21, %c0_22] : memref<4x8x512xf32, #tpu.memory_space<vmem>>, vector<1x8x512xf32>
      %41 = vector.shape_cast %40 : vector<1x8x512xf32> to vector<8x512xf32>
      %cst_23 = arith.constant dense<0.000000e+00> : vector<8x512xf32>
      %42 = tpu.matmul %41, %39, %cst_23 {dimension_numbers = #tpu.dot_dimension_numbers<[1], [0], [0], [1], [0, 0, 1, 1], [], []>} : vector<8x512xf32>, vector<512x512xf32>, vector<8x512xf32> -> vector<8x512xf32>
      %43 = arith.addf %36, %42 : vector<8x512xf32>
      %c0_24 = arith.constant 0 : index
      %c512 = arith.constant 512 : index
      %c0_25 = arith.constant 0 : index
      %44 = vector.load %arg5[%c0_24, %c512, %c0_25] : memref<1x2048x512xbf16, #tpu.memory_space<vmem>>, vector<1x512x512xbf16>
      %45 = vector.shape_cast %44 : vector<1x512x512xbf16> to vector<512x512xbf16>
      %46 = arith.extf %45 : vector<512x512xbf16> to vector<512x512xf32>
      %c1 = arith.constant 1 : index
      %c0_26 = arith.constant 0 : index
      %c0_27 = arith.constant 0 : index
      %47 = vector.load %arg11[%c1, %c0_26, %c0_27] : memref<4x8x512xf32, #tpu.memory_space<vmem>>, vector<1x8x512xf32>
      %48 = vector.shape_cast %47 : vector<1x8x512xf32> to vector<8x512xf32>
      %cst_28 = arith.constant dense<0.000000e+00> : vector<8x512xf32>
      %49 = tpu.matmul %48, %46, %cst_28 {dimension_numbers = #tpu.dot_dimension_numbers<[1], [0], [0], [1], [0, 0, 1, 1], [], []>} : vector<8x512xf32>, vector<512x512xf32>, vector<8x512xf32> -> vector<8x512xf32>
      %50 = arith.addf %43, %49 : vector<8x512xf32>
      %c0_29 = arith.constant 0 : index
      %c1024 = arith.constant 1024 : index
      %c0_30 = arith.constant 0 : index
      %51 = vector.load %arg5[%c0_29, %c1024, %c0_30] : memref<1x2048x512xbf16, #tpu.memory_space<vmem>>, vector<1x512x512xbf16>
      %52 = vector.shape_cast %51 : vector<1x512x512xbf16> to vector<512x512xbf16>
      %53 = arith.extf %52 : vector<512x512xbf16> to vector<512x512xf32>
      %c2 = arith.constant 2 : index
      %c0_31 = arith.constant 0 : index
      %c0_32 = arith.constant 0 : index
      %54 = vector.load %arg11[%c2, %c0_31, %c0_32] : memref<4x8x512xf32, #tpu.memory_space<vmem>>, vector<1x8x512xf32>
      %55 = vector.shape_cast %54 : vector<1x8x512xf32> to vector<8x512xf32>
      %cst_33 = arith.constant dense<0.000000e+00> : vector<8x512xf32>
      %56 = tpu.matmul %55, %53, %cst_33 {dimension_numbers = #tpu.dot_dimension_numbers<[1], [0], [0], [1], [0, 0, 1, 1], [], []>} : vector<8x512xf32>, vector<512x512xf32>, vector<8x512xf32> -> vector<8x512xf32>
      %57 = arith.addf %50, %56 : vector<8x512xf32>
      %c0_34 = arith.constant 0 : index
      %c1536 = arith.constant 1536 : index
      %c0_35 = arith.constant 0 : index
      %58 = vector.load %arg5[%c0_34, %c1536, %c0_35] : memref<1x2048x512xbf16, #tpu.memory_space<vmem>>, vector<1x512x512xbf16>
      %59 = vector.shape_cast %58 : vector<1x512x512xbf16> to vector<512x512xbf16>
      %60 = arith.extf %59 : vector<512x512xbf16> to vector<512x512xf32>
      %c3 = arith.constant 3 : index
      %c0_36 = arith.constant 0 : index
      %c0_37 = arith.constant 0 : index
      %61 = vector.load %arg11[%c3, %c0_36, %c0_37] : memref<4x8x512xf32, #tpu.memory_space<vmem>>, vector<1x8x512xf32>
      %62 = vector.shape_cast %61 : vector<1x8x512xf32> to vector<8x512xf32>
      %cst_38 = arith.constant dense<0.000000e+00> : vector<8x512xf32>
      %63 = tpu.matmul %62, %60, %cst_38 {dimension_numbers = #tpu.dot_dimension_numbers<[1], [0], [0], [1], [0, 0, 1, 1], [], []>} : vector<8x512xf32>, vector<512x512xf32>, vector<8x512xf32> -> vector<8x512xf32>
      %64 = arith.addf %57, %63 : vector<8x512xf32>
      %c0_39 = arith.constant 0 : index
      %c0_40 = arith.constant 0 : index
      %c0_41 = arith.constant 0 : index
      %65 = vector.load %arg6[%c0_39, %c0_40, %c0_41] : memref<1x1x512xf32, #tpu.memory_space<vmem>>, vector<1x1x512xf32>
      %66 = vector.shape_cast %65 : vector<1x1x512xf32> to vector<1x512xf32>
      %67 = vector.broadcast %66 : vector<1x512xf32> to vector<8x512xf32>
      %68 = arith.addf %64, %67 : vector<8x512xf32>
      %cst_42 = arith.constant 0.000000e+00 : f32
      %69 = vector.broadcast %cst_42 : f32 to vector<8x512xf32>
      %70 = arith.maximumf %68, %69 : vector<8x512xf32>
      %71 = arith.index_cast %arg1 : i32 to index
      %c0_43 = arith.constant 0 : index
      %c0_44 = arith.constant 0 : index
      %72 = vector.load %arg10[%71, %c0_43, %c0_44] : memref<4x8x512xf32, #tpu.memory_space<vmem>>, vector<1x8x512xf32>
      %73 = vector.shape_cast %72 : vector<1x8x512xf32> to vector<8x512xf32>
      %74 = vector.shape_cast %70 : vector<8x512xf32> to vector<1x8x512xf32>
      tpu.vector_store %arg10[%71, %c0_43, %c0_44], %74 {strides = array<i32>} : memref<4x8x512xf32, #tpu.memory_space<vmem>>, vector<1x8x512xf32>,
      %c3_i32_45 = arith.constant 3 : i32
      %75 = arith.cmpi eq, %arg0, %c3_i32_45 : i32
      %76 = arith.extui %75 : i1 to i32
      %c0_i32_46 = arith.constant 0 : i32
      %77 = arith.cmpi ne, %76, %c0_i32_46 : i32
      scf.if %77 {
        %c0_47 = arith.constant 0 : index
        %c0_48 = arith.constant 0 : index
        %78 = vector.load %arg12[%c0_47, %c0_48] : memref<8x1xf32, #tpu.memory_space<vmem>>, vector<8x1xf32>
        %c0_49 = arith.constant 0 : index
        %c0_50 = arith.constant 0 : index
        %79 = vector.load %arg7[%c0_49, %c0_50] : memref<1x512xf32, #tpu.memory_space<vmem>>, vector<1x512xf32>
        %80 = vector.broadcast %79 : vector<1x512xf32> to vector<8x512xf32>
        %81 = arith.mulf %70, %80 : vector<8x512xf32>
        %cst_51 = arith.constant dense<0.000000e+00> : vector<8xf32>
        %82 = vector.multi_reduction <add>, %81, %cst_51 [1] : vector<8x512xf32> to vector<8xf32>
        %83 = vector.shape_cast %82 : vector<8xf32> to vector<8x1xf32>
        %84 = arith.addf %78, %83 : vector<8x1xf32>
        %c0_52 = arith.constant 0 : index
        %c0_53 = arith.constant 0 : index
        %85 = vector.load %arg12[%c0_52, %c0_53] : memref<8x1xf32, #tpu.memory_space<vmem>>, vector<8x1xf32>
        tpu.vector_store %arg12[%c0_52, %c0_53], %84 {strides = array<i32>} : memref<8x1xf32, #tpu.memory_space<vmem>>, vector<8x1xf32>,
      } else {
      }
    } else {
    }
    %c3_i32 = arith.constant 3 : i32
    %31 = arith.cmpi eq, %arg0, %c3_i32 : i32
    %c3_i32_16 = arith.constant 3 : i32
    %32 = arith.cmpi eq, %arg1, %c3_i32_16 : i32
    %33 = arith.andi %31, %32 : i1
    %34 = arith.extui %33 : i1 to i32
    %c0_i32_17 = arith.constant 0 : i32
    %35 = arith.cmpi ne, %34, %c0_i32_17 : i32
    scf.if %35 {
      %c0 = arith.constant 0 : index
      %c0_18 = arith.constant 0 : index
      %36 = vector.load %arg12[%c0, %c0_18] : memref<8x1xf32, #tpu.memory_space<vmem>>, vector<8x1xf32>
      %c0_19 = arith.constant 0 : index
      %c0_20 = arith.constant 0 : index
      %37 = vector.load %arg9[%c0_19, %c0_20] : memref<8x1xf32, #tpu.memory_space<vmem>>, vector<8x1xf32>
      tpu.vector_store %arg9[%c0_19, %c0_20], %36 {strides = array<i32>} : memref<8x1xf32, #tpu.memory_space<vmem>>, vector<8x1xf32>,
    } else {
    }
    return
  }
  func.func @transform_0(%arg0: i32, %arg1: i32) -> (i32, i32) {
    %c0_i32 = arith.constant 0 : i32
    %c0_i32_0 = arith.constant 0 : i32
    %c0_i32_1 = arith.constant 0 : i32
    return %c0_i32, %c0_i32_0 : i32, i32
  }
  func.func @transform_1(%arg0: i32, %arg1: i32) -> (i32, i32) {
    %c0_i32 = arith.constant 0 : i32
    %c0_i32_0 = arith.constant 0 : i32
    %c0_i32_1 = arith.constant 0 : i32
    return %c0_i32, %c0_i32_0 : i32, i32
  }
  func.func @transform_2(%arg0: i32, %arg1: i32) -> (i32, i32) {
    %c0_i32 = arith.constant 0 : i32
    %c0_i32_0 = arith.constant 0 : i32
    %c0_i32_1 = arith.constant 0 : i32
    return %c0_i32, %c0_i32_0 : i32, i32
  }
  func.func @transform_3(%arg0: i32, %arg1: i32) -> (i32, i32, i32) {
    %c0_i32 = arith.constant 0 : i32
    %c0_i32_0 = arith.constant 0 : i32
    return %arg0, %c0_i32, %arg1 : i32, i32, i32
  }
  func.func @transform_4(%arg0: i32, %arg1: i32) -> (i32, i32, i32) {
    %c0_i32 = arith.constant 0 : i32
    %c0_i32_0 = arith.constant 0 : i32
    return %arg0, %c0_i32, %arg1 : i32, i32, i32
  }
  func.func @transform_5(%arg0: i32, %arg1: i32) -> (i32, i32) {
    %c0_i32 = arith.constant 0 : i32
    %c0_i32_0 = arith.constant 0 : i32
    return %c0_i32, %arg1 : i32, i32
  }
  func.func @transform_6(%arg0: i32, %arg1: i32) -> (i32, i32) {
    %c0_i32 = arith.constant 0 : i32
    %c0_i32_0 = arith.constant 0 : i32
    %c0_i32_1 = arith.constant 0 : i32
    return %c0_i32, %c0_i32_0 : i32, i32
  }
  func.func @transform_7(%arg0: i32, %arg1: i32) -> (i32, i32) {
    %c0_i32 = arith.constant 0 : i32
    %c0_i32_0 = arith.constant 0 : i32
    %c0_i32_1 = arith.constant 0 : i32
    return %c0_i32, %c0_i32_0 : i32, i32
  }
}

</mosaic_0001>

<llo_original>
// kernel: multiple_regression_forward.1
$region0: #{multiple_regression_forward.1}
  #allocation0 [shape = 'u32[]', space=smem, size = 0x4, offset = 0x4, fixed_abs, tag = 'smem constant byte address 0x4 - core index']
  #allocation1 [shape = 'u32[144,128]{1,0:T(1,128)}', space=vmem, size = 0x12000, scoped, tag = 'internal scratch']
  #allocation2 [shape = 'f32[4,8,512]{2,1,0:T(8,128)}', space=vmem, size = 0x10000, scoped, tag = 'scratch operand']
  #allocation3 [shape = 'f32[4,8,512]{2,1,0:T(8,128)}', space=vmem, size = 0x10000, scoped, tag = 'scratch operand']
  #allocation4 [shape = 'f32[8,1]{1,0:T(8,128)}', space=vmem, size = 0x1000, scoped, tag = 'scratch operand']
  #allocation5 [shape = 'f32[1,1]{1,0:T(1,128)S(1)}', space=vmem, size = 0x200, scoped, tag = 'scoped memory for multiple_regression_forward.1']
  %s0 = inlined_call_operand.vmem [shape: f32[8,8], index: 0, kind: input, shape index: {}]
  %s1 = inlined_call_operand.hbm [shape: f32[8,2048], index: 1, kind: input, shape index: {}]
  %s2 = inlined_call_operand.hbm [shape: f32[1,2048], index: 2, kind: input, shape index: {}]
  %s3 = inlined_call_operand.hbm [shape: bf16[4,2048,2048], index: 3, kind: input, shape index: {}]
  %s4 = inlined_call_operand.hbm [shape: f32[4,1,2048], index: 4, kind: input, shape index: {}]
  %s5 = inlined_call_operand.hbm [shape: f32[1,2048], index: 5, kind: input, shape index: {}]
  %s6 = inlined_call_operand.<no memory space> [shape: f32[1,1], index: 6, kind: input, shape index: {}]
  %s7 = inlined_call_operand.vmem [shape: f32[8,1], index: 7, kind: output, shape index: {}]
  %s8 = sld [smem:[#allocation0]]
  $region105: #{multiple_regression_forward.1} parent=0
    _
  %s10 = ssub.s32 1, %s8
  %s11 = scalar_select 0, %s10, %s8
  %v12 = vstv %s6
  %13 = vst [vmem:[#allocation5] sm:$0x1] %v12
  $region1: #{multiple_regression_forward.1} parent=0
    #allocation6 [shape = 'u8[65536]{0}', space=vmem, size = 0x10000, scoped, tag = 'input window, operand 1, single buffered']
    #allocation7 [shape = 's32[2]{0}', space=sflag, size = 0x8, scoped, tag = 'scoped memory for multiple_regression_forward.1']
    #allocation8 [shape = 'u8[8192]{0}', space=vmem, size = 0x2000, scoped, tag = 'input window, operand 2, single buffered']
    #allocation9 [shape = 's32[1]{0}', space=sflag, size = 0x4, scoped, tag = 'scoped memory for multiple_regression_forward.1']
    #allocation10 [shape = 'u8[4194304]{0}', space=vmem, size = 0x400000, scoped, tag = 'input window, operand 3']
    #allocation11 [shape = 'u8[4096]{0}', space=vmem, size = 0x1000, scoped, tag = 'input window, operand 4']
    #allocation12 [shape = 'u8[4096]{0}', space=vmem, size = 0x1000, scoped, tag = 'input window, operand 5']
    %14 = vsyncpa [#allocation7], 0
    %15 = vsyncpa [#allocation9], 0
    loop: start=0, step=1, limit=18
    $region2: #{multiple_regression_forward.1} parent=1 // loop_pre_header
      _
    $region3: #{multiple_regression_forward.1} parent=1 // loop_header
      %s17 = sphi 0, %s21
      %p18 = scmp.ge.s32.totalorder %s17, 18
      %s24 = sphi 0, %s36
      %s25 = sphi 0, %s32
      %s26 = sphi 0, %s24
      %s27 = sphi 0, %s25
      %s28 = sphi 0, %s26
      %s29 = sphi 0, %s27
      %s37 = sphi 0, %s37
      %s39 = sphi 0, %s37
      %s40 = sphi 0, %s39
      %s54 = sphi 0, %s40
      %s58 = sphi 0, %s58
      %s60 = sphi 0, %s58
      %s61 = sphi 0, %s60
      %s75 = sphi 0, %s61
      %s79 = sphi 0, %s79
      %s81 = sphi 0, %s79
      %s82 = sphi 0, %s81
      %s96 = sphi 0, %s82
      %s104 = sphi 0, %s106
      %s107 = sphi 0, %s104
      %s108 = sphi 0, %s107
      %s124 = sphi 0, %s108
      %s132 = sphi 0, %s134
      %s135 = sphi 0, %s132
      %s136 = sphi 0, %s135
      %s152 = sphi 0, %s136
      %s158 = sphi 0, %s160
      %s161 = sphi 0, %s158
      %s162 = sphi 0, %s161
      %s178 = sphi 0, %s162
      %s182 = sphi 0, %s182
      %s184 = sphi 0, %s182
      %s185 = sphi 0, %s184
      %s199 = sphi 0, %s185
      %s203 = sphi 0, %s203
      %s205 = sphi 0, %s203
      %s206 = sphi 0, %s205
      %s220 = sphi 0, %s206
    $region4: #{multiple_regression_forward.1} parent=1 // loop_header_branch
      %20 = sbr.rel (%p18) target = $region8
    $region5: #{multiple_regression_forward.1} parent=1 // loop_body
      %s22 = ssub.s32 %s17, 1
      %s23 = ssub.s32 %s17, 2
      %s30 = sadd.s32 1, %s25
      %p31 = scmp.ge.s32.totalorder %s30, 4
      %s32 = scalar_select %p31, 0, %s30
      %s33 = sadd.s32 1, %s24
      %s34 = scalar_select %p31, %s33, %s24
      %p35 = scmp.ge.s32.totalorder %s34, 4
      %s36 = scalar_select %p35, 0, %s34
      %s38 = sadd.s32 %s37, 1
      %p41 = scmp.eq.s32.totalorder %s17, 15
      %p42 = scmp.ne.s32.totalorder %s37, %s39
      %p43 = scmp.eq.s32.totalorder %s17, 0
      %p44 = por %p42, %p43
      %p45 = scmp.ne.s32.totalorder %s37, %s39
      %p46 = scmp.eq.s32.totalorder %s22, 15
      %p47 = por %p45, %p46
      %p48 = scmp.ne.s32.totalorder %s39, %s40
      %p49 = scmp.eq.s32.totalorder %s22, 0
      %p50 = por %p48, %p49
      %p51 = scmp.ne.s32.totalorder %s39, %s40
      %p52 = scmp.eq.s32.totalorder %s23, 15
      %p53 = por %p51, %p52
      %p55 = scmp.ne.s32.totalorder %s40, %s54
      %p56 = scmp.eq.s32.totalorder %s23, 0
      %p57 = por %p55, %p56
      %s59 = sadd.s32 %s58, 1
      %p62 = scmp.eq.s32.totalorder %s17, 15
      %p63 = scmp.ne.s32.totalorder %s58, %s60
      %p64 = scmp.eq.s32.totalorder %s17, 0
      %p65 = por %p63, %p64
      %p66 = scmp.ne.s32.totalorder %s58, %s60
      %p67 = scmp.eq.s32.totalorder %s22, 15
      %p68 = por %p66, %p67
      %p69 = scmp.ne.s32.totalorder %s60, %s61
      %p70 = scmp.eq.s32.totalorder %s22, 0
      %p71 = por %p69, %p70
      %p72 = scmp.ne.s32.totalorder %s60, %s61
      %p73 = scmp.eq.s32.totalorder %s23, 15
      %p74 = por %p72, %p73
      %p76 = scmp.ne.s32.totalorder %s61, %s75
      %p77 = scmp.eq.s32.totalorder %s23, 0
      %p78 = por %p76, %p77
      %s80 = sadd.s32 %s79, 1
      %p83 = scmp.eq.s32.totalorder %s17, 15
      %p84 = scmp.ne.s32.totalorder %s79, %s81
      %p85 = scmp.eq.s32.totalorder %s17, 0
      %p86 = por %p84, %p85
      %p87 = scmp.ne.s32.totalorder %s79, %s81
      %p88 = scmp.eq.s32.totalorder %s22, 15
      %p89 = por %p87, %p88
      %p90 = scmp.ne.s32.totalorder %s81, %s82
      %p91 = scmp.eq.s32.totalorder %s22, 0
      %p92 = por %p90, %p91
      %p93 = scmp.ne.s32.totalorder %s81, %s82
      %p94 = scmp.eq.s32.totalorder %s23, 15
      %p95 = por %p93, %p94
      %p97 = scmp.ne.s32.totalorder %s82, %s96
      %p98 = scmp.eq.s32.totalorder %s23, 0
      %p99 = por %p97, %p98
      %s100 = ssub.s32 %s24, %s36
      %s101 = ssub.s32 %s25, %s32
      %s102 = sor.u32 %s100, %s101
      %p103 = scmp.eq.s32.totalorder %s102, 0
      %s105 = sadd.s32 %s104, 1
      %s106 = scalar_select %p103, %s104, %s105
      %p109 = pneg %p103
      %p110 = scmp.eq.s32.totalorder %s17, 15
      %p111 = por %p109, %p110
      %p112 = scmp.ne.s32.totalorder %s104, %s107
      %p113 = scmp.eq.s32.totalorder %s17, 0
      %p114 = por %p112, %p113
      %p115 = scmp.ne.s32.totalorder %s104, %s107
      %p116 = scmp.eq.s32.totalorder %s22, 15
      %p117 = por %p115, %p116
      %p118 = scmp.ne.s32.totalorder %s107, %s108
      %p119 = scmp.eq.s32.totalorder %s22, 0
      %p120 = por %p118, %p119
      %p121 = scmp.ne.s32.totalorder %s107, %s108
      %p122 = scmp.eq.s32.totalorder %s23, 15
      %p123 = por %p121, %p122
      %p125 = scmp.ne.s32.totalorder %s108, %s124
      %p126 = scmp.eq.s32.totalorder %s23, 0
      %p127 = por %p125, %p126
      %s128 = ssub.s32 %s24, %s36
      %s129 = ssub.s32 %s25, %s32
      %s130 = sor.u32 %s128, %s129
      %p131 = scmp.eq.s32.totalorder %s130, 0
      %s133 = sadd.s32 %s132, 1
      %s134 = scalar_select %p131, %s132, %s133
      %p137 = pneg %p131
      %p138 = scmp.eq.s32.totalorder %s17, 15
      %p139 = por %p137, %p138
      %p140 = scmp.ne.s32.totalorder %s132, %s135
      %p141 = scmp.eq.s32.totalorder %s17, 0
      %p142 = por %p140, %p141
      %p143 = scmp.ne.s32.totalorder %s132, %s135
      %p144 = scmp.eq.s32.totalorder %s22, 15
      %p145 = por %p143, %p144
      %p146 = scmp.ne.s32.totalorder %s135, %s136
      %p147 = scmp.eq.s32.totalorder %s22, 0
      %p148 = por %p146, %p147
      %p149 = scmp.ne.s32.totalorder %s135, %s136
      %p150 = scmp.eq.s32.totalorder %s23, 15
      %p151 = por %p149, %p150
      %p153 = scmp.ne.s32.totalorder %s136, %s152
      %p154 = scmp.eq.s32.totalorder %s23, 0
      %p155 = por %p153, %p154
      %s156 = ssub.s32 %s25, %s32
      %p157 = scmp.eq.s32.totalorder %s156, 0
      %s159 = sadd.s32 %s158, 1
      %s160 = scalar_select %p157, %s158, %s159
      %p163 = pneg %p157
      %p164 = scmp.eq.s32.totalorder %s17, 15
      %p165 = por %p163, %p164
      %p166 = scmp.ne.s32.totalorder %s158, %s161
      %p167 = scmp.eq.s32.totalorder %s17, 0
      %p168 = por %p166, %p167
      %p169 = scmp.ne.s32.totalorder %s158, %s161
      %p170 = scmp.eq.s32.totalorder %s22, 15
      %p171 = por %p169, %p170
      %p172 = scmp.ne.s32.totalorder %s161, %s162
      %p173 = scmp.eq.s32.totalorder %s22, 0
      %p174 = por %p172, %p173
      %p175 = scmp.ne.s32.totalorder %s161, %s162
      %p176 = scmp.eq.s32.totalorder %s23, 15
      %p177 = por %p175, %p176
      %p179 = scmp.ne.s32.totalorder %s162, %s178
      %p180 = scmp.eq.s32.totalorder %s23, 0
      %p181 = por %p179, %p180
      %s183 = sadd.s32 %s182, 1
      %p186 = scmp.eq.s32.totalorder %s17, 15
      %p187 = scmp.ne.s32.totalorder %s182, %s184
      %p188 = scmp.eq.s32.totalorder %s17, 0
      %p189 = por %p187, %p188
      %p190 = scmp.ne.s32.totalorder %s182, %s184
      %p191 = scmp.eq.s32.totalorder %s22, 15
      %p192 = por %p190, %p191
      %p193 = scmp.ne.s32.totalorder %s184, %s185
      %p194 = scmp.eq.s32.totalorder %s22, 0
      %p195 = por %p193, %p194
      %p196 = scmp.ne.s32.totalorder %s184, %s185
      %p197 = scmp.eq.s32.totalorder %s23, 15
      %p198 = por %p196, %p197
      %p200 = scmp.ne.s32.totalorder %s185, %s199
      %p201 = scmp.eq.s32.totalorder %s23, 0
      %p202 = por %p200, %p201
      %s204 = sadd.s32 %s203, 1
      %p207 = scmp.eq.s32.totalorder %s17, 15
      %p208 = scmp.ne.s32.totalorder %s203, %s205
      %p209 = scmp.eq.s32.totalorder %s17, 0
      %p210 = por %p208, %p209
      %p211 = scmp.ne.s32.totalorder %s203, %s205
      %p212 = scmp.eq.s32.totalorder %s22, 15
      %p213 = por %p211, %p212
      %p214 = scmp.ne.s32.totalorder %s205, %s206
      %p215 = scmp.eq.s32.totalorder %s22, 0
      %p216 = por %p214, %p215
      %p217 = scmp.ne.s32.totalorder %s205, %s206
      %p218 = scmp.eq.s32.totalorder %s23, 15
      %p219 = por %p217, %p218
      %p221 = scmp.ne.s32.totalorder %s206, %s220
      %p222 = scmp.eq.s32.totalorder %s23, 0
      %p223 = por %p221, %p222
      %p224 = scmp.le.s32.totalorder 1, %s17
      %p225 = scmp.lt.s32.totalorder %s17, 17
      %p226 = pnand %p224, %p225
      %p227 = pneg %p226
      // Predicated region
      $region9: #{multiple_regression_forward.1} parent=5 // pred_check
        _
      $region10: #{multiple_regression_forward.1} parent=5 // pred_check_branch
        %229 = sbr.rel (%p226) target = $region12
      $region11: #{multiple_regression_forward.1} parent=5 // pred_region
        %s230 = ssub.s32 %s17, 1
        // Predicated region
        $region13: #{multiple_regression_forward.1} parent=11 // pred_check
          %p231 = pneg %p50
        $region14: #{multiple_regression_forward.1} parent=11 // pred_check_branch
          %233 = sbr.rel (%p231) target = $region16
        $region15: #{multiple_regression_forward.1} parent=11 // pred_region
          _
        $region16: #{multiple_regression_forward.1} parent=11 // pred_fallthru
          _
        // Predicated region
        $region17: #{multiple_regression_forward.1} parent=11 // pred_check
          %p234 = pneg %p71
        $region18: #{multiple_regression_forward.1} parent=11 // pred_check_branch
          %236 = sbr.rel (%p234) target = $region20
        $region19: #{multiple_regression_forward.1} parent=11 // pred_region
          %s238 = ssub.s32 2048, 2048
          %239 = vsyncadd [#allocation7], %s238
          %s241 = sshll.u32 [#allocation6], 4
          %s242 = int_to_ptr.vmem [resolvable:$true] %s241
          %244 = dma.hbm_to_vmem [thread:$0]  %s1, 2048, %s242, [#allocation7]
        $region20: #{multiple_regression_forward.1} parent=11 // pred_fallthru
          _
        // Predicated region
        $region21: #{multiple_regression_forward.1} parent=11 // pred_check
          %p245 = pneg %p92
        $region22: #{multiple_regression_forward.1} parent=11 // pred_check_branch
          %247 = sbr.rel (%p245) target = $region24
        $region23: #{multiple_regression_forward.1} parent=11 // pred_region
          %s249 = ssub.s32 256, 256
          %250 = vsyncadd [#allocation9], %s249
          %s252 = sshll.u32 [#allocation8], 4
          %s253 = int_to_ptr.vmem [resolvable:$true] %s252
          %255 = dma.hbm_to_vmem [thread:$0]  %s2, 256, %s253, [#allocation9]
        $region24: #{multiple_regression_forward.1} parent=11 // pred_fallthru
          _
        // Predicated region
        $region25: #{multiple_regression_forward.1} parent=11 // pred_check
          %p256 = pneg %p195
        $region26: #{multiple_regression_forward.1} parent=11 // pred_check_branch
          %258 = sbr.rel (%p256) target = $region28
        $region27: #{multiple_regression_forward.1} parent=11 // pred_region
          _
        $region28: #{multiple_regression_forward.1} parent=11 // pred_fallthru
          _
      $region12: #{multiple_regression_forward.1} parent=5 // pred_fallthru
        _
      %p259 = scmp.lt.s32.totalorder %s17, 16
      // Predicated region
      $region29: #{multiple_regression_forward.1} parent=5 // pred_check
        %p260 = pneg %p259
      $region30: #{multiple_regression_forward.1} parent=5 // pred_check_branch
        %262 = sbr.rel (%p260) target = $region32
      $region31: #{multiple_regression_forward.1} parent=5 // pred_region
        // Predicated region
        $region33: #{multiple_regression_forward.1} parent=31 // pred_check
          %p263 = pneg %p114
        $region34: #{multiple_regression_forward.1} parent=31 // pred_check_branch
          %265 = sbr.rel (%p263) target = $region36
        $region35: #{multiple_regression_forward.1} parent=31 // pred_region
          %s266 = sand.u32 %s17, 1
          %s267 = scalar_lea.sflag [#allocation7], %s266
          %s268 = sand.u32 %s104, 1
          %s269 = smul.addr %s268, 4096
          %s270 = scalar_lea.vmem [#allocation10], %s269
          %s271 = smul.u32 4, %s25
          %s273 = ssub.s32 65536, 65536
          %274 = vsyncadd %s267, %s273
          %s275 = smul.addr %s24, 4096
          %s276 = sadd.s32 %s271, %s275
          %s277 = smul.addr %s276, 64
          %s278 = scalar_lea.hbm %s3, %s277
          %s279 = sshll.u32 %s270, 4
          %s280 = int_to_ptr.vmem [resolvable:$true] %s279
          %285 = dma.hbm_to_vmem [thread:$0]  %s278, 65536, %s280, %s267, 1024, 256, 16
        $region36: #{multiple_regression_forward.1} parent=31 // pred_fallthru
          _
        // Predicated region
        $region37: #{multiple_regression_forward.1} parent=31 // pred_check
          %p286 = pneg %p142
        $region38: #{multiple_regression_forward.1} parent=31 // pred_check_branch
          %288 = sbr.rel (%p286) target = $region40
        $region39: #{multiple_regression_forward.1} parent=31 // pred_region
          %s289 = sand.u32 %s17, 1
          %s290 = scalar_lea.sflag [#allocation7], %s289
          %s291 = sand.u32 %s132, 1
          %s292 = smul.addr %s291, 4
          %s293 = scalar_lea.vmem [#allocation11], %s292
          %s294 = smul.u32 4, %s25
          %s296 = ssub.s32 64, 64
          %297 = vsyncadd %s290, %s296
          %s298 = smul.addr %s24, 16
          %s299 = sadd.s32 %s294, %s298
          %s300 = smul.addr %s299, 16
          %s301 = scalar_lea.hbm %s4, %s300
          %s303 = sshll.u32 %s293, 4
          %s304 = int_to_ptr.vmem [resolvable:$true] %s303
          %306 = dma.hbm_to_vmem [thread:$0]  %s301, 64, %s304, %s290
        $region40: #{multiple_regression_forward.1} parent=31 // pred_fallthru
          _
        // Predicated region
        $region41: #{multiple_regression_forward.1} parent=31 // pred_check
          %p307 = pneg %p168
        $region42: #{multiple_regression_forward.1} parent=31 // pred_check_branch
          %309 = sbr.rel (%p307) target = $region44
        $region43: #{multiple_regression_forward.1} parent=31 // pred_region
          %s310 = sand.u32 %s17, 1
          %s311 = scalar_lea.sflag [#allocation7], %s310
          %s312 = sand.u32 %s158, 1
          %s313 = smul.addr %s312, 4
          %s314 = scalar_lea.vmem [#allocation12], %s313
          %s315 = smul.u32 4, %s25
          %s317 = ssub.s32 64, 64
          %318 = vsyncadd %s311, %s317
          %s319 = smul.addr %s315, 16
          %s320 = scalar_lea.hbm %s5, %s319
          %s322 = sshll.u32 %s314, 4
          %s323 = int_to_ptr.vmem [resolvable:$true] %s322
          %325 = dma.hbm_to_vmem [thread:$0]  %s320, 64, %s323, %s311
        $region44: #{multiple_regression_forward.1} parent=31 // pred_fallthru
          _
      $region32: #{multiple_regression_forward.1} parent=5 // pred_fallthru
        _
      %p326 = scmp.le.s32.totalorder 1, %s17
      %p327 = scmp.lt.s32.totalorder %s17, 17
      %p328 = pnand %p326, %p327
      %p329 = pneg %p328
      // Predicated region
      $region45: #{multiple_regression_forward.1} parent=5 // pred_check
        _
      $region46: #{multiple_regression_forward.1} parent=5 // pred_check_branch
        %331 = sbr.rel (%p328) target = $region48
      $region47: #{multiple_regression_forward.1} parent=5 // pred_region
        %s332 = ssub.s32 %s17, 1
        // Predicated region
        $region49: #{multiple_regression_forward.1} parent=47 // pred_check
          %p333 = pneg %p71
        $region50: #{multiple_regression_forward.1} parent=47 // pred_check_branch
          %335 = sbr.rel (%p333) target = $region52
        $region51: #{multiple_regression_forward.1} parent=47 // pred_region
          %336 = dma.done [#allocation7], 2048
        $region52: #{multiple_regression_forward.1} parent=47 // pred_fallthru
          _
        // Predicated region
        $region53: #{multiple_regression_forward.1} parent=47 // pred_check
          %p337 = pneg %p92
        $region54: #{multiple_regression_forward.1} parent=47 // pred_check_branch
          %339 = sbr.rel (%p337) target = $region56
        $region55: #{multiple_regression_forward.1} parent=47 // pred_region
          %340 = dma.done [#allocation9], 256
        $region56: #{multiple_regression_forward.1} parent=47 // pred_fallthru
          _
        %s341 = sand.u32 %s22, 1
        %s342 = scalar_lea.sflag [#allocation7], %s341
        %s343 = sand.u32 %s107, 1
        %s344 = smul.addr %s343, 4096
        %s345 = scalar_lea.vmem [#allocation10], %s344
        // Predicated region
        $region57: #{multiple_regression_forward.1} parent=47 // pred_check
          %p346 = pneg %p120
        $region58: #{multiple_regression_forward.1} parent=47 // pred_check_branch
          %348 = sbr.rel (%p346) target = $region60
        $region59: #{multiple_regression_forward.1} parent=47 // pred_region
          %349 = dma.done %s342, 65536
        $region60: #{multiple_regression_forward.1} parent=47 // pred_fallthru
          _
        %s350 = sand.u32 %s22, 1
        %s351 = scalar_lea.sflag [#allocation7], %s350
        %s352 = sand.u32 %s135, 1
        %s353 = smul.addr %s352, 4
        %s354 = scalar_lea.vmem [#allocation11], %s353
        // Predicated region
        $region61: #{multiple_regression_forward.1} parent=47 // pred_check
          %p355 = pneg %p148
        $region62: #{multiple_regression_forward.1} parent=47 // pred_check_branch
          %357 = sbr.rel (%p355) target = $region64
        $region63: #{multiple_regression_forward.1} parent=47 // pred_region
          %358 = dma.done %s351, 64
        $region64: #{multiple_regression_forward.1} parent=47 // pred_fallthru
          _
        %s359 = sand.u32 %s22, 1
        %s360 = scalar_lea.sflag [#allocation7], %s359
        %s361 = sand.u32 %s161, 1
        %s362 = smul.addr %s361, 4
        %s363 = scalar_lea.vmem [#allocation12], %s362
        // Predicated region
        $region65: #{multiple_regression_forward.1} parent=47 // pred_check
          %p364 = pneg %p174
        $region66: #{multiple_regression_forward.1} parent=47 // pred_check_branch
          %366 = sbr.rel (%p364) target = $region68
        $region67: #{multiple_regression_forward.1} parent=47 // pred_region
          %367 = dma.done %s360, 64
        $region68: #{multiple_regression_forward.1} parent=47 // pred_fallthru
          _
        %p368 = pneg %p50
        %p369 = pneg %p47
        %p370 = pneg %p71
        %p371 = pneg %p68
        %p372 = pneg %p92
        %p373 = pneg %p89
        %s374 = sand.u32 %s22, 1
        %s375 = scalar_lea.sflag [#allocation7], %s374
        %s376 = sand.u32 %s107, 1
        %s377 = smul.addr %s376, 4096
        %s378 = scalar_lea.vmem [#allocation10], %s377
        %p379 = pneg %p120
        %p380 = pneg %p117
        %s381 = sand.u32 %s22, 1
        %s382 = scalar_lea.sflag [#allocation7], %s381
        %s383 = sand.u32 %s135, 1
        %s384 = smul.addr %s383, 4
        %s385 = scalar_lea.vmem [#allocation11], %s384
        %p386 = pneg %p148
        %p387 = pneg %p145
        %s388 = sand.u32 %s22, 1
        %s389 = scalar_lea.sflag [#allocation7], %s388
        %s390 = sand.u32 %s161, 1
        %s391 = smul.addr %s390, 4
        %s392 = scalar_lea.vmem [#allocation12], %s391
        %p393 = pneg %p174
        %p394 = pneg %p171
        %p395 = pneg %p195
        %p396 = pneg %p192
        %p397 = pneg %p216
        %p398 = pneg %p213
        %s399 = smul.u32 4, %s27
        %s400 = smul.u32 4, %s27
        %s401 = smul.u32 4, %s27
        %p402 = scmp.eq.s32.totalorder %s26, 0
        %p403 = scmp.eq.s32.totalorder %s27, 0
        %p404 = pnand %p402, %p403
        %p405 = pneg %p404
        // Predicated region
        $region69: #{multiple_regression_forward.1} parent=47 // pred_check
          _
        $region70: #{multiple_regression_forward.1} parent=47 // pred_check_branch
          %407 = sbr.rel (%p404) target = $region72
        $region71: #{multiple_regression_forward.1} parent=47 // pred_region
          %v408 = vld [vmem:[%s0] sm:$0xff]
          %v409 = vld [vmem:[#allocation6] sm:$0xff]
          %v410 = vld [vmem:[#allocation6 + $0x8] sm:$0xff]
          %v411 = vld [vmem:[#allocation6 + $0x10] sm:$0xff]
          %v412 = vld [vmem:[#allocation6 + $0x18] sm:$0xff]
          %v413 = vld [vmem:[#allocation8] sm:$0xf]
          %v415 = vlaneseq
          %v416 = vshrl.u32 %v415, 7
          %v417 = vsub.s32 0, %v416
          %v418 = vrot.slane %v413, %v417
          %v419 = vlaneseq
          %v420 = vshrl.u32 %v419, 7
          %v421 = vsub.s32 1, %v420
          %v422 = vrot.slane %v413, %v421
          %v423 = vlaneseq
          %v424 = vshrl.u32 %v423, 7
          %v425 = vsub.s32 2, %v424
          %v426 = vrot.slane %v413, %v425
          %v427 = vlaneseq
          %v428 = vshrl.u32 %v427, 7
          %v429 = vsub.s32 3, %v428
          %v430 = vrot.slane %v413, %v429
          %vm435 = vcmask 64512
          %v437 = vsel %vm435, %v408, 0
          %439 = vmatprep.subr.mxu0 %v410
          %440 = vmatpush1.msra.mxu0 %v409
          %441 = vmatprep.subr.mxu0 0.0
          %442 = vmatpush1.msra.mxu0 0.0
          %443 = vmatprep.subr.mxu0 0.0
          %444 = vmatpush1.msra.mxu0 0.0
          %445 = vmatprep.subr.mxu0 0.0
          %446 = vmatpush1.msra.mxu0 0.0
          %447 = vmatprep.subr.mxu0 0.0
          %448 = vmatpush1.msra.mxu0 0.0
          %449 = vmatprep.subr.mxu0 0.0
          %450 = vmatpush1.msra.mxu0 0.0
          %451 = vmatprep.subr.mxu0 0.0
          %452 = vmatpush1.msra.mxu0 0.0
          %453 = vmatprep.subr.mxu0 0.0
          %454 = vmatpush1.msra.mxu0 0.0
          %455 = vmatprep.subr.mxu0 0.0
          %456 = vmatpush1.msra.mxu0 0.0
          %457 = vmatprep.subr.mxu0 0.0
          %458 = vmatpush1.msra.mxu0 0.0
          %459 = vmatprep.subr.mxu0 0.0
          %460 = vmatpush1.msra.mxu0 0.0
          %461 = vmatprep.subr.mxu0 0.0
          %462 = vmatpush1.msra.mxu0 0.0
          %463 = vmatprep.subr.mxu0 0.0
          %464 = vmatpush1.msra.mxu0 0.0
          %465 = vmatprep.subr.mxu0 0.0
          %466 = vmatpush1.msra.mxu0 0.0
          %467 = vmatprep.subr.mxu0 0.0
          %468 = vmatpush1.msra.mxu0 0.0
          %469 = vmatprep.subr.mxu0 0.0
          %470 = vmatpush1.msra.mxu0 0.0
          %471 = vmatprep.subr.mxu0 0.0
          %472 = vmatpush1.msra.mxu0 0.0
          %473 = vmatprep.subr.mxu0 0.0
          %474 = vmatpush1.msra.mxu0 0.0
          %475 = vmatprep.subr.mxu0 0.0
          %476 = vmatpush1.msra.mxu0 0.0
          %477 = vmatprep.subr.mxu0 0.0
          %478 = vmatpush1.msra.mxu0 0.0
          %479 = vmatprep.subr.mxu0 0.0
          %480 = vmatpush1.msra.mxu0 0.0
          %481 = vmatprep.subr.mxu0 0.0
          %482 = vmatpush1.msra.mxu0 0.0
          %483 = vmatprep.subr.mxu0 0.0
          %484 = vmatpush1.msra.mxu0 0.0
          %485 = vmatprep.subr.mxu0 0.0
          %486 = vmatpush1.msra.mxu0 0.0
          %487 = vmatprep.subr.mxu0 0.0
          %488 = vmatpush1.msra.mxu0 0.0
          %489 = vmatprep.subr.mxu0 0.0
          %490 = vmatpush1.msra.mxu0 0.0
          %491 = vmatprep.subr.mxu0 0.0
          %492 = vmatpush1.msra.mxu0 0.0
          %493 = vmatprep.subr.mxu0 0.0
          %494 = vmatpush1.msra.mxu0 0.0
          %495 = vmatprep.subr.mxu0 0.0
          %496 = vmatpush1.msra.mxu0 0.0
          %497 = vmatprep.subr.mxu0 0.0
          %498 = vmatpush1.msra.mxu0 0.0
          %499 = vmatprep.subr.mxu0 0.0
          %500 = vmatpush1.msra.mxu0 0.0
          %501 = vmatprep.subr.mxu0 0.0
          %502 = vmatpush1.msra.mxu0 0.0
          %503 = vmatprep.mubr.f32.mxu0 0.0
          %504 = vmatmul.mubr.f32.gmra.mrb[0].mxu0 %v437
          %v505 = vpop.f32.mrb[0].mxu0
          %v506 = vadd.f32 %v418, %v505
          %v507 = vpop.f32.mrb[0].mxu0
          %v508 = vadd.f32 %v422, %v507
          %509 = vdwg.mxu0
          %510 = vmatprep.subr.mxu0 %v412
          %511 = vmatpush1.msra.mxu0 %v411
          %512 = vmatprep.subr.mxu0 0.0
          %513 = vmatpush1.msra.mxu0 0.0
          %514 = vmatprep.subr.mxu0 0.0
          %515 = vmatpush1.msra.mxu0 0.0
          %516 = vmatprep.subr.mxu0 0.0
          %517 = vmatpush1.msra.mxu0 0.0
          %518 = vmatprep.subr.mxu0 0.0
          %519 = vmatpush1.msra.mxu0 0.0
          %520 = vmatprep.subr.mxu0 0.0
          %521 = vmatpush1.msra.mxu0 0.0
          %522 = vmatprep.subr.mxu0 0.0
          %523 = vmatpush1.msra.mxu0 0.0
          %524 = vmatprep.subr.mxu0 0.0
          %525 = vmatpush1.msra.mxu0 0.0
          %526 = vmatprep.subr.mxu0 0.0
          %527 = vmatpush1.msra.mxu0 0.0
          %528 = vmatprep.subr.mxu0 0.0
          %529 = vmatpush1.msra.mxu0 0.0
          %530 = vmatprep.subr.mxu0 0.0
          %531 = vmatpush1.msra.mxu0 0.0
          %532 = vmatprep.subr.mxu0 0.0
          %533 = vmatpush1.msra.mxu0 0.0
          %534 = vmatprep.subr.mxu0 0.0
          %535 = vmatpush1.msra.mxu0 0.0
          %536 = vmatprep.subr.mxu0 0.0
          %537 = vmatpush1.msra.mxu0 0.0
          %538 = vmatprep.subr.mxu0 0.0
          %539 = vmatpush1.msra.mxu0 0.0
          %540 = vmatprep.subr.mxu0 0.0
          %541 = vmatpush1.msra.mxu0 0.0
          %542 = vmatprep.subr.mxu0 0.0
          %543 = vmatpush1.msra.mxu0 0.0
          %544 = vmatprep.subr.mxu0 0.0
          %545 = vmatpush1.msra.mxu0 0.0
          %546 = vmatprep.subr.mxu0 0.0
          %547 = vmatpush1.msra.mxu0 0.0
          %548 = vmatprep.subr.mxu0 0.0
          %549 = vmatpush1.msra.mxu0 0.0
          %550 = vmatprep.subr.mxu0 0.0
          %551 = vmatpush1.msra.mxu0 0.0
          %552 = vmatprep.subr.mxu0 0.0
          %553 = vmatpush1.msra.mxu0 0.0
          %554 = vmatprep.subr.mxu0 0.0
          %555 = vmatpush1.msra.mxu0 0.0
          %556 = vmatprep.subr.mxu0 0.0
          %557 = vmatpush1.msra.mxu0 0.0
          %558 = vmatprep.subr.mxu0 0.0
          %559 = vmatpush1.msra.mxu0 0.0
          %560 = vmatprep.subr.mxu0 0.0
          %561 = vmatpush1.msra.mxu0 0.0
          %562 = vmatprep.subr.mxu0 0.0
          %563 = vmatpush1.msra.mxu0 0.0
          %564 = vmatprep.subr.mxu0 0.0
          %565 = vmatpush1.msra.mxu0 0.0
          %566 = vmatprep.subr.mxu0 0.0
          %567 = vmatpush1.msra.mxu0 0.0
          %568 = vmatprep.subr.mxu0 0.0
          %569 = vmatpush1.msra.mxu0 0.0
          %570 = vmatprep.subr.mxu0 0.0
          %571 = vmatpush1.msra.mxu0 0.0
          %572 = vmatprep.subr.mxu0 0.0
          %573 = vmatpush1.msra.mxu0 0.0
          %574 = vmatprep.mubr.f32.mxu0 0.0
          %575 = vmatmul.mubr.f32.gmra.mrb[0].mxu0 %v437
          %v576 = vpop.f32.mrb[0].mxu0
          %v577 = vadd.f32 %v426, %v576
          %v578 = vpop.f32.mrb[0].mxu0
          %v579 = vadd.f32 %v430, %v578
          %580 = vdwg.mxu0
          %v581 = vmax.f32 %v506, 0.0
          %v582 = vmax.f32 %v508, 0.0
          %v583 = vmax.f32 %v577, 0.0
          %v584 = vmax.f32 %v579, 0.0
          %585 = vst [vmem:[#allocation2] sm:$0xff] %v581
          %586 = vst [vmem:[#allocation2 + $0x8] sm:$0xff] %v582
          %587 = vst [vmem:[#allocation2 + $0x10] sm:$0xff] %v583
          %588 = vst [vmem:[#allocation2 + $0x18] sm:$0xff] %v584
          %v589 = vld [vmem:[#allocation6 + $0x20] sm:$0xff]
          %v590 = vld [vmem:[#allocation6 + $0x28] sm:$0xff]
          %v591 = vld [vmem:[#allocation6 + $0x30] sm:$0xff]
          %v592 = vld [vmem:[#allocation6 + $0x38] sm:$0xff]
          %v593 = vld [vmem:[#allocation8 + $0x4] sm:$0xf]
          %v595 = vlaneseq
          %v596 = vshrl.u32 %v595, 7
          %v597 = vsub.s32 0, %v596
          %v598 = vrot.slane %v593, %v597
          %v599 = vlaneseq
          %v600 = vshrl.u32 %v599, 7
          %v601 = vsub.s32 1, %v600
          %v602 = vrot.slane %v593, %v601
          %v603 = vlaneseq
          %v604 = vshrl.u32 %v603, 7
          %v605 = vsub.s32 2, %v604
          %v606 = vrot.slane %v593, %v605
          %v607 = vlaneseq
          %v608 = vshrl.u32 %v607, 7
          %v609 = vsub.s32 3, %v608
          %v610 = vrot.slane %v593, %v609
          %615 = vmatprep.subr.mxu0 %v590
          %616 = vmatpush1.msra.mxu0 %v589
          %617 = vmatprep.subr.mxu0 0.0
          %618 = vmatpush1.msra.mxu0 0.0
          %619 = vmatprep.subr.mxu0 0.0
          %620 = vmatpush1.msra.mxu0 0.0
          %621 = vmatprep.subr.mxu0 0.0
          %622 = vmatpush1.msra.mxu0 0.0
          %623 = vmatprep.subr.mxu0 0.0
          %624 = vmatpush1.msra.mxu0 0.0
          %625 = vmatprep.subr.mxu0 0.0
          %626 = vmatpush1.msra.mxu0 0.0
          %627 = vmatprep.subr.mxu0 0.0
          %628 = vmatpush1.msra.mxu0 0.0
          %629 = vmatprep.subr.mxu0 0.0
          %630 = vmatpush1.msra.mxu0 0.0
          %631 = vmatprep.subr.mxu0 0.0
          %632 = vmatpush1.msra.mxu0 0.0
          %633 = vmatprep.subr.mxu0 0.0
          %634 = vmatpush1.msra.mxu0 0.0
          %635 = vmatprep.subr.mxu0 0.0
          %636 = vmatpush1.msra.mxu0 0.0
          %637 = vmatprep.subr.mxu0 0.0
          %638 = vmatpush1.msra.mxu0 0.0
          %639 = vmatprep.subr.mxu0 0.0
          %640 = vmatpush1.msra.mxu0 0.0
          %641 = vmatprep.subr.mxu0 0.0
          %642 = vmatpush1.msra.mxu0 0.0
          %643 = vmatprep.subr.mxu0 0.0
          %644 = vmatpush1.msra.mxu0 0.0
          %645 = vmatprep.subr.mxu0 0.0
          %646 = vmatpush1.msra.mxu0 0.0
          %647 = vmatprep.subr.mxu0 0.0
          %648 = vmatpush1.msra.mxu0 0.0
          %649 = vmatprep.subr.mxu0 0.0
          %650 = vmatpush1.msra.mxu0 0.0
          %651 = vmatprep.subr.mxu0 0.0
          %652 = vmatpush1.msra.mxu0 0.0
          %653 = vmatprep.subr.mxu0 0.0
          %654 = vmatpush1.msra.mxu0 0.0
          %655 = vmatprep.subr.mxu0 0.0
          %656 = vmatpush1.msra.mxu0 0.0
          %657 = vmatprep.subr.mxu0 0.0
          %658 = vmatpush1.msra.mxu0 0.0
          %659 = vmatprep.subr.mxu0 0.0
          %660 = vmatpush1.msra.mxu0 0.0
          %661 = vmatprep.subr.mxu0 0.0
          %662 = vmatpush1.msra.mxu0 0.0
          %663 = vmatprep.subr.mxu0 0.0
          %664 = vmatpush1.msra.mxu0 0.0
          %665 = vmatprep.subr.mxu0 0.0
          %666 = vmatpush1.msra.mxu0 0.0
          %667 = vmatprep.subr.mxu0 0.0
          %668 = vmatpush1.msra.mxu0 0.0
          %669 = vmatprep.subr.mxu0 0.0
          %670 = vmatpush1.msra.mxu0 0.0
          %671 = vmatprep.subr.mxu0 0.0
          %672 = vmatpush1.msra.mxu0 0.0
          %673 = vmatprep.subr.mxu0 0.0
          %674 = vmatpush1.msra.mxu0 0.0
          %675 = vmatprep.subr.mxu0 0.0
          %676 = vmatpush1.msra.mxu0 0.0
          %677 = vmatprep.subr.mxu0 0.0
          %678 = vmatpush1.msra.mxu0 0.0
          %679 = vmatprep.mubr.f32.mxu0 0.0
          %680 = vmatmul.mubr.f32.gmra.mrb[0].mxu0 %v437
          %v681 = vpop.f32.mrb[0].mxu0
          %v682 = vadd.f32 %v598, %v681
          %v683 = vpop.f32.mrb[0].mxu0
          %v684 = vadd.f32 %v602, %v683
          %685 = vdwg.mxu0
          %686 = vmatprep.subr.mxu0 %v592
          %687 = vmatpush1.msra.mxu0 %v591
          %688 = vmatprep.subr.mxu0 0.0
          %689 = vmatpush1.msra.mxu0 0.0
          %690 = vmatprep.subr.mxu0 0.0
          %691 = vmatpush1.msra.mxu0 0.0
          %692 = vmatprep.subr.mxu0 0.0
          %693 = vmatpush1.msra.mxu0 0.0
          %694 = vmatprep.subr.mxu0 0.0
          %695 = vmatpush1.msra.mxu0 0.0
          %696 = vmatprep.subr.mxu0 0.0
          %697 = vmatpush1.msra.mxu0 0.0
          %698 = vmatprep.subr.mxu0 0.0
          %699 = vmatpush1.msra.mxu0 0.0
          %700 = vmatprep.subr.mxu0 0.0
          %701 = vmatpush1.msra.mxu0 0.0
          %702 = vmatprep.subr.mxu0 0.0
          %703 = vmatpush1.msra.mxu0 0.0
          %704 = vmatprep.subr.mxu0 0.0
          %705 = vmatpush1.msra.mxu0 0.0
          %706 = vmatprep.subr.mxu0 0.0
          %707 = vmatpush1.msra.mxu0 0.0
          %708 = vmatprep.subr.mxu0 0.0
          %709 = vmatpush1.msra.mxu0 0.0
          %710 = vmatprep.subr.mxu0 0.0
          %711 = vmatpush1.msra.mxu0 0.0
          %712 = vmatprep.subr.mxu0 0.0
          %713 = vmatpush1.msra.mxu0 0.0
          %714 = vmatprep.subr.mxu0 0.0
          %715 = vmatpush1.msra.mxu0 0.0
          %716 = vmatprep.subr.mxu0 0.0
          %717 = vmatpush1.msra.mxu0 0.0
          %718 = vmatprep.subr.mxu0 0.0
          %719 = vmatpush1.msra.mxu0 0.0
          %720 = vmatprep.subr.mxu0 0.0
          %721 = vmatpush1.msra.mxu0 0.0
          %722 = vmatprep.subr.mxu0 0.0
          %723 = vmatpush1.msra.mxu0 0.0
          %724 = vmatprep.subr.mxu0 0.0
          %725 = vmatpush1.msra.mxu0 0.0
          %726 = vmatprep.subr.mxu0 0.0
          %727 = vmatpush1.msra.mxu0 0.0
          %728 = vmatprep.subr.mxu0 0.0
          %729 = vmatpush1.msra.mxu0 0.0
          %730 = vmatprep.subr.mxu0 0.0
          %731 = vmatpush1.msra.mxu0 0.0
          %732 = vmatprep.subr.mxu0 0.0
          %733 = vmatpush1.msra.mxu0 0.0
          %734 = vmatprep.subr.mxu0 0.0
          %735 = vmatpush1.msra.mxu0 0.0
          %736 = vmatprep.subr.mxu0 0.0
          %737 = vmatpush1.msra.mxu0 0.0
          %738 = vmatprep.subr.mxu0 0.0
          %739 = vmatpush1.msra.mxu0 0.0
          %740 = vmatprep.subr.mxu0 0.0
          %741 = vmatpush1.msra.mxu0 0.0
          %742 = vmatprep.subr.mxu0 0.0
          %743 = vmatpush1.msra.mxu0 0.0
          %744 = vmatprep.subr.mxu0 0.0
          %745 = vmatpush1.msra.mxu0 0.0
          %746 = vmatprep.subr.mxu0 0.0
          %747 = vmatpush1.msra.mxu0 0.0
          %748 = vmatprep.subr.mxu0 0.0
          %749 = vmatpush1.msra.mxu0 0.0
          %750 = vmatprep.mubr.f32.mxu0 0.0
          %751 = vmatmul.mubr.f32.gmra.mrb[0].mxu0 %v437
          %v752 = vpop.f32.mrb[0].mxu0
          %v753 = vadd.f32 %v606, %v752
          %v754 = vpop.f32.mrb[0].mxu0
          %v755 = vadd.f32 %v610, %v754
          %756 = vdwg.mxu0
          %v757 = vmax.f32 %v682, 0.0
          %v758 = vmax.f32 %v684, 0.0
          %v759 = vmax.f32 %v753, 0.0
          %v760 = vmax.f32 %v755, 0.0
          %s761 = scalar_lea.vmem [#allocation2], 32
          %762 = vst [vmem:[%s761] sm:$0xff] %v757
          %763 = vst [vmem:[%s761 + $0x8] sm:$0xff] %v758
          %764 = vst [vmem:[%s761 + $0x10] sm:$0xff] %v759
          %765 = vst [vmem:[%s761 + $0x18] sm:$0xff] %v760
          %v766 = vld [vmem:[#allocation6 + $0x40] sm:$0xff]
          %v767 = vld [vmem:[#allocation6 + $0x48] sm:$0xff]
          %v768 = vld [vmem:[#allocation6 + $0x50] sm:$0xff]
          %v769 = vld [vmem:[#allocation6 + $0x58] sm:$0xff]
          %v770 = vld [vmem:[#allocation8 + $0x8] sm:$0xf]
          %v772 = vlaneseq
          %v773 = vshrl.u32 %v772, 7
          %v774 = vsub.s32 0, %v773
          %v775 = vrot.slane %v770, %v774
          %v776 = vlaneseq
          %v777 = vshrl.u32 %v776, 7
          %v778 = vsub.s32 1, %v777
          %v779 = vrot.slane %v770, %v778
          %v780 = vlaneseq
          %v781 = vshrl.u32 %v780, 7
          %v782 = vsub.s32 2, %v781
          %v783 = vrot.slane %v770, %v782
          %v784 = vlaneseq
          %v785 = vshrl.u32 %v784, 7
          %v786 = vsub.s32 3, %v785
          %v787 = vrot.slane %v770, %v786
          %792 = vmatprep.subr.mxu0 %v767
          %793 = vmatpush1.msra.mxu0 %v766
          %794 = vmatprep.subr.mxu0 0.0
          %795 = vmatpush1.msra.mxu0 0.0
          %796 = vmatprep.subr.mxu0 0.0
          %797 = vmatpush1.msra.mxu0 0.0
          %798 = vmatprep.subr.mxu0 0.0
          %799 = vmatpush1.msra.mxu0 0.0
          %800 = vmatprep.subr.mxu0 0.0
          %801 = vmatpush1.msra.mxu0 0.0
          %802 = vmatprep.subr.mxu0 0.0
          %803 = vmatpush1.msra.mxu0 0.0
          %804 = vmatprep.subr.mxu0 0.0
          %805 = vmatpush1.msra.mxu0 0.0
          %806 = vmatprep.subr.mxu0 0.0
          %807 = vmatpush1.msra.mxu0 0.0
          %808 = vmatprep.subr.mxu0 0.0
          %809 = vmatpush1.msra.mxu0 0.0
          %810 = vmatprep.subr.mxu0 0.0
          %811 = vmatpush1.msra.mxu0 0.0
          %812 = vmatprep.subr.mxu0 0.0
          %813 = vmatpush1.msra.mxu0 0.0
          %814 = vmatprep.subr.mxu0 0.0
          %815 = vmatpush1.msra.mxu0 0.0
          %816 = vmatprep.subr.mxu0 0.0
          %817 = vmatpush1.msra.mxu0 0.0
          %818 = vmatprep.subr.mxu0 0.0
          %819 = vmatpush1.msra.mxu0 0.0
          %820 = vmatprep.subr.mxu0 0.0
          %821 = vmatpush1.msra.mxu0 0.0
          %822 = vmatprep.subr.mxu0 0.0
          %823 = vmatpush1.msra.mxu0 0.0
          %824 = vmatprep.subr.mxu0 0.0
          %825 = vmatpush1.msra.mxu0 0.0
          %826 = vmatprep.subr.mxu0 0.0
          %827 = vmatpush1.msra.mxu0 0.0
          %828 = vmatprep.subr.mxu0 0.0
          %829 = vmatpush1.msra.mxu0 0.0
          %830 = vmatprep.subr.mxu0 0.0
          %831 = vmatpush1.msra.mxu0 0.0
          %832 = vmatprep.subr.mxu0 0.0
          %833 = vmatpush1.msra.mxu0 0.0
          %834 = vmatprep.subr.mxu0 0.0
          %835 = vmatpush1.msra.mxu0 0.0
          %836 = vmatprep.subr.mxu0 0.0
          %837 = vmatpush1.msra.mxu0 0.0
          %838 = vmatprep.subr.mxu0 0.0
          %839 = vmatpush1.msra.mxu0 0.0
          %840 = vmatprep.subr.mxu0 0.0
          %841 = vmatpush1.msra.mxu0 0.0
          %842 = vmatprep.subr.mxu0 0.0
          %843 = vmatpush1.msra.mxu0 0.0
          %844 = vmatprep.subr.mxu0 0.0
          %845 = vmatpush1.msra.mxu0 0.0
          %846 = vmatprep.subr.mxu0 0.0
          %847 = vmatpush1.msra.mxu0 0.0
          %848 = vmatprep.subr.mxu0 0.0
          %849 = vmatpush1.msra.mxu0 0.0
          %850 = vmatprep.subr.mxu0 0.0
          %851 = vmatpush1.msra.mxu0 0.0
          %852 = vmatprep.subr.mxu0 0.0
          %853 = vmatpush1.msra.mxu0 0.0
          %854 = vmatprep.subr.mxu0 0.0
          %855 = vmatpush1.msra.mxu0 0.0
          %856 = vmatprep.mubr.f32.mxu0 0.0
          %857 = vmatmul.mubr.f32.gmra.mrb[0].mxu0 %v437
          %v858 = vpop.f32.mrb[0].mxu0
          %v859 = vadd.f32 %v775, %v858
          %v860 = vpop.f32.mrb[0].mxu0
          %v861 = vadd.f32 %v779, %v860
          %862 = vdwg.mxu0
          %863 = vmatprep.subr.mxu0 %v769
          %864 = vmatpush1.msra.mxu0 %v768
          %865 = vmatprep.subr.mxu0 0.0
          %866 = vmatpush1.msra.mxu0 0.0
          %867 = vmatprep.subr.mxu0 0.0
          %868 = vmatpush1.msra.mxu0 0.0
          %869 = vmatprep.subr.mxu0 0.0
          %870 = vmatpush1.msra.mxu0 0.0
          %871 = vmatprep.subr.mxu0 0.0
          %872 = vmatpush1.msra.mxu0 0.0
          %873 = vmatprep.subr.mxu0 0.0
          %874 = vmatpush1.msra.mxu0 0.0
          %875 = vmatprep.subr.mxu0 0.0
          %876 = vmatpush1.msra.mxu0 0.0
          %877 = vmatprep.subr.mxu0 0.0
          %878 = vmatpush1.msra.mxu0 0.0
          %879 = vmatprep.subr.mxu0 0.0
          %880 = vmatpush1.msra.mxu0 0.0
          %881 = vmatprep.subr.mxu0 0.0
          %882 = vmatpush1.msra.mxu0 0.0
          %883 = vmatprep.subr.mxu0 0.0
          %884 = vmatpush1.msra.mxu0 0.0
          %885 = vmatprep.subr.mxu0 0.0
          %886 = vmatpush1.msra.mxu0 0.0
          %887 = vmatprep.subr.mxu0 0.0
          %888 = vmatpush1.msra.mxu0 0.0
          %889 = vmatprep.subr.mxu0 0.0
          %890 = vmatpush1.msra.mxu0 0.0
          %891 = vmatprep.subr.mxu0 0.0
          %892 = vmatpush1.msra.mxu0 0.0
          %893 = vmatprep.subr.mxu0 0.0
          %894 = vmatpush1.msra.mxu0 0.0
          %895 = vmatprep.subr.mxu0 0.0
          %896 = vmatpush1.msra.mxu0 0.0
          %897 = vmatprep.subr.mxu0 0.0
          %898 = vmatpush1.msra.mxu0 0.0
          %899 = vmatprep.subr.mxu0 0.0
          %900 = vmatpush1.msra.mxu0 0.0
          %901 = vmatprep.subr.mxu0 0.0
          %902 = vmatpush1.msra.mxu0 0.0
          %903 = vmatprep.subr.mxu0 0.0
          %904 = vmatpush1.msra.mxu0 0.0
          %905 = vmatprep.subr.mxu0 0.0
          %906 = vmatpush1.msra.mxu0 0.0
          %907 = vmatprep.subr.mxu0 0.0
          %908 = vmatpush1.msra.mxu0 0.0
          %909 = vmatprep.subr.mxu0 0.0
          %910 = vmatpush1.msra.mxu0 0.0
          %911 = vmatprep.subr.mxu0 0.0
          %912 = vmatpush1.msra.mxu0 0.0
          %913 = vmatprep.subr.mxu0 0.0
          %914 = vmatpush1.msra.mxu0 0.0
          %915 = vmatprep.subr.mxu0 0.0
          %916 = vmatpush1.msra.mxu0 0.0
          %917 = vmatprep.subr.mxu0 0.0
          %918 = vmatpush1.msra.mxu0 0.0
          %919 = vmatprep.subr.mxu0 0.0
          %920 = vmatpush1.msra.mxu0 0.0
          %921 = vmatprep.subr.mxu0 0.0
          %922 = vmatpush1.msra.mxu0 0.0
          %923 = vmatprep.subr.mxu0 0.0
          %924 = vmatpush1.msra.mxu0 0.0
          %925 = vmatprep.subr.mxu0 0.0
          %926 = vmatpush1.msra.mxu0 0.0
          %927 = vmatprep.mubr.f32.mxu0 0.0
          %928 = vmatmul.mubr.f32.gmra.mrb[0].mxu0 %v437
          %v929 = vpop.f32.mrb[0].mxu0
          %v930 = vadd.f32 %v783, %v929
          %v931 = vpop.f32.mrb[0].mxu0
          %v932 = vadd.f32 %v787, %v931
          %933 = vdwg.mxu0
          %v934 = vmax.f32 %v859, 0.0
          %v935 = vmax.f32 %v861, 0.0
          %v936 = vmax.f32 %v930, 0.0
          %v937 = vmax.f32 %v932, 0.0
          %s938 = scalar_lea.vmem [#allocation2], 64
          %939 = vst [vmem:[%s938] sm:$0xff] %v934
          %940 = vst [vmem:[%s938 + $0x8] sm:$0xff] %v935
          %941 = vst [vmem:[%s938 + $0x10] sm:$0xff] %v936
          %942 = vst [vmem:[%s938 + $0x18] sm:$0xff] %v937
          %v943 = vld [vmem:[#allocation6 + $0x60] sm:$0xff]
          %v944 = vld [vmem:[#allocation6 + $0x68] sm:$0xff]
          %v945 = vld [vmem:[#allocation6 + $0x70] sm:$0xff]
          %v946 = vld [vmem:[#allocation6 + $0x78] sm:$0xff]
          %v947 = vld [vmem:[#allocation8 + $0xc] sm:$0xf]
          %v949 = vlaneseq
          %v950 = vshrl.u32 %v949, 7
          %v951 = vsub.s32 0, %v950
          %v952 = vrot.slane %v947, %v951
          %v953 = vlaneseq
          %v954 = vshrl.u32 %v953, 7
          %v955 = vsub.s32 1, %v954
          %v956 = vrot.slane %v947, %v955
          %v957 = vlaneseq
          %v958 = vshrl.u32 %v957, 7
          %v959 = vsub.s32 2, %v958
          %v960 = vrot.slane %v947, %v959
          %v961 = vlaneseq
          %v962 = vshrl.u32 %v961, 7
          %v963 = vsub.s32 3, %v962
          %v964 = vrot.slane %v947, %v963
          %969 = vmatprep.subr.mxu0 %v944
          %970 = vmatpush1.msra.mxu0 %v943
          %971 = vmatprep.subr.mxu0 0.0
          %972 = vmatpush1.msra.mxu0 0.0
          %973 = vmatprep.subr.mxu0 0.0
          %974 = vmatpush1.msra.mxu0 0.0
          %975 = vmatprep.subr.mxu0 0.0
          %976 = vmatpush1.msra.mxu0 0.0
          %977 = vmatprep.subr.mxu0 0.0
          %978 = vmatpush1.msra.mxu0 0.0
          %979 = vmatprep.subr.mxu0 0.0
          %980 = vmatpush1.msra.mxu0 0.0
          %981 = vmatprep.subr.mxu0 0.0
          %982 = vmatpush1.msra.mxu0 0.0
          %983 = vmatprep.subr.mxu0 0.0
          %984 = vmatpush1.msra.mxu0 0.0
          %985 = vmatprep.subr.mxu0 0.0
          %986 = vmatpush1.msra.mxu0 0.0
          %987 = vmatprep.subr.mxu0 0.0
          %988 = vmatpush1.msra.mxu0 0.0
          %989 = vmatprep.subr.mxu0 0.0
          %990 = vmatpush1.msra.mxu0 0.0
          %991 = vmatprep.subr.mxu0 0.0
          %992 = vmatpush1.msra.mxu0 0.0
          %993 = vmatprep.subr.mxu0 0.0
          %994 = vmatpush1.msra.mxu0 0.0
          %995 = vmatprep.subr.mxu0 0.0
          %996 = vmatpush1.msra.mxu0 0.0
          %997 = vmatprep.subr.mxu0 0.0
          %998 = vmatpush1.msra.mxu0 0.0
          %999 = vmatprep.subr.mxu0 0.0
          %1000 = vmatpush1.msra.mxu0 0.0
          %1001 = vmatprep.subr.mxu0 0.0
          %1002 = vmatpush1.msra.mxu0 0.0
          %1003 = vmatprep.subr.mxu0 0.0
          %1004 = vmatpush1.msra.mxu0 0.0
          %1005 = vmatprep.subr.mxu0 0.0
          %1006 = vmatpush1.msra.mxu0 0.0
          %1007 = vmatprep.subr.mxu0 0.0
          %1008 = vmatpush1.msra.mxu0 0.0
          %1009 = vmatprep.subr.mxu0 0.0
          %1010 = vmatpush1.msra.mxu0 0.0
          %1011 = vmatprep.subr.mxu0 0.0
          %1012 = vmatpush1.msra.mxu0 0.0
          %1013 = vmatprep.subr.mxu0 0.0
          %1014 = vmatpush1.msra.mxu0 0.0
          %1015 = vmatprep.subr.mxu0 0.0
          %1016 = vmatpush1.msra.mxu0 0.0
          %1017 = vmatprep.subr.mxu0 0.0
          %1018 = vmatpush1.msra.mxu0 0.0
          %1019 = vmatprep.subr.mxu0 0.0
          %1020 = vmatpush1.msra.mxu0 0.0
          %1021 = vmatprep.subr.mxu0 0.0
          %1022 = vmatpush1.msra.mxu0 0.0
          %1023 = vmatprep.subr.mxu0 0.0
          %1024 = vmatpush1.msra.mxu0 0.0
          %1025 = vmatprep.subr.mxu0 0.0
          %1026 = vmatpush1.msra.mxu0 0.0
          %1027 = vmatprep.subr.mxu0 0.0
          %1028 = vmatpush1.msra.mxu0 0.0
          %1029 = vmatprep.subr.mxu0 0.0
          %1030 = vmatpush1.msra.mxu0 0.0
          %1031 = vmatprep.subr.mxu0 0.0
          %1032 = vmatpush1.msra.mxu0 0.0
          %1033 = vmatprep.mubr.f32.mxu0 0.0
          %1034 = vmatmul.mubr.f32.gmra.mrb[0].mxu0 %v437
          %v1035 = vpop.f32.mrb[0].mxu0
          %v1036 = vadd.f32 %v952, %v1035
          %v1037 = vpop.f32.mrb[0].mxu0
          %v1038 = vadd.f32 %v956, %v1037
          %1039 = vdwg.mxu0
          %1040 = vmatprep.subr.mxu0 %v946
          %1041 = vmatpush1.msra.mxu0 %v945
          %1042 = vmatprep.subr.mxu0 0.0
          %1043 = vmatpush1.msra.mxu0 0.0
          %1044 = vmatprep.subr.mxu0 0.0
          %1045 = vmatpush1.msra.mxu0 0.0
          %1046 = vmatprep.subr.mxu0 0.0
          %1047 = vmatpush1.msra.mxu0 0.0
          %1048 = vmatprep.subr.mxu0 0.0
          %1049 = vmatpush1.msra.mxu0 0.0
          %1050 = vmatprep.subr.mxu0 0.0
          %1051 = vmatpush1.msra.mxu0 0.0
          %1052 = vmatprep.subr.mxu0 0.0
          %1053 = vmatpush1.msra.mxu0 0.0
          %1054 = vmatprep.subr.mxu0 0.0
          %1055 = vmatpush1.msra.mxu0 0.0
          %1056 = vmatprep.subr.mxu0 0.0
          %1057 = vmatpush1.msra.mxu0 0.0
          %1058 = vmatprep.subr.mxu0 0.0
          %1059 = vmatpush1.msra.mxu0 0.0
          %1060 = vmatprep.subr.mxu0 0.0
          %1061 = vmatpush1.msra.mxu0 0.0
          %1062 = vmatprep.subr.mxu0 0.0
          %1063 = vmatpush1.msra.mxu0 0.0
          %1064 = vmatprep.subr.mxu0 0.0
          %1065 = vmatpush1.msra.mxu0 0.0
          %1066 = vmatprep.subr.mxu0 0.0
          %1067 = vmatpush1.msra.mxu0 0.0
          %1068 = vmatprep.subr.mxu0 0.0
          %1069 = vmatpush1.msra.mxu0 0.0
          %1070 = vmatprep.subr.mxu0 0.0
          %1071 = vmatpush1.msra.mxu0 0.0
          %1072 = vmatprep.subr.mxu0 0.0
          %1073 = vmatpush1.msra.mxu0 0.0
          %1074 = vmatprep.subr.mxu0 0.0
          %1075 = vmatpush1.msra.mxu0 0.0
          %1076 = vmatprep.subr.mxu0 0.0
          %1077 = vmatpush1.msra.mxu0 0.0
          %1078 = vmatprep.subr.mxu0 0.0
          %1079 = vmatpush1.msra.mxu0 0.0
          %1080 = vmatprep.subr.mxu0 0.0
          %1081 = vmatpush1.msra.mxu0 0.0
          %1082 = vmatprep.subr.mxu0 0.0
          %1083 = vmatpush1.msra.mxu0 0.0
          %1084 = vmatprep.subr.mxu0 0.0
          %1085 = vmatpush1.msra.mxu0 0.0
          %1086 = vmatprep.subr.mxu0 0.0
          %1087 = vmatpush1.msra.mxu0 0.0
          %1088 = vmatprep.subr.mxu0 0.0
          %1089 = vmatpush1.msra.mxu0 0.0
          %1090 = vmatprep.subr.mxu0 0.0
          %1091 = vmatpush1.msra.mxu0 0.0
          %1092 = vmatprep.subr.mxu0 0.0
          %1093 = vmatpush1.msra.mxu0 0.0
          %1094 = vmatprep.subr.mxu0 0.0
          %1095 = vmatpush1.msra.mxu0 0.0
          %1096 = vmatprep.subr.mxu0 0.0
          %1097 = vmatpush1.msra.mxu0 0.0
          %1098 = vmatprep.subr.mxu0 0.0
          %1099 = vmatpush1.msra.mxu0 0.0
          %1100 = vmatprep.subr.mxu0 0.0
          %1101 = vmatpush1.msra.mxu0 0.0
          %1102 = vmatprep.subr.mxu0 0.0
          %1103 = vmatpush1.msra.mxu0 0.0
          %1104 = vmatprep.mubr.f32.mxu0 0.0
          %1105 = vmatmul.mubr.f32.gmra.mrb[0].mxu0 %v437
          %v1106 = vpop.f32.mrb[0].mxu0
          %v1107 = vadd.f32 %v960, %v1106
          %v1108 = vpop.f32.mrb[0].mxu0
          %v1109 = vadd.f32 %v964, %v1108
          %1110 = vdwg.mxu0
          %v1111 = vmax.f32 %v1036, 0.0
          %v1112 = vmax.f32 %v1038, 0.0
          %v1113 = vmax.f32 %v1107, 0.0
          %v1114 = vmax.f32 %v1109, 0.0
          %s1115 = scalar_lea.vmem [#allocation2], 96
          %1116 = vst [vmem:[%s1115] sm:$0xff] %v1111
          %1117 = vst [vmem:[%s1115 + $0x8] sm:$0xff] %v1112
          %1118 = vst [vmem:[%s1115 + $0x10] sm:$0xff] %v1113
          %1119 = vst [vmem:[%s1115 + $0x18] sm:$0xff] %v1114
          %v1120 = vld [vmem:[#allocation5] sm:$0x1]
          %v1122 = vlaneseq
          %v1123 = vshrl.u32 %v1122, 7
          %v1124 = vsub.s32 0, %v1123
          %v1125 = vrot.slane %v1120, %v1124
          %vm1127 = vcmask 7168
          %1128 = vst.msk [vmem:[#allocation4] sm:$0xff] %vm1127, %v1125
        $region72: #{multiple_regression_forward.1} parent=47 // pred_fallthru
          _
        %p1129 = scmp.lt.s32.totalorder %s26, 0
        %s1130 = ssub.s32 0, %s26
        %s1131 = scalar_select %p1129, %s1130, %s26
        %s1132 = sand.u32 %s1131, 1
        %s1133 = ssub.s32 0, %s1132
        %s1134 = scalar_select %p1129, %s1133, %s1132
        %p1135 = scmp.ne.s32.totalorder %s1134, 0
        %p1136 = scmp.lt.s32.totalorder %s1134, 0
        %p1137 = pnand %p1136, %p1135
        %p1138 = pneg %p1137
        %s1139 = sadd.s32 %s1134, 2
        %s1140 = scalar_select %p1138, %s1139, %s1134
        %p1141 = scmp.eq.s32.totalorder %s1140, 0
        // Predicated region
        $region73: #{multiple_regression_forward.1} parent=47 // pred_check
          %p1142 = pneg %p1141
        $region74: #{multiple_regression_forward.1} parent=47 // pred_check_branch
          %1144 = sbr.rel (%p1142) target = $region76
        $region75: #{multiple_regression_forward.1} parent=47 // pred_region
          %v1145 = vld [vmem:[%s345] sm:$0xff]
          %v1146 = vld [vmem:[%s345 + $0x8] sm:$0xff]
          %v1147 = vld [vmem:[%s345 + $0x10] sm:$0xff]
          %v1148 = vld [vmem:[%s345 + $0x18] sm:$0xff]
          %v1149 = vld [vmem:[%s345 + $0x20] sm:$0xff]
          %v1150 = vld [vmem:[%s345 + $0x28] sm:$0xff]
          %v1151 = vld [vmem:[%s345 + $0x30] sm:$0xff]
          %v1152 = vld [vmem:[%s345 + $0x38] sm:$0xff]
          %v1153 = vld [vmem:[%s345 + $0x40] sm:$0xff]
          %v1154 = vld [vmem:[%s345 + $0x48] sm:$0xff]
          %v1155 = vld [vmem:[%s345 + $0x50] sm:$0xff]
          %v1156 = vld [vmem:[%s345 + $0x58] sm:$0xff]
          %v1157 = vld [vmem:[%s345 + $0x60] sm:$0xff]
          %v1158 = vld [vmem:[%s345 + $0x68] sm:$0xff]
          %v1159 = vld [vmem:[%s345 + $0x70] sm:$0xff]
          %v1160 = vld [vmem:[%s345 + $0x78] sm:$0xff]
          %v1161 = vld [vmem:[%s345 + $0x80] sm:$0xff]
          %v1162 = vld [vmem:[%s345 + $0x88] sm:$0xff]
          %v1163 = vld [vmem:[%s345 + $0x90] sm:$0xff]
          %v1164 = vld [vmem:[%s345 + $0x98] sm:$0xff]
          %v1165 = vld [vmem:[%s345 + $0xa0] sm:$0xff]
          %v1166 = vld [vmem:[%s345 + $0xa8] sm:$0xff]
          %v1167 = vld [vmem:[%s345 + $0xb0] sm:$0xff]
          %v1168 = vld [vmem:[%s345 + $0xb8] sm:$0xff]
          %v1169 = vld [vmem:[%s345 + $0xc0] sm:$0xff]
          %v1170 = vld [vmem:[%s345 + $0xc8] sm:$0xff]
          %v1171 = vld [vmem:[%s345 + $0xd0] sm:$0xff]
          %v1172 = vld [vmem:[%s345 + $0xd8] sm:$0xff]
          %v1173 = vld [vmem:[%s345 + $0xe0] sm:$0xff]
          %v1174 = vld [vmem:[%s345 + $0xe8] sm:$0xff]
          %v1175 = vld [vmem:[%s345 + $0xf0] sm:$0xff]
          %v1176 = vld [vmem:[%s345 + $0xf8] sm:$0xff]
          %v1177 = vld [vmem:[%s345 + $0x100] sm:$0xff]
          %v1178 = vld [vmem:[%s345 + $0x108] sm:$0xff]
          %v1179 = vld [vmem:[%s345 + $0x110] sm:$0xff]
          %v1180 = vld [vmem:[%s345 + $0x118] sm:$0xff]
          %v1181 = vld [vmem:[%s345 + $0x120] sm:$0xff]
          %v1182 = vld [vmem:[%s345 + $0x128] sm:$0xff]
          %v1183 = vld [vmem:[%s345 + $0x130] sm:$0xff]
          %v1184 = vld [vmem:[%s345 + $0x138] sm:$0xff]
          %v1185 = vld [vmem:[%s345 + $0x140] sm:$0xff]
          %v1186 = vld [vmem:[%s345 + $0x148] sm:$0xff]
          %v1187 = vld [vmem:[%s345 + $0x150] sm:$0xff]
          %v1188 = vld [vmem:[%s345 + $0x158] sm:$0xff]
          %v1189 = vld [vmem:[%s345 + $0x160] sm:$0xff]
          %v1190 = vld [vmem:[%s345 + $0x168] sm:$0xff]
          %v1191 = vld [vmem:[%s345 + $0x170] sm:$0xff]
          %v1192 = vld [vmem:[%s345 + $0x178] sm:$0xff]
          %v1193 = vld [vmem:[%s345 + $0x180] sm:$0xff]
          %v1194 = vld [vmem:[%s345 + $0x188] sm:$0xff]
          %v1195 = vld [vmem:[%s345 + $0x190] sm:$0xff]
          %v1196 = vld [vmem:[%s345 + $0x198] sm:$0xff]
          %v1197 = vld [vmem:[%s345 + $0x1a0] sm:$0xff]
          %v1198 = vld [vmem:[%s345 + $0x1a8] sm:$0xff]
          %v1199 = vld [vmem:[%s345 + $0x1b0] sm:$0xff]
          %v1200 = vld [vmem:[%s345 + $0x1b8] sm:$0xff]
          %v1201 = vld [vmem:[%s345 + $0x1c0] sm:$0xff]
          %v1202 = vld [vmem:[%s345 + $0x1c8] sm:$0xff]
          %v1203 = vld [vmem:[%s345 + $0x1d0] sm:$0xff]
          %v1204 = vld [vmem:[%s345 + $0x1d8] sm:$0xff]
          %v1205 = vld [vmem:[%s345 + $0x1e0] sm:$0xff]
          %v1206 = vld [vmem:[%s345 + $0x1e8] sm:$0xff]
          %v1207 = vld [vmem:[%s345 + $0x1f0] sm:$0xff]
          %v1208 = vld [vmem:[%s345 + $0x1f8] sm:$0xff]
          %v1209 = vld [vmem:[%s345 + $0x200] sm:$0xff]
          %v1210 = vld [vmem:[%s345 + $0x208] sm:$0xff]
          %v1211 = vld [vmem:[%s345 + $0x210] sm:$0xff]
          %v1212 = vld [vmem:[%s345 + $0x218] sm:$0xff]
          %v1213 = vld [vmem:[%s345 + $0x220] sm:$0xff]
          %v1214 = vld [vmem:[%s345 + $0x228] sm:$0xff]
          %v1215 = vld [vmem:[%s345 + $0x230] sm:$0xff]
          %v1216 = vld [vmem:[%s345 + $0x238] sm:$0xff]
          %v1217 = vld [vmem:[%s345 + $0x240] sm:$0xff]
          %v1218 = vld [vmem:[%s345 + $0x248] sm:$0xff]
          %v1219 = vld [vmem:[%s345 + $0x250] sm:$0xff]
          %v1220 = vld [vmem:[%s345 + $0x258] sm:$0xff]
          %v1221 = vld [vmem:[%s345 + $0x260] sm:$0xff]
          %v1222 = vld [vmem:[%s345 + $0x268] sm:$0xff]
          %v1223 = vld [vmem:[%s345 + $0x270] sm:$0xff]
          %v1224 = vld [vmem:[%s345 + $0x278] sm:$0xff]
          %v1225 = vld [vmem:[%s345 + $0x280] sm:$0xff]
          %v1226 = vld [vmem:[%s345 + $0x288] sm:$0xff]
          %v1227 = vld [vmem:[%s345 + $0x290] sm:$0xff]
          %v1228 = vld [vmem:[%s345 + $0x298] sm:$0xff]
          %v1229 = vld [vmem:[%s345 + $0x2a0] sm:$0xff]
          %v1230 = vld [vmem:[%s345 + $0x2a8] sm:$0xff]
          %v1231 = vld [vmem:[%s345 + $0x2b0] sm:$0xff]
          %v1232 = vld [vmem:[%s345 + $0x2b8] sm:$0xff]
          %v1233 = vld [vmem:[%s345 + $0x2c0] sm:$0xff]
          %v1234 = vld [vmem:[%s345 + $0x2c8] sm:$0xff]
          %v1235 = vld [vmem:[%s345 + $0x2d0] sm:$0xff]
          %v1236 = vld [vmem:[%s345 + $0x2d8] sm:$0xff]
          %v1237 = vld [vmem:[%s345 + $0x2e0] sm:$0xff]
          %v1238 = vld [vmem:[%s345 + $0x2e8] sm:$0xff]
          %v1239 = vld [vmem:[%s345 + $0x2f0] sm:$0xff]
          %v1240 = vld [vmem:[%s345 + $0x2f8] sm:$0xff]
          %v1241 = vld [vmem:[%s345 + $0x300] sm:$0xff]
          %v1242 = vld [vmem:[%s345 + $0x308] sm:$0xff]
          %v1243 = vld [vmem:[%s345 + $0x310] sm:$0xff]
          %v1244 = vld [vmem:[%s345 + $0x318] sm:$0xff]
          %v1245 = vld [vmem:[%s345 + $0x320] sm:$0xff]
          %v1246 = vld [vmem:[%s345 + $0x328] sm:$0xff]
          %v1247 = vld [vmem:[%s345 + $0x330] sm:$0xff]
          %v1248 = vld [vmem:[%s345 + $0x338] sm:$0xff]
          %v1249 = vld [vmem:[%s345 + $0x340] sm:$0xff]
          %v1250 = vld [vmem:[%s345 + $0x348] sm:$0xff]
          %v1251 = vld [vmem:[%s345 + $0x350] sm:$0xff]
          %v1252 = vld [vmem:[%s345 + $0x358] sm:$0xff]
          %v1253 = vld [vmem:[%s345 + $0x360] sm:$0xff]
          %v1254 = vld [vmem:[%s345 + $0x368] sm:$0xff]
          %v1255 = vld [vmem:[%s345 + $0x370] sm:$0xff]
          %v1256 = vld [vmem:[%s345 + $0x378] sm:$0xff]
          %v1257 = vld [vmem:[%s345 + $0x380] sm:$0xff]
          %v1258 = vld [vmem:[%s345 + $0x388] sm:$0xff]
          %v1259 = vld [vmem:[%s345 + $0x390] sm:$0xff]
          %v1260 = vld [vmem:[%s345 + $0x398] sm:$0xff]
          %v1261 = vld [vmem:[%s345 + $0x3a0] sm:$0xff]
          %v1262 = vld [vmem:[%s345 + $0x3a8] sm:$0xff]
          %v1263 = vld [vmem:[%s345 + $0x3b0] sm:$0xff]
          %v1264 = vld [vmem:[%s345 + $0x3b8] sm:$0xff]
          %v1265 = vld [vmem:[%s345 + $0x3c0] sm:$0xff]
          %v1266 = vld [vmem:[%s345 + $0x3c8] sm:$0xff]
          %v1267 = vld [vmem:[%s345 + $0x3d0] sm:$0xff]
          %v1268 = vld [vmem:[%s345 + $0x3d8] sm:$0xff]
          %v1269 = vld [vmem:[%s345 + $0x3e0] sm:$0xff]
          %v1270 = vld [vmem:[%s345 + $0x3e8] sm:$0xff]
          %v1271 = vld [vmem:[%s345 + $0x3f0] sm:$0xff]
          %v1272 = vld [vmem:[%s345 + $0x3f8] sm:$0xff]
          %v1273 = vunpack.c.l.bf16 %v1145
          %v1274 = vunpack.c.h.bf16 %v1145
          %v1275 = vunpack.c.l.bf16 %v1146
          %v1276 = vunpack.c.h.bf16 %v1146
          %v1277 = vunpack.c.l.bf16 %v1147
          %v1278 = vunpack.c.h.bf16 %v1147
          %v1279 = vunpack.c.l.bf16 %v1148
          %v1280 = vunpack.c.h.bf16 %v1148
          %v1281 = vunpack.c.l.bf16 %v1149
          %v1282 = vunpack.c.h.bf16 %v1149
          %v1283 = vunpack.c.l.bf16 %v1150
          %v1284 = vunpack.c.h.bf16 %v1150
          %v1285 = vunpack.c.l.bf16 %v1151
          %v1286 = vunpack.c.h.bf16 %v1151
          %v1287 = vunpack.c.l.bf16 %v1152
          %v1288 = vunpack.c.h.bf16 %v1152
          %v1289 = vunpack.c.l.bf16 %v1153
          %v1290 = vunpack.c.h.bf16 %v1153
          %v1291 = vunpack.c.l.bf16 %v1154
          %v1292 = vunpack.c.h.bf16 %v1154
          %v1293 = vunpack.c.l.bf16 %v1155
          %v1294 = vunpack.c.h.bf16 %v1155
          %v1295 = vunpack.c.l.bf16 %v1156
          %v1296 = vunpack.c.h.bf16 %v1156
          %v1297 = vunpack.c.l.bf16 %v1157
          %v1298 = vunpack.c.h.bf16 %v1157
          %v1299 = vunpack.c.l.bf16 %v1158
          %v1300 = vunpack.c.h.bf16 %v1158
          %v1301 = vunpack.c.l.bf16 %v1159
          %v1302 = vunpack.c.h.bf16 %v1159
          %v1303 = vunpack.c.l.bf16 %v1160
          %v1304 = vunpack.c.h.bf16 %v1160
          %v1305 = vunpack.c.l.bf16 %v1161
          %v1306 = vunpack.c.h.bf16 %v1161
          %v1307 = vunpack.c.l.bf16 %v1162
          %v1308 = vunpack.c.h.bf16 %v1162
          %v1309 = vunpack.c.l.bf16 %v1163
          %v1310 = vunpack.c.h.bf16 %v1163
          %v1311 = vunpack.c.l.bf16 %v1164
          %v1312 = vunpack.c.h.bf16 %v1164
          %v1313 = vunpack.c.l.bf16 %v1165
          %v1314 = vunpack.c.h.bf16 %v1165
          %v1315 = vunpack.c.l.bf16 %v1166
          %v1316 = vunpack.c.h.bf16 %v1166
          %v1317 = vunpack.c.l.bf16 %v1167
          %v1318 = vunpack.c.h.bf16 %v1167
          %v1319 = vunpack.c.l.bf16 %v1168
          %v1320 = vunpack.c.h.bf16 %v1168
          %v1321 = vunpack.c.l.bf16 %v1169
          %v1322 = vunpack.c.h.bf16 %v1169
          %v1323 = vunpack.c.l.bf16 %v1170
          %v1324 = vunpack.c.h.bf16 %v1170
          %v1325 = vunpack.c.l.bf16 %v1171
          %v1326 = vunpack.c.h.bf16 %v1171
          %v1327 = vunpack.c.l.bf16 %v1172
          %v1328 = vunpack.c.h.bf16 %v1172
          %v1329 = vunpack.c.l.bf16 %v1173
          %v1330 = vunpack.c.h.bf16 %v1173
          %v1331 = vunpack.c.l.bf16 %v1174
          %v1332 = vunpack.c.h.bf16 %v1174
          %v1333 = vunpack.c.l.bf16 %v1175
          %v1334 = vunpack.c.h.bf16 %v1175
          %v1335 = vunpack.c.l.bf16 %v1176
          %v1336 = vunpack.c.h.bf16 %v1176
          %v1337 = vunpack.c.l.bf16 %v1177
          %v1338 = vunpack.c.h.bf16 %v1177
          %v1339 = vunpack.c.l.bf16 %v1178
          %v1340 = vunpack.c.h.bf16 %v1178
          %v1341 = vunpack.c.l.bf16 %v1179
          %v1342 = vunpack.c.h.bf16 %v1179
          %v1343 = vunpack.c.l.bf16 %v1180
          %v1344 = vunpack.c.h.bf16 %v1180
          %v1345 = vunpack.c.l.bf16 %v1181
          %v1346 = vunpack.c.h.bf16 %v1181
          %v1347 = vunpack.c.l.bf16 %v1182
          %v1348 = vunpack.c.h.bf16 %v1182
          %v1349 = vunpack.c.l.bf16 %v1183
          %v1350 = vunpack.c.h.bf16 %v1183
          %v1351 = vunpack.c.l.bf16 %v1184
          %v1352 = vunpack.c.h.bf16 %v1184
          %v1353 = vunpack.c.l.bf16 %v1185
          %v1354 = vunpack.c.h.bf16 %v1185
          %v1355 = vunpack.c.l.bf16 %v1186
          %v1356 = vunpack.c.h.bf16 %v1186
          %v1357 = vunpack.c.l.bf16 %v1187
          %v1358 = vunpack.c.h.bf16 %v1187
          %v1359 = vunpack.c.l.bf16 %v1188
          %v1360 = vunpack.c.h.bf16 %v1188
          %v1361 = vunpack.c.l.bf16 %v1189
          %v1362 = vunpack.c.h.bf16 %v1189
          %v1363 = vunpack.c.l.bf16 %v1190
          %v1364 = vunpack.c.h.bf16 %v1190
          %v1365 = vunpack.c.l.bf16 %v1191
          %v1366 = vunpack.c.h.bf16 %v1191
          %v1367 = vunpack.c.l.bf16 %v1192
          %v1368 = vunpack.c.h.bf16 %v1192
          %v1369 = vunpack.c.l.bf16 %v1193
          %v1370 = vunpack.c.h.bf16 %v1193
          %v1371 = vunpack.c.l.bf16 %v1194
          %v1372 = vunpack.c.h.bf16 %v1194
          %v1373 = vunpack.c.l.bf16 %v1195
          %v1374 = vunpack.c.h.bf16 %v1195
          %v1375 = vunpack.c.l.bf16 %v1196
          %v1376 = vunpack.c.h.bf16 %v1196
          %v1377 = vunpack.c.l.bf16 %v1197
          %v1378 = vunpack.c.h.bf16 %v1197
          %v1379 = vunpack.c.l.bf16 %v1198
          %v1380 = vunpack.c.h.bf16 %v1198
          %v1381 = vunpack.c.l.bf16 %v1199
          %v1382 = vunpack.c.h.bf16 %v1199
          %v1383 = vunpack.c.l.bf16 %v1200
          %v1384 = vunpack.c.h.bf16 %v1200
          %v1385 = vunpack.c.l.bf16 %v1201
          %v1386 = vunpack.c.h.bf16 %v1201
          %v1387 = vunpack.c.l.bf16 %v1202
          %v1388 = vunpack.c.h.bf16 %v1202
          %v1389 = vunpack.c.l.bf16 %v1203
          %v1390 = vunpack.c.h.bf16 %v1203
          %v1391 = vunpack.c.l.bf16 %v1204
          %v1392 = vunpack.c.h.bf16 %v1204
          %v1393 = vunpack.c.l.bf16 %v1205
          %v1394 = vunpack.c.h.bf16 %v1205
          %v1395 = vunpack.c.l.bf16 %v1206
          %v1396 = vunpack.c.h.bf16 %v1206
          %v1397 = vunpack.c.l.bf16 %v1207
          %v1398 = vunpack.c.h.bf16 %v1207
          %v1399 = vunpack.c.l.bf16 %v1208
          %v1400 = vunpack.c.h.bf16 %v1208
          %v1401 = vunpack.c.l.bf16 %v1209
          %v1402 = vunpack.c.h.bf16 %v1209
          %v1403 = vunpack.c.l.bf16 %v1210
          %v1404 = vunpack.c.h.bf16 %v1210
          %v1405 = vunpack.c.l.bf16 %v1211
          %v1406 = vunpack.c.h.bf16 %v1211
          %v1407 = vunpack.c.l.bf16 %v1212
          %v1408 = vunpack.c.h.bf16 %v1212
          %v1409 = vunpack.c.l.bf16 %v1213
          %v1410 = vunpack.c.h.bf16 %v1213
          %v1411 = vunpack.c.l.bf16 %v1214
          %v1412 = vunpack.c.h.bf16 %v1214
          %v1413 = vunpack.c.l.bf16 %v1215
          %v1414 = vunpack.c.h.bf16 %v1215
          %v1415 = vunpack.c.l.bf16 %v1216
          %v1416 = vunpack.c.h.bf16 %v1216
          %v1417 = vunpack.c.l.bf16 %v1217
          %v1418 = vunpack.c.h.bf16 %v1217
          %v1419 = vunpack.c.l.bf16 %v1218
          %v1420 = vunpack.c.h.bf16 %v1218
          %v1421 = vunpack.c.l.bf16 %v1219
          %v1422 = vunpack.c.h.bf16 %v1219
          %v1423 = vunpack.c.l.bf16 %v1220
          %v1424 = vunpack.c.h.bf16 %v1220
          %v1425 = vunpack.c.l.bf16 %v1221
          %v1426 = vunpack.c.h.bf16 %v1221
          %v1427 = vunpack.c.l.bf16 %v1222
          %v1428 = vunpack.c.h.bf16 %v1222
          %v1429 = vunpack.c.l.bf16 %v1223
          %v1430 = vunpack.c.h.bf16 %v1223
          %v1431 = vunpack.c.l.bf16 %v1224
          %v1432 = vunpack.c.h.bf16 %v1224
          %v1433 = vunpack.c.l.bf16 %v1225
          %v1434 = vunpack.c.h.bf16 %v1225
          %v1435 = vunpack.c.l.bf16 %v1226
          %v1436 = vunpack.c.h.bf16 %v1226
          %v1437 = vunpack.c.l.bf16 %v1227
          %v1438 = vunpack.c.h.bf16 %v1227
          %v1439 = vunpack.c.l.bf16 %v1228
          %v1440 = vunpack.c.h.bf16 %v1228
          %v1441 = vunpack.c.l.bf16 %v1229
          %v1442 = vunpack.c.h.bf16 %v1229
          %v1443 = vunpack.c.l.bf16 %v1230
          %v1444 = vunpack.c.h.bf16 %v1230
          %v1445 = vunpack.c.l.bf16 %v1231
          %v1446 = vunpack.c.h.bf16 %v1231
          %v1447 = vunpack.c.l.bf16 %v1232
          %v1448 = vunpack.c.h.bf16 %v1232
          %v1449 = vunpack.c.l.bf16 %v1233
          %v1450 = vunpack.c.h.bf16 %v1233
          %v1451 = vunpack.c.l.bf16 %v1234
          %v1452 = vunpack.c.h.bf16 %v1234
          %v1453 = vunpack.c.l.bf16 %v1235
          %v1454 = vunpack.c.h.bf16 %v1235
          %v1455 = vunpack.c.l.bf16 %v1236
          %v1456 = vunpack.c.h.bf16 %v1236
          %v1457 = vunpack.c.l.bf16 %v1237
          %v1458 = vunpack.c.h.bf16 %v1237
          %v1459 = vunpack.c.l.bf16 %v1238
          %v1460 = vunpack.c.h.bf16 %v1238
          %v1461 = vunpack.c.l.bf16 %v1239
          %v1462 = vunpack.c.h.bf16 %v1239
          %v1463 = vunpack.c.l.bf16 %v1240
          %v1464 = vunpack.c.h.bf16 %v1240
          %v1465 = vunpack.c.l.bf16 %v1241
          %v1466 = vunpack.c.h.bf16 %v1241
          %v1467 = vunpack.c.l.bf16 %v1242
          %v1468 = vunpack.c.h.bf16 %v1242
          %v1469 = vunpack.c.l.bf16 %v1243
          %v1470 = vunpack.c.h.bf16 %v1243
          %v1471 = vunpack.c.l.bf16 %v1244
          %v1472 = vunpack.c.h.bf16 %v1244
          %v1473 = vunpack.c.l.bf16 %v1245
          %v1474 = vunpack.c.h.bf16 %v1245
          %v1475 = vunpack.c.l.bf16 %v1246
          %v1476 = vunpack.c.h.bf16 %v1246
          %v1477 = vunpack.c.l.bf16 %v1247
          %v1478 = vunpack.c.h.bf16 %v1247
          %v1479 = vunpack.c.l.bf16 %v1248
          %v1480 = vunpack.c.h.bf16 %v1248
          %v1481 = vunpack.c.l.bf16 %v1249
          %v1482 = vunpack.c.h.bf16 %v1249
          %v1483 = vunpack.c.l.bf16 %v1250
          %v1484 = vunpack.c.h.bf16 %v1250
          %v1485 = vunpack.c.l.bf16 %v1251
          %v1486 = vunpack.c.h.bf16 %v1251
          %v1487 = vunpack.c.l.bf16 %v1252
          %v1488 = vunpack.c.h.bf16 %v1252
          %v1489 = vunpack.c.l.bf16 %v1253
          %v1490 = vunpack.c.h.bf16 %v1253
          %v1491 = vunpack.c.l.bf16 %v1254
          %v1492 = vunpack.c.h.bf16 %v1254
          %v1493 = vunpack.c.l.bf16 %v1255
          %v1494 = vunpack.c.h.bf16 %v1255
          %v1495 = vunpack.c.l.bf16 %v1256
          %v1496 = vunpack.c.h.bf16 %v1256
          %v1497 = vunpack.c.l.bf16 %v1257
          %v1498 = vunpack.c.h.bf16 %v1257
          %v1499 = vunpack.c.l.bf16 %v1258
          %v1500 = vunpack.c.h.bf16 %v1258
          %v1501 = vunpack.c.l.bf16 %v1259
          %v1502 = vunpack.c.h.bf16 %v1259
          %v1503 = vunpack.c.l.bf16 %v1260
          %v1504 = vunpack.c.h.bf16 %v1260
          %v1505 = vunpack.c.l.bf16 %v1261
          %v1506 = vunpack.c.h.bf16 %v1261
          %v1507 = vunpack.c.l.bf16 %v1262
          %v1508 = vunpack.c.h.bf16 %v1262
          %v1509 = vunpack.c.l.bf16 %v1263
          %v1510 = vunpack.c.h.bf16 %v1263
          %v1511 = vunpack.c.l.bf16 %v1264
          %v1512 = vunpack.c.h.bf16 %v1264
          %v1513 = vunpack.c.l.bf16 %v1265
          %v1514 = vunpack.c.h.bf16 %v1265
          %v1515 = vunpack.c.l.bf16 %v1266
          %v1516 = vunpack.c.h.bf16 %v1266
          %v1517 = vunpack.c.l.bf16 %v1267
          %v1518 = vunpack.c.h.bf16 %v1267
          %v1519 = vunpack.c.l.bf16 %v1268
          %v1520 = vunpack.c.h.bf16 %v1268
          %v1521 = vunpack.c.l.bf16 %v1269
          %v1522 = vunpack.c.h.bf16 %v1269
          %v1523 = vunpack.c.l.bf16 %v1270
          %v1524 = vunpack.c.h.bf16 %v1270
          %v1525 = vunpack.c.l.bf16 %v1271
          %v1526 = vunpack.c.h.bf16 %v1271
          %v1527 = vunpack.c.l.bf16 %v1272
          %v1528 = vunpack.c.h.bf16 %v1272
          %v1529 = vld [vmem:[#allocation2] sm:$0xff]
          %v1530 = vld [vmem:[#allocation2 + $0x8] sm:$0xff]
          %v1531 = vld [vmem:[#allocation2 + $0x10] sm:$0xff]
          %v1532 = vld [vmem:[#allocation2 + $0x18] sm:$0xff]
          %v1533 = vld [vmem:[%s345 + $0x400] sm:$0xff]
          %v1534 = vld [vmem:[%s345 + $0x408] sm:$0xff]
          %v1535 = vld [vmem:[%s345 + $0x410] sm:$0xff]
          %v1536 = vld [vmem:[%s345 + $0x418] sm:$0xff]
          %v1537 = vld [vmem:[%s345 + $0x420] sm:$0xff]
          %v1538 = vld [vmem:[%s345 + $0x428] sm:$0xff]
          %v1539 = vld [vmem:[%s345 + $0x430] sm:$0xff]
          %v1540 = vld [vmem:[%s345 + $0x438] sm:$0xff]
          %v1541 = vld [vmem:[%s345 + $0x440] sm:$0xff]
          %v1542 = vld [vmem:[%s345 + $0x448] sm:$0xff]
          %v1543 = vld [vmem:[%s345 + $0x450] sm:$0xff]
          %v1544 = vld [vmem:[%s345 + $0x458] sm:$0xff]
          %v1545 = vld [vmem:[%s345 + $0x460] sm:$0xff]
          %v1546 = vld [vmem:[%s345 + $0x468] sm:$0xff]
          %v1547 = vld [vmem:[%s345 + $0x470] sm:$0xff]
          %v1548 = vld [vmem:[%s345 + $0x478] sm:$0xff]
          %v1549 = vld [vmem:[%s345 + $0x480] sm:$0xff]
          %v1550 = vld [vmem:[%s345 + $0x488] sm:$0xff]
          %v1551 = vld [vmem:[%s345 + $0x490] sm:$0xff]
          %v1552 = vld [vmem:[%s345 + $0x498] sm:$0xff]
          %v1553 = vld [vmem:[%s345 + $0x4a0] sm:$0xff]
          %v1554 = vld [vmem:[%s345 + $0x4a8] sm:$0xff]
          %v1555 = vld [vmem:[%s345 + $0x4b0] sm:$0xff]
          %v1556 = vld [vmem:[%s345 + $0x4b8] sm:$0xff]
          %v1557 = vld [vmem:[%s345 + $0x4c0] sm:$0xff]
          %v1558 = vld [vmem:[%s345 + $0x4c8] sm:$0xff]
          %v1559 = vld [vmem:[%s345 + $0x4d0] sm:$0xff]
          %v1560 = vld [vmem:[%s345 + $0x4d8] sm:$0xff]
          %v1561 = vld [vmem:[%s345 + $0x4e0] sm:$0xff]
          %v1562 = vld [vmem:[%s345 + $0x4e8] sm:$0xff]
          %v1563 = vld [vmem:[%s345 + $0x4f0] sm:$0xff]
          %v1564 = vld [vmem:[%s345 + $0x4f8] sm:$0xff]
          %v1565 = vld [vmem:[%s345 + $0x500] sm:$0xff]
          %v1566 = vld [vmem:[%s345 + $0x508] sm:$0xff]
          %v1567 = vld [vmem:[%s345 + $0x510] sm:$0xff]
          %v1568 = vld [vmem:[%s345 + $0x518] sm:$0xff]
          %v1569 = vld [vmem:[%s345 + $0x520] sm:$0xff]
          %v1570 = vld [vmem:[%s345 + $0x528] sm:$0xff]
          %v1571 = vld [vmem:[%s345 + $0x530] sm:$0xff]
          %v1572 = vld [vmem:[%s345 + $0x538] sm:$0xff]
          %v1573 = vld [vmem:[%s345 + $0x540] sm:$0xff]
          %v1574 = vld [vmem:[%s345 + $0x548] sm:$0xff]
          %v1575 = vld [vmem:[%s345 + $0x550] sm:$0xff]
          %v1576 = vld [vmem:[%s345 + $0x558] sm:$0xff]
          %v1577 = vld [vmem:[%s345 + $0x560] sm:$0xff]
          %v1578 = vld [vmem:[%s345 + $0x568] sm:$0xff]
          %v1579 = vld [vmem:[%s345 + $0x570] sm:$0xff]
          %v1580 = vld [vmem:[%s345 + $0x578] sm:$0xff]
          %v1581 = vld [vmem:[%s345 + $0x580] sm:$0xff]
          %v1582 = vld [vmem:[%s345 + $0x588] sm:$0xff]
          %v1583 = vld [vmem:[%s345 + $0x590] sm:$0xff]
          %v1584 = vld [vmem:[%s345 + $0x598] sm:$0xff]
          %v1585 = vld [vmem:[%s345 + $0x5a0] sm:$0xff]
          %v1586 = vld [vmem:[%s345 + $0x5a8] sm:$0xff]
          %v1587 = vld [vmem:[%s345 + $0x5b0] sm:$0xff]
          %v1588 = vld [vmem:[%s345 + $0x5b8] sm:$0xff]
          %v1589 = vld [vmem:[%s345 + $0x5c0] sm:$0xff]
          %v1590 = vld [vmem:[%s345 + $0x5c8] sm:$0xff]
          %v1591 = vld [vmem:[%s345 + $0x5d0] sm:$0xff]
          %v1592 = vld [vmem:[%s345 + $0x5d8] sm:$0xff]
          %v1593 = vld [vmem:[%s345 + $0x5e0] sm:$0xff]
          %v1594 = vld [vmem:[%s345 + $0x5e8] sm:$0xff]
          %v1595 = vld [vmem:[%s345 + $0x5f0] sm:$0xff]
          %v1596 = vld [vmem:[%s345 + $0x5f8] sm:$0xff]
          %v1597 = vld [vmem:[%s345 + $0x600] sm:$0xff]
          %v1598 = vld [vmem:[%s345 + $0x608] sm:$0xff]
          %v1599 = vld [vmem:[%s345 + $0x610] sm:$0xff]
          %v1600 = vld [vmem:[%s345 + $0x618] sm:$0xff]
          %v1601 = vld [vmem:[%s345 + $0x620] sm:$0xff]
          %v1602 = vld [vmem:[%s345 + $0x628] sm:$0xff]
          %v1603 = vld [vmem:[%s345 + $0x630] sm:$0xff]
          %v1604 = vld [vmem:[%s345 + $0x638] sm:$0xff]
          %v1605 = vld [vmem:[%s345 + $0x640] sm:$0xff]
          %v1606 = vld [vmem:[%s345 + $0x648] sm:$0xff]
          %v1607 = vld [vmem:[%s345 + $0x650] sm:$0xff]
          %v1608 = vld [vmem:[%s345 + $0x658] sm:$0xff]
          %v1609 = vld [vmem:[%s345 + $0x660] sm:$0xff]
          %v1610 = vld [vmem:[%s345 + $0x668] sm:$0xff]
          %v1611 = vld [vmem:[%s345 + $0x670] sm:$0xff]
          %v1612 = vld [vmem:[%s345 + $0x678] sm:$0xff]
          %v1613 = vld [vmem:[%s345 + $0x680] sm:$0xff]
          %v1614 = vld [vmem:[%s345 + $0x688] sm:$0xff]
          %v1615 = vld [vmem:[%s345 + $0x690] sm:$0xff]
          %v1616 = vld [vmem:[%s345 + $0x698] sm:$0xff]
          %v1617 = vld [vmem:[%s345 + $0x6a0] sm:$0xff]
          %v1618 = vld [vmem:[%s345 + $0x6a8] sm:$0xff]
          %v1619 = vld [vmem:[%s345 + $0x6b0] sm:$0xff]
          %v1620 = vld [vmem:[%s345 + $0x6b8] sm:$0xff]
          %v1621 = vld [vmem:[%s345 + $0x6c0] sm:$0xff]
          %v1622 = vld [vmem:[%s345 + $0x6c8] sm:$0xff]
          %v1623 = vld [vmem:[%s345 + $0x6d0] sm:$0xff]
          %v1624 = vld [vmem:[%s345 + $0x6d8] sm:$0xff]
          %v1625 = vld [vmem:[%s345 + $0x6e0] sm:$0xff]
          %v1626 = vld [vmem:[%s345 + $0x6e8] sm:$0xff]
          %v1627 = vld [vmem:[%s345 + $0x6f0] sm:$0xff]
          %v1628 = vld [vmem:[%s345 + $0x6f8] sm:$0xff]
          %v1629 = vld [vmem:[%s345 + $0x700] sm:$0xff]
          %v1630 = vld [vmem:[%s345 + $0x708] sm:$0xff]
          %v1631 = vld [vmem:[%s345 + $0x710] sm:$0xff]
          %v1632 = vld [vmem:[%s345 + $0x718] sm:$0xff]
          %v1633 = vld [vmem:[%s345 + $0x720] sm:$0xff]
          %v1634 = vld [vmem:[%s345 + $0x728] sm:$0xff]
          %v1635 = vld [vmem:[%s345 + $0x730] sm:$0xff]
          %v1636 = vld [vmem:[%s345 + $0x738] sm:$0xff]
          %v1637 = vld [vmem:[%s345 + $0x740] sm:$0xff]
          %v1638 = vld [vmem:[%s345 + $0x748] sm:$0xff]
          %v1639 = vld [vmem:[%s345 + $0x750] sm:$0xff]
          %v1640 = vld [vmem:[%s345 + $0x758] sm:$0xff]
          %v1641 = vld [vmem:[%s345 + $0x760] sm:$0xff]
          %v1642 = vld [vmem:[%s345 + $0x768] sm:$0xff]
          %v1643 = vld [vmem:[%s345 + $0x770] sm:$0xff]
          %v1644 = vld [vmem:[%s345 + $0x778] sm:$0xff]
          %v1645 = vld [vmem:[%s345 + $0x780] sm:$0xff]
          %v1646 = vld [vmem:[%s345 + $0x788] sm:$0xff]
          %v1647 = vld [vmem:[%s345 + $0x790] sm:$0xff]
          %v1648 = vld [vmem:[%s345 + $0x798] sm:$0xff]
          %v1649 = vld [vmem:[%s345 + $0x7a0] sm:$0xff]
          %v1650 = vld [vmem:[%s345 + $0x7a8] sm:$0xff]
          %v1651 = vld [vmem:[%s345 + $0x7b0] sm:$0xff]
          %v1652 = vld [vmem:[%s345 + $0x7b8] sm:$0xff]
          %v1653 = vld [vmem:[%s345 + $0x7c0] sm:$0xff]
          %v1654 = vld [vmem:[%s345 + $0x7c8] sm:$0xff]
          %v1655 = vld [vmem:[%s345 + $0x7d0] sm:$0xff]
          %v1656 = vld [vmem:[%s345 + $0x7d8] sm:$0xff]
          %v1657 = vld [vmem:[%s345 + $0x7e0] sm:$0xff]
          %v1658 = vld [vmem:[%s345 + $0x7e8] sm:$0xff]
          %v1659 = vld [vmem:[%s345 + $0x7f0] sm:$0xff]
          %v1660 = vld [vmem:[%s345 + $0x7f8] sm:$0xff]
          %v1661 = vunpack.c.l.bf16 %v1533
          %v1662 = vunpack.c.h.bf16 %v1533
          %v1663 = vunpack.c.l.bf16 %v1534
          %v1664 = vunpack.c.h.bf16 %v1534
          %v1665 = vunpack.c.l.bf16 %v1535
          %v1666 = vunpack.c.h.bf16 %v1535
          %v1667 = vunpack.c.l.bf16 %v1536
          %v1668 = vunpack.c.h.bf16 %v1536
          %v1669 = vunpack.c.l.bf16 %v1537
          %v1670 = vunpack.c.h.bf16 %v1537
          %v1671 = vunpack.c.l.bf16 %v1538
          %v1672 = vunpack.c.h.bf16 %v1538
          %v1673 = vunpack.c.l.bf16 %v1539
          %v1674 = vunpack.c.h.bf16 %v1539
          %v1675 = vunpack.c.l.bf16 %v1540
          %v1676 = vunpack.c.h.bf16 %v1540
          %v1677 = vunpack.c.l.bf16 %v1541
          %v1678 = vunpack.c.h.bf16 %v1541
          %v1679 = vunpack.c.l.bf16 %v1542
          %v1680 = vunpack.c.h.bf16 %v1542
          %v1681 = vunpack.c.l.bf16 %v1543
          %v1682 = vunpack.c.h.bf16 %v1543
          %v1683 = vunpack.c.l.bf16 %v1544
          %v1684 = vunpack.c.h.bf16 %v1544
          %v1685 = vunpack.c.l.bf16 %v1545
          %v1686 = vunpack.c.h.bf16 %v1545
          %v1687 = vunpack.c.l.bf16 %v1546
          %v1688 = vunpack.c.h.bf16 %v1546
          %v1689 = vunpack.c.l.bf16 %v1547
          %v1690 = vunpack.c.h.bf16 %v1547
          %v1691 = vunpack.c.l.bf16 %v1548
          %v1692 = vunpack.c.h.bf16 %v1548
          %v1693 = vunpack.c.l.bf16 %v1549
          %v1694 = vunpack.c.h.bf16 %v1549
          %v1695 = vunpack.c.l.bf16 %v1550
          %v1696 = vunpack.c.h.bf16 %v1550
          %v1697 = vunpack.c.l.bf16 %v1551
          %v1698 = vunpack.c.h.bf16 %v1551
          %v1699 = vunpack.c.l.bf16 %v1552
          %v1700 = vunpack.c.h.bf16 %v1552
          %v1701 = vunpack.c.l.bf16 %v1553
          %v1702 = vunpack.c.h.bf16 %v1553
          %v1703 = vunpack.c.l.bf16 %v1554
          %v1704 = vunpack.c.h.bf16 %v1554
          %v1705 = vunpack.c.l.bf16 %v1555
          %v1706 = vunpack.c.h.bf16 %v1555
          %v1707 = vunpack.c.l.bf16 %v1556
          %v1708 = vunpack.c.h.bf16 %v1556
          %v1709 = vunpack.c.l.bf16 %v1557
          %v1710 = vunpack.c.h.bf16 %v1557
          %v1711 = vunpack.c.l.bf16 %v1558
          %v1712 = vunpack.c.h.bf16 %v1558
          %v1713 = vunpack.c.l.bf16 %v1559
          %v1714 = vunpack.c.h.bf16 %v1559
          %v1715 = vunpack.c.l.bf16 %v1560
          %v1716 = vunpack.c.h.bf16 %v1560
          %v1717 = vunpack.c.l.bf16 %v1561
          %v1718 = vunpack.c.h.bf16 %v1561
          %v1719 = vunpack.c.l.bf16 %v1562
          %v1720 = vunpack.c.h.bf16 %v1562
          %v1721 = vunpack.c.l.bf16 %v1563
          %v1722 = vunpack.c.h.bf16 %v1563
          %v1723 = vunpack.c.l.bf16 %v1564
          %v1724 = vunpack.c.h.bf16 %v1564
          %v1725 = vunpack.c.l.bf16 %v1565
          %v1726 = vunpack.c.h.bf16 %v1565
          %v1727 = vunpack.c.l.bf16 %v1566
          %v1728 = vunpack.c.h.bf16 %v1566
          %v1729 = vunpack.c.l.bf16 %v1567
          %v1730 = vunpack.c.h.bf16 %v1567
          %v1731 = vunpack.c.l.bf16 %v1568
          %v1732 = vunpack.c.h.bf16 %v1568
          %v1733 = vunpack.c.l.bf16 %v1569
          %v1734 = vunpack.c.h.bf16 %v1569
          %v1735 = vunpack.c.l.bf16 %v1570
          %v1736 = vunpack.c.h.bf16 %v1570
          %v1737 = vunpack.c.l.bf16 %v1571
          %v1738 = vunpack.c.h.bf16 %v1571
          %v1739 = vunpack.c.l.bf16 %v1572
          %v1740 = vunpack.c.h.bf16 %v1572
          %v1741 = vunpack.c.l.bf16 %v1573
          %v1742 = vunpack.c.h.bf16 %v1573
          %v1743 = vunpack.c.l.bf16 %v1574
          %v1744 = vunpack.c.h.bf16 %v1574
          %v1745 = vunpack.c.l.bf16 %v1575
          %v1746 = vunpack.c.h.bf16 %v1575
          %v1747 = vunpack.c.l.bf16 %v1576
          %v1748 = vunpack.c.h.bf16 %v1576
          %v1749 = vunpack.c.l.bf16 %v1577
          %v1750 = vunpack.c.h.bf16 %v1577
          %v1751 = vunpack.c.l.bf16 %v1578
          %v1752 = vunpack.c.h.bf16 %v1578
          %v1753 = vunpack.c.l.bf16 %v1579
          %v1754 = vunpack.c.h.bf16 %v1579
          %v1755 = vunpack.c.l.bf16 %v1580
          %v1756 = vunpack.c.h.bf16 %v1580
          %v1757 = vunpack.c.l.bf16 %v1581
          %v1758 = vunpack.c.h.bf16 %v1581
          %v1759 = vunpack.c.l.bf16 %v1582
          %v1760 = vunpack.c.h.bf16 %v1582
          %v1761 = vunpack.c.l.bf16 %v1583
          %v1762 = vunpack.c.h.bf16 %v1583
          %v1763 = vunpack.c.l.bf16 %v1584
          %v1764 = vunpack.c.h.bf16 %v1584
          %v1765 = vunpack.c.l.bf16 %v1585
          %v1766 = vunpack.c.h.bf16 %v1585
          %v1767 = vunpack.c.l.bf16 %v1586
          %v1768 = vunpack.c.h.bf16 %v1586
          %v1769 = vunpack.c.l.bf16 %v1587
          %v1770 = vunpack.c.h.bf16 %v1587
          %v1771 = vunpack.c.l.bf16 %v1588
          %v1772 = vunpack.c.h.bf16 %v1588
          %v1773 = vunpack.c.l.bf16 %v1589
          %v1774 = vunpack.c.h.bf16 %v1589
          %v1775 = vunpack.c.l.bf16 %v1590
          %v1776 = vunpack.c.h.bf16 %v1590
          %v1777 = vunpack.c.l.bf16 %v1591
          %v1778 = vunpack.c.h.bf16 %v1591
          %v1779 = vunpack.c.l.bf16 %v1592
          %v1780 = vunpack.c.h.bf16 %v1592
          %v1781 = vunpack.c.l.bf16 %v1593
          %v1782 = vunpack.c.h.bf16 %v1593
          %v1783 = vunpack.c.l.bf16 %v1594
          %v1784 = vunpack.c.h.bf16 %v1594
          %v1785 = vunpack.c.l.bf16 %v1595
          %v1786 = vunpack.c.h.bf16 %v1595
          %v1787 = vunpack.c.l.bf16 %v1596
          %v1788 = vunpack.c.h.bf16 %v1596
          %v1789 = vunpack.c.l.bf16 %v1597
          %v1790 = vunpack.c.h.bf16 %v1597
          %v1791 = vunpack.c.l.bf16 %v1598
          %v1792 = vunpack.c.h.bf16 %v1598
          %v1793 = vunpack.c.l.bf16 %v1599
          %v1794 = vunpack.c.h.bf16 %v1599
          %v1795 = vunpack.c.l.bf16 %v1600
          %v1796 = vunpack.c.h.bf16 %v1600
          %v1797 = vunpack.c.l.bf16 %v1601
          %v1798 = vunpack.c.h.bf16 %v1601
          %v1799 = vunpack.c.l.bf16 %v1602
          %v1800 = vunpack.c.h.bf16 %v1602
          %v1801 = vunpack.c.l.bf16 %v1603
          %v1802 = vunpack.c.h.bf16 %v1603
          %v1803 = vunpack.c.l.bf16 %v1604
          %v1804 = vunpack.c.h.bf16 %v1604
          %v1805 = vunpack.c.l.bf16 %v1605
          %v1806 = vunpack.c.h.bf16 %v1605
          %v1807 = vunpack.c.l.bf16 %v1606
          %v1808 = vunpack.c.h.bf16 %v1606
          %v1809 = vunpack.c.l.bf16 %v1607
          %v1810 = vunpack.c.h.bf16 %v1607
          %v1811 = vunpack.c.l.bf16 %v1608
          %v1812 = vunpack.c.h.bf16 %v1608
          %v1813 = vunpack.c.l.bf16 %v1609
          %v1814 = vunpack.c.h.bf16 %v1609
          %v1815 = vunpack.c.l.bf16 %v1610
          %v1816 = vunpack.c.h.bf16 %v1610
          %v1817 = vunpack.c.l.bf16 %v1611
          %v1818 = vunpack.c.h.bf16 %v1611
          %v1819 = vunpack.c.l.bf16 %v1612
          %v1820 = vunpack.c.h.bf16 %v1612
          %v1821 = vunpack.c.l.bf16 %v1613
          %v1822 = vunpack.c.h.bf16 %v1613
          %v1823 = vunpack.c.l.bf16 %v1614
          %v1824 = vunpack.c.h.bf16 %v1614
          %v1825 = vunpack.c.l.bf16 %v1615
          %v1826 = vunpack.c.h.bf16 %v1615
          %v1827 = vunpack.c.l.bf16 %v1616
          %v1828 = vunpack.c.h.bf16 %v1616
          %v1829 = vunpack.c.l.bf16 %v1617
          %v1830 = vunpack.c.h.bf16 %v1617
          %v1831 = vunpack.c.l.bf16 %v1618
          %v1832 = vunpack.c.h.bf16 %v1618
          %v1833 = vunpack.c.l.bf16 %v1619
          %v1834 = vunpack.c.h.bf16 %v1619
          %v1835 = vunpack.c.l.bf16 %v1620
          %v1836 = vunpack.c.h.bf16 %v1620
          %v1837 = vunpack.c.l.bf16 %v1621
          %v1838 = vunpack.c.h.bf16 %v1621
          %v1839 = vunpack.c.l.bf16 %v1622
          %v1840 = vunpack.c.h.bf16 %v1622
          %v1841 = vunpack.c.l.bf16 %v1623
          %v1842 = vunpack.c.h.bf16 %v1623
          %v1843 = vunpack.c.l.bf16 %v1624
          %v1844 = vunpack.c.h.bf16 %v1624
          %v1845 = vunpack.c.l.bf16 %v1625
          %v1846 = vunpack.c.h.bf16 %v1625
          %v1847 = vunpack.c.l.bf16 %v1626
          %v1848 = vunpack.c.h.bf16 %v1626
          %v1849 = vunpack.c.l.bf16 %v1627
          %v1850 = vunpack.c.h.bf16 %v1627
          %v1851 = vunpack.c.l.bf16 %v1628
          %v1852 = vunpack.c.h.bf16 %v1628
          %v1853 = vunpack.c.l.bf16 %v1629
          %v1854 = vunpack.c.h.bf16 %v1629
          %v1855 = vunpack.c.l.bf16 %v1630
          %v1856 = vunpack.c.h.bf16 %v1630
          %v1857 = vunpack.c.l.bf16 %v1631
          %v1858 = vunpack.c.h.bf16 %v1631
          %v1859 = vunpack.c.l.bf16 %v1632
          %v1860 = vunpack.c.h.bf16 %v1632
          %v1861 = vunpack.c.l.bf16 %v1633
          %v1862 = vunpack.c.h.bf16 %v1633
          %v1863 = vunpack.c.l.bf16 %v1634
          %v1864 = vunpack.c.h.bf16 %v1634
          %v1865 = vunpack.c.l.bf16 %v1635
          %v1866 = vunpack.c.h.bf16 %v1635
          %v1867 = vunpack.c.l.bf16 %v1636
          %v1868 = vunpack.c.h.bf16 %v1636
          %v1869 = vunpack.c.l.bf16 %v1637
          %v1870 = vunpack.c.h.bf16 %v1637
          %v1871 = vunpack.c.l.bf16 %v1638
          %v1872 = vunpack.c.h.bf16 %v1638
          %v1873 = vunpack.c.l.bf16 %v1639
          %v1874 = vunpack.c.h.bf16 %v1639
          %v1875 = vunpack.c.l.bf16 %v1640
          %v1876 = vunpack.c.h.bf16 %v1640
          %v1877 = vunpack.c.l.bf16 %v1641
          %v1878 = vunpack.c.h.bf16 %v1641
          %v1879 = vunpack.c.l.bf16 %v1642
          %v1880 = vunpack.c.h.bf16 %v1642
          %v1881 = vunpack.c.l.bf16 %v1643
          %v1882 = vunpack.c.h.bf16 %v1643
          %v1883 = vunpack.c.l.bf16 %v1644
          %v1884 = vunpack.c.h.bf16 %v1644
          %v1885 = vunpack.c.l.bf16 %v1645
          %v1886 = vunpack.c.h.bf16 %v1645
          %v1887 = vunpack.c.l.bf16 %v1646
          %v1888 = vunpack.c.h.bf16 %v1646
          %v1889 = vunpack.c.l.bf16 %v1647
          %v1890 = vunpack.c.h.bf16 %v1647
          %v1891 = vunpack.c.l.bf16 %v1648
          %v1892 = vunpack.c.h.bf16 %v1648
          %v1893 = vunpack.c.l.bf16 %v1649
          %v1894 = vunpack.c.h.bf16 %v1649
          %v1895 = vunpack.c.l.bf16 %v1650
          %v1896 = vunpack.c.h.bf16 %v1650
          %v1897 = vunpack.c.l.bf16 %v1651
          %v1898 = vunpack.c.h.bf16 %v1651
          %v1899 = vunpack.c.l.bf16 %v1652
          %v1900 = vunpack.c.h.bf16 %v1652
          %v1901 = vunpack.c.l.bf16 %v1653
          %v1902 = vunpack.c.h.bf16 %v1653
          %v1903 = vunpack.c.l.bf16 %v1654
          %v1904 = vunpack.c.h.bf16 %v1654
          %v1905 = vunpack.c.l.bf16 %v1655
          %v1906 = vunpack.c.h.bf16 %v1655
          %v1907 = vunpack.c.l.bf16 %v1656
          %v1908 = vunpack.c.h.bf16 %v1656
          %v1909 = vunpack.c.l.bf16 %v1657
          %v1910 = vunpack.c.h.bf16 %v1657
          %v1911 = vunpack.c.l.bf16 %v1658
          %v1912 = vunpack.c.h.bf16 %v1658
          %v1913 = vunpack.c.l.bf16 %v1659
          %v1914 = vunpack.c.h.bf16 %v1659
          %v1915 = vunpack.c.l.bf16 %v1660
          %v1916 = vunpack.c.h.bf16 %v1660
          %s1917 = scalar_lea.vmem [#allocation2], 32
          %v1918 = vld [vmem:[%s1917] sm:$0xff]
          %v1919 = vld [vmem:[%s1917 + $0x8] sm:$0xff]
          %v1920 = vld [vmem:[%s1917 + $0x10] sm:$0xff]
          %v1921 = vld [vmem:[%s1917 + $0x18] sm:$0xff]
          %1922 = vmatprep.subr.mxu0 %v1662
          %1923 = vmatpush1.msra.mxu0 %v1661
          %1924 = vmatprep.subr.mxu0 %v1666
          %1925 = vmatpush1.msra.mxu0 %v1665
          %1926 = vmatprep.subr.mxu0 %v1670
          %1927 = vmatpush1.msra.mxu0 %v1669
          %1928 = vmatprep.subr.mxu0 %v1674
          %1929 = vmatpush1.msra.mxu0 %v1673
          %1930 = vmatprep.subr.mxu0 %v1678
          %1931 = vmatpush1.msra.mxu0 %v1677
          %1932 = vmatprep.subr.mxu0 %v1682
          %1933 = vmatpush1.msra.mxu0 %v1681
          %1934 = vmatprep.subr.mxu0 %v1686
          %1935 = vmatpush1.msra.mxu0 %v1685
          %1936 = vmatprep.subr.mxu0 %v1690
          %1937 = vmatpush1.msra.mxu0 %v1689
          %1938 = vmatprep.subr.mxu0 %v1694
          %1939 = vmatpush1.msra.mxu0 %v1693
          %1940 = vmatprep.subr.mxu0 %v1698
          %1941 = vmatpush1.msra.mxu0 %v1697
          %1942 = vmatprep.subr.mxu0 %v1702
          %1943 = vmatpush1.msra.mxu0 %v1701
          %1944 = vmatprep.subr.mxu0 %v1706
          %1945 = vmatpush1.msra.mxu0 %v1705
          %1946 = vmatprep.subr.mxu0 %v1710
          %1947 = vmatpush1.msra.mxu0 %v1709
          %1948 = vmatprep.subr.mxu0 %v1714
          %1949 = vmatpush1.msra.mxu0 %v1713
          %1950 = vmatprep.subr.mxu0 %v1718
          %1951 = vmatpush1.msra.mxu0 %v1717
          %1952 = vmatprep.subr.mxu0 %v1722
          %1953 = vmatpush1.msra.mxu0 %v1721
          %1954 = vmatprep.subr.mxu0 %v1726
          %1955 = vmatpush1.msra.mxu0 %v1725
          %1956 = vmatprep.subr.mxu0 %v1730
          %1957 = vmatpush1.msra.mxu0 %v1729
          %1958 = vmatprep.subr.mxu0 %v1734
          %1959 = vmatpush1.msra.mxu0 %v1733
          %1960 = vmatprep.subr.mxu0 %v1738
          %1961 = vmatpush1.msra.mxu0 %v1737
          %1962 = vmatprep.subr.mxu0 %v1742
          %1963 = vmatpush1.msra.mxu0 %v1741
          %1964 = vmatprep.subr.mxu0 %v1746
          %1965 = vmatpush1.msra.mxu0 %v1745
          %1966 = vmatprep.subr.mxu0 %v1750
          %1967 = vmatpush1.msra.mxu0 %v1749
          %1968 = vmatprep.subr.mxu0 %v1754
          %1969 = vmatpush1.msra.mxu0 %v1753
          %1970 = vmatprep.subr.mxu0 %v1758
          %1971 = vmatpush1.msra.mxu0 %v1757
          %1972 = vmatprep.subr.mxu0 %v1762
          %1973 = vmatpush1.msra.mxu0 %v1761
          %1974 = vmatprep.subr.mxu0 %v1766
          %1975 = vmatpush1.msra.mxu0 %v1765
          %1976 = vmatprep.subr.mxu0 %v1770
          %1977 = vmatpush1.msra.mxu0 %v1769
          %1978 = vmatprep.subr.mxu0 %v1774
          %1979 = vmatpush1.msra.mxu0 %v1773
          %1980 = vmatprep.subr.mxu0 %v1778
          %1981 = vmatpush1.msra.mxu0 %v1777
          %1982 = vmatprep.subr.mxu0 %v1782
          %1983 = vmatpush1.msra.mxu0 %v1781
          %1984 = vmatprep.subr.mxu0 %v1786
          %1985 = vmatpush1.msra.mxu0 %v1785
          %1986 = vmatprep.mubr.f32.mxu0 %v1919
          %1987 = vmatmul.mubr.f32.gmra.mrb[0].mxu0 %v1918
          %v1988 = vpop.f32.mrb[0].mxu0
          %v1989 = vadd.f32 0.0, %v1988
          %v1990 = vpop.f32.mrb[0].mxu0
          %v1991 = vadd.f32 0.0, %v1990
          %1992 = vdwg.mxu0
          %1993 = vmatprep.subr.mxu0 %v1790
          %1994 = vmatpush1.msra.mxu0 %v1789
          %1995 = vmatprep.subr.mxu0 %v1794
          %1996 = vmatpush1.msra.mxu0 %v1793
          %1997 = vmatprep.subr.mxu0 %v1798
          %1998 = vmatpush1.msra.mxu0 %v1797
          %1999 = vmatprep.subr.mxu0 %v1802
          %2000 = vmatpush1.msra.mxu0 %v1801
          %2001 = vmatprep.subr.mxu0 %v1806
          %2002 = vmatpush1.msra.mxu0 %v1805
          %2003 = vmatprep.subr.mxu0 %v1810
          %2004 = vmatpush1.msra.mxu0 %v1809
          %2005 = vmatprep.subr.mxu0 %v1814
          %2006 = vmatpush1.msra.mxu0 %v1813
          %2007 = vmatprep.subr.mxu0 %v1818
          %2008 = vmatpush1.msra.mxu0 %v1817
          %2009 = vmatprep.subr.mxu0 %v1822
          %2010 = vmatpush1.msra.mxu0 %v1821
          %2011 = vmatprep.subr.mxu0 %v1826
          %2012 = vmatpush1.msra.mxu0 %v1825
          %2013 = vmatprep.subr.mxu0 %v1830
          %2014 = vmatpush1.msra.mxu0 %v1829
          %2015 = vmatprep.subr.mxu0 %v1834
          %2016 = vmatpush1.msra.mxu0 %v1833
          %2017 = vmatprep.subr.mxu0 %v1838
          %2018 = vmatpush1.msra.mxu0 %v1837
          %2019 = vmatprep.subr.mxu0 %v1842
          %2020 = vmatpush1.msra.mxu0 %v1841
          %2021 = vmatprep.subr.mxu0 %v1846
          %2022 = vmatpush1.msra.mxu0 %v1845
          %2023 = vmatprep.subr.mxu0 %v1850
          %2024 = vmatpush1.msra.mxu0 %v1849
          %2025 = vmatprep.subr.mxu0 %v1854
          %2026 = vmatpush1.msra.mxu0 %v1853
          %2027 = vmatprep.subr.mxu0 %v1858
          %2028 = vmatpush1.msra.mxu0 %v1857
          %2029 = vmatprep.subr.mxu0 %v1862
          %2030 = vmatpush1.msra.mxu0 %v1861
          %2031 = vmatprep.subr.mxu0 %v1866
          %2032 = vmatpush1.msra.mxu0 %v1865
          %2033 = vmatprep.subr.mxu0 %v1870
          %2034 = vmatpush1.msra.mxu0 %v1869
          %2035 = vmatprep.subr.mxu0 %v1874
          %2036 = vmatpush1.msra.mxu0 %v1873
          %2037 = vmatprep.subr.mxu0 %v1878
          %2038 = vmatpush1.msra.mxu0 %v1877
          %2039 = vmatprep.subr.mxu0 %v1882
          %2040 = vmatpush1.msra.mxu0 %v1881
          %2041 = vmatprep.subr.mxu0 %v1886
          %2042 = vmatpush1.msra.mxu0 %v1885
          %2043 = vmatprep.subr.mxu0 %v1890
          %2044 = vmatpush1.msra.mxu0 %v1889
          %2045 = vmatprep.subr.mxu0 %v1894
          %2046 = vmatpush1.msra.mxu0 %v1893
          %2047 = vmatprep.subr.mxu0 %v1898
          %2048 = vmatpush1.msra.mxu0 %v1897
          %2049 = vmatprep.subr.mxu0 %v1902
          %2050 = vmatpush1.msra.mxu0 %v1901
          %2051 = vmatprep.subr.mxu0 %v1906
          %2052 = vmatpush1.msra.mxu0 %v1905
          %2053 = vmatprep.subr.mxu0 %v1910
          %2054 = vmatpush1.msra.mxu0 %v1909
          %2055 = vmatprep.subr.mxu0 %v1914
          %2056 = vmatpush1.msra.mxu0 %v1913
          %2057 = vmatprep.mubr.f32.mxu0 %v1921
          %2058 = vmatmul.mubr.f32.gmra.mrb[0].mxu0 %v1920
          %v2059 = vpop.f32.mrb[0].mxu0
          %v2060 = vadd.f32 %v1989, %v2059
          %v2061 = vpop.f32.mrb[0].mxu0
          %v2062 = vadd.f32 %v1991, %v2061
          %2063 = vdwg.mxu0
          %2064 = vmatprep.subr.mxu0 %v1664
          %2065 = vmatpush1.msra.mxu0 %v1663
          %2066 = vmatprep.subr.mxu0 %v1668
          %2067 = vmatpush1.msra.mxu0 %v1667
          %2068 = vmatprep.subr.mxu0 %v1672
          %2069 = vmatpush1.msra.mxu0 %v1671
          %2070 = vmatprep.subr.mxu0 %v1676
          %2071 = vmatpush1.msra.mxu0 %v1675
          %2072 = vmatprep.subr.mxu0 %v1680
          %2073 = vmatpush1.msra.mxu0 %v1679
          %2074 = vmatprep.subr.mxu0 %v1684
          %2075 = vmatpush1.msra.mxu0 %v1683
          %2076 = vmatprep.subr.mxu0 %v1688
          %2077 = vmatpush1.msra.mxu0 %v1687
          %2078 = vmatprep.subr.mxu0 %v1692
          %2079 = vmatpush1.msra.mxu0 %v1691
          %2080 = vmatprep.subr.mxu0 %v1696
          %2081 = vmatpush1.msra.mxu0 %v1695
          %2082 = vmatprep.subr.mxu0 %v1700
          %2083 = vmatpush1.msra.mxu0 %v1699
          %2084 = vmatprep.subr.mxu0 %v1704
          %2085 = vmatpush1.msra.mxu0 %v1703
          %2086 = vmatprep.subr.mxu0 %v1708
          %2087 = vmatpush1.msra.mxu0 %v1707
          %2088 = vmatprep.subr.mxu0 %v1712
          %2089 = vmatpush1.msra.mxu0 %v1711
          %2090 = vmatprep.subr.mxu0 %v1716
          %2091 = vmatpush1.msra.mxu0 %v1715
          %2092 = vmatprep.subr.mxu0 %v1720
          %2093 = vmatpush1.msra.mxu0 %v1719
          %2094 = vmatprep.subr.mxu0 %v1724
          %2095 = vmatpush1.msra.mxu0 %v1723
          %2096 = vmatprep.subr.mxu0 %v1728
          %2097 = vmatpush1.msra.mxu0 %v1727
          %2098 = vmatprep.subr.mxu0 %v1732
          %2099 = vmatpush1.msra.mxu0 %v1731
          %2100 = vmatprep.subr.mxu0 %v1736
          %2101 = vmatpush1.msra.mxu0 %v1735
          %2102 = vmatprep.subr.mxu0 %v1740
          %2103 = vmatpush1.msra.mxu0 %v1739
          %2104 = vmatprep.subr.mxu0 %v1744
          %2105 = vmatpush1.msra.mxu0 %v1743
          %2106 = vmatprep.subr.mxu0 %v1748
          %2107 = vmatpush1.msra.mxu0 %v1747
          %2108 = vmatprep.subr.mxu0 %v1752
          %2109 = vmatpush1.msra.mxu0 %v1751
          %2110 = vmatprep.subr.mxu0 %v1756
          %2111 = vmatpush1.msra.mxu0 %v1755
          %2112 = vmatprep.subr.mxu0 %v1760
          %2113 = vmatpush1.msra.mxu0 %v1759
          %2114 = vmatprep.subr.mxu0 %v1764
          %2115 = vmatpush1.msra.mxu0 %v1763
          %2116 = vmatprep.subr.mxu0 %v1768
          %2117 = vmatpush1.msra.mxu0 %v1767
          %2118 = vmatprep.subr.mxu0 %v1772
          %2119 = vmatpush1.msra.mxu0 %v1771
          %2120 = vmatprep.subr.mxu0 %v1776
          %2121 = vmatpush1.msra.mxu0 %v1775
          %2122 = vmatprep.subr.mxu0 %v1780
          %2123 = vmatpush1.msra.mxu0 %v1779
          %2124 = vmatprep.subr.mxu0 %v1784
          %2125 = vmatpush1.msra.mxu0 %v1783
          %2126 = vmatprep.subr.mxu0 %v1788
          %2127 = vmatpush1.msra.mxu0 %v1787
          %2128 = vmatprep.mubr.f32.mxu0 %v1919
          %2129 = vmatmul.mubr.f32.gmra.mrb[0].mxu0 %v1918
          %v2130 = vpop.f32.mrb[0].mxu0
          %v2131 = vadd.f32 0.0, %v2130
          %v2132 = vpop.f32.mrb[0].mxu0
          %v2133 = vadd.f32 0.0, %v2132
          %2134 = vdwg.mxu0
          %2135 = vmatprep.subr.mxu0 %v1792
          %2136 = vmatpush1.msra.mxu0 %v1791
          %2137 = vmatprep.subr.mxu0 %v1796
          %2138 = vmatpush1.msra.mxu0 %v1795
          %2139 = vmatprep.subr.mxu0 %v1800
          %2140 = vmatpush1.msra.mxu0 %v1799
          %2141 = vmatprep.subr.mxu0 %v1804
          %2142 = vmatpush1.msra.mxu0 %v1803
          %2143 = vmatprep.subr.mxu0 %v1808
          %2144 = vmatpush1.msra.mxu0 %v1807
          %2145 = vmatprep.subr.mxu0 %v1812
          %2146 = vmatpush1.msra.mxu0 %v1811
          %2147 = vmatprep.subr.mxu0 %v1816
          %2148 = vmatpush1.msra.mxu0 %v1815
          %2149 = vmatprep.subr.mxu0 %v1820
          %2150 = vmatpush1.msra.mxu0 %v1819
          %2151 = vmatprep.subr.mxu0 %v1824
          %2152 = vmatpush1.msra.mxu0 %v1823
          %2153 = vmatprep.subr.mxu0 %v1828
          %2154 = vmatpush1.msra.mxu0 %v1827
          %2155 = vmatprep.subr.mxu0 %v1832
          %2156 = vmatpush1.msra.mxu0 %v1831
          %2157 = vmatprep.subr.mxu0 %v1836
          %2158 = vmatpush1.msra.mxu0 %v1835
          %2159 = vmatprep.subr.mxu0 %v1840
          %2160 = vmatpush1.msra.mxu0 %v1839
          %2161 = vmatprep.subr.mxu0 %v1844
          %2162 = vmatpush1.msra.mxu0 %v1843
          %2163 = vmatprep.subr.mxu0 %v1848
          %2164 = vmatpush1.msra.mxu0 %v1847
          %2165 = vmatprep.subr.mxu0 %v1852
          %2166 = vmatpush1.msra.mxu0 %v1851
          %2167 = vmatprep.subr.mxu0 %v1856
          %2168 = vmatpush1.msra.mxu0 %v1855
          %2169 = vmatprep.subr.mxu0 %v1860
          %2170 = vmatpush1.msra.mxu0 %v1859
          %2171 = vmatprep.subr.mxu0 %v1864
          %2172 = vmatpush1.msra.mxu0 %v1863
          %2173 = vmatprep.subr.mxu0 %v1868
          %2174 = vmatpush1.msra.mxu0 %v1867
          %2175 = vmatprep.subr.mxu0 %v1872
          %2176 = vmatpush1.msra.mxu0 %v1871
          %2177 = vmatprep.subr.mxu0 %v1876
          %2178 = vmatpush1.msra.mxu0 %v1875
          %2179 = vmatprep.subr.mxu0 %v1880
          %2180 = vmatpush1.msra.mxu0 %v1879
          %2181 = vmatprep.subr.mxu0 %v1884
          %2182 = vmatpush1.msra.mxu0 %v1883
          %2183 = vmatprep.subr.mxu0 %v1888
          %2184 = vmatpush1.msra.mxu0 %v1887
          %2185 = vmatprep.subr.mxu0 %v1892
          %2186 = vmatpush1.msra.mxu0 %v1891
          %2187 = vmatprep.subr.mxu0 %v1896
          %2188 = vmatpush1.msra.mxu0 %v1895
          %2189 = vmatprep.subr.mxu0 %v1900
          %2190 = vmatpush1.msra.mxu0 %v1899
          %2191 = vmatprep.subr.mxu0 %v1904
          %2192 = vmatpush1.msra.mxu0 %v1903
          %2193 = vmatprep.subr.mxu0 %v1908
          %2194 = vmatpush1.msra.mxu0 %v1907
          %2195 = vmatprep.subr.mxu0 %v1912
          %2196 = vmatpush1.msra.mxu0 %v1911
          %2197 = vmatprep.subr.mxu0 %v1916
          %2198 = vmatpush1.msra.mxu0 %v1915
          %2199 = vmatprep.mubr.f32.mxu0 %v1921
          %2200 = vmatmul.mubr.f32.gmra.mrb[0].mxu0 %v1920
          %v2201 = vpop.f32.mrb[0].mxu0
          %v2202 = vadd.f32 %v2131, %v2201
          %v2203 = vpop.f32.mrb[0].mxu0
          %v2204 = vadd.f32 %v2133, %v2203
          %2205 = vdwg.mxu0
          %2206 = vmatprep.subr.mxu0 %v1274
          %2207 = vmatpush1.msra.mxu0 %v1273
          %2208 = vmatprep.subr.mxu0 %v1278
          %2209 = vmatpush1.msra.mxu0 %v1277
          %2210 = vmatprep.subr.mxu0 %v1282
          %2211 = vmatpush1.msra.mxu0 %v1281
          %2212 = vmatprep.subr.mxu0 %v1286
          %2213 = vmatpush1.msra.mxu0 %v1285
          %2214 = vmatprep.subr.mxu0 %v1290
          %2215 = vmatpush1.msra.mxu0 %v1289
          %2216 = vmatprep.subr.mxu0 %v1294
          %2217 = vmatpush1.msra.mxu0 %v1293
          %2218 = vmatprep.subr.mxu0 %v1298
          %2219 = vmatpush1.msra.mxu0 %v1297
          %2220 = vmatprep.subr.mxu0 %v1302
          %2221 = vmatpush1.msra.mxu0 %v1301
          %2222 = vmatprep.subr.mxu0 %v1306
          %2223 = vmatpush1.msra.mxu0 %v1305
          %2224 = vmatprep.subr.mxu0 %v1310
          %2225 = vmatpush1.msra.mxu0 %v1309
          %2226 = vmatprep.subr.mxu0 %v1314
          %2227 = vmatpush1.msra.mxu0 %v1313
          %2228 = vmatprep.subr.mxu0 %v1318
          %2229 = vmatpush1.msra.mxu0 %v1317
          %2230 = vmatprep.subr.mxu0 %v1322
          %2231 = vmatpush1.msra.mxu0 %v1321
          %2232 = vmatprep.subr.mxu0 %v1326
          %2233 = vmatpush1.msra.mxu0 %v1325
          %2234 = vmatprep.subr.mxu0 %v1330
          %2235 = vmatpush1.msra.mxu0 %v1329
          %2236 = vmatprep.subr.mxu0 %v1334
          %2237 = vmatpush1.msra.mxu0 %v1333
          %2238 = vmatprep.subr.mxu0 %v1338
          %2239 = vmatpush1.msra.mxu0 %v1337
          %2240 = vmatprep.subr.mxu0 %v1342
          %2241 = vmatpush1.msra.mxu0 %v1341
          %2242 = vmatprep.subr.mxu0 %v1346
          %2243 = vmatpush1.msra.mxu0 %v1345
          %2244 = vmatprep.subr.mxu0 %v1350
          %2245 = vmatpush1.msra.mxu0 %v1349
          %2246 = vmatprep.subr.mxu0 %v1354
          %2247 = vmatpush1.msra.mxu0 %v1353
          %2248 = vmatprep.subr.mxu0 %v1358
          %2249 = vmatpush1.msra.mxu0 %v1357
          %2250 = vmatprep.subr.mxu0 %v1362
          %2251 = vmatpush1.msra.mxu0 %v1361
          %2252 = vmatprep.subr.mxu0 %v1366
          %2253 = vmatpush1.msra.mxu0 %v1365
          %2254 = vmatprep.subr.mxu0 %v1370
          %2255 = vmatpush1.msra.mxu0 %v1369
          %2256 = vmatprep.subr.mxu0 %v1374
          %2257 = vmatpush1.msra.mxu0 %v1373
          %2258 = vmatprep.subr.mxu0 %v1378
          %2259 = vmatpush1.msra.mxu0 %v1377
          %2260 = vmatprep.subr.mxu0 %v1382
          %2261 = vmatpush1.msra.mxu0 %v1381
          %2262 = vmatprep.subr.mxu0 %v1386
          %2263 = vmatpush1.msra.mxu0 %v1385
          %2264 = vmatprep.subr.mxu0 %v1390
          %2265 = vmatpush1.msra.mxu0 %v1389
          %2266 = vmatprep.subr.mxu0 %v1394
          %2267 = vmatpush1.msra.mxu0 %v1393
          %2268 = vmatprep.subr.mxu0 %v1398
          %2269 = vmatpush1.msra.mxu0 %v1397
          %2270 = vmatprep.mubr.f32.mxu0 %v1530
          %2271 = vmatmul.mubr.f32.gmra.mrb[0].mxu0 %v1529
          %v2272 = vpop.f32.mrb[0].mxu0
          %v2273 = vadd.f32 %v2060, %v2272
          %v2274 = vpop.f32.mrb[0].mxu0
          %v2275 = vadd.f32 %v2062, %v2274
          %2276 = vdwg.mxu0
          %2277 = vmatprep.subr.mxu0 %v1402
          %2278 = vmatpush1.msra.mxu0 %v1401
          %2279 = vmatprep.subr.mxu0 %v1406
          %2280 = vmatpush1.msra.mxu0 %v1405
          %2281 = vmatprep.subr.mxu0 %v1410
          %2282 = vmatpush1.msra.mxu0 %v1409
          %2283 = vmatprep.subr.mxu0 %v1414
          %2284 = vmatpush1.msra.mxu0 %v1413
          %2285 = vmatprep.subr.mxu0 %v1418
          %2286 = vmatpush1.msra.mxu0 %v1417
          %2287 = vmatprep.subr.mxu0 %v1422
          %2288 = vmatpush1.msra.mxu0 %v1421
          %2289 = vmatprep.subr.mxu0 %v1426
          %2290 = vmatpush1.msra.mxu0 %v1425
          %2291 = vmatprep.subr.mxu0 %v1430
          %2292 = vmatpush1.msra.mxu0 %v1429
          %2293 = vmatprep.subr.mxu0 %v1434
          %2294 = vmatpush1.msra.mxu0 %v1433
          %2295 = vmatprep.subr.mxu0 %v1438
          %2296 = vmatpush1.msra.mxu0 %v1437
          %2297 = vmatprep.subr.mxu0 %v1442
          %2298 = vmatpush1.msra.mxu0 %v1441
          %2299 = vmatprep.subr.mxu0 %v1446
          %2300 = vmatpush1.msra.mxu0 %v1445
          %2301 = vmatprep.subr.mxu0 %v1450
          %2302 = vmatpush1.msra.mxu0 %v1449
          %2303 = vmatprep.subr.mxu0 %v1454
          %2304 = vmatpush1.msra.mxu0 %v1453
          %2305 = vmatprep.subr.mxu0 %v1458
          %2306 = vmatpush1.msra.mxu0 %v1457
          %2307 = vmatprep.subr.mxu0 %v1462
          %2308 = vmatpush1.msra.mxu0 %v1461
          %2309 = vmatprep.subr.mxu0 %v1466
          %2310 = vmatpush1.msra.mxu0 %v1465
          %2311 = vmatprep.subr.mxu0 %v1470
          %2312 = vmatpush1.msra.mxu0 %v1469
          %2313 = vmatprep.subr.mxu0 %v1474
          %2314 = vmatpush1.msra.mxu0 %v1473
          %2315 = vmatprep.subr.mxu0 %v1478
          %2316 = vmatpush1.msra.mxu0 %v1477
          %2317 = vmatprep.subr.mxu0 %v1482
          %2318 = vmatpush1.msra.mxu0 %v1481
          %2319 = vmatprep.subr.mxu0 %v1486
          %2320 = vmatpush1.msra.mxu0 %v1485
          %2321 = vmatprep.subr.mxu0 %v1490
          %2322 = vmatpush1.msra.mxu0 %v1489
          %2323 = vmatprep.subr.mxu0 %v1494
          %2324 = vmatpush1.msra.mxu0 %v1493
          %2325 = vmatprep.subr.mxu0 %v1498
          %2326 = vmatpush1.msra.mxu0 %v1497
          %2327 = vmatprep.subr.mxu0 %v1502
          %2328 = vmatpush1.msra.mxu0 %v1501
          %2329 = vmatprep.subr.mxu0 %v1506
          %2330 = vmatpush1.msra.mxu0 %v1505
          %2331 = vmatprep.subr.mxu0 %v1510
          %2332 = vmatpush1.msra.mxu0 %v1509
          %2333 = vmatprep.subr.mxu0 %v1514
          %2334 = vmatpush1.msra.mxu0 %v1513
          %2335 = vmatprep.subr.mxu0 %v1518
          %2336 = vmatpush1.msra.mxu0 %v1517
          %2337 = vmatprep.subr.mxu0 %v1522
          %2338 = vmatpush1.msra.mxu0 %v1521
          %2339 = vmatprep.subr.mxu0 %v1526
          %2340 = vmatpush1.msra.mxu0 %v1525
          %2341 = vmatprep.mubr.f32.mxu0 %v1532
          %2342 = vmatmul.mubr.f32.gmra.mrb[0].mxu0 %v1531
          %v2343 = vpop.f32.mrb[0].mxu0
          %v2344 = vadd.f32 %v2273, %v2343
          %v2345 = vpop.f32.mrb[0].mxu0
          %v2346 = vadd.f32 %v2275, %v2345
          %2347 = vdwg.mxu0
          %2348 = vmatprep.subr.mxu0 %v1276
          %2349 = vmatpush1.msra.mxu0 %v1275
          %2350 = vmatprep.subr.mxu0 %v1280
          %2351 = vmatpush1.msra.mxu0 %v1279
          %2352 = vmatprep.subr.mxu0 %v1284
          %2353 = vmatpush1.msra.mxu0 %v1283
          %2354 = vmatprep.subr.mxu0 %v1288
          %2355 = vmatpush1.msra.mxu0 %v1287
          %2356 = vmatprep.subr.mxu0 %v1292
          %2357 = vmatpush1.msra.mxu0 %v1291
          %2358 = vmatprep.subr.mxu0 %v1296
          %2359 = vmatpush1.msra.mxu0 %v1295
          %2360 = vmatprep.subr.mxu0 %v1300
          %2361 = vmatpush1.msra.mxu0 %v1299
          %2362 = vmatprep.subr.mxu0 %v1304
          %2363 = vmatpush1.msra.mxu0 %v1303
          %2364 = vmatprep.subr.mxu0 %v1308
          %2365 = vmatpush1.msra.mxu0 %v1307
          %2366 = vmatprep.subr.mxu0 %v1312
          %2367 = vmatpush1.msra.mxu0 %v1311
          %2368 = vmatprep.subr.mxu0 %v1316
          %2369 = vmatpush1.msra.mxu0 %v1315
          %2370 = vmatprep.subr.mxu0 %v1320
          %2371 = vmatpush1.msra.mxu0 %v1319
          %2372 = vmatprep.subr.mxu0 %v1324
          %2373 = vmatpush1.msra.mxu0 %v1323
          %2374 = vmatprep.subr.mxu0 %v1328
          %2375 = vmatpush1.msra.mxu0 %v1327
          %2376 = vmatprep.subr.mxu0 %v1332
          %2377 = vmatpush1.msra.mxu0 %v1331
          %2378 = vmatprep.subr.mxu0 %v1336
          %2379 = vmatpush1.msra.mxu0 %v1335
          %2380 = vmatprep.subr.mxu0 %v1340
          %2381 = vmatpush1.msra.mxu0 %v1339
          %2382 = vmatprep.subr.mxu0 %v1344
          %2383 = vmatpush1.msra.mxu0 %v1343
          %2384 = vmatprep.subr.mxu0 %v1348
          %2385 = vmatpush1.msra.mxu0 %v1347
          %2386 = vmatprep.subr.mxu0 %v1352
          %2387 = vmatpush1.msra.mxu0 %v1351
          %2388 = vmatprep.subr.mxu0 %v1356
          %2389 = vmatpush1.msra.mxu0 %v1355
          %2390 = vmatprep.subr.mxu0 %v1360
          %2391 = vmatpush1.msra.mxu0 %v1359
          %2392 = vmatprep.subr.mxu0 %v1364
          %2393 = vmatpush1.msra.mxu0 %v1363
          %2394 = vmatprep.subr.mxu0 %v1368
          %2395 = vmatpush1.msra.mxu0 %v1367
          %2396 = vmatprep.subr.mxu0 %v1372
          %2397 = vmatpush1.msra.mxu0 %v1371
          %2398 = vmatprep.subr.mxu0 %v1376
          %2399 = vmatpush1.msra.mxu0 %v1375
          %2400 = vmatprep.subr.mxu0 %v1380
          %2401 = vmatpush1.msra.mxu0 %v1379
          %2402 = vmatprep.subr.mxu0 %v1384
          %2403 = vmatpush1.msra.mxu0 %v1383
          %2404 = vmatprep.subr.mxu0 %v1388
          %2405 = vmatpush1.msra.mxu0 %v1387
          %2406 = vmatprep.subr.mxu0 %v1392
          %2407 = vmatpush1.msra.mxu0 %v1391
          %2408 = vmatprep.subr.mxu0 %v1396
          %2409 = vmatpush1.msra.mxu0 %v1395
          %2410 = vmatprep.subr.mxu0 %v1400
          %2411 = vmatpush1.msra.mxu0 %v1399
          %2412 = vmatprep.mubr.f32.mxu0 %v1530
          %2413 = vmatmul.mubr.f32.gmra.mrb[0].mxu0 %v1529
          %v2414 = vpop.f32.mrb[0].mxu0
          %v2415 = vadd.f32 %v2202, %v2414
          %v2416 = vpop.f32.mrb[0].mxu0
          %v2417 = vadd.f32 %v2204, %v2416
          %2418 = vdwg.mxu0
          %2419 = vmatprep.subr.mxu0 %v1404
          %2420 = vmatpush1.msra.mxu0 %v1403
          %2421 = vmatprep.subr.mxu0 %v1408
          %2422 = vmatpush1.msra.mxu0 %v1407
          %2423 = vmatprep.subr.mxu0 %v1412
          %2424 = vmatpush1.msra.mxu0 %v1411
          %2425 = vmatprep.subr.mxu0 %v1416
          %2426 = vmatpush1.msra.mxu0 %v1415
          %2427 = vmatprep.subr.mxu0 %v1420
          %2428 = vmatpush1.msra.mxu0 %v1419
          %2429 = vmatprep.subr.mxu0 %v1424
          %2430 = vmatpush1.msra.mxu0 %v1423
          %2431 = vmatprep.subr.mxu0 %v1428
          %2432 = vmatpush1.msra.mxu0 %v1427
          %2433 = vmatprep.subr.mxu0 %v1432
          %2434 = vmatpush1.msra.mxu0 %v1431
          %2435 = vmatprep.subr.mxu0 %v1436
          %2436 = vmatpush1.msra.mxu0 %v1435
          %2437 = vmatprep.subr.mxu0 %v1440
          %2438 = vmatpush1.msra.mxu0 %v1439
          %2439 = vmatprep.subr.mxu0 %v1444
          %2440 = vmatpush1.msra.mxu0 %v1443
          %2441 = vmatprep.subr.mxu0 %v1448
          %2442 = vmatpush1.msra.mxu0 %v1447
          %2443 = vmatprep.subr.mxu0 %v1452
          %2444 = vmatpush1.msra.mxu0 %v1451
          %2445 = vmatprep.subr.mxu0 %v1456
          %2446 = vmatpush1.msra.mxu0 %v1455
          %2447 = vmatprep.subr.mxu0 %v1460
          %2448 = vmatpush1.msra.mxu0 %v1459
          %2449 = vmatprep.subr.mxu0 %v1464
          %2450 = vmatpush1.msra.mxu0 %v1463
          %2451 = vmatprep.subr.mxu0 %v1468
          %2452 = vmatpush1.msra.mxu0 %v1467
          %2453 = vmatprep.subr.mxu0 %v1472
          %2454 = vmatpush1.msra.mxu0 %v1471
          %2455 = vmatprep.subr.mxu0 %v1476
          %2456 = vmatpush1.msra.mxu0 %v1475
          %2457 = vmatprep.subr.mxu0 %v1480
          %2458 = vmatpush1.msra.mxu0 %v1479
          %2459 = vmatprep.subr.mxu0 %v1484
          %2460 = vmatpush1.msra.mxu0 %v1483
          %2461 = vmatprep.subr.mxu0 %v1488
          %2462 = vmatpush1.msra.mxu0 %v1487
          %2463 = vmatprep.subr.mxu0 %v1492
          %2464 = vmatpush1.msra.mxu0 %v1491
          %2465 = vmatprep.subr.mxu0 %v1496
          %2466 = vmatpush1.msra.mxu0 %v1495
          %2467 = vmatprep.subr.mxu0 %v1500
          %2468 = vmatpush1.msra.mxu0 %v1499
          %2469 = vmatprep.subr.mxu0 %v1504
          %2470 = vmatpush1.msra.mxu0 %v1503
          %2471 = vmatprep.subr.mxu0 %v1508
          %2472 = vmatpush1.msra.mxu0 %v1507
          %2473 = vmatprep.subr.mxu0 %v1512
          %2474 = vmatpush1.msra.mxu0 %v1511
          %2475 = vmatprep.subr.mxu0 %v1516
          %2476 = vmatpush1.msra.mxu0 %v1515
          %2477 = vmatprep.subr.mxu0 %v1520
          %2478 = vmatpush1.msra.mxu0 %v1519
          %2479 = vmatprep.subr.mxu0 %v1524
          %2480 = vmatpush1.msra.mxu0 %v1523
          %2481 = vmatprep.subr.mxu0 %v1528
          %2482 = vmatpush1.msra.mxu0 %v1527
          %2483 = vmatprep.mubr.f32.mxu0 %v1532
          %2484 = vmatmul.mubr.f32.gmra.mrb[0].mxu0 %v1531
          %v2485 = vpop.f32.mrb[0].mxu0
          %v2486 = vadd.f32 %v2415, %v2485
          %v2487 = vpop.f32.mrb[0].mxu0
          %v2488 = vadd.f32 %v2417, %v2487
          %2489 = vdwg.mxu0
          %v2490 = vld [vmem:[%s345 + $0x800] sm:$0xff]
          %v2491 = vld [vmem:[%s345 + $0x808] sm:$0xff]
          %v2492 = vld [vmem:[%s345 + $0x810] sm:$0xff]
          %v2493 = vld [vmem:[%s345 + $0x818] sm:$0xff]
          %v2494 = vld [vmem:[%s345 + $0x820] sm:$0xff]
          %v2495 = vld [vmem:[%s345 + $0x828] sm:$0xff]
          %v2496 = vld [vmem:[%s345 + $0x830] sm:$0xff]
          %v2497 = vld [vmem:[%s345 + $0x838] sm:$0xff]
          %v2498 = vld [vmem:[%s345 + $0x840] sm:$0xff]
          %v2499 = vld [vmem:[%s345 + $0x848] sm:$0xff]
          %v2500 = vld [vmem:[%s345 + $0x850] sm:$0xff]
          %v2501 = vld [vmem:[%s345 + $0x858] sm:$0xff]
          %v2502 = vld [vmem:[%s345 + $0x860] sm:$0xff]
          %v2503 = vld [vmem:[%s345 + $0x868] sm:$0xff]
          %v2504 = vld [vmem:[%s345 + $0x870] sm:$0xff]
          %v2505 = vld [vmem:[%s345 + $0x878] sm:$0xff]
          %v2506 = vld [vmem:[%s345 + $0x880] sm:$0xff]
          %v2507 = vld [vmem:[%s345 + $0x888] sm:$0xff]
          %v2508 = vld [vmem:[%s345 + $0x890] sm:$0xff]
          %v2509 = vld [vmem:[%s345 + $0x898] sm:$0xff]
          %v2510 = vld [vmem:[%s345 + $0x8a0] sm:$0xff]
          %v2511 = vld [vmem:[%s345 + $0x8a8] sm:$0xff]
          %v2512 = vld [vmem:[%s345 + $0x8b0] sm:$0xff]
          %v2513 = vld [vmem:[%s345 + $0x8b8] sm:$0xff]
          %v2514 = vld [vmem:[%s345 + $0x8c0] sm:$0xff]
          %v2515 = vld [vmem:[%s345 + $0x8c8] sm:$0xff]
          %v2516 = vld [vmem:[%s345 + $0x8d0] sm:$0xff]
          %v2517 = vld [vmem:[%s345 + $0x8d8] sm:$0xff]
          %v2518 = vld [vmem:[%s345 + $0x8e0] sm:$0xff]
          %v2519 = vld [vmem:[%s345 + $0x8e8] sm:$0xff]
          %v2520 = vld [vmem:[%s345 + $0x8f0] sm:$0xff]
          %v2521 = vld [vmem:[%s345 + $0x8f8] sm:$0xff]
          %v2522 = vld [vmem:[%s345 + $0x900] sm:$0xff]
          %v2523 = vld [vmem:[%s345 + $0x908] sm:$0xff]
          %v2524 = vld [vmem:[%s345 + $0x910] sm:$0xff]
          %v2525 = vld [vmem:[%s345 + $0x918] sm:$0xff]
          %v2526 = vld [vmem:[%s345 + $0x920] sm:$0xff]
          %v2527 = vld [vmem:[%s345 + $0x928] sm:$0xff]
          %v2528 = vld [vmem:[%s345 + $0x930] sm:$0xff]
          %v2529 = vld [vmem:[%s345 + $0x938] sm:$0xff]
          %v2530 = vld [vmem:[%s345 + $0x940] sm:$0xff]
          %v2531 = vld [vmem:[%s345 + $0x948] sm:$0xff]
          %v2532 = vld [vmem:[%s345 + $0x950] sm:$0xff]
          %v2533 = vld [vmem:[%s345 + $0x958] sm:$0xff]
          %v2534 = vld [vmem:[%s345 + $0x960] sm:$0xff]
          %v2535 = vld [vmem:[%s345 + $0x968] sm:$0xff]
          %v2536 = vld [vmem:[%s345 + $0x970] sm:$0xff]
          %v2537 = vld [vmem:[%s345 + $0x978] sm:$0xff]
          %v2538 = vld [vmem:[%s345 + $0x980] sm:$0xff]
          %v2539 = vld [vmem:[%s345 + $0x988] sm:$0xff]
          %v2540 = vld [vmem:[%s345 + $0x990] sm:$0xff]
          %v2541 = vld [vmem:[%s345 + $0x998] sm:$0xff]
          %v2542 = vld [vmem:[%s345 + $0x9a0] sm:$0xff]
          %v2543 = vld [vmem:[%s345 + $0x9a8] sm:$0xff]
          %v2544 = vld [vmem:[%s345 + $0x9b0] sm:$0xff]
          %v2545 = vld [vmem:[%s345 + $0x9b8] sm:$0xff]
          %v2546 = vld [vmem:[%s345 + $0x9c0] sm:$0xff]
          %v2547 = vld [vmem:[%s345 + $0x9c8] sm:$0xff]
          %v2548 = vld [vmem:[%s345 + $0x9d0] sm:$0xff]
          %v2549 = vld [vmem:[%s345 + $0x9d8] sm:$0xff]
          %v2550 = vld [vmem:[%s345 + $0x9e0] sm:$0xff]
          %v2551 = vld [vmem:[%s345 + $0x9e8] sm:$0xff]
          %v2552 = vld [vmem:[%s345 + $0x9f0] sm:$0xff]
          %v2553 = vld [vmem:[%s345 + $0x9f8] sm:$0xff]
          %v2554 = vld [vmem:[%s345 + $0xa00] sm:$0xff]
          %v2555 = vld [vmem:[%s345 + $0xa08] sm:$0xff]
          %v2556 = vld [vmem:[%s345 + $0xa10] sm:$0xff]
          %v2557 = vld [vmem:[%s345 + $0xa18] sm:$0xff]
          %v2558 = vld [vmem:[%s345 + $0xa20] sm:$0xff]
          %v2559 = vld [vmem:[%s345 + $0xa28] sm:$0xff]
          %v2560 = vld [vmem:[%s345 + $0xa30] sm:$0xff]
          %v2561 = vld [vmem:[%s345 + $0xa38] sm:$0xff]
          %v2562 = vld [vmem:[%s345 + $0xa40] sm:$0xff]
          %v2563 = vld [vmem:[%s345 + $0xa48] sm:$0xff]
          %v2564 = vld [vmem:[%s345 + $0xa50] sm:$0xff]
          %v2565 = vld [vmem:[%s345 + $0xa58] sm:$0xff]
          %v2566 = vld [vmem:[%s345 + $0xa60] sm:$0xff]
          %v2567 = vld [vmem:[%s345 + $0xa68] sm:$0xff]
          %v2568 = vld [vmem:[%s345 + $0xa70] sm:$0xff]
          %v2569 = vld [vmem:[%s345 + $0xa78] sm:$0xff]
          %v2570 = vld [vmem:[%s345 + $0xa80] sm:$0xff]
          %v2571 = vld [vmem:[%s345 + $0xa88] sm:$0xff]
          %v2572 = vld [vmem:[%s345 + $0xa90] sm:$0xff]
          %v2573 = vld [vmem:[%s345 + $0xa98] sm:$0xff]
          %v2574 = vld [vmem:[%s345 + $0xaa0] sm:$0xff]
          %v2575 = vld [vmem:[%s345 + $0xaa8] sm:$0xff]
          %v2576 = vld [vmem:[%s345 + $0xab0] sm:$0xff]
          %v2577 = vld [vmem:[%s345 + $0xab8] sm:$0xff]
          %v2578 = vld [vmem:[%s345 + $0xac0] sm:$0xff]
          %v2579 = vld [vmem:[%s345 + $0xac8] sm:$0xff]
          %v2580 = vld [vmem:[%s345 + $0xad0] sm:$0xff]
          %v2581 = vld [vmem:[%s345 + $0xad8] sm:$0xff]
          %v2582 = vld [vmem:[%s345 + $0xae0] sm:$0xff]
          %v2583 = vld [vmem:[%s345 + $0xae8] sm:$0xff]
          %v2584 = vld [vmem:[%s345 + $0xaf0] sm:$0xff]
          %v2585 = vld [vmem:[%s345 + $0xaf8] sm:$0xff]
          %v2586 = vld [vmem:[%s345 + $0xb00] sm:$0xff]
          %v2587 = vld [vmem:[%s345 + $0xb08] sm:$0xff]
          %v2588 = vld [vmem:[%s345 + $0xb10] sm:$0xff]
          %v2589 = vld [vmem:[%s345 + $0xb18] sm:$0xff]
          %v2590 = vld [vmem:[%s345 + $0xb20] sm:$0xff]
          %v2591 = vld [vmem:[%s345 + $0xb28] sm:$0xff]
          %v2592 = vld [vmem:[%s345 + $0xb30] sm:$0xff]
          %v2593 = vld [vmem:[%s345 + $0xb38] sm:$0xff]
          %v2594 = vld [vmem:[%s345 + $0xb40] sm:$0xff]
          %v2595 = vld [vmem:[%s345 + $0xb48] sm:$0xff]
          %v2596 = vld [vmem:[%s345 + $0xb50] sm:$0xff]
          %v2597 = vld [vmem:[%s345 + $0xb58] sm:$0xff]
          %v2598 = vld [vmem:[%s345 + $0xb60] sm:$0xff]
          %v2599 = vld [vmem:[%s345 + $0xb68] sm:$0xff]
          %v2600 = vld [vmem:[%s345 + $0xb70] sm:$0xff]
          %v2601 = vld [vmem:[%s345 + $0xb78] sm:$0xff]
          %v2602 = vld [vmem:[%s345 + $0xb80] sm:$0xff]
          %v2603 = vld [vmem:[%s345 + $0xb88] sm:$0xff]
          %v2604 = vld [vmem:[%s345 + $0xb90] sm:$0xff]
          %v2605 = vld [vmem:[%s345 + $0xb98] sm:$0xff]
          %v2606 = vld [vmem:[%s345 + $0xba0] sm:$0xff]
          %v2607 = vld [vmem:[%s345 + $0xba8] sm:$0xff]
          %v2608 = vld [vmem:[%s345 + $0xbb0] sm:$0xff]
          %v2609 = vld [vmem:[%s345 + $0xbb8] sm:$0xff]
          %v2610 = vld [vmem:[%s345 + $0xbc0] sm:$0xff]
          %v2611 = vld [vmem:[%s345 + $0xbc8] sm:$0xff]
          %v2612 = vld [vmem:[%s345 + $0xbd0] sm:$0xff]
          %v2613 = vld [vmem:[%s345 + $0xbd8] sm:$0xff]
          %v2614 = vld [vmem:[%s345 + $0xbe0] sm:$0xff]
          %v2615 = vld [vmem:[%s345 + $0xbe8] sm:$0xff]
          %v2616 = vld [vmem:[%s345 + $0xbf0] sm:$0xff]
          %v2617 = vld [vmem:[%s345 + $0xbf8] sm:$0xff]
          %v2618 = vunpack.c.l.bf16 %v2490
          %v2619 = vunpack.c.h.bf16 %v2490
          %v2620 = vunpack.c.l.bf16 %v2491
          %v2621 = vunpack.c.h.bf16 %v2491
          %v2622 = vunpack.c.l.bf16 %v2492
          %v2623 = vunpack.c.h.bf16 %v2492
          %v2624 = vunpack.c.l.bf16 %v2493
          %v2625 = vunpack.c.h.bf16 %v2493
          %v2626 = vunpack.c.l.bf16 %v2494
          %v2627 = vunpack.c.h.bf16 %v2494
          %v2628 = vunpack.c.l.bf16 %v2495
          %v2629 = vunpack.c.h.bf16 %v2495
          %v2630 = vunpack.c.l.bf16 %v2496
          %v2631 = vunpack.c.h.bf16 %v2496
          %v2632 = vunpack.c.l.bf16 %v2497
          %v2633 = vunpack.c.h.bf16 %v2497
          %v2634 = vunpack.c.l.bf16 %v2498
          %v2635 = vunpack.c.h.bf16 %v2498
          %v2636 = vunpack.c.l.bf16 %v2499
          %v2637 = vunpack.c.h.bf16 %v2499
          %v2638 = vunpack.c.l.bf16 %v2500
          %v2639 = vunpack.c.h.bf16 %v2500
          %v2640 = vunpack.c.l.bf16 %v2501
          %v2641 = vunpack.c.h.bf16 %v2501
          %v2642 = vunpack.c.l.bf16 %v2502
          %v2643 = vunpack.c.h.bf16 %v2502
          %v2644 = vunpack.c.l.bf16 %v2503
          %v2645 = vunpack.c.h.bf16 %v2503
          %v2646 = vunpack.c.l.bf16 %v2504
          %v2647 = vunpack.c.h.bf16 %v2504
          %v2648 = vunpack.c.l.bf16 %v2505
          %v2649 = vunpack.c.h.bf16 %v2505
          %v2650 = vunpack.c.l.bf16 %v2506
          %v2651 = vunpack.c.h.bf16 %v2506
          %v2652 = vunpack.c.l.bf16 %v2507
          %v2653 = vunpack.c.h.bf16 %v2507
          %v2654 = vunpack.c.l.bf16 %v2508
          %v2655 = vunpack.c.h.bf16 %v2508
          %v2656 = vunpack.c.l.bf16 %v2509
          %v2657 = vunpack.c.h.bf16 %v2509
          %v2658 = vunpack.c.l.bf16 %v2510
          %v2659 = vunpack.c.h.bf16 %v2510
          %v2660 = vunpack.c.l.bf16 %v2511
          %v2661 = vunpack.c.h.bf16 %v2511
          %v2662 = vunpack.c.l.bf16 %v2512
          %v2663 = vunpack.c.h.bf16 %v2512
          %v2664 = vunpack.c.l.bf16 %v2513
          %v2665 = vunpack.c.h.bf16 %v2513
          %v2666 = vunpack.c.l.bf16 %v2514
          %v2667 = vunpack.c.h.bf16 %v2514
          %v2668 = vunpack.c.l.bf16 %v2515
          %v2669 = vunpack.c.h.bf16 %v2515
          %v2670 = vunpack.c.l.bf16 %v2516
          %v2671 = vunpack.c.h.bf16 %v2516
          %v2672 = vunpack.c.l.bf16 %v2517
          %v2673 = vunpack.c.h.bf16 %v2517
          %v2674 = vunpack.c.l.bf16 %v2518
          %v2675 = vunpack.c.h.bf16 %v2518
          %v2676 = vunpack.c.l.bf16 %v2519
          %v2677 = vunpack.c.h.bf16 %v2519
          %v2678 = vunpack.c.l.bf16 %v2520
          %v2679 = vunpack.c.h.bf16 %v2520
          %v2680 = vunpack.c.l.bf16 %v2521
          %v2681 = vunpack.c.h.bf16 %v2521
          %v2682 = vunpack.c.l.bf16 %v2522
          %v2683 = vunpack.c.h.bf16 %v2522
          %v2684 = vunpack.c.l.bf16 %v2523
          %v2685 = vunpack.c.h.bf16 %v2523
          %v2686 = vunpack.c.l.bf16 %v2524
          %v2687 = vunpack.c.h.bf16 %v2524
          %v2688 = vunpack.c.l.bf16 %v2525
          %v2689 = vunpack.c.h.bf16 %v2525
          %v2690 = vunpack.c.l.bf16 %v2526
          %v2691 = vunpack.c.h.bf16 %v2526
          %v2692 = vunpack.c.l.bf16 %v2527
          %v2693 = vunpack.c.h.bf16 %v2527
          %v2694 = vunpack.c.l.bf16 %v2528
          %v2695 = vunpack.c.h.bf16 %v2528
          %v2696 = vunpack.c.l.bf16 %v2529
          %v2697 = vunpack.c.h.bf16 %v2529
          %v2698 = vunpack.c.l.bf16 %v2530
          %v2699 = vunpack.c.h.bf16 %v2530
          %v2700 = vunpack.c.l.bf16 %v2531
          %v2701 = vunpack.c.h.bf16 %v2531
          %v2702 = vunpack.c.l.bf16 %v2532
          %v2703 = vunpack.c.h.bf16 %v2532
          %v2704 = vunpack.c.l.bf16 %v2533
          %v2705 = vunpack.c.h.bf16 %v2533
          %v2706 = vunpack.c.l.bf16 %v2534
          %v2707 = vunpack.c.h.bf16 %v2534
          %v2708 = vunpack.c.l.bf16 %v2535
          %v2709 = vunpack.c.h.bf16 %v2535
          %v2710 = vunpack.c.l.bf16 %v2536
          %v2711 = vunpack.c.h.bf16 %v2536
          %v2712 = vunpack.c.l.bf16 %v2537
          %v2713 = vunpack.c.h.bf16 %v2537
          %v2714 = vunpack.c.l.bf16 %v2538
          %v2715 = vunpack.c.h.bf16 %v2538
          %v2716 = vunpack.c.l.bf16 %v2539
          %v2717 = vunpack.c.h.bf16 %v2539
          %v2718 = vunpack.c.l.bf16 %v2540
          %v2719 = vunpack.c.h.bf16 %v2540
          %v2720 = vunpack.c.l.bf16 %v2541
          %v2721 = vunpack.c.h.bf16 %v2541
          %v2722 = vunpack.c.l.bf16 %v2542
          %v2723 = vunpack.c.h.bf16 %v2542
          %v2724 = vunpack.c.l.bf16 %v2543
          %v2725 = vunpack.c.h.bf16 %v2543
          %v2726 = vunpack.c.l.bf16 %v2544
          %v2727 = vunpack.c.h.bf16 %v2544
          %v2728 = vunpack.c.l.bf16 %v2545
          %v2729 = vunpack.c.h.bf16 %v2545
          %v2730 = vunpack.c.l.bf16 %v2546
          %v2731 = vunpack.c.h.bf16 %v2546
          %v2732 = vunpack.c.l.bf16 %v2547
          %v2733 = vunpack.c.h.bf16 %v2547
          %v2734 = vunpack.c.l.bf16 %v2548
          %v2735 = vunpack.c.h.bf16 %v2548
          %v2736 = vunpack.c.l.bf16 %v2549
          %v2737 = vunpack.c.h.bf16 %v2549
          %v2738 = vunpack.c.l.bf16 %v2550
          %v2739 = vunpack.c.h.bf16 %v2550
          %v2740 = vunpack.c.l.bf16 %v2551
          %v2741 = vunpack.c.h.bf16 %v2551
          %v2742 = vunpack.c.l.bf16 %v2552
          %v2743 = vunpack.c.h.bf16 %v2552
          %v2744 = vunpack.c.l.bf16 %v2553
          %v2745 = vunpack.c.h.bf16 %v2553
          %v2746 = vunpack.c.l.bf16 %v2554
          %v2747 = vunpack.c.h.bf16 %v2554
          %v2748 = vunpack.c.l.bf16 %v2555
          %v2749 = vunpack.c.h.bf16 %v2555
          %v2750 = vunpack.c.l.bf16 %v2556
          %v2751 = vunpack.c.h.bf16 %v2556
          %v2752 = vunpack.c.l.bf16 %v2557
          %v2753 = vunpack.c.h.bf16 %v2557
          %v2754 = vunpack.c.l.bf16 %v2558
          %v2755 = vunpack.c.h.bf16 %v2558
          %v2756 = vunpack.c.l.bf16 %v2559
          %v2757 = vunpack.c.h.bf16 %v2559
          %v2758 = vunpack.c.l.bf16 %v2560
          %v2759 = vunpack.c.h.bf16 %v2560
          %v2760 = vunpack.c.l.bf16 %v2561
          %v2761 = vunpack.c.h.bf16 %v2561
          %v2762 = vunpack.c.l.bf16 %v2562
          %v2763 = vunpack.c.h.bf16 %v2562
          %v2764 = vunpack.c.l.bf16 %v2563
          %v2765 = vunpack.c.h.bf16 %v2563
          %v2766 = vunpack.c.l.bf16 %v2564
          %v2767 = vunpack.c.h.bf16 %v2564
          %v2768 = vunpack.c.l.bf16 %v2565
          %v2769 = vunpack.c.h.bf16 %v2565
          %v2770 = vunpack.c.l.bf16 %v2566
          %v2771 = vunpack.c.h.bf16 %v2566
          %v2772 = vunpack.c.l.bf16 %v2567
          %v2773 = vunpack.c.h.bf16 %v2567
          %v2774 = vunpack.c.l.bf16 %v2568
          %v2775 = vunpack.c.h.bf16 %v2568
          %v2776 = vunpack.c.l.bf16 %v2569
          %v2777 = vunpack.c.h.bf16 %v2569
          %v2778 = vunpack.c.l.bf16 %v2570
          %v2779 = vunpack.c.h.bf16 %v2570
          %v2780 = vunpack.c.l.bf16 %v2571
          %v2781 = vunpack.c.h.bf16 %v2571
          %v2782 = vunpack.c.l.bf16 %v2572
          %v2783 = vunpack.c.h.bf16 %v2572
          %v2784 = vunpack.c.l.bf16 %v2573
          %v2785 = vunpack.c.h.bf16 %v2573
          %v2786 = vunpack.c.l.bf16 %v2574
          %v2787 = vunpack.c.h.bf16 %v2574
          %v2788 = vunpack.c.l.bf16 %v2575
          %v2789 = vunpack.c.h.bf16 %v2575
          %v2790 = vunpack.c.l.bf16 %v2576
          %v2791 = vunpack.c.h.bf16 %v2576
          %v2792 = vunpack.c.l.bf16 %v2577
          %v2793 = vunpack.c.h.bf16 %v2577
          %v2794 = vunpack.c.l.bf16 %v2578
          %v2795 = vunpack.c.h.bf16 %v2578
          %v2796 = vunpack.c.l.bf16 %v2579
          %v2797 = vunpack.c.h.bf16 %v2579
          %v2798 = vunpack.c.l.bf16 %v2580
          %v2799 = vunpack.c.h.bf16 %v2580
          %v2800 = vunpack.c.l.bf16 %v2581
          %v2801 = vunpack.c.h.bf16 %v2581
          %v2802 = vunpack.c.l.bf16 %v2582
          %v2803 = vunpack.c.h.bf16 %v2582
          %v2804 = vunpack.c.l.bf16 %v2583
          %v2805 = vunpack.c.h.bf16 %v2583
          %v2806 = vunpack.c.l.bf16 %v2584
          %v2807 = vunpack.c.h.bf16 %v2584
          %v2808 = vunpack.c.l.bf16 %v2585
          %v2809 = vunpack.c.h.bf16 %v2585
          %v2810 = vunpack.c.l.bf16 %v2586
          %v2811 = vunpack.c.h.bf16 %v2586
          %v2812 = vunpack.c.l.bf16 %v2587
          %v2813 = vunpack.c.h.bf16 %v2587
          %v2814 = vunpack.c.l.bf16 %v2588
          %v2815 = vunpack.c.h.bf16 %v2588
          %v2816 = vunpack.c.l.bf16 %v2589
          %v2817 = vunpack.c.h.bf16 %v2589
          %v2818 = vunpack.c.l.bf16 %v2590
          %v2819 = vunpack.c.h.bf16 %v2590
          %v2820 = vunpack.c.l.bf16 %v2591
          %v2821 = vunpack.c.h.bf16 %v2591
          %v2822 = vunpack.c.l.bf16 %v2592
          %v2823 = vunpack.c.h.bf16 %v2592
          %v2824 = vunpack.c.l.bf16 %v2593
          %v2825 = vunpack.c.h.bf16 %v2593
          %v2826 = vunpack.c.l.bf16 %v2594
          %v2827 = vunpack.c.h.bf16 %v2594
          %v2828 = vunpack.c.l.bf16 %v2595
          %v2829 = vunpack.c.h.bf16 %v2595
          %v2830 = vunpack.c.l.bf16 %v2596
          %v2831 = vunpack.c.h.bf16 %v2596
          %v2832 = vunpack.c.l.bf16 %v2597
          %v2833 = vunpack.c.h.bf16 %v2597
          %v2834 = vunpack.c.l.bf16 %v2598
          %v2835 = vunpack.c.h.bf16 %v2598
          %v2836 = vunpack.c.l.bf16 %v2599
          %v2837 = vunpack.c.h.bf16 %v2599
          %v2838 = vunpack.c.l.bf16 %v2600
          %v2839 = vunpack.c.h.bf16 %v2600
          %v2840 = vunpack.c.l.bf16 %v2601
          %v2841 = vunpack.c.h.bf16 %v2601
          %v2842 = vunpack.c.l.bf16 %v2602
          %v2843 = vunpack.c.h.bf16 %v2602
          %v2844 = vunpack.c.l.bf16 %v2603
          %v2845 = vunpack.c.h.bf16 %v2603
          %v2846 = vunpack.c.l.bf16 %v2604
          %v2847 = vunpack.c.h.bf16 %v2604
          %v2848 = vunpack.c.l.bf16 %v2605
          %v2849 = vunpack.c.h.bf16 %v2605
          %v2850 = vunpack.c.l.bf16 %v2606
          %v2851 = vunpack.c.h.bf16 %v2606
          %v2852 = vunpack.c.l.bf16 %v2607
          %v2853 = vunpack.c.h.bf16 %v2607
          %v2854 = vunpack.c.l.bf16 %v2608
          %v2855 = vunpack.c.h.bf16 %v2608
          %v2856 = vunpack.c.l.bf16 %v2609
          %v2857 = vunpack.c.h.bf16 %v2609
          %v2858 = vunpack.c.l.bf16 %v2610
          %v2859 = vunpack.c.h.bf16 %v2610
          %v2860 = vunpack.c.l.bf16 %v2611
          %v2861 = vunpack.c.h.bf16 %v2611
          %v2862 = vunpack.c.l.bf16 %v2612
          %v2863 = vunpack.c.h.bf16 %v2612
          %v2864 = vunpack.c.l.bf16 %v2613
          %v2865 = vunpack.c.h.bf16 %v2613
          %v2866 = vunpack.c.l.bf16 %v2614
          %v2867 = vunpack.c.h.bf16 %v2614
          %v2868 = vunpack.c.l.bf16 %v2615
          %v2869 = vunpack.c.h.bf16 %v2615
          %v2870 = vunpack.c.l.bf16 %v2616
          %v2871 = vunpack.c.h.bf16 %v2616
          %v2872 = vunpack.c.l.bf16 %v2617
          %v2873 = vunpack.c.h.bf16 %v2617
          %s2874 = scalar_lea.vmem [#allocation2], 64
          %v2875 = vld [vmem:[%s2874] sm:$0xff]
          %v2876 = vld [vmem:[%s2874 + $0x8] sm:$0xff]
          %v2877 = vld [vmem:[%s2874 + $0x10] sm:$0xff]
          %v2878 = vld [vmem:[%s2874 + $0x18] sm:$0xff]
          %2879 = vmatprep.subr.mxu0 %v2619
          %2880 = vmatpush1.msra.mxu0 %v2618
          %2881 = vmatprep.subr.mxu0 %v2623
          %2882 = vmatpush1.msra.mxu0 %v2622
          %2883 = vmatprep.subr.mxu0 %v2627
          %2884 = vmatpush1.msra.mxu0 %v2626
          %2885 = vmatprep.subr.mxu0 %v2631
          %2886 = vmatpush1.msra.mxu0 %v2630
          %2887 = vmatprep.subr.mxu0 %v2635
          %2888 = vmatpush1.msra.mxu0 %v2634
          %2889 = vmatprep.subr.mxu0 %v2639
          %2890 = vmatpush1.msra.mxu0 %v2638
          %2891 = vmatprep.subr.mxu0 %v2643
          %2892 = vmatpush1.msra.mxu0 %v2642
          %2893 = vmatprep.subr.mxu0 %v2647
          %2894 = vmatpush1.msra.mxu0 %v2646
          %2895 = vmatprep.subr.mxu0 %v2651
          %2896 = vmatpush1.msra.mxu0 %v2650
          %2897 = vmatprep.subr.mxu0 %v2655
          %2898 = vmatpush1.msra.mxu0 %v2654
          %2899 = vmatprep.subr.mxu0 %v2659
          %2900 = vmatpush1.msra.mxu0 %v2658
          %2901 = vmatprep.subr.mxu0 %v2663
          %2902 = vmatpush1.msra.mxu0 %v2662
          %2903 = vmatprep.subr.mxu0 %v2667
          %2904 = vmatpush1.msra.mxu0 %v2666
          %2905 = vmatprep.subr.mxu0 %v2671
          %2906 = vmatpush1.msra.mxu0 %v2670
          %2907 = vmatprep.subr.mxu0 %v2675
          %2908 = vmatpush1.msra.mxu0 %v2674
          %2909 = vmatprep.subr.mxu0 %v2679
          %2910 = vmatpush1.msra.mxu0 %v2678
          %2911 = vmatprep.subr.mxu0 %v2683
          %2912 = vmatpush1.msra.mxu0 %v2682
          %2913 = vmatprep.subr.mxu0 %v2687
          %2914 = vmatpush1.msra.mxu0 %v2686
          %2915 = vmatprep.subr.mxu0 %v2691
          %2916 = vmatpush1.msra.mxu0 %v2690
          %2917 = vmatprep.subr.mxu0 %v2695
          %2918 = vmatpush1.msra.mxu0 %v2694
          %2919 = vmatprep.subr.mxu0 %v2699
          %2920 = vmatpush1.msra.mxu0 %v2698
          %2921 = vmatprep.subr.mxu0 %v2703
          %2922 = vmatpush1.msra.mxu0 %v2702
          %2923 = vmatprep.subr.mxu0 %v2707
          %2924 = vmatpush1.msra.mxu0 %v2706
          %2925 = vmatprep.subr.mxu0 %v2711
          %2926 = vmatpush1.msra.mxu0 %v2710
          %2927 = vmatprep.subr.mxu0 %v2715
          %2928 = vmatpush1.msra.mxu0 %v2714
          %2929 = vmatprep.subr.mxu0 %v2719
          %2930 = vmatpush1.msra.mxu0 %v2718
          %2931 = vmatprep.subr.mxu0 %v2723
          %2932 = vmatpush1.msra.mxu0 %v2722
          %2933 = vmatprep.subr.mxu0 %v2727
          %2934 = vmatpush1.msra.mxu0 %v2726
          %2935 = vmatprep.subr.mxu0 %v2731
          %2936 = vmatpush1.msra.mxu0 %v2730
          %2937 = vmatprep.subr.mxu0 %v2735
          %2938 = vmatpush1.msra.mxu0 %v2734
          %2939 = vmatprep.subr.mxu0 %v2739
          %2940 = vmatpush1.msra.mxu0 %v2738
          %2941 = vmatprep.subr.mxu0 %v2743
          %2942 = vmatpush1.msra.mxu0 %v2742
          %2943 = vmatprep.mubr.f32.mxu0 %v2876
          %2944 = vmatmul.mubr.f32.gmra.mrb[0].mxu0 %v2875
          %v2945 = vpop.f32.mrb[0].mxu0
          %v2946 = vadd.f32 0.0, %v2945
          %v2947 = vpop.f32.mrb[0].mxu0
          %v2948 = vadd.f32 0.0, %v2947
          %2949 = vdwg.mxu0
          %2950 = vmatprep.subr.mxu0 %v2747
          %2951 = vmatpush1.msra.mxu0 %v2746
          %2952 = vmatprep.subr.mxu0 %v2751
          %2953 = vmatpush1.msra.mxu0 %v2750
          %2954 = vmatprep.subr.mxu0 %v2755
          %2955 = vmatpush1.msra.mxu0 %v2754
          %2956 = vmatprep.subr.mxu0 %v2759
          %2957 = vmatpush1.msra.mxu0 %v2758
          %2958 = vmatprep.subr.mxu0 %v2763
          %2959 = vmatpush1.msra.mxu0 %v2762
          %2960 = vmatprep.subr.mxu0 %v2767
          %2961 = vmatpush1.msra.mxu0 %v2766
          %2962 = vmatprep.subr.mxu0 %v2771
          %2963 = vmatpush1.msra.mxu0 %v2770
          %2964 = vmatprep.subr.mxu0 %v2775
          %2965 = vmatpush1.msra.mxu0 %v2774
          %2966 = vmatprep.subr.mxu0 %v2779
          %2967 = vmatpush1.msra.mxu0 %v2778
          %2968 = vmatprep.subr.mxu0 %v2783
          %2969 = vmatpush1.msra.mxu0 %v2782
          %2970 = vmatprep.subr.mxu0 %v2787
          %2971 = vmatpush1.msra.mxu0 %v2786
          %2972 = vmatprep.subr.mxu0 %v2791
          %2973 = vmatpush1.msra.mxu0 %v2790
          %2974 = vmatprep.subr.mxu0 %v2795
          %2975 = vmatpush1.msra.mxu0 %v2794
          %2976 = vmatprep.subr.mxu0 %v2799
          %2977 = vmatpush1.msra.mxu0 %v2798
          %2978 = vmatprep.subr.mxu0 %v2803
          %2979 = vmatpush1.msra.mxu0 %v2802
          %2980 = vmatprep.subr.mxu0 %v2807
          %2981 = vmatpush1.msra.mxu0 %v2806
          %2982 = vmatprep.subr.mxu0 %v2811
          %2983 = vmatpush1.msra.mxu0 %v2810
          %2984 = vmatprep.subr.mxu0 %v2815
          %2985 = vmatpush1.msra.mxu0 %v2814
          %2986 = vmatprep.subr.mxu0 %v2819
          %2987 = vmatpush1.msra.mxu0 %v2818
          %2988 = vmatprep.subr.mxu0 %v2823
          %2989 = vmatpush1.msra.mxu0 %v2822
          %2990 = vmatprep.subr.mxu0 %v2827
          %2991 = vmatpush1.msra.mxu0 %v2826
          %2992 = vmatprep.subr.mxu0 %v2831
          %2993 = vmatpush1.msra.mxu0 %v2830
          %2994 = vmatprep.subr.mxu0 %v2835
          %2995 = vmatpush1.msra.mxu0 %v2834
          %2996 = vmatprep.subr.mxu0 %v2839
          %2997 = vmatpush1.msra.mxu0 %v2838
          %2998 = vmatprep.subr.mxu0 %v2843
          %2999 = vmatpush1.msra.mxu0 %v2842
          %3000 = vmatprep.subr.mxu0 %v2847
          %3001 = vmatpush1.msra.mxu0 %v2846
          %3002 = vmatprep.subr.mxu0 %v2851
          %3003 = vmatpush1.msra.mxu0 %v2850
          %3004 = vmatprep.subr.mxu0 %v2855
          %3005 = vmatpush1.msra.mxu0 %v2854
          %3006 = vmatprep.subr.mxu0 %v2859
          %3007 = vmatpush1.msra.mxu0 %v2858
          %3008 = vmatprep.subr.mxu0 %v2863
          %3009 = vmatpush1.msra.mxu0 %v2862
          %3010 = vmatprep.subr.mxu0 %v2867
          %3011 = vmatpush1.msra.mxu0 %v2866
          %3012 = vmatprep.subr.mxu0 %v2871
          %3013 = vmatpush1.msra.mxu0 %v2870
          %3014 = vmatprep.mubr.f32.mxu0 %v2878
          %3015 = vmatmul.mubr.f32.gmra.mrb[0].mxu0 %v2877
          %v3016 = vpop.f32.mrb[0].mxu0
          %v3017 = vadd.f32 %v2946, %v3016
          %v3018 = vpop.f32.mrb[0].mxu0
          %v3019 = vadd.f32 %v2948, %v3018
          %3020 = vdwg.mxu0
          %3021 = vmatprep.subr.mxu0 %v2621
          %3022 = vmatpush1.msra.mxu0 %v2620
          %3023 = vmatprep.subr.mxu0 %v2625
          %3024 = vmatpush1.msra.mxu0 %v2624
          %3025 = vmatprep.subr.mxu0 %v2629
          %3026 = vmatpush1.msra.mxu0 %v2628
          %3027 = vmatprep.subr.mxu0 %v2633
          %3028 = vmatpush1.msra.mxu0 %v2632
          %3029 = vmatprep.subr.mxu0 %v2637
          %3030 = vmatpush1.msra.mxu0 %v2636
          %3031 = vmatprep.subr.mxu0 %v2641
          %3032 = vmatpush1.msra.mxu0 %v2640
          %3033 = vmatprep.subr.mxu0 %v2645
          %3034 = vmatpush1.msra.mxu0 %v2644
          %3035 = vmatprep.subr.mxu0 %v2649
          %3036 = vmatpush1.msra.mxu0 %v2648
          %3037 = vmatprep.subr.mxu0 %v2653
          %3038 = vmatpush1.msra.mxu0 %v2652
          %3039 = vmatprep.subr.mxu0 %v2657
          %3040 = vmatpush1.msra.mxu0 %v2656
          %3041 = vmatprep.subr.mxu0 %v2661
          %3042 = vmatpush1.msra.mxu0 %v2660
          %3043 = vmatprep.subr.mxu0 %v2665
          %3044 = vmatpush1.msra.mxu0 %v2664
          %3045 = vmatprep.subr.mxu0 %v2669
          %3046 = vmatpush1.msra.mxu0 %v2668
          %3047 = vmatprep.subr.mxu0 %v2673
          %3048 = vmatpush1.msra.mxu0 %v2672
          %3049 = vmatprep.subr.mxu0 %v2677
          %3050 = vmatpush1.msra.mxu0 %v2676
          %3051 = vmatprep.subr.mxu0 %v2681
          %3052 = vmatpush1.msra.mxu0 %v2680
          %3053 = vmatprep.subr.mxu0 %v2685
          %3054 = vmatpush1.msra.mxu0 %v2684
          %3055 = vmatprep.subr.mxu0 %v2689
          %3056 = vmatpush1.msra.mxu0 %v2688
          %3057 = vmatprep.subr.mxu0 %v2693
          %3058 = vmatpush1.msra.mxu0 %v2692
          %3059 = vmatprep.subr.mxu0 %v2697
          %3060 = vmatpush1.msra.mxu0 %v2696
          %3061 = vmatprep.subr.mxu0 %v2701
          %3062 = vmatpush1.msra.mxu0 %v2700
          %3063 = vmatprep.subr.mxu0 %v2705
          %3064 = vmatpush1.msra.mxu0 %v2704
          %3065 = vmatprep.subr.mxu0 %v2709
          %3066 = vmatpush1.msra.mxu0 %v2708
          %3067 = vmatprep.subr.mxu0 %v2713
          %3068 = vmatpush1.msra.mxu0 %v2712
          %3069 = vmatprep.subr.mxu0 %v2717
          %3070 = vmatpush1.msra.mxu0 %v2716
          %3071 = vmatprep.subr.mxu0 %v2721
          %3072 = vmatpush1.msra.mxu0 %v2720
          %3073 = vmatprep.subr.mxu0 %v2725
          %3074 = vmatpush1.msra.mxu0 %v2724
          %3075 = vmatprep.subr.mxu0 %v2729
          %3076 = vmatpush1.msra.mxu0 %v2728
          %3077 = vmatprep.subr.mxu0 %v2733
          %3078 = vmatpush1.msra.mxu0 %v2732
          %3079 = vmatprep.subr.mxu0 %v2737
          %3080 = vmatpush1.msra.mxu0 %v2736
          %3081 = vmatprep.subr.mxu0 %v2741
          %3082 = vmatpush1.msra.mxu0 %v2740
          %3083 = vmatprep.subr.mxu0 %v2745
          %3084 = vmatpush1.msra.mxu0 %v2744
          %3085 = vmatprep.mubr.f32.mxu0 %v2876
          %3086 = vmatmul.mubr.f32.gmra.mrb[0].mxu0 %v2875
          %v3087 = vpop.f32.mrb[0].mxu0
          %v3088 = vadd.f32 0.0, %v3087
          %v3089 = vpop.f32.mrb[0].mxu0
          %v3090 = vadd.f32 0.0, %v3089
          %3091 = vdwg.mxu0
          %3092 = vmatprep.subr.mxu0 %v2749
          %3093 = vmatpush1.msra.mxu0 %v2748
          %3094 = vmatprep.subr.mxu0 %v2753
          %3095 = vmatpush1.msra.mxu0 %v2752
          %3096 = vmatprep.subr.mxu0 %v2757
          %3097 = vmatpush1.msra.mxu0 %v2756
          %3098 = vmatprep.subr.mxu0 %v2761
          %3099 = vmatpush1.msra.mxu0 %v2760
          %3100 = vmatprep.subr.mxu0 %v2765
          %3101 = vmatpush1.msra.mxu0 %v2764
          %3102 = vmatprep.subr.mxu0 %v2769
          %3103 = vmatpush1.msra.mxu0 %v2768
          %3104 = vmatprep.subr.mxu0 %v2773
          %3105 = vmatpush1.msra.mxu0 %v2772
          %3106 = vmatprep.subr.mxu0 %v2777
          %3107 = vmatpush1.msra.mxu0 %v2776
          %3108 = vmatprep.subr.mxu0 %v2781
          %3109 = vmatpush1.msra.mxu0 %v2780
          %3110 = vmatprep.subr.mxu0 %v2785
          %3111 = vmatpush1.msra.mxu0 %v2784
          %3112 = vmatprep.subr.mxu0 %v2789
          %3113 = vmatpush1.msra.mxu0 %v2788
          %3114 = vmatprep.subr.mxu0 %v2793
          %3115 = vmatpush1.msra.mxu0 %v2792
          %3116 = vmatprep.subr.mxu0 %v2797
          %3117 = vmatpush1.msra.mxu0 %v2796
          %3118 = vmatprep.subr.mxu0 %v2801
          %3119 = vmatpush1.msra.mxu0 %v2800
          %3120 = vmatprep.subr.mxu0 %v2805
          %3121 = vmatpush1.msra.mxu0 %v2804
          %3122 = vmatprep.subr.mxu0 %v2809
          %3123 = vmatpush1.msra.mxu0 %v2808
          %3124 = vmatprep.subr.mxu0 %v2813
          %3125 = vmatpush1.msra.mxu0 %v2812
          %3126 = vmatprep.subr.mxu0 %v2817
          %3127 = vmatpush1.msra.mxu0 %v2816
          %3128 = vmatprep.subr.mxu0 %v2821
          %3129 = vmatpush1.msra.mxu0 %v2820
          %3130 = vmatprep.subr.mxu0 %v2825
          %3131 = vmatpush1.msra.mxu0 %v2824
          %3132 = vmatprep.subr.mxu0 %v2829
          %3133 = vmatpush1.msra.mxu0 %v2828
          %3134 = vmatprep.subr.mxu0 %v2833
          %3135 = vmatpush1.msra.mxu0 %v2832
          %3136 = vmatprep.subr.mxu0 %v2837
          %3137 = vmatpush1.msra.mxu0 %v2836
          %3138 = vmatprep.subr.mxu0 %v2841
          %3139 = vmatpush1.msra.mxu0 %v2840
          %3140 = vmatprep.subr.mxu0 %v2845
          %3141 = vmatpush1.msra.mxu0 %v2844
          %3142 = vmatprep.subr.mxu0 %v2849
          %3143 = vmatpush1.msra.mxu0 %v2848
          %3144 = vmatprep.subr.mxu0 %v2853
          %3145 = vmatpush1.msra.mxu0 %v2852
          %3146 = vmatprep.subr.mxu0 %v2857
          %3147 = vmatpush1.msra.mxu0 %v2856
          %3148 = vmatprep.subr.mxu0 %v2861
          %3149 = vmatpush1.msra.mxu0 %v2860
          %3150 = vmatprep.subr.mxu0 %v2865
          %3151 = vmatpush1.msra.mxu0 %v2864
          %3152 = vmatprep.subr.mxu0 %v2869
          %3153 = vmatpush1.msra.mxu0 %v2868
          %3154 = vmatprep.subr.mxu0 %v2873
          %3155 = vmatpush1.msra.mxu0 %v2872
          %3156 = vmatprep.mubr.f32.mxu0 %v2878
          %3157 = vmatmul.mubr.f32.gmra.mrb[0].mxu0 %v2877
          %v3158 = vpop.f32.mrb[0].mxu0
          %v3159 = vadd.f32 %v3088, %v3158
          %v3160 = vpop.f32.mrb[0].mxu0
          %v3161 = vadd.f32 %v3090, %v3160
          %3162 = vdwg.mxu0
          %v3163 = vadd.f32 %v2344, %v3017
          %v3164 = vadd.f32 %v2346, %v3019
          %v3165 = vadd.f32 %v2486, %v3159
          %v3166 = vadd.f32 %v2488, %v3161
          %v3167 = vld [vmem:[%s345 + $0xc00] sm:$0xff]
          %v3168 = vld [vmem:[%s345 + $0xc08] sm:$0xff]
          %v3169 = vld [vmem:[%s345 + $0xc10] sm:$0xff]
          %v3170 = vld [vmem:[%s345 + $0xc18] sm:$0xff]
          %v3171 = vld [vmem:[%s345 + $0xc20] sm:$0xff]
          %v3172 = vld [vmem:[%s345 + $0xc28] sm:$0xff]
          %v3173 = vld [vmem:[%s345 + $0xc30] sm:$0xff]
          %v3174 = vld [vmem:[%s345 + $0xc38] sm:$0xff]
          %v3175 = vld [vmem:[%s345 + $0xc40] sm:$0xff]
          %v3176 = vld [vmem:[%s345 + $0xc48] sm:$0xff]
          %v3177 = vld [vmem:[%s345 + $0xc50] sm:$0xff]
          %v3178 = vld [vmem:[%s345 + $0xc58] sm:$0xff]
          %v3179 = vld [vmem:[%s345 + $0xc60] sm:$0xff]
          %v3180 = vld [vmem:[%s345 + $0xc68] sm:$0xff]
          %v3181 = vld [vmem:[%s345 + $0xc70] sm:$0xff]
          %v3182 = vld [vmem:[%s345 + $0xc78] sm:$0xff]
          %v3183 = vld [vmem:[%s345 + $0xc80] sm:$0xff]
          %v3184 = vld [vmem:[%s345 + $0xc88] sm:$0xff]
          %v3185 = vld [vmem:[%s345 + $0xc90] sm:$0xff]
          %v3186 = vld [vmem:[%s345 + $0xc98] sm:$0xff]
          %v3187 = vld [vmem:[%s345 + $0xca0] sm:$0xff]
          %v3188 = vld [vmem:[%s345 + $0xca8] sm:$0xff]
          %v3189 = vld [vmem:[%s345 + $0xcb0] sm:$0xff]
          %v3190 = vld [vmem:[%s345 + $0xcb8] sm:$0xff]
          %v3191 = vld [vmem:[%s345 + $0xcc0] sm:$0xff]
          %v3192 = vld [vmem:[%s345 + $0xcc8] sm:$0xff]
          %v3193 = vld [vmem:[%s345 + $0xcd0] sm:$0xff]
          %v3194 = vld [vmem:[%s345 + $0xcd8] sm:$0xff]
          %v3195 = vld [vmem:[%s345 + $0xce0] sm:$0xff]
          %v3196 = vld [vmem:[%s345 + $0xce8] sm:$0xff]
          %v3197 = vld [vmem:[%s345 + $0xcf0] sm:$0xff]
          %v3198 = vld [vmem:[%s345 + $0xcf8] sm:$0xff]
          %v3199 = vld [vmem:[%s345 + $0xd00] sm:$0xff]
          %v3200 = vld [vmem:[%s345 + $0xd08] sm:$0xff]
          %v3201 = vld [vmem:[%s345 + $0xd10] sm:$0xff]
          %v3202 = vld [vmem:[%s345 + $0xd18] sm:$0xff]
          %v3203 = vld [vmem:[%s345 + $0xd20] sm:$0xff]
          %v3204 = vld [vmem:[%s345 + $0xd28] sm:$0xff]
          %v3205 = vld [vmem:[%s345 + $0xd30] sm:$0xff]
          %v3206 = vld [vmem:[%s345 + $0xd38] sm:$0xff]
          %v3207 = vld [vmem:[%s345 + $0xd40] sm:$0xff]
          %v3208 = vld [vmem:[%s345 + $0xd48] sm:$0xff]
          %v3209 = vld [vmem:[%s345 + $0xd50] sm:$0xff]
          %v3210 = vld [vmem:[%s345 + $0xd58] sm:$0xff]
          %v3211 = vld [vmem:[%s345 + $0xd60] sm:$0xff]
          %v3212 = vld [vmem:[%s345 + $0xd68] sm:$0xff]
          %v3213 = vld [vmem:[%s345 + $0xd70] sm:$0xff]
          %v3214 = vld [vmem:[%s345 + $0xd78] sm:$0xff]
          %v3215 = vld [vmem:[%s345 + $0xd80] sm:$0xff]
          %v3216 = vld [vmem:[%s345 + $0xd88] sm:$0xff]
          %v3217 = vld [vmem:[%s345 + $0xd90] sm:$0xff]
          %v3218 = vld [vmem:[%s345 + $0xd98] sm:$0xff]
          %v3219 = vld [vmem:[%s345 + $0xda0] sm:$0xff]
          %v3220 = vld [vmem:[%s345 + $0xda8] sm:$0xff]
          %v3221 = vld [vmem:[%s345 + $0xdb0] sm:$0xff]
          %v3222 = vld [vmem:[%s345 + $0xdb8] sm:$0xff]
          %v3223 = vld [vmem:[%s345 + $0xdc0] sm:$0xff]
          %v3224 = vld [vmem:[%s345 + $0xdc8] sm:$0xff]
          %v3225 = vld [vmem:[%s345 + $0xdd0] sm:$0xff]
          %v3226 = vld [vmem:[%s345 + $0xdd8] sm:$0xff]
          %v3227 = vld [vmem:[%s345 + $0xde0] sm:$0xff]
          %v3228 = vld [vmem:[%s345 + $0xde8] sm:$0xff]
          %v3229 = vld [vmem:[%s345 + $0xdf0] sm:$0xff]
          %v3230 = vld [vmem:[%s345 + $0xdf8] sm:$0xff]
          %v3231 = vld [vmem:[%s345 + $0xe00] sm:$0xff]
          %v3232 = vld [vmem:[%s345 + $0xe08] sm:$0xff]
          %v3233 = vld [vmem:[%s345 + $0xe10] sm:$0xff]
          %v3234 = vld [vmem:[%s345 + $0xe18] sm:$0xff]
          %v3235 = vld [vmem:[%s345 + $0xe20] sm:$0xff]
          %v3236 = vld [vmem:[%s345 + $0xe28] sm:$0xff]
          %v3237 = vld [vmem:[%s345 + $0xe30] sm:$0xff]
          %v3238 = vld [vmem:[%s345 + $0xe38] sm:$0xff]
          %v3239 = vld [vmem:[%s345 + $0xe40] sm:$0xff]
          %v3240 = vld [vmem:[%s345 + $0xe48] sm:$0xff]
          %v3241 = vld [vmem:[%s345 + $0xe50] sm:$0xff]
          %v3242 = vld [vmem:[%s345 + $0xe58] sm:$0xff]
          %v3243 = vld [vmem:[%s345 + $0xe60] sm:$0xff]
          %v3244 = vld [vmem:[%s345 + $0xe68] sm:$0xff]
          %v3245 = vld [vmem:[%s345 + $0xe70] sm:$0xff]
          %v3246 = vld [vmem:[%s345 + $0xe78] sm:$0xff]
          %v3247 = vld [vmem:[%s345 + $0xe80] sm:$0xff]
          %v3248 = vld [vmem:[%s345 + $0xe88] sm:$0xff]
          %v3249 = vld [vmem:[%s345 + $0xe90] sm:$0xff]
          %v3250 = vld [vmem:[%s345 + $0xe98] sm:$0xff]
          %v3251 = vld [vmem:[%s345 + $0xea0] sm:$0xff]
          %v3252 = vld [vmem:[%s345 + $0xea8] sm:$0xff]
          %v3253 = vld [vmem:[%s345 + $0xeb0] sm:$0xff]
          %v3254 = vld [vmem:[%s345 + $0xeb8] sm:$0xff]
          %v3255 = vld [vmem:[%s345 + $0xec0] sm:$0xff]
          %v3256 = vld [vmem:[%s345 + $0xec8] sm:$0xff]
          %v3257 = vld [vmem:[%s345 + $0xed0] sm:$0xff]
          %v3258 = vld [vmem:[%s345 + $0xed8] sm:$0xff]
          %v3259 = vld [vmem:[%s345 + $0xee0] sm:$0xff]
          %v3260 = vld [vmem:[%s345 + $0xee8] sm:$0xff]
          %v3261 = vld [vmem:[%s345 + $0xef0] sm:$0xff]
          %v3262 = vld [vmem:[%s345 + $0xef8] sm:$0xff]
          %v3263 = vld [vmem:[%s345 + $0xf00] sm:$0xff]
          %v3264 = vld [vmem:[%s345 + $0xf08] sm:$0xff]
          %v3265 = vld [vmem:[%s345 + $0xf10] sm:$0xff]
          %v3266 = vld [vmem:[%s345 + $0xf18] sm:$0xff]
          %v3267 = vld [vmem:[%s345 + $0xf20] sm:$0xff]
          %v3268 = vld [vmem:[%s345 + $0xf28] sm:$0xff]
          %v3269 = vld [vmem:[%s345 + $0xf30] sm:$0xff]
          %v3270 = vld [vmem:[%s345 + $0xf38] sm:$0xff]
          %v3271 = vld [vmem:[%s345 + $0xf40] sm:$0xff]
          %v3272 = vld [vmem:[%s345 + $0xf48] sm:$0xff]
          %v3273 = vld [vmem:[%s345 + $0xf50] sm:$0xff]
          %v3274 = vld [vmem:[%s345 + $0xf58] sm:$0xff]
          %v3275 = vld [vmem:[%s345 + $0xf60] sm:$0xff]
          %v3276 = vld [vmem:[%s345 + $0xf68] sm:$0xff]
          %v3277 = vld [vmem:[%s345 + $0xf70] sm:$0xff]
          %v3278 = vld [vmem:[%s345 + $0xf78] sm:$0xff]
          %v3279 = vld [vmem:[%s345 + $0xf80] sm:$0xff]
          %v3280 = vld [vmem:[%s345 + $0xf88] sm:$0xff]
          %v3281 = vld [vmem:[%s345 + $0xf90] sm:$0xff]
          %v3282 = vld [vmem:[%s345 + $0xf98] sm:$0xff]
          %v3283 = vld [vmem:[%s345 + $0xfa0] sm:$0xff]
          %v3284 = vld [vmem:[%s345 + $0xfa8] sm:$0xff]
          %v3285 = vld [vmem:[%s345 + $0xfb0] sm:$0xff]
          %v3286 = vld [vmem:[%s345 + $0xfb8] sm:$0xff]
          %v3287 = vld [vmem:[%s345 + $0xfc0] sm:$0xff]
          %v3288 = vld [vmem:[%s345 + $0xfc8] sm:$0xff]
          %v3289 = vld [vmem:[%s345 + $0xfd0] sm:$0xff]
          %v3290 = vld [vmem:[%s345 + $0xfd8] sm:$0xff]
          %v3291 = vld [vmem:[%s345 + $0xfe0] sm:$0xff]
          %v3292 = vld [vmem:[%s345 + $0xfe8] sm:$0xff]
          %v3293 = vld [vmem:[%s345 + $0xff0] sm:$0xff]
          %v3294 = vld [vmem:[%s345 + $0xff8] sm:$0xff]
          %v3295 = vunpack.c.l.bf16 %v3167
          %v3296 = vunpack.c.h.bf16 %v3167
          %v3297 = vunpack.c.l.bf16 %v3168
          %v3298 = vunpack.c.h.bf16 %v3168
          %v3299 = vunpack.c.l.bf16 %v3169
          %v3300 = vunpack.c.h.bf16 %v3169
          %v3301 = vunpack.c.l.bf16 %v3170
          %v3302 = vunpack.c.h.bf16 %v3170
          %v3303 = vunpack.c.l.bf16 %v3171
          %v3304 = vunpack.c.h.bf16 %v3171
          %v3305 = vunpack.c.l.bf16 %v3172
          %v3306 = vunpack.c.h.bf16 %v3172
          %v3307 = vunpack.c.l.bf16 %v3173
          %v3308 = vunpack.c.h.bf16 %v3173
          %v3309 = vunpack.c.l.bf16 %v3174
          %v3310 = vunpack.c.h.bf16 %v3174
          %v3311 = vunpack.c.l.bf16 %v3175
          %v3312 = vunpack.c.h.bf16 %v3175
          %v3313 = vunpack.c.l.bf16 %v3176
          %v3314 = vunpack.c.h.bf16 %v3176
          %v3315 = vunpack.c.l.bf16 %v3177
          %v3316 = vunpack.c.h.bf16 %v3177
          %v3317 = vunpack.c.l.bf16 %v3178
          %v3318 = vunpack.c.h.bf16 %v3178
          %v3319 = vunpack.c.l.bf16 %v3179
          %v3320 = vunpack.c.h.bf16 %v3179
          %v3321 = vunpack.c.l.bf16 %v3180
          %v3322 = vunpack.c.h.bf16 %v3180
          %v3323 = vunpack.c.l.bf16 %v3181
          %v3324 = vunpack.c.h.bf16 %v3181
          %v3325 = vunpack.c.l.bf16 %v3182
          %v3326 = vunpack.c.h.bf16 %v3182
          %v3327 = vunpack.c.l.bf16 %v3183
          %v3328 = vunpack.c.h.bf16 %v3183
          %v3329 = vunpack.c.l.bf16 %v3184
          %v3330 = vunpack.c.h.bf16 %v3184
          %v3331 = vunpack.c.l.bf16 %v3185
          %v3332 = vunpack.c.h.bf16 %v3185
          %v3333 = vunpack.c.l.bf16 %v3186
          %v3334 = vunpack.c.h.bf16 %v3186
          %v3335 = vunpack.c.l.bf16 %v3187
          %v3336 = vunpack.c.h.bf16 %v3187
          %v3337 = vunpack.c.l.bf16 %v3188
          %v3338 = vunpack.c.h.bf16 %v3188
          %v3339 = vunpack.c.l.bf16 %v3189
          %v3340 = vunpack.c.h.bf16 %v3189
          %v3341 = vunpack.c.l.bf16 %v3190
          %v3342 = vunpack.c.h.bf16 %v3190
          %v3343 = vunpack.c.l.bf16 %v3191
          %v3344 = vunpack.c.h.bf16 %v3191
          %v3345 = vunpack.c.l.bf16 %v3192
          %v3346 = vunpack.c.h.bf16 %v3192
          %v3347 = vunpack.c.l.bf16 %v3193
          %v3348 = vunpack.c.h.bf16 %v3193
          %v3349 = vunpack.c.l.bf16 %v3194
          %v3350 = vunpack.c.h.bf16 %v3194
          %v3351 = vunpack.c.l.bf16 %v3195
          %v3352 = vunpack.c.h.bf16 %v3195
          %v3353 = vunpack.c.l.bf16 %v3196
          %v3354 = vunpack.c.h.bf16 %v3196
          %v3355 = vunpack.c.l.bf16 %v3197
          %v3356 = vunpack.c.h.bf16 %v3197
          %v3357 = vunpack.c.l.bf16 %v3198
          %v3358 = vunpack.c.h.bf16 %v3198
          %v3359 = vunpack.c.l.bf16 %v3199
          %v3360 = vunpack.c.h.bf16 %v3199
          %v3361 = vunpack.c.l.bf16 %v3200
          %v3362 = vunpack.c.h.bf16 %v3200
          %v3363 = vunpack.c.l.bf16 %v3201
          %v3364 = vunpack.c.h.bf16 %v3201
          %v3365 = vunpack.c.l.bf16 %v3202
          %v3366 = vunpack.c.h.bf16 %v3202
          %v3367 = vunpack.c.l.bf16 %v3203
          %v3368 = vunpack.c.h.bf16 %v3203
          %v3369 = vunpack.c.l.bf16 %v3204
          %v3370 = vunpack.c.h.bf16 %v3204
          %v3371 = vunpack.c.l.bf16 %v3205
          %v3372 = vunpack.c.h.bf16 %v3205
          %v3373 = vunpack.c.l.bf16 %v3206
          %v3374 = vunpack.c.h.bf16 %v3206
          %v3375 = vunpack.c.l.bf16 %v3207
          %v3376 = vunpack.c.h.bf16 %v3207
          %v3377 = vunpack.c.l.bf16 %v3208
          %v3378 = vunpack.c.h.bf16 %v3208
          %v3379 = vunpack.c.l.bf16 %v3209
          %v3380 = vunpack.c.h.bf16 %v3209
          %v3381 = vunpack.c.l.bf16 %v3210
          %v3382 = vunpack.c.h.bf16 %v3210
          %v3383 = vunpack.c.l.bf16 %v3211
          %v3384 = vunpack.c.h.bf16 %v3211
          %v3385 = vunpack.c.l.bf16 %v3212
          %v3386 = vunpack.c.h.bf16 %v3212
          %v3387 = vunpack.c.l.bf16 %v3213
          %v3388 = vunpack.c.h.bf16 %v3213
          %v3389 = vunpack.c.l.bf16 %v3214
          %v3390 = vunpack.c.h.bf16 %v3214
          %v3391 = vunpack.c.l.bf16 %v3215
          %v3392 = vunpack.c.h.bf16 %v3215
          %v3393 = vunpack.c.l.bf16 %v3216
          %v3394 = vunpack.c.h.bf16 %v3216
          %v3395 = vunpack.c.l.bf16 %v3217
          %v3396 = vunpack.c.h.bf16 %v3217
          %v3397 = vunpack.c.l.bf16 %v3218
          %v3398 = vunpack.c.h.bf16 %v3218
          %v3399 = vunpack.c.l.bf16 %v3219
          %v3400 = vunpack.c.h.bf16 %v3219
          %v3401 = vunpack.c.l.bf16 %v3220
          %v3402 = vunpack.c.h.bf16 %v3220
          %v3403 = vunpack.c.l.bf16 %v3221
          %v3404 = vunpack.c.h.bf16 %v3221
          %v3405 = vunpack.c.l.bf16 %v3222
          %v3406 = vunpack.c.h.bf16 %v3222
          %v3407 = vunpack.c.l.bf16 %v3223
          %v3408 = vunpack.c.h.bf16 %v3223
          %v3409 = vunpack.c.l.bf16 %v3224
          %v3410 = vunpack.c.h.bf16 %v3224
          %v3411 = vunpack.c.l.bf16 %v3225
          %v3412 = vunpack.c.h.bf16 %v3225
          %v3413 = vunpack.c.l.bf16 %v3226
          %v3414 = vunpack.c.h.bf16 %v3226
          %v3415 = vunpack.c.l.bf16 %v3227
          %v3416 = vunpack.c.h.bf16 %v3227
          %v3417 = vunpack.c.l.bf16 %v3228
          %v3418 = vunpack.c.h.bf16 %v3228
          %v3419 = vunpack.c.l.bf16 %v3229
          %v3420 = vunpack.c.h.bf16 %v3229
          %v3421 = vunpack.c.l.bf16 %v3230
          %v3422 = vunpack.c.h.bf16 %v3230
          %v3423 = vunpack.c.l.bf16 %v3231
          %v3424 = vunpack.c.h.bf16 %v3231
          %v3425 = vunpack.c.l.bf16 %v3232
          %v3426 = vunpack.c.h.bf16 %v3232
          %v3427 = vunpack.c.l.bf16 %v3233
          %v3428 = vunpack.c.h.bf16 %v3233
          %v3429 = vunpack.c.l.bf16 %v3234
          %v3430 = vunpack.c.h.bf16 %v3234
          %v3431 = vunpack.c.l.bf16 %v3235
          %v3432 = vunpack.c.h.bf16 %v3235
          %v3433 = vunpack.c.l.bf16 %v3236
          %v3434 = vunpack.c.h.bf16 %v3236
          %v3435 = vunpack.c.l.bf16 %v3237
          %v3436 = vunpack.c.h.bf16 %v3237
          %v3437 = vunpack.c.l.bf16 %v3238
          %v3438 = vunpack.c.h.bf16 %v3238
          %v3439 = vunpack.c.l.bf16 %v3239
          %v3440 = vunpack.c.h.bf16 %v3239
          %v3441 = vunpack.c.l.bf16 %v3240
          %v3442 = vunpack.c.h.bf16 %v3240
          %v3443 = vunpack.c.l.bf16 %v3241
          %v3444 = vunpack.c.h.bf16 %v3241
          %v3445 = vunpack.c.l.bf16 %v3242
          %v3446 = vunpack.c.h.bf16 %v3242
          %v3447 = vunpack.c.l.bf16 %v3243
          %v3448 = vunpack.c.h.bf16 %v3243
          %v3449 = vunpack.c.l.bf16 %v3244
          %v3450 = vunpack.c.h.bf16 %v3244
          %v3451 = vunpack.c.l.bf16 %v3245
          %v3452 = vunpack.c.h.bf16 %v3245
          %v3453 = vunpack.c.l.bf16 %v3246
          %v3454 = vunpack.c.h.bf16 %v3246
          %v3455 = vunpack.c.l.bf16 %v3247
          %v3456 = vunpack.c.h.bf16 %v3247
          %v3457 = vunpack.c.l.bf16 %v3248
          %v3458 = vunpack.c.h.bf16 %v3248
          %v3459 = vunpack.c.l.bf16 %v3249
          %v3460 = vunpack.c.h.bf16 %v3249
          %v3461 = vunpack.c.l.bf16 %v3250
          %v3462 = vunpack.c.h.bf16 %v3250
          %v3463 = vunpack.c.l.bf16 %v3251
          %v3464 = vunpack.c.h.bf16 %v3251
          %v3465 = vunpack.c.l.bf16 %v3252
          %v3466 = vunpack.c.h.bf16 %v3252
          %v3467 = vunpack.c.l.bf16 %v3253
          %v3468 = vunpack.c.h.bf16 %v3253
          %v3469 = vunpack.c.l.bf16 %v3254
          %v3470 = vunpack.c.h.bf16 %v3254
          %v3471 = vunpack.c.l.bf16 %v3255
          %v3472 = vunpack.c.h.bf16 %v3255
          %v3473 = vunpack.c.l.bf16 %v3256
          %v3474 = vunpack.c.h.bf16 %v3256
          %v3475 = vunpack.c.l.bf16 %v3257
          %v3476 = vunpack.c.h.bf16 %v3257
          %v3477 = vunpack.c.l.bf16 %v3258
          %v3478 = vunpack.c.h.bf16 %v3258
          %v3479 = vunpack.c.l.bf16 %v3259
          %v3480 = vunpack.c.h.bf16 %v3259
          %v3481 = vunpack.c.l.bf16 %v3260
          %v3482 = vunpack.c.h.bf16 %v3260
          %v3483 = vunpack.c.l.bf16 %v3261
          %v3484 = vunpack.c.h.bf16 %v3261
          %v3485 = vunpack.c.l.bf16 %v3262
          %v3486 = vunpack.c.h.bf16 %v3262
          %v3487 = vunpack.c.l.bf16 %v3263
          %v3488 = vunpack.c.h.bf16 %v3263
          %v3489 = vunpack.c.l.bf16 %v3264
          %v3490 = vunpack.c.h.bf16 %v3264
          %v3491 = vunpack.c.l.bf16 %v3265
          %v3492 = vunpack.c.h.bf16 %v3265
          %v3493 = vunpack.c.l.bf16 %v3266
          %v3494 = vunpack.c.h.bf16 %v3266
          %v3495 = vunpack.c.l.bf16 %v3267
          %v3496 = vunpack.c.h.bf16 %v3267
          %v3497 = vunpack.c.l.bf16 %v3268
          %v3498 = vunpack.c.h.bf16 %v3268
          %v3499 = vunpack.c.l.bf16 %v3269
          %v3500 = vunpack.c.h.bf16 %v3269
          %v3501 = vunpack.c.l.bf16 %v3270
          %v3502 = vunpack.c.h.bf16 %v3270
          %v3503 = vunpack.c.l.bf16 %v3271
          %v3504 = vunpack.c.h.bf16 %v3271
          %v3505 = vunpack.c.l.bf16 %v3272
          %v3506 = vunpack.c.h.bf16 %v3272
          %v3507 = vunpack.c.l.bf16 %v3273
          %v3508 = vunpack.c.h.bf16 %v3273
          %v3509 = vunpack.c.l.bf16 %v3274
          %v3510 = vunpack.c.h.bf16 %v3274
          %v3511 = vunpack.c.l.bf16 %v3275
          %v3512 = vunpack.c.h.bf16 %v3275
          %v3513 = vunpack.c.l.bf16 %v3276
          %v3514 = vunpack.c.h.bf16 %v3276
          %v3515 = vunpack.c.l.bf16 %v3277
          %v3516 = vunpack.c.h.bf16 %v3277
          %v3517 = vunpack.c.l.bf16 %v3278
          %v3518 = vunpack.c.h.bf16 %v3278
          %v3519 = vunpack.c.l.bf16 %v3279
          %v3520 = vunpack.c.h.bf16 %v3279
          %v3521 = vunpack.c.l.bf16 %v3280
          %v3522 = vunpack.c.h.bf16 %v3280
          %v3523 = vunpack.c.l.bf16 %v3281
          %v3524 = vunpack.c.h.bf16 %v3281
          %v3525 = vunpack.c.l.bf16 %v3282
          %v3526 = vunpack.c.h.bf16 %v3282
          %v3527 = vunpack.c.l.bf16 %v3283
          %v3528 = vunpack.c.h.bf16 %v3283
          %v3529 = vunpack.c.l.bf16 %v3284
          %v3530 = vunpack.c.h.bf16 %v3284
          %v3531 = vunpack.c.l.bf16 %v3285
          %v3532 = vunpack.c.h.bf16 %v3285
          %v3533 = vunpack.c.l.bf16 %v3286
          %v3534 = vunpack.c.h.bf16 %v3286
          %v3535 = vunpack.c.l.bf16 %v3287
          %v3536 = vunpack.c.h.bf16 %v3287
          %v3537 = vunpack.c.l.bf16 %v3288
          %v3538 = vunpack.c.h.bf16 %v3288
          %v3539 = vunpack.c.l.bf16 %v3289
          %v3540 = vunpack.c.h.bf16 %v3289
          %v3541 = vunpack.c.l.bf16 %v3290
          %v3542 = vunpack.c.h.bf16 %v3290
          %v3543 = vunpack.c.l.bf16 %v3291
          %v3544 = vunpack.c.h.bf16 %v3291
          %v3545 = vunpack.c.l.bf16 %v3292
          %v3546 = vunpack.c.h.bf16 %v3292
          %v3547 = vunpack.c.l.bf16 %v3293
          %v3548 = vunpack.c.h.bf16 %v3293
          %v3549 = vunpack.c.l.bf16 %v3294
          %v3550 = vunpack.c.h.bf16 %v3294
          %s3551 = scalar_lea.vmem [#allocation2], 96
          %v3552 = vld [vmem:[%s3551] sm:$0xff]
          %v3553 = vld [vmem:[%s3551 + $0x8] sm:$0xff]
          %v3554 = vld [vmem:[%s3551 + $0x10] sm:$0xff]
          %v3555 = vld [vmem:[%s3551 + $0x18] sm:$0xff]
          %3556 = vmatprep.subr.mxu0 %v3296
          %3557 = vmatpush1.msra.mxu0 %v3295
          %3558 = vmatprep.subr.mxu0 %v3300
          %3559 = vmatpush1.msra.mxu0 %v3299
          %3560 = vmatprep.subr.mxu0 %v3304
          %3561 = vmatpush1.msra.mxu0 %v3303
          %3562 = vmatprep.subr.mxu0 %v3308
          %3563 = vmatpush1.msra.mxu0 %v3307
          %3564 = vmatprep.subr.mxu0 %v3312
          %3565 = vmatpush1.msra.mxu0 %v3311
          %3566 = vmatprep.subr.mxu0 %v3316
          %3567 = vmatpush1.msra.mxu0 %v3315
          %3568 = vmatprep.subr.mxu0 %v3320
          %3569 = vmatpush1.msra.mxu0 %v3319
          %3570 = vmatprep.subr.mxu0 %v3324
          %3571 = vmatpush1.msra.mxu0 %v3323
          %3572 = vmatprep.subr.mxu0 %v3328
          %3573 = vmatpush1.msra.mxu0 %v3327
          %3574 = vmatprep.subr.mxu0 %v3332
          %3575 = vmatpush1.msra.mxu0 %v3331
          %3576 = vmatprep.subr.mxu0 %v3336
          %3577 = vmatpush1.msra.mxu0 %v3335
          %3578 = vmatprep.subr.mxu0 %v3340
          %3579 = vmatpush1.msra.mxu0 %v3339
          %3580 = vmatprep.subr.mxu0 %v3344
          %3581 = vmatpush1.msra.mxu0 %v3343
          %3582 = vmatprep.subr.mxu0 %v3348
          %3583 = vmatpush1.msra.mxu0 %v3347
          %3584 = vmatprep.subr.mxu0 %v3352
          %3585 = vmatpush1.msra.mxu0 %v3351
          %3586 = vmatprep.subr.mxu0 %v3356
          %3587 = vmatpush1.msra.mxu0 %v3355
          %3588 = vmatprep.subr.mxu0 %v3360
          %3589 = vmatpush1.msra.mxu0 %v3359
          %3590 = vmatprep.subr.mxu0 %v3364
          %3591 = vmatpush1.msra.mxu0 %v3363
          %3592 = vmatprep.subr.mxu0 %v3368
          %3593 = vmatpush1.msra.mxu0 %v3367
          %3594 = vmatprep.subr.mxu0 %v3372
          %3595 = vmatpush1.msra.mxu0 %v3371
          %3596 = vmatprep.subr.mxu0 %v3376
          %3597 = vmatpush1.msra.mxu0 %v3375
          %3598 = vmatprep.subr.mxu0 %v3380
          %3599 = vmatpush1.msra.mxu0 %v3379
          %3600 = vmatprep.subr.mxu0 %v3384
          %3601 = vmatpush1.msra.mxu0 %v3383
          %3602 = vmatprep.subr.mxu0 %v3388
          %3603 = vmatpush1.msra.mxu0 %v3387
          %3604 = vmatprep.subr.mxu0 %v3392
          %3605 = vmatpush1.msra.mxu0 %v3391
          %3606 = vmatprep.subr.mxu0 %v3396
          %3607 = vmatpush1.msra.mxu0 %v3395
          %3608 = vmatprep.subr.mxu0 %v3400
          %3609 = vmatpush1.msra.mxu0 %v3399
          %3610 = vmatprep.subr.mxu0 %v3404
          %3611 = vmatpush1.msra.mxu0 %v3403
          %3612 = vmatprep.subr.mxu0 %v3408
          %3613 = vmatpush1.msra.mxu0 %v3407
          %3614 = vmatprep.subr.mxu0 %v3412
          %3615 = vmatpush1.msra.mxu0 %v3411
          %3616 = vmatprep.subr.mxu0 %v3416
          %3617 = vmatpush1.msra.mxu0 %v3415
          %3618 = vmatprep.subr.mxu0 %v3420
          %3619 = vmatpush1.msra.mxu0 %v3419
          %3620 = vmatprep.mubr.f32.mxu0 %v3553
          %3621 = vmatmul.mubr.f32.gmra.mrb[0].mxu0 %v3552
          %v3622 = vpop.f32.mrb[0].mxu0
          %v3623 = vadd.f32 0.0, %v3622
          %v3624 = vpop.f32.mrb[0].mxu0
          %v3625 = vadd.f32 0.0, %v3624
          %3626 = vdwg.mxu0
          %3627 = vmatprep.subr.mxu0 %v3424
          %3628 = vmatpush1.msra.mxu0 %v3423
          %3629 = vmatprep.subr.mxu0 %v3428
          %3630 = vmatpush1.msra.mxu0 %v3427
          %3631 = vmatprep.subr.mxu0 %v3432
          %3632 = vmatpush1.msra.mxu0 %v3431
          %3633 = vmatprep.subr.mxu0 %v3436
          %3634 = vmatpush1.msra.mxu0 %v3435
          %3635 = vmatprep.subr.mxu0 %v3440
          %3636 = vmatpush1.msra.mxu0 %v3439
          %3637 = vmatprep.subr.mxu0 %v3444
          %3638 = vmatpush1.msra.mxu0 %v3443
          %3639 = vmatprep.subr.mxu0 %v3448
          %3640 = vmatpush1.msra.mxu0 %v3447
          %3641 = vmatprep.subr.mxu0 %v3452
          %3642 = vmatpush1.msra.mxu0 %v3451
          %3643 = vmatprep.subr.mxu0 %v3456
          %3644 = vmatpush1.msra.mxu0 %v3455
          %3645 = vmatprep.subr.mxu0 %v3460
          %3646 = vmatpush1.msra.mxu0 %v3459
          %3647 = vmatprep.subr.mxu0 %v3464
          %3648 = vmatpush1.msra.mxu0 %v3463
          %3649 = vmatprep.subr.mxu0 %v3468
          %3650 = vmatpush1.msra.mxu0 %v3467
          %3651 = vmatprep.subr.mxu0 %v3472
          %3652 = vmatpush1.msra.mxu0 %v3471
          %3653 = vmatprep.subr.mxu0 %v3476
          %3654 = vmatpush1.msra.mxu0 %v3475
          %3655 = vmatprep.subr.mxu0 %v3480
          %3656 = vmatpush1.msra.mxu0 %v3479
          %3657 = vmatprep.subr.mxu0 %v3484
          %3658 = vmatpush1.msra.mxu0 %v3483
          %3659 = vmatprep.subr.mxu0 %v3488
          %3660 = vmatpush1.msra.mxu0 %v3487
          %3661 = vmatprep.subr.mxu0 %v3492
          %3662 = vmatpush1.msra.mxu0 %v3491
          %3663 = vmatprep.subr.mxu0 %v3496
          %3664 = vmatpush1.msra.mxu0 %v3495
          %3665 = vmatprep.subr.mxu0 %v3500
          %3666 = vmatpush1.msra.mxu0 %v3499
          %3667 = vmatprep.subr.mxu0 %v3504
          %3668 = vmatpush1.msra.mxu0 %v3503
          %3669 = vmatprep.subr.mxu0 %v3508
          %3670 = vmatpush1.msra.mxu0 %v3507
          %3671 = vmatprep.subr.mxu0 %v3512
          %3672 = vmatpush1.msra.mxu0 %v3511
          %3673 = vmatprep.subr.mxu0 %v3516
          %3674 = vmatpush1.msra.mxu0 %v3515
          %3675 = vmatprep.subr.mxu0 %v3520
          %3676 = vmatpush1.msra.mxu0 %v3519
          %3677 = vmatprep.subr.mxu0 %v3524
          %3678 = vmatpush1.msra.mxu0 %v3523
          %3679 = vmatprep.subr.mxu0 %v3528
          %3680 = vmatpush1.msra.mxu0 %v3527
          %3681 = vmatprep.subr.mxu0 %v3532
          %3682 = vmatpush1.msra.mxu0 %v3531
          %3683 = vmatprep.subr.mxu0 %v3536
          %3684 = vmatpush1.msra.mxu0 %v3535
          %3685 = vmatprep.subr.mxu0 %v3540
          %3686 = vmatpush1.msra.mxu0 %v3539
          %3687 = vmatprep.subr.mxu0 %v3544
          %3688 = vmatpush1.msra.mxu0 %v3543
          %3689 = vmatprep.subr.mxu0 %v3548
          %3690 = vmatpush1.msra.mxu0 %v3547
          %3691 = vmatprep.mubr.f32.mxu0 %v3555
          %3692 = vmatmul.mubr.f32.gmra.mrb[0].mxu0 %v3554
          %v3693 = vpop.f32.mrb[0].mxu0
          %v3694 = vadd.f32 %v3623, %v3693
          %v3695 = vpop.f32.mrb[0].mxu0
          %v3696 = vadd.f32 %v3625, %v3695
          %3697 = vdwg.mxu0
          %3698 = vmatprep.subr.mxu0 %v3298
          %3699 = vmatpush1.msra.mxu0 %v3297
          %3700 = vmatprep.subr.mxu0 %v3302
          %3701 = vmatpush1.msra.mxu0 %v3301
          %3702 = vmatprep.subr.mxu0 %v3306
          %3703 = vmatpush1.msra.mxu0 %v3305
          %3704 = vmatprep.subr.mxu0 %v3310
          %3705 = vmatpush1.msra.mxu0 %v3309
          %3706 = vmatprep.subr.mxu0 %v3314
          %3707 = vmatpush1.msra.mxu0 %v3313
          %3708 = vmatprep.subr.mxu0 %v3318
          %3709 = vmatpush1.msra.mxu0 %v3317
          %3710 = vmatprep.subr.mxu0 %v3322
          %3711 = vmatpush1.msra.mxu0 %v3321
          %3712 = vmatprep.subr.mxu0 %v3326
          %3713 = vmatpush1.msra.mxu0 %v3325
          %3714 = vmatprep.subr.mxu0 %v3330
          %3715 = vmatpush1.msra.mxu0 %v3329
          %3716 = vmatprep.subr.mxu0 %v3334
          %3717 = vmatpush1.msra.mxu0 %v3333
          %3718 = vmatprep.subr.mxu0 %v3338
          %3719 = vmatpush1.msra.mxu0 %v3337
          %3720 = vmatprep.subr.mxu0 %v3342
          %3721 = vmatpush1.msra.mxu0 %v3341
          %3722 = vmatprep.subr.mxu0 %v3346
          %3723 = vmatpush1.msra.mxu0 %v3345
          %3724 = vmatprep.subr.mxu0 %v3350
          %3725 = vmatpush1.msra.mxu0 %v3349
          %3726 = vmatprep.subr.mxu0 %v3354
          %3727 = vmatpush1.msra.mxu0 %v3353
          %3728 = vmatprep.subr.mxu0 %v3358
          %3729 = vmatpush1.msra.mxu0 %v3357
          %3730 = vmatprep.subr.mxu0 %v3362
          %3731 = vmatpush1.msra.mxu0 %v3361
          %3732 = vmatprep.subr.mxu0 %v3366
          %3733 = vmatpush1.msra.mxu0 %v3365
          %3734 = vmatprep.subr.mxu0 %v3370
          %3735 = vmatpush1.msra.mxu0 %v3369
          %3736 = vmatprep.subr.mxu0 %v3374
          %3737 = vmatpush1.msra.mxu0 %v3373
          %3738 = vmatprep.subr.mxu0 %v3378
          %3739 = vmatpush1.msra.mxu0 %v3377
          %3740 = vmatprep.subr.mxu0 %v3382
          %3741 = vmatpush1.msra.mxu0 %v3381
          %3742 = vmatprep.subr.mxu0 %v3386
          %3743 = vmatpush1.msra.mxu0 %v3385
          %3744 = vmatprep.subr.mxu0 %v3390
          %3745 = vmatpush1.msra.mxu0 %v3389
          %3746 = vmatprep.subr.mxu0 %v3394
          %3747 = vmatpush1.msra.mxu0 %v3393
          %3748 = vmatprep.subr.mxu0 %v3398
          %3749 = vmatpush1.msra.mxu0 %v3397
          %3750 = vmatprep.subr.mxu0 %v3402
          %3751 = vmatpush1.msra.mxu0 %v3401
          %3752 = vmatprep.subr.mxu0 %v3406
          %3753 = vmatpush1.msra.mxu0 %v3405
          %3754 = vmatprep.subr.mxu0 %v3410
          %3755 = vmatpush1.msra.mxu0 %v3409
          %3756 = vmatprep.subr.mxu0 %v3414
          %3757 = vmatpush1.msra.mxu0 %v3413
          %3758 = vmatprep.subr.mxu0 %v3418
          %3759 = vmatpush1.msra.mxu0 %v3417
          %3760 = vmatprep.subr.mxu0 %v3422
          %3761 = vmatpush1.msra.mxu0 %v3421
          %3762 = vmatprep.mubr.f32.mxu0 %v3553
          %3763 = vmatmul.mubr.f32.gmra.mrb[0].mxu0 %v3552
          %v3764 = vpop.f32.mrb[0].mxu0
          %v3765 = vadd.f32 0.0, %v3764
          %v3766 = vpop.f32.mrb[0].mxu0
          %v3767 = vadd.f32 0.0, %v3766
          %3768 = vdwg.mxu0
          %3769 = vmatprep.subr.mxu0 %v3426
          %3770 = vmatpush1.msra.mxu0 %v3425
          %3771 = vmatprep.subr.mxu0 %v3430
          %3772 = vmatpush1.msra.mxu0 %v3429
          %3773 = vmatprep.subr.mxu0 %v3434
          %3774 = vmatpush1.msra.mxu0 %v3433
          %3775 = vmatprep.subr.mxu0 %v3438
          %3776 = vmatpush1.msra.mxu0 %v3437
          %3777 = vmatprep.subr.mxu0 %v3442
          %3778 = vmatpush1.msra.mxu0 %v3441
          %3779 = vmatprep.subr.mxu0 %v3446
          %3780 = vmatpush1.msra.mxu0 %v3445
          %3781 = vmatprep.subr.mxu0 %v3450
          %3782 = vmatpush1.msra.mxu0 %v3449
          %3783 = vmatprep.subr.mxu0 %v3454
          %3784 = vmatpush1.msra.mxu0 %v3453
          %3785 = vmatprep.subr.mxu0 %v3458
          %3786 = vmatpush1.msra.mxu0 %v3457
          %3787 = vmatprep.subr.mxu0 %v3462
          %3788 = vmatpush1.msra.mxu0 %v3461
          %3789 = vmatprep.subr.mxu0 %v3466
          %3790 = vmatpush1.msra.mxu0 %v3465
          %3791 = vmatprep.subr.mxu0 %v3470
          %3792 = vmatpush1.msra.mxu0 %v3469
          %3793 = vmatprep.subr.mxu0 %v3474
          %3794 = vmatpush1.msra.mxu0 %v3473
          %3795 = vmatprep.subr.mxu0 %v3478
          %3796 = vmatpush1.msra.mxu0 %v3477
          %3797 = vmatprep.subr.mxu0 %v3482
          %3798 = vmatpush1.msra.mxu0 %v3481
          %3799 = vmatprep.subr.mxu0 %v3486
          %3800 = vmatpush1.msra.mxu0 %v3485
          %3801 = vmatprep.subr.mxu0 %v3490
          %3802 = vmatpush1.msra.mxu0 %v3489
          %3803 = vmatprep.subr.mxu0 %v3494
          %3804 = vmatpush1.msra.mxu0 %v3493
          %3805 = vmatprep.subr.mxu0 %v3498
          %3806 = vmatpush1.msra.mxu0 %v3497
          %3807 = vmatprep.subr.mxu0 %v3502
          %3808 = vmatpush1.msra.mxu0 %v3501
          %3809 = vmatprep.subr.mxu0 %v3506
          %3810 = vmatpush1.msra.mxu0 %v3505
          %3811 = vmatprep.subr.mxu0 %v3510
          %3812 = vmatpush1.msra.mxu0 %v3509
          %3813 = vmatprep.subr.mxu0 %v3514
          %3814 = vmatpush1.msra.mxu0 %v3513
          %3815 = vmatprep.subr.mxu0 %v3518
          %3816 = vmatpush1.msra.mxu0 %v3517
          %3817 = vmatprep.subr.mxu0 %v3522
          %3818 = vmatpush1.msra.mxu0 %v3521
          %3819 = vmatprep.subr.mxu0 %v3526
          %3820 = vmatpush1.msra.mxu0 %v3525
          %3821 = vmatprep.subr.mxu0 %v3530
          %3822 = vmatpush1.msra.mxu0 %v3529
          %3823 = vmatprep.subr.mxu0 %v3534
          %3824 = vmatpush1.msra.mxu0 %v3533
          %3825 = vmatprep.subr.mxu0 %v3538
          %3826 = vmatpush1.msra.mxu0 %v3537
          %3827 = vmatprep.subr.mxu0 %v3542
          %3828 = vmatpush1.msra.mxu0 %v3541
          %3829 = vmatprep.subr.mxu0 %v3546
          %3830 = vmatpush1.msra.mxu0 %v3545
          %3831 = vmatprep.subr.mxu0 %v3550
          %3832 = vmatpush1.msra.mxu0 %v3549
          %3833 = vmatprep.mubr.f32.mxu0 %v3555
          %3834 = vmatmul.mubr.f32.gmra.mrb[0].mxu0 %v3554
          %v3835 = vpop.f32.mrb[0].mxu0
          %v3836 = vadd.f32 %v3765, %v3835
          %v3837 = vpop.f32.mrb[0].mxu0
          %v3838 = vadd.f32 %v3767, %v3837
          %3839 = vdwg.mxu0
          %v3840 = vadd.f32 %v3163, %v3694
          %v3841 = vadd.f32 %v3164, %v3696
          %v3842 = vadd.f32 %v3165, %v3836
          %v3843 = vadd.f32 %v3166, %v3838
          %v3844 = vld [vmem:[%s354] sm:$0xf]
          %v3846 = vlaneseq
          %v3847 = vshrl.u32 %v3846, 7
          %v3848 = vsub.s32 0, %v3847
          %v3849 = vrot.slane %v3844, %v3848
          %v3850 = vlaneseq
          %v3851 = vshrl.u32 %v3850, 7
          %v3852 = vsub.s32 1, %v3851
          %v3853 = vrot.slane %v3844, %v3852
          %v3854 = vlaneseq
          %v3855 = vshrl.u32 %v3854, 7
          %v3856 = vsub.s32 2, %v3855
          %v3857 = vrot.slane %v3844, %v3856
          %v3858 = vlaneseq
          %v3859 = vshrl.u32 %v3858, 7
          %v3860 = vsub.s32 3, %v3859
          %v3861 = vrot.slane %v3844, %v3860
          %v3866 = vadd.f32 %v3840, %v3849
          %v3867 = vadd.f32 %v3841, %v3853
          %v3868 = vadd.f32 %v3842, %v3857
          %v3869 = vadd.f32 %v3843, %v3861
          %v3870 = vmax.f32 %v3866, 0.0
          %v3871 = vmax.f32 %v3867, 0.0
          %v3872 = vmax.f32 %v3868, 0.0
          %v3873 = vmax.f32 %v3869, 0.0
          %s3874 = smul.u32 %s27, 4
          %s3875 = smul.addr %s3874, 8
          %s3876 = scalar_lea.vmem [#allocation3], %s3875
          %3877 = vst [vmem:[%s3876] sm:$0xff] %v3870
          %3878 = vst [vmem:[%s3876 + $0x8] sm:$0xff] %v3871
          %3879 = vst [vmem:[%s3876 + $0x10] sm:$0xff] %v3872
          %3880 = vst [vmem:[%s3876 + $0x18] sm:$0xff] %v3873
          %p3881 = scmp.eq.s32.totalorder %s26, 3
          // Predicated region
          $region77: #{multiple_regression_forward.1} parent=75 // pred_check
            %p3882 = pneg %p3881
          $region78: #{multiple_regression_forward.1} parent=75 // pred_check_branch
            %3884 = sbr.rel (%p3882) target = $region80
          $region79: #{multiple_regression_forward.1} parent=75 // pred_region
            %v3885 = vld [vmem:[#allocation4] sm:$0xff]
            %v3886 = vld [vmem:[%s363] sm:$0xf]
            %v3888 = vlaneseq
            %v3889 = vshrl.u32 %v3888, 7
            %v3890 = vsub.s32 0, %v3889
            %v3891 = vrot.slane %v3886, %v3890
            %v3892 = vlaneseq
            %v3893 = vshrl.u32 %v3892, 7
            %v3894 = vsub.s32 1, %v3893
            %v3895 = vrot.slane %v3886, %v3894
            %v3896 = vlaneseq
            %v3897 = vshrl.u32 %v3896, 7
            %v3898 = vsub.s32 2, %v3897
            %v3899 = vrot.slane %v3886, %v3898
            %v3900 = vlaneseq
            %v3901 = vshrl.u32 %v3900, 7
            %v3902 = vsub.s32 3, %v3901
            %v3903 = vrot.slane %v3886, %v3902
            %v3908 = vmul.f32 %v3870, %v3891
            %v3909 = vmul.f32 %v3871, %v3895
            %v3910 = vmul.f32 %v3872, %v3899
            %v3911 = vmul.f32 %v3873, %v3903
            %v3912 = vadd.f32 %v3908, %v3909
            %v3913 = vadd.f32 %v3912, %v3910
            %v3914 = vadd.f32 %v3913, %v3911
            %3915 = vadd.xlane.f32.xlu0 %v3914
            %v3916 = vpop.xlane.xlu0 %3915
            %v3917 = vadd.f32 %v3885, %v3916
            %vm3918 = vcmask 7168
            %3919 = vst.msk [vmem:[#allocation4] sm:$0xff] %vm3918, %v3917
          $region80: #{multiple_regression_forward.1} parent=75 // pred_fallthru
            _
        $region76: #{multiple_regression_forward.1} parent=47 // pred_fallthru
          _
        %p3920 = scmp.eq.s32.totalorder %s1140, 1
        // Predicated region
        $region81: #{multiple_regression_forward.1} parent=47 // pred_check
          %p3921 = pneg %p3920
        $region82: #{multiple_regression_forward.1} parent=47 // pred_check_branch
          %3923 = sbr.rel (%p3921) target = $region84
        $region83: #{multiple_regression_forward.1} parent=47 // pred_region
          %v3924 = vld [vmem:[%s345] sm:$0xff]
          %v3925 = vld [vmem:[%s345 + $0x8] sm:$0xff]
          %v3926 = vld [vmem:[%s345 + $0x10] sm:$0xff]
          %v3927 = vld [vmem:[%s345 + $0x18] sm:$0xff]
          %v3928 = vld [vmem:[%s345 + $0x20] sm:$0xff]
          %v3929 = vld [vmem:[%s345 + $0x28] sm:$0xff]
          %v3930 = vld [vmem:[%s345 + $0x30] sm:$0xff]
          %v3931 = vld [vmem:[%s345 + $0x38] sm:$0xff]
          %v3932 = vld [vmem:[%s345 + $0x40] sm:$0xff]
          %v3933 = vld [vmem:[%s345 + $0x48] sm:$0xff]
          %v3934 = vld [vmem:[%s345 + $0x50] sm:$0xff]
          %v3935 = vld [vmem:[%s345 + $0x58] sm:$0xff]
          %v3936 = vld [vmem:[%s345 + $0x60] sm:$0xff]
          %v3937 = vld [vmem:[%s345 + $0x68] sm:$0xff]
          %v3938 = vld [vmem:[%s345 + $0x70] sm:$0xff]
          %v3939 = vld [vmem:[%s345 + $0x78] sm:$0xff]
          %v3940 = vld [vmem:[%s345 + $0x80] sm:$0xff]
          %v3941 = vld [vmem:[%s345 + $0x88] sm:$0xff]
          %v3942 = vld [vmem:[%s345 + $0x90] sm:$0xff]
          %v3943 = vld [vmem:[%s345 + $0x98] sm:$0xff]
          %v3944 = vld [vmem:[%s345 + $0xa0] sm:$0xff]
          %v3945 = vld [vmem:[%s345 + $0xa8] sm:$0xff]
          %v3946 = vld [vmem:[%s345 + $0xb0] sm:$0xff]
          %v3947 = vld [vmem:[%s345 + $0xb8] sm:$0xff]
          %v3948 = vld [vmem:[%s345 + $0xc0] sm:$0xff]
          %v3949 = vld [vmem:[%s345 + $0xc8] sm:$0xff]
          %v3950 = vld [vmem:[%s345 + $0xd0] sm:$0xff]
          %v3951 = vld [vmem:[%s345 + $0xd8] sm:$0xff]
          %v3952 = vld [vmem:[%s345 + $0xe0] sm:$0xff]
          %v3953 = vld [vmem:[%s345 + $0xe8] sm:$0xff]
          %v3954 = vld [vmem:[%s345 + $0xf0] sm:$0xff]
          %v3955 = vld [vmem:[%s345 + $0xf8] sm:$0xff]
          %v3956 = vld [vmem:[%s345 + $0x100] sm:$0xff]
          %v3957 = vld [vmem:[%s345 + $0x108] sm:$0xff]
          %v3958 = vld [vmem:[%s345 + $0x110] sm:$0xff]
          %v3959 = vld [vmem:[%s345 + $0x118] sm:$0xff]
          %v3960 = vld [vmem:[%s345 + $0x120] sm:$0xff]
          %v3961 = vld [vmem:[%s345 + $0x128] sm:$0xff]
          %v3962 = vld [vmem:[%s345 + $0x130] sm:$0xff]
          %v3963 = vld [vmem:[%s345 + $0x138] sm:$0xff]
          %v3964 = vld [vmem:[%s345 + $0x140] sm:$0xff]
          %v3965 = vld [vmem:[%s345 + $0x148] sm:$0xff]
          %v3966 = vld [vmem:[%s345 + $0x150] sm:$0xff]
          %v3967 = vld [vmem:[%s345 + $0x158] sm:$0xff]
          %v3968 = vld [vmem:[%s345 + $0x160] sm:$0xff]
          %v3969 = vld [vmem:[%s345 + $0x168] sm:$0xff]
          %v3970 = vld [vmem:[%s345 + $0x170] sm:$0xff]
          %v3971 = vld [vmem:[%s345 + $0x178] sm:$0xff]
          %v3972 = vld [vmem:[%s345 + $0x180] sm:$0xff]
          %v3973 = vld [vmem:[%s345 + $0x188] sm:$0xff]
          %v3974 = vld [vmem:[%s345 + $0x190] sm:$0xff]
          %v3975 = vld [vmem:[%s345 + $0x198] sm:$0xff]
          %v3976 = vld [vmem:[%s345 + $0x1a0] sm:$0xff]
          %v3977 = vld [vmem:[%s345 + $0x1a8] sm:$0xff]
          %v3978 = vld [vmem:[%s345 + $0x1b0] sm:$0xff]
          %v3979 = vld [vmem:[%s345 + $0x1b8] sm:$0xff]
          %v3980 = vld [vmem:[%s345 + $0x1c0] sm:$0xff]
          %v3981 = vld [vmem:[%s345 + $0x1c8] sm:$0xff]
          %v3982 = vld [vmem:[%s345 + $0x1d0] sm:$0xff]
          %v3983 = vld [vmem:[%s345 + $0x1d8] sm:$0xff]
          %v3984 = vld [vmem:[%s345 + $0x1e0] sm:$0xff]
          %v3985 = vld [vmem:[%s345 + $0x1e8] sm:$0xff]
          %v3986 = vld [vmem:[%s345 + $0x1f0] sm:$0xff]
          %v3987 = vld [vmem:[%s345 + $0x1f8] sm:$0xff]
          %v3988 = vld [vmem:[%s345 + $0x200] sm:$0xff]
          %v3989 = vld [vmem:[%s345 + $0x208] sm:$0xff]
          %v3990 = vld [vmem:[%s345 + $0x210] sm:$0xff]
          %v3991 = vld [vmem:[%s345 + $0x218] sm:$0xff]
          %v3992 = vld [vmem:[%s345 + $0x220] sm:$0xff]
          %v3993 = vld [vmem:[%s345 + $0x228] sm:$0xff]
          %v3994 = vld [vmem:[%s345 + $0x230] sm:$0xff]
          %v3995 = vld [vmem:[%s345 + $0x238] sm:$0xff]
          %v3996 = vld [vmem:[%s345 + $0x240] sm:$0xff]
          %v3997 = vld [vmem:[%s345 + $0x248] sm:$0xff]
          %v3998 = vld [vmem:[%s345 + $0x250] sm:$0xff]
          %v3999 = vld [vmem:[%s345 + $0x258] sm:$0xff]
          %v4000 = vld [vmem:[%s345 + $0x260] sm:$0xff]
          %v4001 = vld [vmem:[%s345 + $0x268] sm:$0xff]
          %v4002 = vld [vmem:[%s345 + $0x270] sm:$0xff]
          %v4003 = vld [vmem:[%s345 + $0x278] sm:$0xff]
          %v4004 = vld [vmem:[%s345 + $0x280] sm:$0xff]
          %v4005 = vld [vmem:[%s345 + $0x288] sm:$0xff]
          %v4006 = vld [vmem:[%s345 + $0x290] sm:$0xff]
          %v4007 = vld [vmem:[%s345 + $0x298] sm:$0xff]
          %v4008 = vld [vmem:[%s345 + $0x2a0] sm:$0xff]
          %v4009 = vld [vmem:[%s345 + $0x2a8] sm:$0xff]
          %v4010 = vld [vmem:[%s345 + $0x2b0] sm:$0xff]
          %v4011 = vld [vmem:[%s345 + $0x2b8] sm:$0xff]
          %v4012 = vld [vmem:[%s345 + $0x2c0] sm:$0xff]
          %v4013 = vld [vmem:[%s345 + $0x2c8] sm:$0xff]
          %v4014 = vld [vmem:[%s345 + $0x2d0] sm:$0xff]
          %v4015 = vld [vmem:[%s345 + $0x2d8] sm:$0xff]
          %v4016 = vld [vmem:[%s345 + $0x2e0] sm:$0xff]
          %v4017 = vld [vmem:[%s345 + $0x2e8] sm:$0xff]
          %v4018 = vld [vmem:[%s345 + $0x2f0] sm:$0xff]
          %v4019 = vld [vmem:[%s345 + $0x2f8] sm:$0xff]
          %v4020 = vld [vmem:[%s345 + $0x300] sm:$0xff]
          %v4021 = vld [vmem:[%s345 + $0x308] sm:$0xff]
          %v4022 = vld [vmem:[%s345 + $0x310] sm:$0xff]
          %v4023 = vld [vmem:[%s345 + $0x318] sm:$0xff]
          %v4024 = vld [vmem:[%s345 + $0x320] sm:$0xff]
          %v4025 = vld [vmem:[%s345 + $0x328] sm:$0xff]
          %v4026 = vld [vmem:[%s345 + $0x330] sm:$0xff]
          %v4027 = vld [vmem:[%s345 + $0x338] sm:$0xff]
          %v4028 = vld [vmem:[%s345 + $0x340] sm:$0xff]
          %v4029 = vld [vmem:[%s345 + $0x348] sm:$0xff]
          %v4030 = vld [vmem:[%s345 + $0x350] sm:$0xff]
          %v4031 = vld [vmem:[%s345 + $0x358] sm:$0xff]
          %v4032 = vld [vmem:[%s345 + $0x360] sm:$0xff]
          %v4033 = vld [vmem:[%s345 + $0x368] sm:$0xff]
          %v4034 = vld [vmem:[%s345 + $0x370] sm:$0xff]
          %v4035 = vld [vmem:[%s345 + $0x378] sm:$0xff]
          %v4036 = vld [vmem:[%s345 + $0x380] sm:$0xff]
          %v4037 = vld [vmem:[%s345 + $0x388] sm:$0xff]
          %v4038 = vld [vmem:[%s345 + $0x390] sm:$0xff]
          %v4039 = vld [vmem:[%s345 + $0x398] sm:$0xff]
          %v4040 = vld [vmem:[%s345 + $0x3a0] sm:$0xff]
          %v4041 = vld [vmem:[%s345 + $0x3a8] sm:$0xff]
          %v4042 = vld [vmem:[%s345 + $0x3b0] sm:$0xff]
          %v4043 = vld [vmem:[%s345 + $0x3b8] sm:$0xff]
          %v4044 = vld [vmem:[%s345 + $0x3c0] sm:$0xff]
          %v4045 = vld [vmem:[%s345 + $0x3c8] sm:$0xff]
          %v4046 = vld [vmem:[%s345 + $0x3d0] sm:$0xff]
          %v4047 = vld [vmem:[%s345 + $0x3d8] sm:$0xff]
          %v4048 = vld [vmem:[%s345 + $0x3e0] sm:$0xff]
          %v4049 = vld [vmem:[%s345 + $0x3e8] sm:$0xff]
          %v4050 = vld [vmem:[%s345 + $0x3f0] sm:$0xff]
          %v4051 = vld [vmem:[%s345 + $0x3f8] sm:$0xff]
          %v4052 = vunpack.c.l.bf16 %v3924
          %v4053 = vunpack.c.h.bf16 %v3924
          %v4054 = vunpack.c.l.bf16 %v3925
          %v4055 = vunpack.c.h.bf16 %v3925
          %v4056 = vunpack.c.l.bf16 %v3926
          %v4057 = vunpack.c.h.bf16 %v3926
          %v4058 = vunpack.c.l.bf16 %v3927
          %v4059 = vunpack.c.h.bf16 %v3927
          %v4060 = vunpack.c.l.bf16 %v3928
          %v4061 = vunpack.c.h.bf16 %v3928
          %v4062 = vunpack.c.l.bf16 %v3929
          %v4063 = vunpack.c.h.bf16 %v3929
          %v4064 = vunpack.c.l.bf16 %v3930
          %v4065 = vunpack.c.h.bf16 %v3930
          %v4066 = vunpack.c.l.bf16 %v3931
          %v4067 = vunpack.c.h.bf16 %v3931
          %v4068 = vunpack.c.l.bf16 %v3932
          %v4069 = vunpack.c.h.bf16 %v3932
          %v4070 = vunpack.c.l.bf16 %v3933
          %v4071 = vunpack.c.h.bf16 %v3933
          %v4072 = vunpack.c.l.bf16 %v3934
          %v4073 = vunpack.c.h.bf16 %v3934
          %v4074 = vunpack.c.l.bf16 %v3935
          %v4075 = vunpack.c.h.bf16 %v3935
          %v4076 = vunpack.c.l.bf16 %v3936
          %v4077 = vunpack.c.h.bf16 %v3936
          %v4078 = vunpack.c.l.bf16 %v3937
          %v4079 = vunpack.c.h.bf16 %v3937
          %v4080 = vunpack.c.l.bf16 %v3938
          %v4081 = vunpack.c.h.bf16 %v3938
          %v4082 = vunpack.c.l.bf16 %v3939
          %v4083 = vunpack.c.h.bf16 %v3939
          %v4084 = vunpack.c.l.bf16 %v3940
          %v4085 = vunpack.c.h.bf16 %v3940
          %v4086 = vunpack.c.l.bf16 %v3941
          %v4087 = vunpack.c.h.bf16 %v3941
          %v4088 = vunpack.c.l.bf16 %v3942
          %v4089 = vunpack.c.h.bf16 %v3942
          %v4090 = vunpack.c.l.bf16 %v3943
          %v4091 = vunpack.c.h.bf16 %v3943
          %v4092 = vunpack.c.l.bf16 %v3944
          %v4093 = vunpack.c.h.bf16 %v3944
          %v4094 = vunpack.c.l.bf16 %v3945
          %v4095 = vunpack.c.h.bf16 %v3945
          %v4096 = vunpack.c.l.bf16 %v3946
          %v4097 = vunpack.c.h.bf16 %v3946
          %v4098 = vunpack.c.l.bf16 %v3947
          %v4099 = vunpack.c.h.bf16 %v3947
          %v4100 = vunpack.c.l.bf16 %v3948
          %v4101 = vunpack.c.h.bf16 %v3948
          %v4102 = vunpack.c.l.bf16 %v3949
          %v4103 = vunpack.c.h.bf16 %v3949
          %v4104 = vunpack.c.l.bf16 %v3950
          %v4105 = vunpack.c.h.bf16 %v3950
          %v4106 = vunpack.c.l.bf16 %v3951
          %v4107 = vunpack.c.h.bf16 %v3951
          %v4108 = vunpack.c.l.bf16 %v3952
          %v4109 = vunpack.c.h.bf16 %v3952
          %v4110 = vunpack.c.l.bf16 %v3953
          %v4111 = vunpack.c.h.bf16 %v3953
          %v4112 = vunpack.c.l.bf16 %v3954
          %v4113 = vunpack.c.h.bf16 %v3954
          %v4114 = vunpack.c.l.bf16 %v3955
          %v4115 = vunpack.c.h.bf16 %v3955
          %v4116 = vunpack.c.l.bf16 %v3956
          %v4117 = vunpack.c.h.bf16 %v3956
          %v4118 = vunpack.c.l.bf16 %v3957
          %v4119 = vunpack.c.h.bf16 %v3957
          %v4120 = vunpack.c.l.bf16 %v3958
          %v4121 = vunpack.c.h.bf16 %v3958
          %v4122 = vunpack.c.l.bf16 %v3959
          %v4123 = vunpack.c.h.bf16 %v3959
          %v4124 = vunpack.c.l.bf16 %v3960
          %v4125 = vunpack.c.h.bf16 %v3960
          %v4126 = vunpack.c.l.bf16 %v3961
          %v4127 = vunpack.c.h.bf16 %v3961
          %v4128 = vunpack.c.l.bf16 %v3962
          %v4129 = vunpack.c.h.bf16 %v3962
          %v4130 = vunpack.c.l.bf16 %v3963
          %v4131 = vunpack.c.h.bf16 %v3963
          %v4132 = vunpack.c.l.bf16 %v3964
          %v4133 = vunpack.c.h.bf16 %v3964
          %v4134 = vunpack.c.l.bf16 %v3965
          %v4135 = vunpack.c.h.bf16 %v3965
          %v4136 = vunpack.c.l.bf16 %v3966
          %v4137 = vunpack.c.h.bf16 %v3966
          %v4138 = vunpack.c.l.bf16 %v3967
          %v4139 = vunpack.c.h.bf16 %v3967
          %v4140 = vunpack.c.l.bf16 %v3968
          %v4141 = vunpack.c.h.bf16 %v3968
          %v4142 = vunpack.c.l.bf16 %v3969
          %v4143 = vunpack.c.h.bf16 %v3969
          %v4144 = vunpack.c.l.bf16 %v3970
          %v4145 = vunpack.c.h.bf16 %v3970
          %v4146 = vunpack.c.l.bf16 %v3971
          %v4147 = vunpack.c.h.bf16 %v3971
          %v4148 = vunpack.c.l.bf16 %v3972
          %v4149 = vunpack.c.h.bf16 %v3972
          %v4150 = vunpack.c.l.bf16 %v3973
          %v4151 = vunpack.c.h.bf16 %v3973
          %v4152 = vunpack.c.l.bf16 %v3974
          %v4153 = vunpack.c.h.bf16 %v3974
          %v4154 = vunpack.c.l.bf16 %v3975
          %v4155 = vunpack.c.h.bf16 %v3975
          %v4156 = vunpack.c.l.bf16 %v3976
          %v4157 = vunpack.c.h.bf16 %v3976
          %v4158 = vunpack.c.l.bf16 %v3977
          %v4159 = vunpack.c.h.bf16 %v3977
          %v4160 = vunpack.c.l.bf16 %v3978
          %v4161 = vunpack.c.h.bf16 %v3978
          %v4162 = vunpack.c.l.bf16 %v3979
          %v4163 = vunpack.c.h.bf16 %v3979
          %v4164 = vunpack.c.l.bf16 %v3980
          %v4165 = vunpack.c.h.bf16 %v3980
          %v4166 = vunpack.c.l.bf16 %v3981
          %v4167 = vunpack.c.h.bf16 %v3981
          %v4168 = vunpack.c.l.bf16 %v3982
          %v4169 = vunpack.c.h.bf16 %v3982
          %v4170 = vunpack.c.l.bf16 %v3983
          %v4171 = vunpack.c.h.bf16 %v3983
          %v4172 = vunpack.c.l.bf16 %v3984
          %v4173 = vunpack.c.h.bf16 %v3984
          %v4174 = vunpack.c.l.bf16 %v3985
          %v4175 = vunpack.c.h.bf16 %v3985
          %v4176 = vunpack.c.l.bf16 %v3986
          %v4177 = vunpack.c.h.bf16 %v3986
          %v4178 = vunpack.c.l.bf16 %v3987
          %v4179 = vunpack.c.h.bf16 %v3987
          %v4180 = vunpack.c.l.bf16 %v3988
          %v4181 = vunpack.c.h.bf16 %v3988
          %v4182 = vunpack.c.l.bf16 %v3989
          %v4183 = vunpack.c.h.bf16 %v3989
          %v4184 = vunpack.c.l.bf16 %v3990
          %v4185 = vunpack.c.h.bf16 %v3990
          %v4186 = vunpack.c.l.bf16 %v3991
          %v4187 = vunpack.c.h.bf16 %v3991
          %v4188 = vunpack.c.l.bf16 %v3992
          %v4189 = vunpack.c.h.bf16 %v3992
          %v4190 = vunpack.c.l.bf16 %v3993
          %v4191 = vunpack.c.h.bf16 %v3993
          %v4192 = vunpack.c.l.bf16 %v3994
          %v4193 = vunpack.c.h.bf16 %v3994
          %v4194 = vunpack.c.l.bf16 %v3995
          %v4195 = vunpack.c.h.bf16 %v3995
          %v4196 = vunpack.c.l.bf16 %v3996
          %v4197 = vunpack.c.h.bf16 %v3996
          %v4198 = vunpack.c.l.bf16 %v3997
          %v4199 = vunpack.c.h.bf16 %v3997
          %v4200 = vunpack.c.l.bf16 %v3998
          %v4201 = vunpack.c.h.bf16 %v3998
          %v4202 = vunpack.c.l.bf16 %v3999
          %v4203 = vunpack.c.h.bf16 %v3999
          %v4204 = vunpack.c.l.bf16 %v4000
          %v4205 = vunpack.c.h.bf16 %v4000
          %v4206 = vunpack.c.l.bf16 %v4001
          %v4207 = vunpack.c.h.bf16 %v4001
          %v4208 = vunpack.c.l.bf16 %v4002
          %v4209 = vunpack.c.h.bf16 %v4002
          %v4210 = vunpack.c.l.bf16 %v4003
          %v4211 = vunpack.c.h.bf16 %v4003
          %v4212 = vunpack.c.l.bf16 %v4004
          %v4213 = vunpack.c.h.bf16 %v4004
          %v4214 = vunpack.c.l.bf16 %v4005
          %v4215 = vunpack.c.h.bf16 %v4005
          %v4216 = vunpack.c.l.bf16 %v4006
          %v4217 = vunpack.c.h.bf16 %v4006
          %v4218 = vunpack.c.l.bf16 %v4007
          %v4219 = vunpack.c.h.bf16 %v4007
          %v4220 = vunpack.c.l.bf16 %v4008
          %v4221 = vunpack.c.h.bf16 %v4008
          %v4222 = vunpack.c.l.bf16 %v4009
          %v4223 = vunpack.c.h.bf16 %v4009
          %v4224 = vunpack.c.l.bf16 %v4010
          %v4225 = vunpack.c.h.bf16 %v4010
          %v4226 = vunpack.c.l.bf16 %v4011
          %v4227 = vunpack.c.h.bf16 %v4011
          %v4228 = vunpack.c.l.bf16 %v4012
          %v4229 = vunpack.c.h.bf16 %v4012
          %v4230 = vunpack.c.l.bf16 %v4013
          %v4231 = vunpack.c.h.bf16 %v4013
          %v4232 = vunpack.c.l.bf16 %v4014
          %v4233 = vunpack.c.h.bf16 %v4014
          %v4234 = vunpack.c.l.bf16 %v4015
          %v4235 = vunpack.c.h.bf16 %v4015
          %v4236 = vunpack.c.l.bf16 %v4016
          %v4237 = vunpack.c.h.bf16 %v4016
          %v4238 = vunpack.c.l.bf16 %v4017
          %v4239 = vunpack.c.h.bf16 %v4017
          %v4240 = vunpack.c.l.bf16 %v4018
          %v4241 = vunpack.c.h.bf16 %v4018
          %v4242 = vunpack.c.l.bf16 %v4019
          %v4243 = vunpack.c.h.bf16 %v4019
          %v4244 = vunpack.c.l.bf16 %v4020
          %v4245 = vunpack.c.h.bf16 %v4020
          %v4246 = vunpack.c.l.bf16 %v4021
          %v4247 = vunpack.c.h.bf16 %v4021
          %v4248 = vunpack.c.l.bf16 %v4022
          %v4249 = vunpack.c.h.bf16 %v4022
          %v4250 = vunpack.c.l.bf16 %v4023
          %v4251 = vunpack.c.h.bf16 %v4023
          %v4252 = vunpack.c.l.bf16 %v4024
          %v4253 = vunpack.c.h.bf16 %v4024
          %v4254 = vunpack.c.l.bf16 %v4025
          %v4255 = vunpack.c.h.bf16 %v4025
          %v4256 = vunpack.c.l.bf16 %v4026
          %v4257 = vunpack.c.h.bf16 %v4026
          %v4258 = vunpack.c.l.bf16 %v4027
          %v4259 = vunpack.c.h.bf16 %v4027
          %v4260 = vunpack.c.l.bf16 %v4028
          %v4261 = vunpack.c.h.bf16 %v4028
          %v4262 = vunpack.c.l.bf16 %v4029
          %v4263 = vunpack.c.h.bf16 %v4029
          %v4264 = vunpack.c.l.bf16 %v4030
          %v4265 = vunpack.c.h.bf16 %v4030
          %v4266 = vunpack.c.l.bf16 %v4031
          %v4267 = vunpack.c.h.bf16 %v4031
          %v4268 = vunpack.c.l.bf16 %v4032
          %v4269 = vunpack.c.h.bf16 %v4032
          %v4270 = vunpack.c.l.bf16 %v4033
          %v4271 = vunpack.c.h.bf16 %v4033
          %v4272 = vunpack.c.l.bf16 %v4034
          %v4273 = vunpack.c.h.bf16 %v4034
          %v4274 = vunpack.c.l.bf16 %v4035
          %v4275 = vunpack.c.h.bf16 %v4035
          %v4276 = vunpack.c.l.bf16 %v4036
          %v4277 = vunpack.c.h.bf16 %v4036
          %v4278 = vunpack.c.l.bf16 %v4037
          %v4279 = vunpack.c.h.bf16 %v4037
          %v4280 = vunpack.c.l.bf16 %v4038
          %v4281 = vunpack.c.h.bf16 %v4038
          %v4282 = vunpack.c.l.bf16 %v4039
          %v4283 = vunpack.c.h.bf16 %v4039
          %v4284 = vunpack.c.l.bf16 %v4040
          %v4285 = vunpack.c.h.bf16 %v4040
          %v4286 = vunpack.c.l.bf16 %v4041
          %v4287 = vunpack.c.h.bf16 %v4041
          %v4288 = vunpack.c.l.bf16 %v4042
          %v4289 = vunpack.c.h.bf16 %v4042
          %v4290 = vunpack.c.l.bf16 %v4043
          %v4291 = vunpack.c.h.bf16 %v4043
          %v4292 = vunpack.c.l.bf16 %v4044
          %v4293 = vunpack.c.h.bf16 %v4044
          %v4294 = vunpack.c.l.bf16 %v4045
          %v4295 = vunpack.c.h.bf16 %v4045
          %v4296 = vunpack.c.l.bf16 %v4046
          %v4297 = vunpack.c.h.bf16 %v4046
          %v4298 = vunpack.c.l.bf16 %v4047
          %v4299 = vunpack.c.h.bf16 %v4047
          %v4300 = vunpack.c.l.bf16 %v4048
          %v4301 = vunpack.c.h.bf16 %v4048
          %v4302 = vunpack.c.l.bf16 %v4049
          %v4303 = vunpack.c.h.bf16 %v4049
          %v4304 = vunpack.c.l.bf16 %v4050
          %v4305 = vunpack.c.h.bf16 %v4050
          %v4306 = vunpack.c.l.bf16 %v4051
          %v4307 = vunpack.c.h.bf16 %v4051
          %v4308 = vld [vmem:[#allocation3] sm:$0xff]
          %v4309 = vld [vmem:[#allocation3 + $0x8] sm:$0xff]
          %v4310 = vld [vmem:[#allocation3 + $0x10] sm:$0xff]
          %v4311 = vld [vmem:[#allocation3 + $0x18] sm:$0xff]
          %v4312 = vld [vmem:[%s345 + $0x400] sm:$0xff]
          %v4313 = vld [vmem:[%s345 + $0x408] sm:$0xff]
          %v4314 = vld [vmem:[%s345 + $0x410] sm:$0xff]
          %v4315 = vld [vmem:[%s345 + $0x418] sm:$0xff]
          %v4316 = vld [vmem:[%s345 + $0x420] sm:$0xff]
          %v4317 = vld [vmem:[%s345 + $0x428] sm:$0xff]
          %v4318 = vld [vmem:[%s345 + $0x430] sm:$0xff]
          %v4319 = vld [vmem:[%s345 + $0x438] sm:$0xff]
          %v4320 = vld [vmem:[%s345 + $0x440] sm:$0xff]
          %v4321 = vld [vmem:[%s345 + $0x448] sm:$0xff]
          %v4322 = vld [vmem:[%s345 + $0x450] sm:$0xff]
          %v4323 = vld [vmem:[%s345 + $0x458] sm:$0xff]
          %v4324 = vld [vmem:[%s345 + $0x460] sm:$0xff]
          %v4325 = vld [vmem:[%s345 + $0x468] sm:$0xff]
          %v4326 = vld [vmem:[%s345 + $0x470] sm:$0xff]
          %v4327 = vld [vmem:[%s345 + $0x478] sm:$0xff]
          %v4328 = vld [vmem:[%s345 + $0x480] sm:$0xff]
          %v4329 = vld [vmem:[%s345 + $0x488] sm:$0xff]
          %v4330 = vld [vmem:[%s345 + $0x490] sm:$0xff]
          %v4331 = vld [vmem:[%s345 + $0x498] sm:$0xff]
          %v4332 = vld [vmem:[%s345 + $0x4a0] sm:$0xff]
          %v4333 = vld [vmem:[%s345 + $0x4a8] sm:$0xff]
          %v4334 = vld [vmem:[%s345 + $0x4b0] sm:$0xff]
          %v4335 = vld [vmem:[%s345 + $0x4b8] sm:$0xff]
          %v4336 = vld [vmem:[%s345 + $0x4c0] sm:$0xff]
          %v4337 = vld [vmem:[%s345 + $0x4c8] sm:$0xff]
          %v4338 = vld [vmem:[%s345 + $0x4d0] sm:$0xff]
          %v4339 = vld [vmem:[%s345 + $0x4d8] sm:$0xff]
          %v4340 = vld [vmem:[%s345 + $0x4e0] sm:$0xff]
          %v4341 = vld [vmem:[%s345 + $0x4e8] sm:$0xff]
          %v4342 = vld [vmem:[%s345 + $0x4f0] sm:$0xff]
          %v4343 = vld [vmem:[%s345 + $0x4f8] sm:$0xff]
          %v4344 = vld [vmem:[%s345 + $0x500] sm:$0xff]
          %v4345 = vld [vmem:[%s345 + $0x508] sm:$0xff]
          %v4346 = vld [vmem:[%s345 + $0x510] sm:$0xff]
          %v4347 = vld [vmem:[%s345 + $0x518] sm:$0xff]
          %v4348 = vld [vmem:[%s345 + $0x520] sm:$0xff]
          %v4349 = vld [vmem:[%s345 + $0x528] sm:$0xff]
          %v4350 = vld [vmem:[%s345 + $0x530] sm:$0xff]
          %v4351 = vld [vmem:[%s345 + $0x538] sm:$0xff]
          %v4352 = vld [vmem:[%s345 + $0x540] sm:$0xff]
          %v4353 = vld [vmem:[%s345 + $0x548] sm:$0xff]
          %v4354 = vld [vmem:[%s345 + $0x550] sm:$0xff]
          %v4355 = vld [vmem:[%s345 + $0x558] sm:$0xff]
          %v4356 = vld [vmem:[%s345 + $0x560] sm:$0xff]
          %v4357 = vld [vmem:[%s345 + $0x568] sm:$0xff]
          %v4358 = vld [vmem:[%s345 + $0x570] sm:$0xff]
          %v4359 = vld [vmem:[%s345 + $0x578] sm:$0xff]
          %v4360 = vld [vmem:[%s345 + $0x580] sm:$0xff]
          %v4361 = vld [vmem:[%s345 + $0x588] sm:$0xff]
          %v4362 = vld [vmem:[%s345 + $0x590] sm:$0xff]
          %v4363 = vld [vmem:[%s345 + $0x598] sm:$0xff]
          %v4364 = vld [vmem:[%s345 + $0x5a0] sm:$0xff]
          %v4365 = vld [vmem:[%s345 + $0x5a8] sm:$0xff]
          %v4366 = vld [vmem:[%s345 + $0x5b0] sm:$0xff]
          %v4367 = vld [vmem:[%s345 + $0x5b8] sm:$0xff]
          %v4368 = vld [vmem:[%s345 + $0x5c0] sm:$0xff]
          %v4369 = vld [vmem:[%s345 + $0x5c8] sm:$0xff]
          %v4370 = vld [vmem:[%s345 + $0x5d0] sm:$0xff]
          %v4371 = vld [vmem:[%s345 + $0x5d8] sm:$0xff]
          %v4372 = vld [vmem:[%s345 + $0x5e0] sm:$0xff]
          %v4373 = vld [vmem:[%s345 + $0x5e8] sm:$0xff]
          %v4374 = vld [vmem:[%s345 + $0x5f0] sm:$0xff]
          %v4375 = vld [vmem:[%s345 + $0x5f8] sm:$0xff]
          %v4376 = vld [vmem:[%s345 + $0x600] sm:$0xff]
          %v4377 = vld [vmem:[%s345 + $0x608] sm:$0xff]
          %v4378 = vld [vmem:[%s345 + $0x610] sm:$0xff]
          %v4379 = vld [vmem:[%s345 + $0x618] sm:$0xff]
          %v4380 = vld [vmem:[%s345 + $0x620] sm:$0xff]
          %v4381 = vld [vmem:[%s345 + $0x628] sm:$0xff]
          %v4382 = vld [vmem:[%s345 + $0x630] sm:$0xff]
          %v4383 = vld [vmem:[%s345 + $0x638] sm:$0xff]
          %v4384 = vld [vmem:[%s345 + $0x640] sm:$0xff]
          %v4385 = vld [vmem:[%s345 + $0x648] sm:$0xff]
          %v4386 = vld [vmem:[%s345 + $0x650] sm:$0xff]
          %v4387 = vld [vmem:[%s345 + $0x658] sm:$0xff]
          %v4388 = vld [vmem:[%s345 + $0x660] sm:$0xff]
          %v4389 = vld [vmem:[%s345 + $0x668] sm:$0xff]
          %v4390 = vld [vmem:[%s345 + $0x670] sm:$0xff]
          %v4391 = vld [vmem:[%s345 + $0x678] sm:$0xff]
          %v4392 = vld [vmem:[%s345 + $0x680] sm:$0xff]
          %v4393 = vld [vmem:[%s345 + $0x688] sm:$0xff]
          %v4394 = vld [vmem:[%s345 + $0x690] sm:$0xff]
          %v4395 = vld [vmem:[%s345 + $0x698] sm:$0xff]
          %v4396 = vld [vmem:[%s345 + $0x6a0] sm:$0xff]
          %v4397 = vld [vmem:[%s345 + $0x6a8] sm:$0xff]
          %v4398 = vld [vmem:[%s345 + $0x6b0] sm:$0xff]
          %v4399 = vld [vmem:[%s345 + $0x6b8] sm:$0xff]
          %v4400 = vld [vmem:[%s345 + $0x6c0] sm:$0xff]
          %v4401 = vld [vmem:[%s345 + $0x6c8] sm:$0xff]
          %v4402 = vld [vmem:[%s345 + $0x6d0] sm:$0xff]
          %v4403 = vld [vmem:[%s345 + $0x6d8] sm:$0xff]
          %v4404 = vld [vmem:[%s345 + $0x6e0] sm:$0xff]
          %v4405 = vld [vmem:[%s345 + $0x6e8] sm:$0xff]
          %v4406 = vld [vmem:[%s345 + $0x6f0] sm:$0xff]
          %v4407 = vld [vmem:[%s345 + $0x6f8] sm:$0xff]
          %v4408 = vld [vmem:[%s345 + $0x700] sm:$0xff]
          %v4409 = vld [vmem:[%s345 + $0x708] sm:$0xff]
          %v4410 = vld [vmem:[%s345 + $0x710] sm:$0xff]
          %v4411 = vld [vmem:[%s345 + $0x718] sm:$0xff]
          %v4412 = vld [vmem:[%s345 + $0x720] sm:$0xff]
          %v4413 = vld [vmem:[%s345 + $0x728] sm:$0xff]
          %v4414 = vld [vmem:[%s345 + $0x730] sm:$0xff]
          %v4415 = vld [vmem:[%s345 + $0x738] sm:$0xff]
          %v4416 = vld [vmem:[%s345 + $0x740] sm:$0xff]
          %v4417 = vld [vmem:[%s345 + $0x748] sm:$0xff]
          %v4418 = vld [vmem:[%s345 + $0x750] sm:$0xff]
          %v4419 = vld [vmem:[%s345 + $0x758] sm:$0xff]
          %v4420 = vld [vmem:[%s345 + $0x760] sm:$0xff]
          %v4421 = vld [vmem:[%s345 + $0x768] sm:$0xff]
          %v4422 = vld [vmem:[%s345 + $0x770] sm:$0xff]
          %v4423 = vld [vmem:[%s345 + $0x778] sm:$0xff]
          %v4424 = vld [vmem:[%s345 + $0x780] sm:$0xff]
          %v4425 = vld [vmem:[%s345 + $0x788] sm:$0xff]
          %v4426 = vld [vmem:[%s345 + $0x790] sm:$0xff]
          %v4427 = vld [vmem:[%s345 + $0x798] sm:$0xff]
          %v4428 = vld [vmem:[%s345 + $0x7a0] sm:$0xff]
          %v4429 = vld [vmem:[%s345 + $0x7a8] sm:$0xff]
          %v4430 = vld [vmem:[%s345 + $0x7b0] sm:$0xff]
          %v4431 = vld [vmem:[%s345 + $0x7b8] sm:$0xff]
          %v4432 = vld [vmem:[%s345 + $0x7c0] sm:$0xff]
          %v4433 = vld [vmem:[%s345 + $0x7c8] sm:$0xff]
          %v4434 = vld [vmem:[%s345 + $0x7d0] sm:$0xff]
          %v4435 = vld [vmem:[%s345 + $0x7d8] sm:$0xff]
          %v4436 = vld [vmem:[%s345 + $0x7e0] sm:$0xff]
          %v4437 = vld [vmem:[%s345 + $0x7e8] sm:$0xff]
          %v4438 = vld [vmem:[%s345 + $0x7f0] sm:$0xff]
          %v4439 = vld [vmem:[%s345 + $0x7f8] sm:$0xff]
          %v4440 = vunpack.c.l.bf16 %v4312
          %v4441 = vunpack.c.h.bf16 %v4312
          %v4442 = vunpack.c.l.bf16 %v4313
          %v4443 = vunpack.c.h.bf16 %v4313
          %v4444 = vunpack.c.l.bf16 %v4314
          %v4445 = vunpack.c.h.bf16 %v4314
          %v4446 = vunpack.c.l.bf16 %v4315
          %v4447 = vunpack.c.h.bf16 %v4315
          %v4448 = vunpack.c.l.bf16 %v4316
          %v4449 = vunpack.c.h.bf16 %v4316
          %v4450 = vunpack.c.l.bf16 %v4317
          %v4451 = vunpack.c.h.bf16 %v4317
          %v4452 = vunpack.c.l.bf16 %v4318
          %v4453 = vunpack.c.h.bf16 %v4318
          %v4454 = vunpack.c.l.bf16 %v4319
          %v4455 = vunpack.c.h.bf16 %v4319
          %v4456 = vunpack.c.l.bf16 %v4320
          %v4457 = vunpack.c.h.bf16 %v4320
          %v4458 = vunpack.c.l.bf16 %v4321
          %v4459 = vunpack.c.h.bf16 %v4321
          %v4460 = vunpack.c.l.bf16 %v4322
          %v4461 = vunpack.c.h.bf16 %v4322
          %v4462 = vunpack.c.l.bf16 %v4323
          %v4463 = vunpack.c.h.bf16 %v4323
          %v4464 = vunpack.c.l.bf16 %v4324
          %v4465 = vunpack.c.h.bf16 %v4324
          %v4466 = vunpack.c.l.bf16 %v4325
          %v4467 = vunpack.c.h.bf16 %v4325
          %v4468 = vunpack.c.l.bf16 %v4326
          %v4469 = vunpack.c.h.bf16 %v4326
          %v4470 = vunpack.c.l.bf16 %v4327
          %v4471 = vunpack.c.h.bf16 %v4327
          %v4472 = vunpack.c.l.bf16 %v4328
          %v4473 = vunpack.c.h.bf16 %v4328
          %v4474 = vunpack.c.l.bf16 %v4329
          %v4475 = vunpack.c.h.bf16 %v4329
          %v4476 = vunpack.c.l.bf16 %v4330
          %v4477 = vunpack.c.h.bf16 %v4330
          %v4478 = vunpack.c.l.bf16 %v4331
          %v4479 = vunpack.c.h.bf16 %v4331
          %v4480 = vunpack.c.l.bf16 %v4332
          %v4481 = vunpack.c.h.bf16 %v4332
          %v4482 = vunpack.c.l.bf16 %v4333
          %v4483 = vunpack.c.h.bf16 %v4333
          %v4484 = vunpack.c.l.bf16 %v4334
          %v4485 = vunpack.c.h.bf16 %v4334
          %v4486 = vunpack.c.l.bf16 %v4335
          %v4487 = vunpack.c.h.bf16 %v4335
          %v4488 = vunpack.c.l.bf16 %v4336
          %v4489 = vunpack.c.h.bf16 %v4336
          %v4490 = vunpack.c.l.bf16 %v4337
          %v4491 = vunpack.c.h.bf16 %v4337
          %v4492 = vunpack.c.l.bf16 %v4338
          %v4493 = vunpack.c.h.bf16 %v4338
          %v4494 = vunpack.c.l.bf16 %v4339
          %v4495 = vunpack.c.h.bf16 %v4339
          %v4496 = vunpack.c.l.bf16 %v4340
          %v4497 = vunpack.c.h.bf16 %v4340
          %v4498 = vunpack.c.l.bf16 %v4341
          %v4499 = vunpack.c.h.bf16 %v4341
          %v4500 = vunpack.c.l.bf16 %v4342
          %v4501 = vunpack.c.h.bf16 %v4342
          %v4502 = vunpack.c.l.bf16 %v4343
          %v4503 = vunpack.c.h.bf16 %v4343
          %v4504 = vunpack.c.l.bf16 %v4344
          %v4505 = vunpack.c.h.bf16 %v4344
          %v4506 = vunpack.c.l.bf16 %v4345
          %v4507 = vunpack.c.h.bf16 %v4345
          %v4508 = vunpack.c.l.bf16 %v4346
          %v4509 = vunpack.c.h.bf16 %v4346
          %v4510 = vunpack.c.l.bf16 %v4347
          %v4511 = vunpack.c.h.bf16 %v4347
          %v4512 = vunpack.c.l.bf16 %v4348
          %v4513 = vunpack.c.h.bf16 %v4348
          %v4514 = vunpack.c.l.bf16 %v4349
          %v4515 = vunpack.c.h.bf16 %v4349
          %v4516 = vunpack.c.l.bf16 %v4350
          %v4517 = vunpack.c.h.bf16 %v4350
          %v4518 = vunpack.c.l.bf16 %v4351
          %v4519 = vunpack.c.h.bf16 %v4351
          %v4520 = vunpack.c.l.bf16 %v4352
          %v4521 = vunpack.c.h.bf16 %v4352
          %v4522 = vunpack.c.l.bf16 %v4353
          %v4523 = vunpack.c.h.bf16 %v4353
          %v4524 = vunpack.c.l.bf16 %v4354
          %v4525 = vunpack.c.h.bf16 %v4354
          %v4526 = vunpack.c.l.bf16 %v4355
          %v4527 = vunpack.c.h.bf16 %v4355
          %v4528 = vunpack.c.l.bf16 %v4356
          %v4529 = vunpack.c.h.bf16 %v4356
          %v4530 = vunpack.c.l.bf16 %v4357
          %v4531 = vunpack.c.h.bf16 %v4357
          %v4532 = vunpack.c.l.bf16 %v4358
          %v4533 = vunpack.c.h.bf16 %v4358
          %v4534 = vunpack.c.l.bf16 %v4359
          %v4535 = vunpack.c.h.bf16 %v4359
          %v4536 = vunpack.c.l.bf16 %v4360
          %v4537 = vunpack.c.h.bf16 %v4360
          %v4538 = vunpack.c.l.bf16 %v4361
          %v4539 = vunpack.c.h.bf16 %v4361
          %v4540 = vunpack.c.l.bf16 %v4362
          %v4541 = vunpack.c.h.bf16 %v4362
          %v4542 = vunpack.c.l.bf16 %v4363
          %v4543 = vunpack.c.h.bf16 %v4363
          %v4544 = vunpack.c.l.bf16 %v4364
          %v4545 = vunpack.c.h.bf16 %v4364
          %v4546 = vunpack.c.l.bf16 %v4365
          %v4547 = vunpack.c.h.bf16 %v4365
          %v4548 = vunpack.c.l.bf16 %v4366
          %v4549 = vunpack.c.h.bf16 %v4366
          %v4550 = vunpack.c.l.bf16 %v4367
          %v4551 = vunpack.c.h.bf16 %v4367
          %v4552 = vunpack.c.l.bf16 %v4368
          %v4553 = vunpack.c.h.bf16 %v4368
          %v4554 = vunpack.c.l.bf16 %v4369
          %v4555 = vunpack.c.h.bf16 %v4369
          %v4556 = vunpack.c.l.bf16 %v4370
          %v4557 = vunpack.c.h.bf16 %v4370
          %v4558 = vunpack.c.l.bf16 %v4371
          %v4559 = vunpack.c.h.bf16 %v4371
          %v4560 = vunpack.c.l.bf16 %v4372
          %v4561 = vunpack.c.h.bf16 %v4372
          %v4562 = vunpack.c.l.bf16 %v4373
          %v4563 = vunpack.c.h.bf16 %v4373
          %v4564 = vunpack.c.l.bf16 %v4374
          %v4565 = vunpack.c.h.bf16 %v4374
          %v4566 = vunpack.c.l.bf16 %v4375
          %v4567 = vunpack.c.h.bf16 %v4375
          %v4568 = vunpack.c.l.bf16 %v4376
          %v4569 = vunpack.c.h.bf16 %v4376
          %v4570 = vunpack.c.l.bf16 %v4377
          %v4571 = vunpack.c.h.bf16 %v4377
          %v4572 = vunpack.c.l.bf16 %v4378
          %v4573 = vunpack.c.h.bf16 %v4378
          %v4574 = vunpack.c.l.bf16 %v4379
          %v4575 = vunpack.c.h.bf16 %v4379
          %v4576 = vunpack.c.l.bf16 %v4380
          %v4577 = vunpack.c.h.bf16 %v4380
          %v4578 = vunpack.c.l.bf16 %v4381
          %v4579 = vunpack.c.h.bf16 %v4381
          %v4580 = vunpack.c.l.bf16 %v4382
          %v4581 = vunpack.c.h.bf16 %v4382
          %v4582 = vunpack.c.l.bf16 %v4383
          %v4583 = vunpack.c.h.bf16 %v4383
          %v4584 = vunpack.c.l.bf16 %v4384
          %v4585 = vunpack.c.h.bf16 %v4384
          %v4586 = vunpack.c.l.bf16 %v4385
          %v4587 = vunpack.c.h.bf16 %v4385
          %v4588 = vunpack.c.l.bf16 %v4386
          %v4589 = vunpack.c.h.bf16 %v4386
          %v4590 = vunpack.c.l.bf16 %v4387
          %v4591 = vunpack.c.h.bf16 %v4387
          %v4592 = vunpack.c.l.bf16 %v4388
          %v4593 = vunpack.c.h.bf16 %v4388
          %v4594 = vunpack.c.l.bf16 %v4389
          %v4595 = vunpack.c.h.bf16 %v4389
          %v4596 = vunpack.c.l.bf16 %v4390
          %v4597 = vunpack.c.h.bf16 %v4390
          %v4598 = vunpack.c.l.bf16 %v4391
          %v4599 = vunpack.c.h.bf16 %v4391
          %v4600 = vunpack.c.l.bf16 %v4392
          %v4601 = vunpack.c.h.bf16 %v4392
          %v4602 = vunpack.c.l.bf16 %v4393
          %v4603 = vunpack.c.h.bf16 %v4393
          %v4604 = vunpack.c.l.bf16 %v4394
          %v4605 = vunpack.c.h.bf16 %v4394
          %v4606 = vunpack.c.l.bf16 %v4395
          %v4607 = vunpack.c.h.bf16 %v4395
          %v4608 = vunpack.c.l.bf16 %v4396
          %v4609 = vunpack.c.h.bf16 %v4396
          %v4610 = vunpack.c.l.bf16 %v4397
          %v4611 = vunpack.c.h.bf16 %v4397
          %v4612 = vunpack.c.l.bf16 %v4398
          %v4613 = vunpack.c.h.bf16 %v4398
          %v4614 = vunpack.c.l.bf16 %v4399
          %v4615 = vunpack.c.h.bf16 %v4399
          %v4616 = vunpack.c.l.bf16 %v4400
          %v4617 = vunpack.c.h.bf16 %v4400
          %v4618 = vunpack.c.l.bf16 %v4401
          %v4619 = vunpack.c.h.bf16 %v4401
          %v4620 = vunpack.c.l.bf16 %v4402
          %v4621 = vunpack.c.h.bf16 %v4402
          %v4622 = vunpack.c.l.bf16 %v4403
          %v4623 = vunpack.c.h.bf16 %v4403
          %v4624 = vunpack.c.l.bf16 %v4404
          %v4625 = vunpack.c.h.bf16 %v4404
          %v4626 = vunpack.c.l.bf16 %v4405
          %v4627 = vunpack.c.h.bf16 %v4405
          %v4628 = vunpack.c.l.bf16 %v4406
          %v4629 = vunpack.c.h.bf16 %v4406
          %v4630 = vunpack.c.l.bf16 %v4407
          %v4631 = vunpack.c.h.bf16 %v4407
          %v4632 = vunpack.c.l.bf16 %v4408
          %v4633 = vunpack.c.h.bf16 %v4408
          %v4634 = vunpack.c.l.bf16 %v4409
          %v4635 = vunpack.c.h.bf16 %v4409
          %v4636 = vunpack.c.l.bf16 %v4410
          %v4637 = vunpack.c.h.bf16 %v4410
          %v4638 = vunpack.c.l.bf16 %v4411
          %v4639 = vunpack.c.h.bf16 %v4411
          %v4640 = vunpack.c.l.bf16 %v4412
          %v4641 = vunpack.c.h.bf16 %v4412
          %v4642 = vunpack.c.l.bf16 %v4413
          %v4643 = vunpack.c.h.bf16 %v4413
          %v4644 = vunpack.c.l.bf16 %v4414
          %v4645 = vunpack.c.h.bf16 %v4414
          %v4646 = vunpack.c.l.bf16 %v4415
          %v4647 = vunpack.c.h.bf16 %v4415
          %v4648 = vunpack.c.l.bf16 %v4416
          %v4649 = vunpack.c.h.bf16 %v4416
          %v4650 = vunpack.c.l.bf16 %v4417
          %v4651 = vunpack.c.h.bf16 %v4417
          %v4652 = vunpack.c.l.bf16 %v4418
          %v4653 = vunpack.c.h.bf16 %v4418
          %v4654 = vunpack.c.l.bf16 %v4419
          %v4655 = vunpack.c.h.bf16 %v4419
          %v4656 = vunpack.c.l.bf16 %v4420
          %v4657 = vunpack.c.h.bf16 %v4420
          %v4658 = vunpack.c.l.bf16 %v4421
          %v4659 = vunpack.c.h.bf16 %v4421
          %v4660 = vunpack.c.l.bf16 %v4422
          %v4661 = vunpack.c.h.bf16 %v4422
          %v4662 = vunpack.c.l.bf16 %v4423
          %v4663 = vunpack.c.h.bf16 %v4423
          %v4664 = vunpack.c.l.bf16 %v4424
          %v4665 = vunpack.c.h.bf16 %v4424
          %v4666 = vunpack.c.l.bf16 %v4425
          %v4667 = vunpack.c.h.bf16 %v4425
          %v4668 = vunpack.c.l.bf16 %v4426
          %v4669 = vunpack.c.h.bf16 %v4426
          %v4670 = vunpack.c.l.bf16 %v4427
          %v4671 = vunpack.c.h.bf16 %v4427
          %v4672 = vunpack.c.l.bf16 %v4428
          %v4673 = vunpack.c.h.bf16 %v4428
          %v4674 = vunpack.c.l.bf16 %v4429
          %v4675 = vunpack.c.h.bf16 %v4429
          %v4676 = vunpack.c.l.bf16 %v4430
          %v4677 = vunpack.c.h.bf16 %v4430
          %v4678 = vunpack.c.l.bf16 %v4431
          %v4679 = vunpack.c.h.bf16 %v4431
          %v4680 = vunpack.c.l.bf16 %v4432
          %v4681 = vunpack.c.h.bf16 %v4432
          %v4682 = vunpack.c.l.bf16 %v4433
          %v4683 = vunpack.c.h.bf16 %v4433
          %v4684 = vunpack.c.l.bf16 %v4434
          %v4685 = vunpack.c.h.bf16 %v4434
          %v4686 = vunpack.c.l.bf16 %v4435
          %v4687 = vunpack.c.h.bf16 %v4435
          %v4688 = vunpack.c.l.bf16 %v4436
          %v4689 = vunpack.c.h.bf16 %v4436
          %v4690 = vunpack.c.l.bf16 %v4437
          %v4691 = vunpack.c.h.bf16 %v4437
          %v4692 = vunpack.c.l.bf16 %v4438
          %v4693 = vunpack.c.h.bf16 %v4438
          %v4694 = vunpack.c.l.bf16 %v4439
          %v4695 = vunpack.c.h.bf16 %v4439
          %s4696 = scalar_lea.vmem [#allocation3], 32
          %v4697 = vld [vmem:[%s4696] sm:$0xff]
          %v4698 = vld [vmem:[%s4696 + $0x8] sm:$0xff]
          %v4699 = vld [vmem:[%s4696 + $0x10] sm:$0xff]
          %v4700 = vld [vmem:[%s4696 + $0x18] sm:$0xff]
          %4701 = vmatprep.subr.mxu0 %v4441
          %4702 = vmatpush1.msra.mxu0 %v4440
          %4703 = vmatprep.subr.mxu0 %v4445
          %4704 = vmatpush1.msra.mxu0 %v4444
          %4705 = vmatprep.subr.mxu0 %v4449
          %4706 = vmatpush1.msra.mxu0 %v4448
          %4707 = vmatprep.subr.mxu0 %v4453
          %4708 = vmatpush1.msra.mxu0 %v4452
          %4709 = vmatprep.subr.mxu0 %v4457
          %4710 = vmatpush1.msra.mxu0 %v4456
          %4711 = vmatprep.subr.mxu0 %v4461
          %4712 = vmatpush1.msra.mxu0 %v4460
          %4713 = vmatprep.subr.mxu0 %v4465
          %4714 = vmatpush1.msra.mxu0 %v4464
          %4715 = vmatprep.subr.mxu0 %v4469
          %4716 = vmatpush1.msra.mxu0 %v4468
          %4717 = vmatprep.subr.mxu0 %v4473
          %4718 = vmatpush1.msra.mxu0 %v4472
          %4719 = vmatprep.subr.mxu0 %v4477
          %4720 = vmatpush1.msra.mxu0 %v4476
          %4721 = vmatprep.subr.mxu0 %v4481
          %4722 = vmatpush1.msra.mxu0 %v4480
          %4723 = vmatprep.subr.mxu0 %v4485
          %4724 = vmatpush1.msra.mxu0 %v4484
          %4725 = vmatprep.subr.mxu0 %v4489
          %4726 = vmatpush1.msra.mxu0 %v4488
          %4727 = vmatprep.subr.mxu0 %v4493
          %4728 = vmatpush1.msra.mxu0 %v4492
          %4729 = vmatprep.subr.mxu0 %v4497
          %4730 = vmatpush1.msra.mxu0 %v4496
          %4731 = vmatprep.subr.mxu0 %v4501
          %4732 = vmatpush1.msra.mxu0 %v4500
          %4733 = vmatprep.subr.mxu0 %v4505
          %4734 = vmatpush1.msra.mxu0 %v4504
          %4735 = vmatprep.subr.mxu0 %v4509
          %4736 = vmatpush1.msra.mxu0 %v4508
          %4737 = vmatprep.subr.mxu0 %v4513
          %4738 = vmatpush1.msra.mxu0 %v4512
          %4739 = vmatprep.subr.mxu0 %v4517
          %4740 = vmatpush1.msra.mxu0 %v4516
          %4741 = vmatprep.subr.mxu0 %v4521
          %4742 = vmatpush1.msra.mxu0 %v4520
          %4743 = vmatprep.subr.mxu0 %v4525
          %4744 = vmatpush1.msra.mxu0 %v4524
          %4745 = vmatprep.subr.mxu0 %v4529
          %4746 = vmatpush1.msra.mxu0 %v4528
          %4747 = vmatprep.subr.mxu0 %v4533
          %4748 = vmatpush1.msra.mxu0 %v4532
          %4749 = vmatprep.subr.mxu0 %v4537
          %4750 = vmatpush1.msra.mxu0 %v4536
          %4751 = vmatprep.subr.mxu0 %v4541
          %4752 = vmatpush1.msra.mxu0 %v4540
          %4753 = vmatprep.subr.mxu0 %v4545
          %4754 = vmatpush1.msra.mxu0 %v4544
          %4755 = vmatprep.subr.mxu0 %v4549
          %4756 = vmatpush1.msra.mxu0 %v4548
          %4757 = vmatprep.subr.mxu0 %v4553
          %4758 = vmatpush1.msra.mxu0 %v4552
          %4759 = vmatprep.subr.mxu0 %v4557
          %4760 = vmatpush1.msra.mxu0 %v4556
          %4761 = vmatprep.subr.mxu0 %v4561
          %4762 = vmatpush1.msra.mxu0 %v4560
          %4763 = vmatprep.subr.mxu0 %v4565
          %4764 = vmatpush1.msra.mxu0 %v4564
          %4765 = vmatprep.mubr.f32.mxu0 %v4698
          %4766 = vmatmul.mubr.f32.gmra.mrb[0].mxu0 %v4697
          %v4767 = vpop.f32.mrb[0].mxu0
          %v4768 = vadd.f32 0.0, %v4767
          %v4769 = vpop.f32.mrb[0].mxu0
          %v4770 = vadd.f32 0.0, %v4769
          %4771 = vdwg.mxu0
          %4772 = vmatprep.subr.mxu0 %v4569
          %4773 = vmatpush1.msra.mxu0 %v4568
          %4774 = vmatprep.subr.mxu0 %v4573
          %4775 = vmatpush1.msra.mxu0 %v4572
          %4776 = vmatprep.subr.mxu0 %v4577
          %4777 = vmatpush1.msra.mxu0 %v4576
          %4778 = vmatprep.subr.mxu0 %v4581
          %4779 = vmatpush1.msra.mxu0 %v4580
          %4780 = vmatprep.subr.mxu0 %v4585
          %4781 = vmatpush1.msra.mxu0 %v4584
          %4782 = vmatprep.subr.mxu0 %v4589
          %4783 = vmatpush1.msra.mxu0 %v4588
          %4784 = vmatprep.subr.mxu0 %v4593
          %4785 = vmatpush1.msra.mxu0 %v4592
          %4786 = vmatprep.subr.mxu0 %v4597
          %4787 = vmatpush1.msra.mxu0 %v4596
          %4788 = vmatprep.subr.mxu0 %v4601
          %4789 = vmatpush1.msra.mxu0 %v4600
          %4790 = vmatprep.subr.mxu0 %v4605
          %4791 = vmatpush1.msra.mxu0 %v4604
          %4792 = vmatprep.subr.mxu0 %v4609
          %4793 = vmatpush1.msra.mxu0 %v4608
          %4794 = vmatprep.subr.mxu0 %v4613
          %4795 = vmatpush1.msra.mxu0 %v4612
          %4796 = vmatprep.subr.mxu0 %v4617
          %4797 = vmatpush1.msra.mxu0 %v4616
          %4798 = vmatprep.subr.mxu0 %v4621
          %4799 = vmatpush1.msra.mxu0 %v4620
          %4800 = vmatprep.subr.mxu0 %v4625
          %4801 = vmatpush1.msra.mxu0 %v4624
          %4802 = vmatprep.subr.mxu0 %v4629
          %4803 = vmatpush1.msra.mxu0 %v4628
          %4804 = vmatprep.subr.mxu0 %v4633
          %4805 = vmatpush1.msra.mxu0 %v4632
          %4806 = vmatprep.subr.mxu0 %v4637
          %4807 = vmatpush1.msra.mxu0 %v4636
          %4808 = vmatprep.subr.mxu0 %v4641
          %4809 = vmatpush1.msra.mxu0 %v4640
          %4810 = vmatprep.subr.mxu0 %v4645
          %4811 = vmatpush1.msra.mxu0 %v4644
          %4812 = vmatprep.subr.mxu0 %v4649
          %4813 = vmatpush1.msra.mxu0 %v4648
          %4814 = vmatprep.subr.mxu0 %v4653
          %4815 = vmatpush1.msra.mxu0 %v4652
          %4816 = vmatprep.subr.mxu0 %v4657
          %4817 = vmatpush1.msra.mxu0 %v4656
          %4818 = vmatprep.subr.mxu0 %v4661
          %4819 = vmatpush1.msra.mxu0 %v4660
          %4820 = vmatprep.subr.mxu0 %v4665
          %4821 = vmatpush1.msra.mxu0 %v4664
          %4822 = vmatprep.subr.mxu0 %v4669
          %4823 = vmatpush1.msra.mxu0 %v4668
          %4824 = vmatprep.subr.mxu0 %v4673
          %4825 = vmatpush1.msra.mxu0 %v4672
          %4826 = vmatprep.subr.mxu0 %v4677
          %4827 = vmatpush1.msra.mxu0 %v4676
          %4828 = vmatprep.subr.mxu0 %v4681
          %4829 = vmatpush1.msra.mxu0 %v4680
          %4830 = vmatprep.subr.mxu0 %v4685
          %4831 = vmatpush1.msra.mxu0 %v4684
          %4832 = vmatprep.subr.mxu0 %v4689
          %4833 = vmatpush1.msra.mxu0 %v4688
          %4834 = vmatprep.subr.mxu0 %v4693
          %4835 = vmatpush1.msra.mxu0 %v4692
          %4836 = vmatprep.mubr.f32.mxu0 %v4700
          %4837 = vmatmul.mubr.f32.gmra.mrb[0].mxu0 %v4699
          %v4838 = vpop.f32.mrb[0].mxu0
          %v4839 = vadd.f32 %v4768, %v4838
          %v4840 = vpop.f32.mrb[0].mxu0
          %v4841 = vadd.f32 %v4770, %v4840
          %4842 = vdwg.mxu0
          %4843 = vmatprep.subr.mxu0 %v4443
          %4844 = vmatpush1.msra.mxu0 %v4442
          %4845 = vmatprep.subr.mxu0 %v4447
          %4846 = vmatpush1.msra.mxu0 %v4446
          %4847 = vmatprep.subr.mxu0 %v4451
          %4848 = vmatpush1.msra.mxu0 %v4450
          %4849 = vmatprep.subr.mxu0 %v4455
          %4850 = vmatpush1.msra.mxu0 %v4454
          %4851 = vmatprep.subr.mxu0 %v4459
          %4852 = vmatpush1.msra.mxu0 %v4458
          %4853 = vmatprep.subr.mxu0 %v4463
          %4854 = vmatpush1.msra.mxu0 %v4462
          %4855 = vmatprep.subr.mxu0 %v4467
          %4856 = vmatpush1.msra.mxu0 %v4466
          %4857 = vmatprep.subr.mxu0 %v4471
          %4858 = vmatpush1.msra.mxu0 %v4470
          %4859 = vmatprep.subr.mxu0 %v4475
          %4860 = vmatpush1.msra.mxu0 %v4474
          %4861 = vmatprep.subr.mxu0 %v4479
          %4862 = vmatpush1.msra.mxu0 %v4478
          %4863 = vmatprep.subr.mxu0 %v4483
          %4864 = vmatpush1.msra.mxu0 %v4482
          %4865 = vmatprep.subr.mxu0 %v4487
          %4866 = vmatpush1.msra.mxu0 %v4486
          %4867 = vmatprep.subr.mxu0 %v4491
          %4868 = vmatpush1.msra.mxu0 %v4490
          %4869 = vmatprep.subr.mxu0 %v4495
          %4870 = vmatpush1.msra.mxu0 %v4494
          %4871 = vmatprep.subr.mxu0 %v4499
          %4872 = vmatpush1.msra.mxu0 %v4498
          %4873 = vmatprep.subr.mxu0 %v4503
          %4874 = vmatpush1.msra.mxu0 %v4502
          %4875 = vmatprep.subr.mxu0 %v4507
          %4876 = vmatpush1.msra.mxu0 %v4506
          %4877 = vmatprep.subr.mxu0 %v4511
          %4878 = vmatpush1.msra.mxu0 %v4510
          %4879 = vmatprep.subr.mxu0 %v4515
          %4880 = vmatpush1.msra.mxu0 %v4514
          %4881 = vmatprep.subr.mxu0 %v4519
          %4882 = vmatpush1.msra.mxu0 %v4518
          %4883 = vmatprep.subr.mxu0 %v4523
          %4884 = vmatpush1.msra.mxu0 %v4522
          %4885 = vmatprep.subr.mxu0 %v4527
          %4886 = vmatpush1.msra.mxu0 %v4526
          %4887 = vmatprep.subr.mxu0 %v4531
          %4888 = vmatpush1.msra.mxu0 %v4530
          %4889 = vmatprep.subr.mxu0 %v4535
          %4890 = vmatpush1.msra.mxu0 %v4534
          %4891 = vmatprep.subr.mxu0 %v4539
          %4892 = vmatpush1.msra.mxu0 %v4538
          %4893 = vmatprep.subr.mxu0 %v4543
          %4894 = vmatpush1.msra.mxu0 %v4542
          %4895 = vmatprep.subr.mxu0 %v4547
          %4896 = vmatpush1.msra.mxu0 %v4546
          %4897 = vmatprep.subr.mxu0 %v4551
          %4898 = vmatpush1.msra.mxu0 %v4550
          %4899 = vmatprep.subr.mxu0 %v4555
          %4900 = vmatpush1.msra.mxu0 %v4554
          %4901 = vmatprep.subr.mxu0 %v4559
          %4902 = vmatpush1.msra.mxu0 %v4558
          %4903 = vmatprep.subr.mxu0 %v4563
          %4904 = vmatpush1.msra.mxu0 %v4562
          %4905 = vmatprep.subr.mxu0 %v4567
          %4906 = vmatpush1.msra.mxu0 %v4566
          %4907 = vmatprep.mubr.f32.mxu0 %v4698
          %4908 = vmatmul.mubr.f32.gmra.mrb[0].mxu0 %v4697
          %v4909 = vpop.f32.mrb[0].mxu0
          %v4910 = vadd.f32 0.0, %v4909
          %v4911 = vpop.f32.mrb[0].mxu0
          %v4912 = vadd.f32 0.0, %v4911
          %4913 = vdwg.mxu0
          %4914 = vmatprep.subr.mxu0 %v4571
          %4915 = vmatpush1.msra.mxu0 %v4570
          %4916 = vmatprep.subr.mxu0 %v4575
          %4917 = vmatpush1.msra.mxu0 %v4574
          %4918 = vmatprep.subr.mxu0 %v4579
          %4919 = vmatpush1.msra.mxu0 %v4578
          %4920 = vmatprep.subr.mxu0 %v4583
          %4921 = vmatpush1.msra.mxu0 %v4582
          %4922 = vmatprep.subr.mxu0 %v4587
          %4923 = vmatpush1.msra.mxu0 %v4586
          %4924 = vmatprep.subr.mxu0 %v4591
          %4925 = vmatpush1.msra.mxu0 %v4590
          %4926 = vmatprep.subr.mxu0 %v4595
          %4927 = vmatpush1.msra.mxu0 %v4594
          %4928 = vmatprep.subr.mxu0 %v4599
          %4929 = vmatpush1.msra.mxu0 %v4598
          %4930 = vmatprep.subr.mxu0 %v4603
          %4931 = vmatpush1.msra.mxu0 %v4602
          %4932 = vmatprep.subr.mxu0 %v4607
          %4933 = vmatpush1.msra.mxu0 %v4606
          %4934 = vmatprep.subr.mxu0 %v4611
          %4935 = vmatpush1.msra.mxu0 %v4610
          %4936 = vmatprep.subr.mxu0 %v4615
          %4937 = vmatpush1.msra.mxu0 %v4614
          %4938 = vmatprep.subr.mxu0 %v4619
          %4939 = vmatpush1.msra.mxu0 %v4618
          %4940 = vmatprep.subr.mxu0 %v4623
          %4941 = vmatpush1.msra.mxu0 %v4622
          %4942 = vmatprep.subr.mxu0 %v4627
          %4943 = vmatpush1.msra.mxu0 %v4626
          %4944 = vmatprep.subr.mxu0 %v4631
          %4945 = vmatpush1.msra.mxu0 %v4630
          %4946 = vmatprep.subr.mxu0 %v4635
          %4947 = vmatpush1.msra.mxu0 %v4634
          %4948 = vmatprep.subr.mxu0 %v4639
          %4949 = vmatpush1.msra.mxu0 %v4638
          %4950 = vmatprep.subr.mxu0 %v4643
          %4951 = vmatpush1.msra.mxu0 %v4642
          %4952 = vmatprep.subr.mxu0 %v4647
          %4953 = vmatpush1.msra.mxu0 %v4646
          %4954 = vmatprep.subr.mxu0 %v4651
          %4955 = vmatpush1.msra.mxu0 %v4650
          %4956 = vmatprep.subr.mxu0 %v4655
          %4957 = vmatpush1.msra.mxu0 %v4654
          %4958 = vmatprep.subr.mxu0 %v4659
          %4959 = vmatpush1.msra.mxu0 %v4658
          %4960 = vmatprep.subr.mxu0 %v4663
          %4961 = vmatpush1.msra.mxu0 %v4662
          %4962 = vmatprep.subr.mxu0 %v4667
          %4963 = vmatpush1.msra.mxu0 %v4666
          %4964 = vmatprep.subr.mxu0 %v4671
          %4965 = vmatpush1.msra.mxu0 %v4670
          %4966 = vmatprep.subr.mxu0 %v4675
          %4967 = vmatpush1.msra.mxu0 %v4674
          %4968 = vmatprep.subr.mxu0 %v4679
          %4969 = vmatpush1.msra.mxu0 %v4678
          %4970 = vmatprep.subr.mxu0 %v4683
          %4971 = vmatpush1.msra.mxu0 %v4682
          %4972 = vmatprep.subr.mxu0 %v4687
          %4973 = vmatpush1.msra.mxu0 %v4686
          %4974 = vmatprep.subr.mxu0 %v4691
          %4975 = vmatpush1.msra.mxu0 %v4690
          %4976 = vmatprep.subr.mxu0 %v4695
          %4977 = vmatpush1.msra.mxu0 %v4694
          %4978 = vmatprep.mubr.f32.mxu0 %v4700
          %4979 = vmatmul.mubr.f32.gmra.mrb[0].mxu0 %v4699
          %v4980 = vpop.f32.mrb[0].mxu0
          %v4981 = vadd.f32 %v4910, %v4980
          %v4982 = vpop.f32.mrb[0].mxu0
          %v4983 = vadd.f32 %v4912, %v4982
          %4984 = vdwg.mxu0
          %4985 = vmatprep.subr.mxu0 %v4053
          %4986 = vmatpush1.msra.mxu0 %v4052
          %4987 = vmatprep.subr.mxu0 %v4057
          %4988 = vmatpush1.msra.mxu0 %v4056
          %4989 = vmatprep.subr.mxu0 %v4061
          %4990 = vmatpush1.msra.mxu0 %v4060
          %4991 = vmatprep.subr.mxu0 %v4065
          %4992 = vmatpush1.msra.mxu0 %v4064
          %4993 = vmatprep.subr.mxu0 %v4069
          %4994 = vmatpush1.msra.mxu0 %v4068
          %4995 = vmatprep.subr.mxu0 %v4073
          %4996 = vmatpush1.msra.mxu0 %v4072
          %4997 = vmatprep.subr.mxu0 %v4077
          %4998 = vmatpush1.msra.mxu0 %v4076
          %4999 = vmatprep.subr.mxu0 %v4081
          %5000 = vmatpush1.msra.mxu0 %v4080
          %5001 = vmatprep.subr.mxu0 %v4085
          %5002 = vmatpush1.msra.mxu0 %v4084
          %5003 = vmatprep.subr.mxu0 %v4089
          %5004 = vmatpush1.msra.mxu0 %v4088
          %5005 = vmatprep.subr.mxu0 %v4093
          %5006 = vmatpush1.msra.mxu0 %v4092
          %5007 = vmatprep.subr.mxu0 %v4097
          %5008 = vmatpush1.msra.mxu0 %v4096
          %5009 = vmatprep.subr.mxu0 %v4101
          %5010 = vmatpush1.msra.mxu0 %v4100
          %5011 = vmatprep.subr.mxu0 %v4105
          %5012 = vmatpush1.msra.mxu0 %v4104
          %5013 = vmatprep.subr.mxu0 %v4109
          %5014 = vmatpush1.msra.mxu0 %v4108
          %5015 = vmatprep.subr.mxu0 %v4113
          %5016 = vmatpush1.msra.mxu0 %v4112
          %5017 = vmatprep.subr.mxu0 %v4117
          %5018 = vmatpush1.msra.mxu0 %v4116
          %5019 = vmatprep.subr.mxu0 %v4121
          %5020 = vmatpush1.msra.mxu0 %v4120
          %5021 = vmatprep.subr.mxu0 %v4125
          %5022 = vmatpush1.msra.mxu0 %v4124
          %5023 = vmatprep.subr.mxu0 %v4129
          %5024 = vmatpush1.msra.mxu0 %v4128
          %5025 = vmatprep.subr.mxu0 %v4133
          %5026 = vmatpush1.msra.mxu0 %v4132
          %5027 = vmatprep.subr.mxu0 %v4137
          %5028 = vmatpush1.msra.mxu0 %v4136
          %5029 = vmatprep.subr.mxu0 %v4141
          %5030 = vmatpush1.msra.mxu0 %v4140
          %5031 = vmatprep.subr.mxu0 %v4145
          %5032 = vmatpush1.msra.mxu0 %v4144
          %5033 = vmatprep.subr.mxu0 %v4149
          %5034 = vmatpush1.msra.mxu0 %v4148
          %5035 = vmatprep.subr.mxu0 %v4153
          %5036 = vmatpush1.msra.mxu0 %v4152
          %5037 = vmatprep.subr.mxu0 %v4157
          %5038 = vmatpush1.msra.mxu0 %v4156
          %5039 = vmatprep.subr.mxu0 %v4161
          %5040 = vmatpush1.msra.mxu0 %v4160
          %5041 = vmatprep.subr.mxu0 %v4165
          %5042 = vmatpush1.msra.mxu0 %v4164
          %5043 = vmatprep.subr.mxu0 %v4169
          %5044 = vmatpush1.msra.mxu0 %v4168
          %5045 = vmatprep.subr.mxu0 %v4173
          %5046 = vmatpush1.msra.mxu0 %v4172
          %5047 = vmatprep.subr.mxu0 %v4177
          %5048 = vmatpush1.msra.mxu0 %v4176
          %5049 = vmatprep.mubr.f32.mxu0 %v4309
          %5050 = vmatmul.mubr.f32.gmra.mrb[0].mxu0 %v4308
          %v5051 = vpop.f32.mrb[0].mxu0
          %v5052 = vadd.f32 %v4839, %v5051
          %v5053 = vpop.f32.mrb[0].mxu0
          %v5054 = vadd.f32 %v4841, %v5053
          %5055 = vdwg.mxu0
          %5056 = vmatprep.subr.mxu0 %v4181
          %5057 = vmatpush1.msra.mxu0 %v4180
          %5058 = vmatprep.subr.mxu0 %v4185
          %5059 = vmatpush1.msra.mxu0 %v4184
          %5060 = vmatprep.subr.mxu0 %v4189
          %5061 = vmatpush1.msra.mxu0 %v4188
          %5062 = vmatprep.subr.mxu0 %v4193
          %5063 = vmatpush1.msra.mxu0 %v4192
          %5064 = vmatprep.subr.mxu0 %v4197
          %5065 = vmatpush1.msra.mxu0 %v4196
          %5066 = vmatprep.subr.mxu0 %v4201
          %5067 = vmatpush1.msra.mxu0 %v4200
          %5068 = vmatprep.subr.mxu0 %v4205
          %5069 = vmatpush1.msra.mxu0 %v4204
          %5070 = vmatprep.subr.mxu0 %v4209
          %5071 = vmatpush1.msra.mxu0 %v4208
          %5072 = vmatprep.subr.mxu0 %v4213
          %5073 = vmatpush1.msra.mxu0 %v4212
          %5074 = vmatprep.subr.mxu0 %v4217
          %5075 = vmatpush1.msra.mxu0 %v4216
          %5076 = vmatprep.subr.mxu0 %v4221
          %5077 = vmatpush1.msra.mxu0 %v4220
          %5078 = vmatprep.subr.mxu0 %v4225
          %5079 = vmatpush1.msra.mxu0 %v4224
          %5080 = vmatprep.subr.mxu0 %v4229
          %5081 = vmatpush1.msra.mxu0 %v4228
          %5082 = vmatprep.subr.mxu0 %v4233
          %5083 = vmatpush1.msra.mxu0 %v4232
          %5084 = vmatprep.subr.mxu0 %v4237
          %5085 = vmatpush1.msra.mxu0 %v4236
          %5086 = vmatprep.subr.mxu0 %v4241
          %5087 = vmatpush1.msra.mxu0 %v4240
          %5088 = vmatprep.subr.mxu0 %v4245
          %5089 = vmatpush1.msra.mxu0 %v4244
          %5090 = vmatprep.subr.mxu0 %v4249
          %5091 = vmatpush1.msra.mxu0 %v4248
          %5092 = vmatprep.subr.mxu0 %v4253
          %5093 = vmatpush1.msra.mxu0 %v4252
          %5094 = vmatprep.subr.mxu0 %v4257
          %5095 = vmatpush1.msra.mxu0 %v4256
          %5096 = vmatprep.subr.mxu0 %v4261
          %5097 = vmatpush1.msra.mxu0 %v4260
          %5098 = vmatprep.subr.mxu0 %v4265
          %5099 = vmatpush1.msra.mxu0 %v4264
          %5100 = vmatprep.subr.mxu0 %v4269
          %5101 = vmatpush1.msra.mxu0 %v4268
          %5102 = vmatprep.subr.mxu0 %v4273
          %5103 = vmatpush1.msra.mxu0 %v4272
          %5104 = vmatprep.subr.mxu0 %v4277
          %5105 = vmatpush1.msra.mxu0 %v4276
          %5106 = vmatprep.subr.mxu0 %v4281
          %5107 = vmatpush1.msra.mxu0 %v4280
          %5108 = vmatprep.subr.mxu0 %v4285
          %5109 = vmatpush1.msra.mxu0 %v4284
          %5110 = vmatprep.subr.mxu0 %v4289
          %5111 = vmatpush1.msra.mxu0 %v4288
          %5112 = vmatprep.subr.mxu0 %v4293
          %5113 = vmatpush1.msra.mxu0 %v4292
          %5114 = vmatprep.subr.mxu0 %v4297
          %5115 = vmatpush1.msra.mxu0 %v4296
          %5116 = vmatprep.subr.mxu0 %v4301
          %5117 = vmatpush1.msra.mxu0 %v4300
          %5118 = vmatprep.subr.mxu0 %v4305
          %5119 = vmatpush1.msra.mxu0 %v4304
          %5120 = vmatprep.mubr.f32.mxu0 %v4311
          %5121 = vmatmul.mubr.f32.gmra.mrb[0].mxu0 %v4310
          %v5122 = vpop.f32.mrb[0].mxu0
          %v5123 = vadd.f32 %v5052, %v5122
          %v5124 = vpop.f32.mrb[0].mxu0
          %v5125 = vadd.f32 %v5054, %v5124
          %5126 = vdwg.mxu0
          %5127 = vmatprep.subr.mxu0 %v4055
          %5128 = vmatpush1.msra.mxu0 %v4054
          %5129 = vmatprep.subr.mxu0 %v4059
          %5130 = vmatpush1.msra.mxu0 %v4058
          %5131 = vmatprep.subr.mxu0 %v4063
          %5132 = vmatpush1.msra.mxu0 %v4062
          %5133 = vmatprep.subr.mxu0 %v4067
          %5134 = vmatpush1.msra.mxu0 %v4066
          %5135 = vmatprep.subr.mxu0 %v4071
          %5136 = vmatpush1.msra.mxu0 %v4070
          %5137 = vmatprep.subr.mxu0 %v4075
          %5138 = vmatpush1.msra.mxu0 %v4074
          %5139 = vmatprep.subr.mxu0 %v4079
          %5140 = vmatpush1.msra.mxu0 %v4078
          %5141 = vmatprep.subr.mxu0 %v4083
          %5142 = vmatpush1.msra.mxu0 %v4082
          %5143 = vmatprep.subr.mxu0 %v4087
          %5144 = vmatpush1.msra.mxu0 %v4086
          %5145 = vmatprep.subr.mxu0 %v4091
          %5146 = vmatpush1.msra.mxu0 %v4090
          %5147 = vmatprep.subr.mxu0 %v4095
          %5148 = vmatpush1.msra.mxu0 %v4094
          %5149 = vmatprep.subr.mxu0 %v4099
          %5150 = vmatpush1.msra.mxu0 %v4098
          %5151 = vmatprep.subr.mxu0 %v4103
          %5152 = vmatpush1.msra.mxu0 %v4102
          %5153 = vmatprep.subr.mxu0 %v4107
          %5154 = vmatpush1.msra.mxu0 %v4106
          %5155 = vmatprep.subr.mxu0 %v4111
          %5156 = vmatpush1.msra.mxu0 %v4110
          %5157 = vmatprep.subr.mxu0 %v4115
          %5158 = vmatpush1.msra.mxu0 %v4114
          %5159 = vmatprep.subr.mxu0 %v4119
          %5160 = vmatpush1.msra.mxu0 %v4118
          %5161 = vmatprep.subr.mxu0 %v4123
          %5162 = vmatpush1.msra.mxu0 %v4122
          %5163 = vmatprep.subr.mxu0 %v4127
          %5164 = vmatpush1.msra.mxu0 %v4126
          %5165 = vmatprep.subr.mxu0 %v4131
          %5166 = vmatpush1.msra.mxu0 %v4130
          %5167 = vmatprep.subr.mxu0 %v4135
          %5168 = vmatpush1.msra.mxu0 %v4134
          %5169 = vmatprep.subr.mxu0 %v4139
          %5170 = vmatpush1.msra.mxu0 %v4138
          %5171 = vmatprep.subr.mxu0 %v4143
          %5172 = vmatpush1.msra.mxu0 %v4142
          %5173 = vmatprep.subr.mxu0 %v4147
          %5174 = vmatpush1.msra.mxu0 %v4146
          %5175 = vmatprep.subr.mxu0 %v4151
          %5176 = vmatpush1.msra.mxu0 %v4150
          %5177 = vmatprep.subr.mxu0 %v4155
          %5178 = vmatpush1.msra.mxu0 %v4154
          %5179 = vmatprep.subr.mxu0 %v4159
          %5180 = vmatpush1.msra.mxu0 %v4158
          %5181 = vmatprep.subr.mxu0 %v4163
          %5182 = vmatpush1.msra.mxu0 %v4162
          %5183 = vmatprep.subr.mxu0 %v4167
          %5184 = vmatpush1.msra.mxu0 %v4166
          %5185 = vmatprep.subr.mxu0 %v4171
          %5186 = vmatpush1.msra.mxu0 %v4170
          %5187 = vmatprep.subr.mxu0 %v4175
          %5188 = vmatpush1.msra.mxu0 %v4174
          %5189 = vmatprep.subr.mxu0 %v4179
          %5190 = vmatpush1.msra.mxu0 %v4178
          %5191 = vmatprep.mubr.f32.mxu0 %v4309
          %5192 = vmatmul.mubr.f32.gmra.mrb[0].mxu0 %v4308
          %v5193 = vpop.f32.mrb[0].mxu0
          %v5194 = vadd.f32 %v4981, %v5193
          %v5195 = vpop.f32.mrb[0].mxu0
          %v5196 = vadd.f32 %v4983, %v5195
          %5197 = vdwg.mxu0
          %5198 = vmatprep.subr.mxu0 %v4183
          %5199 = vmatpush1.msra.mxu0 %v4182
          %5200 = vmatprep.subr.mxu0 %v4187
          %5201 = vmatpush1.msra.mxu0 %v4186
          %5202 = vmatprep.subr.mxu0 %v4191
          %5203 = vmatpush1.msra.mxu0 %v4190
          %5204 = vmatprep.subr.mxu0 %v4195
          %5205 = vmatpush1.msra.mxu0 %v4194
          %5206 = vmatprep.subr.mxu0 %v4199
          %5207 = vmatpush1.msra.mxu0 %v4198
          %5208 = vmatprep.subr.mxu0 %v4203
          %5209 = vmatpush1.msra.mxu0 %v4202
          %5210 = vmatprep.subr.mxu0 %v4207
          %5211 = vmatpush1.msra.mxu0 %v4206
          %5212 = vmatprep.subr.mxu0 %v4211
          %5213 = vmatpush1.msra.mxu0 %v4210
          %5214 = vmatprep.subr.mxu0 %v4215
          %5215 = vmatpush1.msra.mxu0 %v4214
          %5216 = vmatprep.subr.mxu0 %v4219
          %5217 = vmatpush1.msra.mxu0 %v4218
          %5218 = vmatprep.subr.mxu0 %v4223
          %5219 = vmatpush1.msra.mxu0 %v4222
          %5220 = vmatprep.subr.mxu0 %v4227
          %5221 = vmatpush1.msra.mxu0 %v4226
          %5222 = vmatprep.subr.mxu0 %v4231
          %5223 = vmatpush1.msra.mxu0 %v4230
          %5224 = vmatprep.subr.mxu0 %v4235
          %5225 = vmatpush1.msra.mxu0 %v4234
          %5226 = vmatprep.subr.mxu0 %v4239
          %5227 = vmatpush1.msra.mxu0 %v4238
          %5228 = vmatprep.subr.mxu0 %v4243
          %5229 = vmatpush1.msra.mxu0 %v4242
          %5230 = vmatprep.subr.mxu0 %v4247
          %5231 = vmatpush1.msra.mxu0 %v4246
          %5232 = vmatprep.subr.mxu0 %v4251
          %5233 = vmatpush1.msra.mxu0 %v4250
          %5234 = vmatprep.subr.mxu0 %v4255
          %5235 = vmatpush1.msra.mxu0 %v4254
          %5236 = vmatprep.subr.mxu0 %v4259
          %5237 = vmatpush1.msra.mxu0 %v4258
          %5238 = vmatprep.subr.mxu0 %v4263
          %5239 = vmatpush1.msra.mxu0 %v4262
          %5240 = vmatprep.subr.mxu0 %v4267
          %5241 = vmatpush1.msra.mxu0 %v4266
          %5242 = vmatprep.subr.mxu0 %v4271
          %5243 = vmatpush1.msra.mxu0 %v4270
          %5244 = vmatprep.subr.mxu0 %v4275
          %5245 = vmatpush1.msra.mxu0 %v4274
          %5246 = vmatprep.subr.mxu0 %v4279
          %5247 = vmatpush1.msra.mxu0 %v4278
          %5248 = vmatprep.subr.mxu0 %v4283
          %5249 = vmatpush1.msra.mxu0 %v4282
          %5250 = vmatprep.subr.mxu0 %v4287
          %5251 = vmatpush1.msra.mxu0 %v4286
          %5252 = vmatprep.subr.mxu0 %v4291
          %5253 = vmatpush1.msra.mxu0 %v4290
          %5254 = vmatprep.subr.mxu0 %v4295
          %5255 = vmatpush1.msra.mxu0 %v4294
          %5256 = vmatprep.subr.mxu0 %v4299
          %5257 = vmatpush1.msra.mxu0 %v4298
          %5258 = vmatprep.subr.mxu0 %v4303
          %5259 = vmatpush1.msra.mxu0 %v4302
          %5260 = vmatprep.subr.mxu0 %v4307
          %5261 = vmatpush1.msra.mxu0 %v4306
          %5262 = vmatprep.mubr.f32.mxu0 %v4311
          %5263 = vmatmul.mubr.f32.gmra.mrb[0].mxu0 %v4310
          %v5264 = vpop.f32.mrb[0].mxu0
          %v5265 = vadd.f32 %v5194, %v5264
          %v5266 = vpop.f32.mrb[0].mxu0
          %v5267 = vadd.f32 %v5196, %v5266
          %5268 = vdwg.mxu0
          %v5269 = vld [vmem:[%s345 + $0x800] sm:$0xff]
          %v5270 = vld [vmem:[%s345 + $0x808] sm:$0xff]
          %v5271 = vld [vmem:[%s345 + $0x810] sm:$0xff]
          %v5272 = vld [vmem:[%s345 + $0x818] sm:$0xff]
          %v5273 = vld [vmem:[%s345 + $0x820] sm:$0xff]
          %v5274 = vld [vmem:[%s345 + $0x828] sm:$0xff]
          %v5275 = vld [vmem:[%s345 + $0x830] sm:$0xff]
          %v5276 = vld [vmem:[%s345 + $0x838] sm:$0xff]
          %v5277 = vld [vmem:[%s345 + $0x840] sm:$0xff]
          %v5278 = vld [vmem:[%s345 + $0x848] sm:$0xff]
          %v5279 = vld [vmem:[%s345 + $0x850] sm:$0xff]
          %v5280 = vld [vmem:[%s345 + $0x858] sm:$0xff]
          %v5281 = vld [vmem:[%s345 + $0x860] sm:$0xff]
          %v5282 = vld [vmem:[%s345 + $0x868] sm:$0xff]
          %v5283 = vld [vmem:[%s345 + $0x870] sm:$0xff]
          %v5284 = vld [vmem:[%s345 + $0x878] sm:$0xff]
          %v5285 = vld [vmem:[%s345 + $0x880] sm:$0xff]
          %v5286 = vld [vmem:[%s345 + $0x888] sm:$0xff]
          %v5287 = vld [vmem:[%s345 + $0x890] sm:$0xff]
          %v5288 = vld [vmem:[%s345 + $0x898] sm:$0xff]
          %v5289 = vld [vmem:[%s345 + $0x8a0] sm:$0xff]
          %v5290 = vld [vmem:[%s345 + $0x8a8] sm:$0xff]
          %v5291 = vld [vmem:[%s345 + $0x8b0] sm:$0xff]
          %v5292 = vld [vmem:[%s345 + $0x8b8] sm:$0xff]
          %v5293 = vld [vmem:[%s345 + $0x8c0] sm:$0xff]
          %v5294 = vld [vmem:[%s345 + $0x8c8] sm:$0xff]
          %v5295 = vld [vmem:[%s345 + $0x8d0] sm:$0xff]
          %v5296 = vld [vmem:[%s345 + $0x8d8] sm:$0xff]
          %v5297 = vld [vmem:[%s345 + $0x8e0] sm:$0xff]
          %v5298 = vld [vmem:[%s345 + $0x8e8] sm:$0xff]
          %v5299 = vld [vmem:[%s345 + $0x8f0] sm:$0xff]
          %v5300 = vld [vmem:[%s345 + $0x8f8] sm:$0xff]
          %v5301 = vld [vmem:[%s345 + $0x900] sm:$0xff]
          %v5302 = vld [vmem:[%s345 + $0x908] sm:$0xff]
          %v5303 = vld [vmem:[%s345 + $0x910] sm:$0xff]
          %v5304 = vld [vmem:[%s345 + $0x918] sm:$0xff]
          %v5305 = vld [vmem:[%s345 + $0x920] sm:$0xff]
          %v5306 = vld [vmem:[%s345 + $0x928] sm:$0xff]
          %v5307 = vld [vmem:[%s345 + $0x930] sm:$0xff]
          %v5308 = vld [vmem:[%s345 + $0x938] sm:$0xff]
          %v5309 = vld [vmem:[%s345 + $0x940] sm:$0xff]
          %v5310 = vld [vmem:[%s345 + $0x948] sm:$0xff]
          %v5311 = vld [vmem:[%s345 + $0x950] sm:$0xff]
          %v5312 = vld [vmem:[%s345 + $0x958] sm:$0xff]
          %v5313 = vld [vmem:[%s345 + $0x960] sm:$0xff]
          %v5314 = vld [vmem:[%s345 + $0x968] sm:$0xff]
          %v5315 = vld [vmem:[%s345 + $0x970] sm:$0xff]
          %v5316 = vld [vmem:[%s345 + $0x978] sm:$0xff]
          %v5317 = vld [vmem:[%s345 + $0x980] sm:$0xff]
          %v5318 = vld [vmem:[%s345 + $0x988] sm:$0xff]
          %v5319 = vld [vmem:[%s345 + $0x990] sm:$0xff]
          %v5320 = vld [vmem:[%s345 + $0x998] sm:$0xff]
          %v5321 = vld [vmem:[%s345 + $0x9a0] sm:$0xff]
          %v5322 = vld [vmem:[%s345 + $0x9a8] sm:$0xff]
          %v5323 = vld [vmem:[%s345 + $0x9b0] sm:$0xff]
          %v5324 = vld [vmem:[%s345 + $0x9b8] sm:$0xff]
          %v5325 = vld [vmem:[%s345 + $0x9c0] sm:$0xff]
          %v5326 = vld [vmem:[%s345 + $0x9c8] sm:$0xff]
          %v5327 = vld [vmem:[%s345 + $0x9d0] sm:$0xff]
          %v5328 = vld [vmem:[%s345 + $0x9d8] sm:$0xff]
          %v5329 = vld [vmem:[%s345 + $0x9e0] sm:$0xff]
          %v5330 = vld [vmem:[%s345 + $0x9e8] sm:$0xff]
          %v5331 = vld [vmem:[%s345 + $0x9f0] sm:$0xff]
          %v5332 = vld [vmem:[%s345 + $0x9f8] sm:$0xff]
          %v5333 = vld [vmem:[%s345 + $0xa00] sm:$0xff]
          %v5334 = vld [vmem:[%s345 + $0xa08] sm:$0xff]
          %v5335 = vld [vmem:[%s345 + $0xa10] sm:$0xff]
          %v5336 = vld [vmem:[%s345 + $0xa18] sm:$0xff]
          %v5337 = vld [vmem:[%s345 + $0xa20] sm:$0xff]
          %v5338 = vld [vmem:[%s345 + $0xa28] sm:$0xff]
          %v5339 = vld [vmem:[%s345 + $0xa30] sm:$0xff]
          %v5340 = vld [vmem:[%s345 + $0xa38] sm:$0xff]
          %v5341 = vld [vmem:[%s345 + $0xa40] sm:$0xff]
          %v5342 = vld [vmem:[%s345 + $0xa48] sm:$0xff]
          %v5343 = vld [vmem:[%s345 + $0xa50] sm:$0xff]
          %v5344 = vld [vmem:[%s345 + $0xa58] sm:$0xff]
          %v5345 = vld [vmem:[%s345 + $0xa60] sm:$0xff]
          %v5346 = vld [vmem:[%s345 + $0xa68] sm:$0xff]
          %v5347 = vld [vmem:[%s345 + $0xa70] sm:$0xff]
          %v5348 = vld [vmem:[%s345 + $0xa78] sm:$0xff]
          %v5349 = vld [vmem:[%s345 + $0xa80] sm:$0xff]
          %v5350 = vld [vmem:[%s345 + $0xa88] sm:$0xff]
          %v5351 = vld [vmem:[%s345 + $0xa90] sm:$0xff]
          %v5352 = vld [vmem:[%s345 + $0xa98] sm:$0xff]
          %v5353 = vld [vmem:[%s345 + $0xaa0] sm:$0xff]
          %v5354 = vld [vmem:[%s345 + $0xaa8] sm:$0xff]
          %v5355 = vld [vmem:[%s345 + $0xab0] sm:$0xff]
          %v5356 = vld [vmem:[%s345 + $0xab8] sm:$0xff]
          %v5357 = vld [vmem:[%s345 + $0xac0] sm:$0xff]
          %v5358 = vld [vmem:[%s345 + $0xac8] sm:$0xff]
          %v5359 = vld [vmem:[%s345 + $0xad0] sm:$0xff]
          %v5360 = vld [vmem:[%s345 + $0xad8] sm:$0xff]
          %v5361 = vld [vmem:[%s345 + $0xae0] sm:$0xff]
          %v5362 = vld [vmem:[%s345 + $0xae8] sm:$0xff]
          %v5363 = vld [vmem:[%s345 + $0xaf0] sm:$0xff]
          %v5364 = vld [vmem:[%s345 + $0xaf8] sm:$0xff]
          %v5365 = vld [vmem:[%s345 + $0xb00] sm:$0xff]
          %v5366 = vld [vmem:[%s345 + $0xb08] sm:$0xff]
          %v5367 = vld [vmem:[%s345 + $0xb10] sm:$0xff]
          %v5368 = vld [vmem:[%s345 + $0xb18] sm:$0xff]
          %v5369 = vld [vmem:[%s345 + $0xb20] sm:$0xff]
          %v5370 = vld [vmem:[%s345 + $0xb28] sm:$0xff]
          %v5371 = vld [vmem:[%s345 + $0xb30] sm:$0xff]
          %v5372 = vld [vmem:[%s345 + $0xb38] sm:$0xff]
          %v5373 = vld [vmem:[%s345 + $0xb40] sm:$0xff]
          %v5374 = vld [vmem:[%s345 + $0xb48] sm:$0xff]
          %v5375 = vld [vmem:[%s345 + $0xb50] sm:$0xff]
          %v5376 = vld [vmem:[%s345 + $0xb58] sm:$0xff]
          %v5377 = vld [vmem:[%s345 + $0xb60] sm:$0xff]
          %v5378 = vld [vmem:[%s345 + $0xb68] sm:$0xff]
          %v5379 = vld [vmem:[%s345 + $0xb70] sm:$0xff]
          %v5380 = vld [vmem:[%s345 + $0xb78] sm:$0xff]
          %v5381 = vld [vmem:[%s345 + $0xb80] sm:$0xff]
          %v5382 = vld [vmem:[%s345 + $0xb88] sm:$0xff]
          %v5383 = vld [vmem:[%s345 + $0xb90] sm:$0xff]
          %v5384 = vld [vmem:[%s345 + $0xb98] sm:$0xff]
          %v5385 = vld [vmem:[%s345 + $0xba0] sm:$0xff]
          %v5386 = vld [vmem:[%s345 + $0xba8] sm:$0xff]
          %v5387 = vld [vmem:[%s345 + $0xbb0] sm:$0xff]
          %v5388 = vld [vmem:[%s345 + $0xbb8] sm:$0xff]
          %v5389 = vld [vmem:[%s345 + $0xbc0] sm:$0xff]
          %v5390 = vld [vmem:[%s345 + $0xbc8] sm:$0xff]
          %v5391 = vld [vmem:[%s345 + $0xbd0] sm:$0xff]
          %v5392 = vld [vmem:[%s345 + $0xbd8] sm:$0xff]
          %v5393 = vld [vmem:[%s345 + $0xbe0] sm:$0xff]
          %v5394 = vld [vmem:[%s345 + $0xbe8] sm:$0xff]
          %v5395 = vld [vmem:[%s345 + $0xbf0] sm:$0xff]
          %v5396 = vld [vmem:[%s345 + $0xbf8] sm:$0xff]
          %v5397 = vunpack.c.l.bf16 %v5269
          %v5398 = vunpack.c.h.bf16 %v5269
          %v5399 = vunpack.c.l.bf16 %v5270
          %v5400 = vunpack.c.h.bf16 %v5270
          %v5401 = vunpack.c.l.bf16 %v5271
          %v5402 = vunpack.c.h.bf16 %v5271
          %v5403 = vunpack.c.l.bf16 %v5272
          %v5404 = vunpack.c.h.bf16 %v5272
          %v5405 = vunpack.c.l.bf16 %v5273
          %v5406 = vunpack.c.h.bf16 %v5273
          %v5407 = vunpack.c.l.bf16 %v5274
          %v5408 = vunpack.c.h.bf16 %v5274
          %v5409 = vunpack.c.l.bf16 %v5275
          %v5410 = vunpack.c.h.bf16 %v5275
          %v5411 = vunpack.c.l.bf16 %v5276
          %v5412 = vunpack.c.h.bf16 %v5276
          %v5413 = vunpack.c.l.bf16 %v5277
          %v5414 = vunpack.c.h.bf16 %v5277
          %v5415 = vunpack.c.l.bf16 %v5278
          %v5416 = vunpack.c.h.bf16 %v5278
          %v5417 = vunpack.c.l.bf16 %v5279
          %v5418 = vunpack.c.h.bf16 %v5279
          %v5419 = vunpack.c.l.bf16 %v5280
          %v5420 = vunpack.c.h.bf16 %v5280
          %v5421 = vunpack.c.l.bf16 %v5281
          %v5422 = vunpack.c.h.bf16 %v5281
          %v5423 = vunpack.c.l.bf16 %v5282
          %v5424 = vunpack.c.h.bf16 %v5282
          %v5425 = vunpack.c.l.bf16 %v5283
          %v5426 = vunpack.c.h.bf16 %v5283
          %v5427 = vunpack.c.l.bf16 %v5284
          %v5428 = vunpack.c.h.bf16 %v5284
          %v5429 = vunpack.c.l.bf16 %v5285
          %v5430 = vunpack.c.h.bf16 %v5285
          %v5431 = vunpack.c.l.bf16 %v5286
          %v5432 = vunpack.c.h.bf16 %v5286
          %v5433 = vunpack.c.l.bf16 %v5287
          %v5434 = vunpack.c.h.bf16 %v5287
          %v5435 = vunpack.c.l.bf16 %v5288
          %v5436 = vunpack.c.h.bf16 %v5288
          %v5437 = vunpack.c.l.bf16 %v5289
          %v5438 = vunpack.c.h.bf16 %v5289
          %v5439 = vunpack.c.l.bf16 %v5290
          %v5440 = vunpack.c.h.bf16 %v5290
          %v5441 = vunpack.c.l.bf16 %v5291
          %v5442 = vunpack.c.h.bf16 %v5291
          %v5443 = vunpack.c.l.bf16 %v5292
          %v5444 = vunpack.c.h.bf16 %v5292
          %v5445 = vunpack.c.l.bf16 %v5293
          %v5446 = vunpack.c.h.bf16 %v5293
          %v5447 = vunpack.c.l.bf16 %v5294
          %v5448 = vunpack.c.h.bf16 %v5294
          %v5449 = vunpack.c.l.bf16 %v5295
          %v5450 = vunpack.c.h.bf16 %v5295
          %v5451 = vunpack.c.l.bf16 %v5296
          %v5452 = vunpack.c.h.bf16 %v5296
          %v5453 = vunpack.c.l.bf16 %v5297
          %v5454 = vunpack.c.h.bf16 %v5297
          %v5455 = vunpack.c.l.bf16 %v5298
          %v5456 = vunpack.c.h.bf16 %v5298
          %v5457 = vunpack.c.l.bf16 %v5299
          %v5458 = vunpack.c.h.bf16 %v5299
          %v5459 = vunpack.c.l.bf16 %v5300
          %v5460 = vunpack.c.h.bf16 %v5300
          %v5461 = vunpack.c.l.bf16 %v5301
          %v5462 = vunpack.c.h.bf16 %v5301
          %v5463 = vunpack.c.l.bf16 %v5302
          %v5464 = vunpack.c.h.bf16 %v5302
          %v5465 = vunpack.c.l.bf16 %v5303
          %v5466 = vunpack.c.h.bf16 %v5303
          %v5467 = vunpack.c.l.bf16 %v5304
          %v5468 = vunpack.c.h.bf16 %v5304
          %v5469 = vunpack.c.l.bf16 %v5305
          %v5470 = vunpack.c.h.bf16 %v5305
          %v5471 = vunpack.c.l.bf16 %v5306
          %v5472 = vunpack.c.h.bf16 %v5306
          %v5473 = vunpack.c.l.bf16 %v5307
          %v5474 = vunpack.c.h.bf16 %v5307
          %v5475 = vunpack.c.l.bf16 %v5308
          %v5476 = vunpack.c.h.bf16 %v5308
          %v5477 = vunpack.c.l.bf16 %v5309
          %v5478 = vunpack.c.h.bf16 %v5309
          %v5479 = vunpack.c.l.bf16 %v5310
          %v5480 = vunpack.c.h.bf16 %v5310
          %v5481 = vunpack.c.l.bf16 %v5311
          %v5482 = vunpack.c.h.bf16 %v5311
          %v5483 = vunpack.c.l.bf16 %v5312
          %v5484 = vunpack.c.h.bf16 %v5312
          %v5485 = vunpack.c.l.bf16 %v5313
          %v5486 = vunpack.c.h.bf16 %v5313
          %v5487 = vunpack.c.l.bf16 %v5314
          %v5488 = vunpack.c.h.bf16 %v5314
          %v5489 = vunpack.c.l.bf16 %v5315
          %v5490 = vunpack.c.h.bf16 %v5315
          %v5491 = vunpack.c.l.bf16 %v5316
          %v5492 = vunpack.c.h.bf16 %v5316
          %v5493 = vunpack.c.l.bf16 %v5317
          %v5494 = vunpack.c.h.bf16 %v5317
          %v5495 = vunpack.c.l.bf16 %v5318
          %v5496 = vunpack.c.h.bf16 %v5318
          %v5497 = vunpack.c.l.bf16 %v5319
          %v5498 = vunpack.c.h.bf16 %v5319
          %v5499 = vunpack.c.l.bf16 %v5320
          %v5500 = vunpack.c.h.bf16 %v5320
          %v5501 = vunpack.c.l.bf16 %v5321
          %v5502 = vunpack.c.h.bf16 %v5321
          %v5503 = vunpack.c.l.bf16 %v5322
          %v5504 = vunpack.c.h.bf16 %v5322
          %v5505 = vunpack.c.l.bf16 %v5323
          %v5506 = vunpack.c.h.bf16 %v5323
          %v5507 = vunpack.c.l.bf16 %v5324
          %v5508 = vunpack.c.h.bf16 %v5324
          %v5509 = vunpack.c.l.bf16 %v5325
          %v5510 = vunpack.c.h.bf16 %v5325
          %v5511 = vunpack.c.l.bf16 %v5326
          %v5512 = vunpack.c.h.bf16 %v5326
          %v5513 = vunpack.c.l.bf16 %v5327
          %v5514 = vunpack.c.h.bf16 %v5327
          %v5515 = vunpack.c.l.bf16 %v5328
          %v5516 = vunpack.c.h.bf16 %v5328
          %v5517 = vunpack.c.l.bf16 %v5329
          %v5518 = vunpack.c.h.bf16 %v5329
          %v5519 = vunpack.c.l.bf16 %v5330
          %v5520 = vunpack.c.h.bf16 %v5330
          %v5521 = vunpack.c.l.bf16 %v5331
          %v5522 = vunpack.c.h.bf16 %v5331
          %v5523 = vunpack.c.l.bf16 %v5332
          %v5524 = vunpack.c.h.bf16 %v5332
          %v5525 = vunpack.c.l.bf16 %v5333
          %v5526 = vunpack.c.h.bf16 %v5333
          %v5527 = vunpack.c.l.bf16 %v5334
          %v5528 = vunpack.c.h.bf16 %v5334
          %v5529 = vunpack.c.l.bf16 %v5335
          %v5530 = vunpack.c.h.bf16 %v5335
          %v5531 = vunpack.c.l.bf16 %v5336
          %v5532 = vunpack.c.h.bf16 %v5336
          %v5533 = vunpack.c.l.bf16 %v5337
          %v5534 = vunpack.c.h.bf16 %v5337
          %v5535 = vunpack.c.l.bf16 %v5338
          %v5536 = vunpack.c.h.bf16 %v5338
          %v5537 = vunpack.c.l.bf16 %v5339
          %v5538 = vunpack.c.h.bf16 %v5339
          %v5539 = vunpack.c.l.bf16 %v5340
          %v5540 = vunpack.c.h.bf16 %v5340
          %v5541 = vunpack.c.l.bf16 %v5341
          %v5542 = vunpack.c.h.bf16 %v5341
          %v5543 = vunpack.c.l.bf16 %v5342
          %v5544 = vunpack.c.h.bf16 %v5342
          %v5545 = vunpack.c.l.bf16 %v5343
          %v5546 = vunpack.c.h.bf16 %v5343
          %v5547 = vunpack.c.l.bf16 %v5344
          %v5548 = vunpack.c.h.bf16 %v5344
          %v5549 = vunpack.c.l.bf16 %v5345
          %v5550 = vunpack.c.h.bf16 %v5345
          %v5551 = vunpack.c.l.bf16 %v5346
          %v5552 = vunpack.c.h.bf16 %v5346
          %v5553 = vunpack.c.l.bf16 %v5347
          %v5554 = vunpack.c.h.bf16 %v5347
          %v5555 = vunpack.c.l.bf16 %v5348
          %v5556 = vunpack.c.h.bf16 %v5348
          %v5557 = vunpack.c.l.bf16 %v5349
          %v5558 = vunpack.c.h.bf16 %v5349
          %v5559 = vunpack.c.l.bf16 %v5350
          %v5560 = vunpack.c.h.bf16 %v5350
          %v5561 = vunpack.c.l.bf16 %v5351
          %v5562 = vunpack.c.h.bf16 %v5351
          %v5563 = vunpack.c.l.bf16 %v5352
          %v5564 = vunpack.c.h.bf16 %v5352
          %v5565 = vunpack.c.l.bf16 %v5353
          %v5566 = vunpack.c.h.bf16 %v5353
          %v5567 = vunpack.c.l.bf16 %v5354
          %v5568 = vunpack.c.h.bf16 %v5354
          %v5569 = vunpack.c.l.bf16 %v5355
          %v5570 = vunpack.c.h.bf16 %v5355
          %v5571 = vunpack.c.l.bf16 %v5356
          %v5572 = vunpack.c.h.bf16 %v5356
          %v5573 = vunpack.c.l.bf16 %v5357
          %v5574 = vunpack.c.h.bf16 %v5357
          %v5575 = vunpack.c.l.bf16 %v5358
          %v5576 = vunpack.c.h.bf16 %v5358
          %v5577 = vunpack.c.l.bf16 %v5359
          %v5578 = vunpack.c.h.bf16 %v5359
          %v5579 = vunpack.c.l.bf16 %v5360
          %v5580 = vunpack.c.h.bf16 %v5360
          %v5581 = vunpack.c.l.bf16 %v5361
          %v5582 = vunpack.c.h.bf16 %v5361
          %v5583 = vunpack.c.l.bf16 %v5362
          %v5584 = vunpack.c.h.bf16 %v5362
          %v5585 = vunpack.c.l.bf16 %v5363
          %v5586 = vunpack.c.h.bf16 %v5363
          %v5587 = vunpack.c.l.bf16 %v5364
          %v5588 = vunpack.c.h.bf16 %v5364
          %v5589 = vunpack.c.l.bf16 %v5365
          %v5590 = vunpack.c.h.bf16 %v5365
          %v5591 = vunpack.c.l.bf16 %v5366
          %v5592 = vunpack.c.h.bf16 %v5366
          %v5593 = vunpack.c.l.bf16 %v5367
          %v5594 = vunpack.c.h.bf16 %v5367
          %v5595 = vunpack.c.l.bf16 %v5368
          %v5596 = vunpack.c.h.bf16 %v5368
          %v5597 = vunpack.c.l.bf16 %v5369
          %v5598 = vunpack.c.h.bf16 %v5369
          %v5599 = vunpack.c.l.bf16 %v5370
          %v5600 = vunpack.c.h.bf16 %v5370
          %v5601 = vunpack.c.l.bf16 %v5371
          %v5602 = vunpack.c.h.bf16 %v5371
          %v5603 = vunpack.c.l.bf16 %v5372
          %v5604 = vunpack.c.h.bf16 %v5372
          %v5605 = vunpack.c.l.bf16 %v5373
          %v5606 = vunpack.c.h.bf16 %v5373
          %v5607 = vunpack.c.l.bf16 %v5374
          %v5608 = vunpack.c.h.bf16 %v5374
          %v5609 = vunpack.c.l.bf16 %v5375
          %v5610 = vunpack.c.h.bf16 %v5375
          %v5611 = vunpack.c.l.bf16 %v5376
          %v5612 = vunpack.c.h.bf16 %v5376
          %v5613 = vunpack.c.l.bf16 %v5377
          %v5614 = vunpack.c.h.bf16 %v5377
          %v5615 = vunpack.c.l.bf16 %v5378
          %v5616 = vunpack.c.h.bf16 %v5378
          %v5617 = vunpack.c.l.bf16 %v5379
          %v5618 = vunpack.c.h.bf16 %v5379
          %v5619 = vunpack.c.l.bf16 %v5380
          %v5620 = vunpack.c.h.bf16 %v5380
          %v5621 = vunpack.c.l.bf16 %v5381
          %v5622 = vunpack.c.h.bf16 %v5381
          %v5623 = vunpack.c.l.bf16 %v5382
          %v5624 = vunpack.c.h.bf16 %v5382
          %v5625 = vunpack.c.l.bf16 %v5383
          %v5626 = vunpack.c.h.bf16 %v5383
          %v5627 = vunpack.c.l.bf16 %v5384
          %v5628 = vunpack.c.h.bf16 %v5384
          %v5629 = vunpack.c.l.bf16 %v5385
          %v5630 = vunpack.c.h.bf16 %v5385
          %v5631 = vunpack.c.l.bf16 %v5386
          %v5632 = vunpack.c.h.bf16 %v5386
          %v5633 = vunpack.c.l.bf16 %v5387
          %v5634 = vunpack.c.h.bf16 %v5387
          %v5635 = vunpack.c.l.bf16 %v5388
          %v5636 = vunpack.c.h.bf16 %v5388
          %v5637 = vunpack.c.l.bf16 %v5389
          %v5638 = vunpack.c.h.bf16 %v5389
          %v5639 = vunpack.c.l.bf16 %v5390
          %v5640 = vunpack.c.h.bf16 %v5390
          %v5641 = vunpack.c.l.bf16 %v5391
          %v5642 = vunpack.c.h.bf16 %v5391
          %v5643 = vunpack.c.l.bf16 %v5392
          %v5644 = vunpack.c.h.bf16 %v5392
          %v5645 = vunpack.c.l.bf16 %v5393
          %v5646 = vunpack.c.h.bf16 %v5393
          %v5647 = vunpack.c.l.bf16 %v5394
          %v5648 = vunpack.c.h.bf16 %v5394
          %v5649 = vunpack.c.l.bf16 %v5395
          %v5650 = vunpack.c.h.bf16 %v5395
          %v5651 = vunpack.c.l.bf16 %v5396
          %v5652 = vunpack.c.h.bf16 %v5396
          %s5653 = scalar_lea.vmem [#allocation3], 64
          %v5654 = vld [vmem:[%s5653] sm:$0xff]
          %v5655 = vld [vmem:[%s5653 + $0x8] sm:$0xff]
          %v5656 = vld [vmem:[%s5653 + $0x10] sm:$0xff]
          %v5657 = vld [vmem:[%s5653 + $0x18] sm:$0xff]
          %5658 = vmatprep.subr.mxu0 %v5398
          %5659 = vmatpush1.msra.mxu0 %v5397
          %5660 = vmatprep.subr.mxu0 %v5402
          %5661 = vmatpush1.msra.mxu0 %v5401
          %5662 = vmatprep.subr.mxu0 %v5406
          %5663 = vmatpush1.msra.mxu0 %v5405
          %5664 = vmatprep.subr.mxu0 %v5410
          %5665 = vmatpush1.msra.mxu0 %v5409
          %5666 = vmatprep.subr.mxu0 %v5414
          %5667 = vmatpush1.msra.mxu0 %v5413
          %5668 = vmatprep.subr.mxu0 %v5418
          %5669 = vmatpush1.msra.mxu0 %v5417
          %5670 = vmatprep.subr.mxu0 %v5422
          %5671 = vmatpush1.msra.mxu0 %v5421
          %5672 = vmatprep.subr.mxu0 %v5426
          %5673 = vmatpush1.msra.mxu0 %v5425
          %5674 = vmatprep.subr.mxu0 %v5430
          %5675 = vmatpush1.msra.mxu0 %v5429
          %5676 = vmatprep.subr.mxu0 %v5434
          %5677 = vmatpush1.msra.mxu0 %v5433
          %5678 = vmatprep.subr.mxu0 %v5438
          %5679 = vmatpush1.msra.mxu0 %v5437
          %5680 = vmatprep.subr.mxu0 %v5442
          %5681 = vmatpush1.msra.mxu0 %v5441
          %5682 = vmatprep.subr.mxu0 %v5446
          %5683 = vmatpush1.msra.mxu0 %v5445
          %5684 = vmatprep.subr.mxu0 %v5450
          %5685 = vmatpush1.msra.mxu0 %v5449
          %5686 = vmatprep.subr.mxu0 %v5454
          %5687 = vmatpush1.msra.mxu0 %v5453
          %5688 = vmatprep.subr.mxu0 %v5458
          %5689 = vmatpush1.msra.mxu0 %v5457
          %5690 = vmatprep.subr.mxu0 %v5462
          %5691 = vmatpush1.msra.mxu0 %v5461
          %5692 = vmatprep.subr.mxu0 %v5466
          %5693 = vmatpush1.msra.mxu0 %v5465
          %5694 = vmatprep.subr.mxu0 %v5470
          %5695 = vmatpush1.msra.mxu0 %v5469
          %5696 = vmatprep.subr.mxu0 %v5474
          %5697 = vmatpush1.msra.mxu0 %v5473
          %5698 = vmatprep.subr.mxu0 %v5478
          %5699 = vmatpush1.msra.mxu0 %v5477
          %5700 = vmatprep.subr.mxu0 %v5482
          %5701 = vmatpush1.msra.mxu0 %v5481
          %5702 = vmatprep.subr.mxu0 %v5486
          %5703 = vmatpush1.msra.mxu0 %v5485
          %5704 = vmatprep.subr.mxu0 %v5490
          %5705 = vmatpush1.msra.mxu0 %v5489
          %5706 = vmatprep.subr.mxu0 %v5494
          %5707 = vmatpush1.msra.mxu0 %v5493
          %5708 = vmatprep.subr.mxu0 %v5498
          %5709 = vmatpush1.msra.mxu0 %v5497
          %5710 = vmatprep.subr.mxu0 %v5502
          %5711 = vmatpush1.msra.mxu0 %v5501
          %5712 = vmatprep.subr.mxu0 %v5506
          %5713 = vmatpush1.msra.mxu0 %v5505
          %5714 = vmatprep.subr.mxu0 %v5510
          %5715 = vmatpush1.msra.mxu0 %v5509
          %5716 = vmatprep.subr.mxu0 %v5514
          %5717 = vmatpush1.msra.mxu0 %v5513
          %5718 = vmatprep.subr.mxu0 %v5518
          %5719 = vmatpush1.msra.mxu0 %v5517
          %5720 = vmatprep.subr.mxu0 %v5522
          %5721 = vmatpush1.msra.mxu0 %v5521
          %5722 = vmatprep.mubr.f32.mxu0 %v5655
          %5723 = vmatmul.mubr.f32.gmra.mrb[0].mxu0 %v5654
          %v5724 = vpop.f32.mrb[0].mxu0
          %v5725 = vadd.f32 0.0, %v5724
          %v5726 = vpop.f32.mrb[0].mxu0
          %v5727 = vadd.f32 0.0, %v5726
          %5728 = vdwg.mxu0
          %5729 = vmatprep.subr.mxu0 %v5526
          %5730 = vmatpush1.msra.mxu0 %v5525
          %5731 = vmatprep.subr.mxu0 %v5530
          %5732 = vmatpush1.msra.mxu0 %v5529
          %5733 = vmatprep.subr.mxu0 %v5534
          %5734 = vmatpush1.msra.mxu0 %v5533
          %5735 = vmatprep.subr.mxu0 %v5538
          %5736 = vmatpush1.msra.mxu0 %v5537
          %5737 = vmatprep.subr.mxu0 %v5542
          %5738 = vmatpush1.msra.mxu0 %v5541
          %5739 = vmatprep.subr.mxu0 %v5546
          %5740 = vmatpush1.msra.mxu0 %v5545
          %5741 = vmatprep.subr.mxu0 %v5550
          %5742 = vmatpush1.msra.mxu0 %v5549
          %5743 = vmatprep.subr.mxu0 %v5554
          %5744 = vmatpush1.msra.mxu0 %v5553
          %5745 = vmatprep.subr.mxu0 %v5558
          %5746 = vmatpush1.msra.mxu0 %v5557
          %5747 = vmatprep.subr.mxu0 %v5562
          %5748 = vmatpush1.msra.mxu0 %v5561
          %5749 = vmatprep.subr.mxu0 %v5566
          %5750 = vmatpush1.msra.mxu0 %v5565
          %5751 = vmatprep.subr.mxu0 %v5570
          %5752 = vmatpush1.msra.mxu0 %v5569
          %5753 = vmatprep.subr.mxu0 %v5574
          %5754 = vmatpush1.msra.mxu0 %v5573
          %5755 = vmatprep.subr.mxu0 %v5578
          %5756 = vmatpush1.msra.mxu0 %v5577
          %5757 = vmatprep.subr.mxu0 %v5582
          %5758 = vmatpush1.msra.mxu0 %v5581
          %5759 = vmatprep.subr.mxu0 %v5586
          %5760 = vmatpush1.msra.mxu0 %v5585
          %5761 = vmatprep.subr.mxu0 %v5590
          %5762 = vmatpush1.msra.mxu0 %v5589
          %5763 = vmatprep.subr.mxu0 %v5594
          %5764 = vmatpush1.msra.mxu0 %v5593
          %5765 = vmatprep.subr.mxu0 %v5598
          %5766 = vmatpush1.msra.mxu0 %v5597
          %5767 = vmatprep.subr.mxu0 %v5602
          %5768 = vmatpush1.msra.mxu0 %v5601
          %5769 = vmatprep.subr.mxu0 %v5606
          %5770 = vmatpush1.msra.mxu0 %v5605
          %5771 = vmatprep.subr.mxu0 %v5610
          %5772 = vmatpush1.msra.mxu0 %v5609
          %5773 = vmatprep.subr.mxu0 %v5614
          %5774 = vmatpush1.msra.mxu0 %v5613
          %5775 = vmatprep.subr.mxu0 %v5618
          %5776 = vmatpush1.msra.mxu0 %v5617
          %5777 = vmatprep.subr.mxu0 %v5622
          %5778 = vmatpush1.msra.mxu0 %v5621
          %5779 = vmatprep.subr.mxu0 %v5626
          %5780 = vmatpush1.msra.mxu0 %v5625
          %5781 = vmatprep.subr.mxu0 %v5630
          %5782 = vmatpush1.msra.mxu0 %v5629
          %5783 = vmatprep.subr.mxu0 %v5634
          %5784 = vmatpush1.msra.mxu0 %v5633
          %5785 = vmatprep.subr.mxu0 %v5638
          %5786 = vmatpush1.msra.mxu0 %v5637
          %5787 = vmatprep.subr.mxu0 %v5642
          %5788 = vmatpush1.msra.mxu0 %v5641
          %5789 = vmatprep.subr.mxu0 %v5646
          %5790 = vmatpush1.msra.mxu0 %v5645
          %5791 = vmatprep.subr.mxu0 %v5650
          %5792 = vmatpush1.msra.mxu0 %v5649
          %5793 = vmatprep.mubr.f32.mxu0 %v5657
          %5794 = vmatmul.mubr.f32.gmra.mrb[0].mxu0 %v5656
          %v5795 = vpop.f32.mrb[0].mxu0
          %v5796 = vadd.f32 %v5725, %v5795
          %v5797 = vpop.f32.mrb[0].mxu0
          %v5798 = vadd.f32 %v5727, %v5797
          %5799 = vdwg.mxu0
          %5800 = vmatprep.subr.mxu0 %v5400
          %5801 = vmatpush1.msra.mxu0 %v5399
          %5802 = vmatprep.subr.mxu0 %v5404
          %5803 = vmatpush1.msra.mxu0 %v5403
          %5804 = vmatprep.subr.mxu0 %v5408
          %5805 = vmatpush1.msra.mxu0 %v5407
          %5806 = vmatprep.subr.mxu0 %v5412
          %5807 = vmatpush1.msra.mxu0 %v5411
          %5808 = vmatprep.subr.mxu0 %v5416
          %5809 = vmatpush1.msra.mxu0 %v5415
          %5810 = vmatprep.subr.mxu0 %v5420
          %5811 = vmatpush1.msra.mxu0 %v5419
          %5812 = vmatprep.subr.mxu0 %v5424
          %5813 = vmatpush1.msra.mxu0 %v5423
          %5814 = vmatprep.subr.mxu0 %v5428
          %5815 = vmatpush1.msra.mxu0 %v5427
          %5816 = vmatprep.subr.mxu0 %v5432
          %5817 = vmatpush1.msra.mxu0 %v5431
          %5818 = vmatprep.subr.mxu0 %v5436
          %5819 = vmatpush1.msra.mxu0 %v5435
          %5820 = vmatprep.subr.mxu0 %v5440
          %5821 = vmatpush1.msra.mxu0 %v5439
          %5822 = vmatprep.subr.mxu0 %v5444
          %5823 = vmatpush1.msra.mxu0 %v5443
          %5824 = vmatprep.subr.mxu0 %v5448
          %5825 = vmatpush1.msra.mxu0 %v5447
          %5826 = vmatprep.subr.mxu0 %v5452
          %5827 = vmatpush1.msra.mxu0 %v5451
          %5828 = vmatprep.subr.mxu0 %v5456
          %5829 = vmatpush1.msra.mxu0 %v5455
          %5830 = vmatprep.subr.mxu0 %v5460
          %5831 = vmatpush1.msra.mxu0 %v5459
          %5832 = vmatprep.subr.mxu0 %v5464
          %5833 = vmatpush1.msra.mxu0 %v5463
          %5834 = vmatprep.subr.mxu0 %v5468
          %5835 = vmatpush1.msra.mxu0 %v5467
          %5836 = vmatprep.subr.mxu0 %v5472
          %5837 = vmatpush1.msra.mxu0 %v5471
          %5838 = vmatprep.subr.mxu0 %v5476
          %5839 = vmatpush1.msra.mxu0 %v5475
          %5840 = vmatprep.subr.mxu0 %v5480
          %5841 = vmatpush1.msra.mxu0 %v5479
          %5842 = vmatprep.subr.mxu0 %v5484
          %5843 = vmatpush1.msra.mxu0 %v5483
          %5844 = vmatprep.subr.mxu0 %v5488
          %5845 = vmatpush1.msra.mxu0 %v5487
          %5846 = vmatprep.subr.mxu0 %v5492
          %5847 = vmatpush1.msra.mxu0 %v5491
          %5848 = vmatprep.subr.mxu0 %v5496
          %5849 = vmatpush1.msra.mxu0 %v5495
          %5850 = vmatprep.subr.mxu0 %v5500
          %5851 = vmatpush1.msra.mxu0 %v5499
          %5852 = vmatprep.subr.mxu0 %v5504
          %5853 = vmatpush1.msra.mxu0 %v5503
          %5854 = vmatprep.subr.mxu0 %v5508
          %5855 = vmatpush1.msra.mxu0 %v5507
          %5856 = vmatprep.subr.mxu0 %v5512
          %5857 = vmatpush1.msra.mxu0 %v5511
          %5858 = vmatprep.subr.mxu0 %v5516
          %5859 = vmatpush1.msra.mxu0 %v5515
          %5860 = vmatprep.subr.mxu0 %v5520
          %5861 = vmatpush1.msra.mxu0 %v5519
          %5862 = vmatprep.subr.mxu0 %v5524
          %5863 = vmatpush1.msra.mxu0 %v5523
          %5864 = vmatprep.mubr.f32.mxu0 %v5655
          %5865 = vmatmul.mubr.f32.gmra.mrb[0].mxu0 %v5654
          %v5866 = vpop.f32.mrb[0].mxu0
          %v5867 = vadd.f32 0.0, %v5866
          %v5868 = vpop.f32.mrb[0].mxu0
          %v5869 = vadd.f32 0.0, %v5868
          %5870 = vdwg.mxu0
          %5871 = vmatprep.subr.mxu0 %v5528
          %5872 = vmatpush1.msra.mxu0 %v5527
          %5873 = vmatprep.subr.mxu0 %v5532
          %5874 = vmatpush1.msra.mxu0 %v5531
          %5875 = vmatprep.subr.mxu0 %v5536
          %5876 = vmatpush1.msra.mxu0 %v5535
          %5877 = vmatprep.subr.mxu0 %v5540
          %5878 = vmatpush1.msra.mxu0 %v5539
          %5879 = vmatprep.subr.mxu0 %v5544
          %5880 = vmatpush1.msra.mxu0 %v5543
          %5881 = vmatprep.subr.mxu0 %v5548
          %5882 = vmatpush1.msra.mxu0 %v5547
          %5883 = vmatprep.subr.mxu0 %v5552
          %5884 = vmatpush1.msra.mxu0 %v5551
          %5885 = vmatprep.subr.mxu0 %v5556
          %5886 = vmatpush1.msra.mxu0 %v5555
          %5887 = vmatprep.subr.mxu0 %v5560
          %5888 = vmatpush1.msra.mxu0 %v5559
          %5889 = vmatprep.subr.mxu0 %v5564
          %5890 = vmatpush1.msra.mxu0 %v5563
          %5891 = vmatprep.subr.mxu0 %v5568
          %5892 = vmatpush1.msra.mxu0 %v5567
          %5893 = vmatprep.subr.mxu0 %v5572
          %5894 = vmatpush1.msra.mxu0 %v5571
          %5895 = vmatprep.subr.mxu0 %v5576
          %5896 = vmatpush1.msra.mxu0 %v5575
          %5897 = vmatprep.subr.mxu0 %v5580
          %5898 = vmatpush1.msra.mxu0 %v5579
          %5899 = vmatprep.subr.mxu0 %v5584
          %5900 = vmatpush1.msra.mxu0 %v5583
          %5901 = vmatprep.subr.mxu0 %v5588
          %5902 = vmatpush1.msra.mxu0 %v5587
          %5903 = vmatprep.subr.mxu0 %v5592
          %5904 = vmatpush1.msra.mxu0 %v5591
          %5905 = vmatprep.subr.mxu0 %v5596
          %5906 = vmatpush1.msra.mxu0 %v5595
          %5907 = vmatprep.subr.mxu0 %v5600
          %5908 = vmatpush1.msra.mxu0 %v5599
          %5909 = vmatprep.subr.mxu0 %v5604
          %5910 = vmatpush1.msra.mxu0 %v5603
          %5911 = vmatprep.subr.mxu0 %v5608
          %5912 = vmatpush1.msra.mxu0 %v5607
          %5913 = vmatprep.subr.mxu0 %v5612
          %5914 = vmatpush1.msra.mxu0 %v5611
          %5915 = vmatprep.subr.mxu0 %v5616
          %5916 = vmatpush1.msra.mxu0 %v5615
          %5917 = vmatprep.subr.mxu0 %v5620
          %5918 = vmatpush1.msra.mxu0 %v5619
          %5919 = vmatprep.subr.mxu0 %v5624
          %5920 = vmatpush1.msra.mxu0 %v5623
          %5921 = vmatprep.subr.mxu0 %v5628
          %5922 = vmatpush1.msra.mxu0 %v5627
          %5923 = vmatprep.subr.mxu0 %v5632
          %5924 = vmatpush1.msra.mxu0 %v5631
          %5925 = vmatprep.subr.mxu0 %v5636
          %5926 = vmatpush1.msra.mxu0 %v5635
          %5927 = vmatprep.subr.mxu0 %v5640
          %5928 = vmatpush1.msra.mxu0 %v5639
          %5929 = vmatprep.subr.mxu0 %v5644
          %5930 = vmatpush1.msra.mxu0 %v5643
          %5931 = vmatprep.subr.mxu0 %v5648
          %5932 = vmatpush1.msra.mxu0 %v5647
          %5933 = vmatprep.subr.mxu0 %v5652
          %5934 = vmatpush1.msra.mxu0 %v5651
          %5935 = vmatprep.mubr.f32.mxu0 %v5657
          %5936 = vmatmul.mubr.f32.gmra.mrb[0].mxu0 %v5656
          %v5937 = vpop.f32.mrb[0].mxu0
          %v5938 = vadd.f32 %v5867, %v5937
          %v5939 = vpop.f32.mrb[0].mxu0
          %v5940 = vadd.f32 %v5869, %v5939
          %5941 = vdwg.mxu0
          %v5942 = vadd.f32 %v5123, %v5796
          %v5943 = vadd.f32 %v5125, %v5798
          %v5944 = vadd.f32 %v5265, %v5938
          %v5945 = vadd.f32 %v5267, %v5940
          %v5946 = vld [vmem:[%s345 + $0xc00] sm:$0xff]
          %v5947 = vld [vmem:[%s345 + $0xc08] sm:$0xff]
          %v5948 = vld [vmem:[%s345 + $0xc10] sm:$0xff]
          %v5949 = vld [vmem:[%s345 + $0xc18] sm:$0xff]
          %v5950 = vld [vmem:[%s345 + $0xc20] sm:$0xff]
          %v5951 = vld [vmem:[%s345 + $0xc28] sm:$0xff]
          %v5952 = vld [vmem:[%s345 + $0xc30] sm:$0xff]
          %v5953 = vld [vmem:[%s345 + $0xc38] sm:$0xff]
          %v5954 = vld [vmem:[%s345 + $0xc40] sm:$0xff]
          %v5955 = vld [vmem:[%s345 + $0xc48] sm:$0xff]
          %v5956 = vld [vmem:[%s345 + $0xc50] sm:$0xff]
          %v5957 = vld [vmem:[%s345 + $0xc58] sm:$0xff]
          %v5958 = vld [vmem:[%s345 + $0xc60] sm:$0xff]
          %v5959 = vld [vmem:[%s345 + $0xc68] sm:$0xff]
          %v5960 = vld [vmem:[%s345 + $0xc70] sm:$0xff]
          %v5961 = vld [vmem:[%s345 + $0xc78] sm:$0xff]
          %v5962 = vld [vmem:[%s345 + $0xc80] sm:$0xff]
          %v5963 = vld [vmem:[%s345 + $0xc88] sm:$0xff]
          %v5964 = vld [vmem:[%s345 + $0xc90] sm:$0xff]
          %v5965 = vld [vmem:[%s345 + $0xc98] sm:$0xff]
          %v5966 = vld [vmem:[%s345 + $0xca0] sm:$0xff]
          %v5967 = vld [vmem:[%s345 + $0xca8] sm:$0xff]
          %v5968 = vld [vmem:[%s345 + $0xcb0] sm:$0xff]
          %v5969 = vld [vmem:[%s345 + $0xcb8] sm:$0xff]
          %v5970 = vld [vmem:[%s345 + $0xcc0] sm:$0xff]
          %v5971 = vld [vmem:[%s345 + $0xcc8] sm:$0xff]
          %v5972 = vld [vmem:[%s345 + $0xcd0] sm:$0xff]
          %v5973 = vld [vmem:[%s345 + $0xcd8] sm:$0xff]
          %v5974 = vld [vmem:[%s345 + $0xce0] sm:$0xff]
          %v5975 = vld [vmem:[%s345 + $0xce8] sm:$0xff]
          %v5976 = vld [vmem:[%s345 + $0xcf0] sm:$0xff]
          %v5977 = vld [vmem:[%s345 + $0xcf8] sm:$0xff]
          %v5978 = vld [vmem:[%s345 + $0xd00] sm:$0xff]
          %v5979 = vld [vmem:[%s345 + $0xd08] sm:$0xff]
          %v5980 = vld [vmem:[%s345 + $0xd10] sm:$0xff]
          %v5981 = vld [vmem:[%s345 + $0xd18] sm:$0xff]
          %v5982 = vld [vmem:[%s345 + $0xd20] sm:$0xff]
          %v5983 = vld [vmem:[%s345 + $0xd28] sm:$0xff]
          %v5984 = vld [vmem:[%s345 + $0xd30] sm:$0xff]
          %v5985 = vld [vmem:[%s345 + $0xd38] sm:$0xff]
          %v5986 = vld [vmem:[%s345 + $0xd40] sm:$0xff]
          %v5987 = vld [vmem:[%s345 + $0xd48] sm:$0xff]
          %v5988 = vld [vmem:[%s345 + $0xd50] sm:$0xff]
          %v5989 = vld [vmem:[%s345 + $0xd58] sm:$0xff]
          %v5990 = vld [vmem:[%s345 + $0xd60] sm:$0xff]
          %v5991 = vld [vmem:[%s345 + $0xd68] sm:$0xff]
          %v5992 = vld [vmem:[%s345 + $0xd70] sm:$0xff]
          %v5993 = vld [vmem:[%s345 + $0xd78] sm:$0xff]
          %v5994 = vld [vmem:[%s345 + $0xd80] sm:$0xff]
          %v5995 = vld [vmem:[%s345 + $0xd88] sm:$0xff]
          %v5996 = vld [vmem:[%s345 + $0xd90] sm:$0xff]
          %v5997 = vld [vmem:[%s345 + $0xd98] sm:$0xff]
          %v5998 = vld [vmem:[%s345 + $0xda0] sm:$0xff]
          %v5999 = vld [vmem:[%s345 + $0xda8] sm:$0xff]
          %v6000 = vld [vmem:[%s345 + $0xdb0] sm:$0xff]
          %v6001 = vld [vmem:[%s345 + $0xdb8] sm:$0xff]
          %v6002 = vld [vmem:[%s345 + $0xdc0] sm:$0xff]
          %v6003 = vld [vmem:[%s345 + $0xdc8] sm:$0xff]
          %v6004 = vld [vmem:[%s345 + $0xdd0] sm:$0xff]
          %v6005 = vld [vmem:[%s345 + $0xdd8] sm:$0xff]
          %v6006 = vld [vmem:[%s345 + $0xde0] sm:$0xff]
          %v6007 = vld [vmem:[%s345 + $0xde8] sm:$0xff]
          %v6008 = vld [vmem:[%s345 + $0xdf0] sm:$0xff]
          %v6009 = vld [vmem:[%s345 + $0xdf8] sm:$0xff]
          %v6010 = vld [vmem:[%s345 + $0xe00] sm:$0xff]
          %v6011 = vld [vmem:[%s345 + $0xe08] sm:$0xff]
          %v6012 = vld [vmem:[%s345 + $0xe10] sm:$0xff]
          %v6013 = vld [vmem:[%s345 + $0xe18] sm:$0xff]
          %v6014 = vld [vmem:[%s345 + $0xe20] sm:$0xff]
          %v6015 = vld [vmem:[%s345 + $0xe28] sm:$0xff]
          %v6016 = vld [vmem:[%s345 + $0xe30] sm:$0xff]
          %v6017 = vld [vmem:[%s345 + $0xe38] sm:$0xff]
          %v6018 = vld [vmem:[%s345 + $0xe40] sm:$0xff]
          %v6019 = vld [vmem:[%s345 + $0xe48] sm:$0xff]
          %v6020 = vld [vmem:[%s345 + $0xe50] sm:$0xff]
          %v6021 = vld [vmem:[%s345 + $0xe58] sm:$0xff]
          %v6022 = vld [vmem:[%s345 + $0xe60] sm:$0xff]
          %v6023 = vld [vmem:[%s345 + $0xe68] sm:$0xff]
          %v6024 = vld [vmem:[%s345 + $0xe70] sm:$0xff]
          %v6025 = vld [vmem:[%s345 + $0xe78] sm:$0xff]
          %v6026 = vld [vmem:[%s345 + $0xe80] sm:$0xff]
          %v6027 = vld [vmem:[%s345 + $0xe88] sm:$0xff]
          %v6028 = vld [vmem:[%s345 + $0xe90] sm:$0xff]
          %v6029 = vld [vmem:[%s345 + $0xe98] sm:$0xff]
          %v6030 = vld [vmem:[%s345 + $0xea0] sm:$0xff]
          %v6031 = vld [vmem:[%s345 + $0xea8] sm:$0xff]
          %v6032 = vld [vmem:[%s345 + $0xeb0] sm:$0xff]
          %v6033 = vld [vmem:[%s345 + $0xeb8] sm:$0xff]
          %v6034 = vld [vmem:[%s345 + $0xec0] sm:$0xff]
          %v6035 = vld [vmem:[%s345 + $0xec8] sm:$0xff]
          %v6036 = vld [vmem:[%s345 + $0xed0] sm:$0xff]
          %v6037 = vld [vmem:[%s345 + $0xed8] sm:$0xff]
          %v6038 = vld [vmem:[%s345 + $0xee0] sm:$0xff]
          %v6039 = vld [vmem:[%s345 + $0xee8] sm:$0xff]
          %v6040 = vld [vmem:[%s345 + $0xef0] sm:$0xff]
          %v6041 = vld [vmem:[%s345 + $0xef8] sm:$0xff]
          %v6042 = vld [vmem:[%s345 + $0xf00] sm:$0xff]
          %v6043 = vld [vmem:[%s345 + $0xf08] sm:$0xff]
          %v6044 = vld [vmem:[%s345 + $0xf10] sm:$0xff]
          %v6045 = vld [vmem:[%s345 + $0xf18] sm:$0xff]
          %v6046 = vld [vmem:[%s345 + $0xf20] sm:$0xff]
          %v6047 = vld [vmem:[%s345 + $0xf28] sm:$0xff]
          %v6048 = vld [vmem:[%s345 + $0xf30] sm:$0xff]
          %v6049 = vld [vmem:[%s345 + $0xf38] sm:$0xff]
          %v6050 = vld [vmem:[%s345 + $0xf40] sm:$0xff]
          %v6051 = vld [vmem:[%s345 + $0xf48] sm:$0xff]
          %v6052 = vld [vmem:[%s345 + $0xf50] sm:$0xff]
          %v6053 = vld [vmem:[%s345 + $0xf58] sm:$0xff]
          %v6054 = vld [vmem:[%s345 + $0xf60] sm:$0xff]
          %v6055 = vld [vmem:[%s345 + $0xf68] sm:$0xff]
          %v6056 = vld [vmem:[%s345 + $0xf70] sm:$0xff]
          %v6057 = vld [vmem:[%s345 + $0xf78] sm:$0xff]
          %v6058 = vld [vmem:[%s345 + $0xf80] sm:$0xff]
          %v6059 = vld [vmem:[%s345 + $0xf88] sm:$0xff]
          %v6060 = vld [vmem:[%s345 + $0xf90] sm:$0xff]
          %v6061 = vld [vmem:[%s345 + $0xf98] sm:$0xff]
          %v6062 = vld [vmem:[%s345 + $0xfa0] sm:$0xff]
          %v6063 = vld [vmem:[%s345 + $0xfa8] sm:$0xff]
          %v6064 = vld [vmem:[%s345 + $0xfb0] sm:$0xff]
          %v6065 = vld [vmem:[%s345 + $0xfb8] sm:$0xff]
          %v6066 = vld [vmem:[%s345 + $0xfc0] sm:$0xff]
          %v6067 = vld [vmem:[%s345 + $0xfc8] sm:$0xff]
          %v6068 = vld [vmem:[%s345 + $0xfd0] sm:$0xff]
          %v6069 = vld [vmem:[%s345 + $0xfd8] sm:$0xff]
          %v6070 = vld [vmem:[%s345 + $0xfe0] sm:$0xff]
          %v6071 = vld [vmem:[%s345 + $0xfe8] sm:$0xff]
          %v6072 = vld [vmem:[%s345 + $0xff0] sm:$0xff]
          %v6073 = vld [vmem:[%s345 + $0xff8] sm:$0xff]
          %v6074 = vunpack.c.l.bf16 %v5946
          %v6075 = vunpack.c.h.bf16 %v5946
          %v6076 = vunpack.c.l.bf16 %v5947
          %v6077 = vunpack.c.h.bf16 %v5947
          %v6078 = vunpack.c.l.bf16 %v5948
          %v6079 = vunpack.c.h.bf16 %v5948
          %v6080 = vunpack.c.l.bf16 %v5949
          %v6081 = vunpack.c.h.bf16 %v5949
          %v6082 = vunpack.c.l.bf16 %v5950
          %v6083 = vunpack.c.h.bf16 %v5950
          %v6084 = vunpack.c.l.bf16 %v5951
          %v6085 = vunpack.c.h.bf16 %v5951
          %v6086 = vunpack.c.l.bf16 %v5952
          %v6087 = vunpack.c.h.bf16 %v5952
          %v6088 = vunpack.c.l.bf16 %v5953
          %v6089 = vunpack.c.h.bf16 %v5953
          %v6090 = vunpack.c.l.bf16 %v5954
          %v6091 = vunpack.c.h.bf16 %v5954
          %v6092 = vunpack.c.l.bf16 %v5955
          %v6093 = vunpack.c.h.bf16 %v5955
          %v6094 = vunpack.c.l.bf16 %v5956
          %v6095 = vunpack.c.h.bf16 %v5956
          %v6096 = vunpack.c.l.bf16 %v5957
          %v6097 = vunpack.c.h.bf16 %v5957
          %v6098 = vunpack.c.l.bf16 %v5958
          %v6099 = vunpack.c.h.bf16 %v5958
          %v6100 = vunpack.c.l.bf16 %v5959
          %v6101 = vunpack.c.h.bf16 %v5959
          %v6102 = vunpack.c.l.bf16 %v5960
          %v6103 = vunpack.c.h.bf16 %v5960
          %v6104 = vunpack.c.l.bf16 %v5961
          %v6105 = vunpack.c.h.bf16 %v5961
          %v6106 = vunpack.c.l.bf16 %v5962
          %v6107 = vunpack.c.h.bf16 %v5962
          %v6108 = vunpack.c.l.bf16 %v5963
          %v6109 = vunpack.c.h.bf16 %v5963
          %v6110 = vunpack.c.l.bf16 %v5964
          %v6111 = vunpack.c.h.bf16 %v5964
          %v6112 = vunpack.c.l.bf16 %v5965
          %v6113 = vunpack.c.h.bf16 %v5965
          %v6114 = vunpack.c.l.bf16 %v5966
          %v6115 = vunpack.c.h.bf16 %v5966
          %v6116 = vunpack.c.l.bf16 %v5967
          %v6117 = vunpack.c.h.bf16 %v5967
          %v6118 = vunpack.c.l.bf16 %v5968
          %v6119 = vunpack.c.h.bf16 %v5968
          %v6120 = vunpack.c.l.bf16 %v5969
          %v6121 = vunpack.c.h.bf16 %v5969
          %v6122 = vunpack.c.l.bf16 %v5970
          %v6123 = vunpack.c.h.bf16 %v5970
          %v6124 = vunpack.c.l.bf16 %v5971
          %v6125 = vunpack.c.h.bf16 %v5971
          %v6126 = vunpack.c.l.bf16 %v5972
          %v6127 = vunpack.c.h.bf16 %v5972
          %v6128 = vunpack.c.l.bf16 %v5973
          %v6129 = vunpack.c.h.bf16 %v5973
          %v6130 = vunpack.c.l.bf16 %v5974
          %v6131 = vunpack.c.h.bf16 %v5974
          %v6132 = vunpack.c.l.bf16 %v5975
          %v6133 = vunpack.c.h.bf16 %v5975
          %v6134 = vunpack.c.l.bf16 %v5976
          %v6135 = vunpack.c.h.bf16 %v5976
          %v6136 = vunpack.c.l.bf16 %v5977
          %v6137 = vunpack.c.h.bf16 %v5977
          %v6138 = vunpack.c.l.bf16 %v5978
          %v6139 = vunpack.c.h.bf16 %v5978
          %v6140 = vunpack.c.l.bf16 %v5979
          %v6141 = vunpack.c.h.bf16 %v5979
          %v6142 = vunpack.c.l.bf16 %v5980
          %v6143 = vunpack.c.h.bf16 %v5980
          %v6144 = vunpack.c.l.bf16 %v5981
          %v6145 = vunpack.c.h.bf16 %v5981
          %v6146 = vunpack.c.l.bf16 %v5982
          %v6147 = vunpack.c.h.bf16 %v5982
          %v6148 = vunpack.c.l.bf16 %v5983
          %v6149 = vunpack.c.h.bf16 %v5983
          %v6150 = vunpack.c.l.bf16 %v5984
          %v6151 = vunpack.c.h.bf16 %v5984
          %v6152 = vunpack.c.l.bf16 %v5985
          %v6153 = vunpack.c.h.bf16 %v5985
          %v6154 = vunpack.c.l.bf16 %v5986
          %v6155 = vunpack.c.h.bf16 %v5986
          %v6156 = vunpack.c.l.bf16 %v5987
          %v6157 = vunpack.c.h.bf16 %v5987
          %v6158 = vunpack.c.l.bf16 %v5988
          %v6159 = vunpack.c.h.bf16 %v5988
          %v6160 = vunpack.c.l.bf16 %v5989
          %v6161 = vunpack.c.h.bf16 %v5989
          %v6162 = vunpack.c.l.bf16 %v5990
          %v6163 = vunpack.c.h.bf16 %v5990
          %v6164 = vunpack.c.l.bf16 %v5991
          %v6165 = vunpack.c.h.bf16 %v5991
          %v6166 = vunpack.c.l.bf16 %v5992
          %v6167 = vunpack.c.h.bf16 %v5992
          %v6168 = vunpack.c.l.bf16 %v5993
          %v6169 = vunpack.c.h.bf16 %v5993
          %v6170 = vunpack.c.l.bf16 %v5994
          %v6171 = vunpack.c.h.bf16 %v5994
          %v6172 = vunpack.c.l.bf16 %v5995
          %v6173 = vunpack.c.h.bf16 %v5995
          %v6174 = vunpack.c.l.bf16 %v5996
          %v6175 = vunpack.c.h.bf16 %v5996
          %v6176 = vunpack.c.l.bf16 %v5997
          %v6177 = vunpack.c.h.bf16 %v5997
          %v6178 = vunpack.c.l.bf16 %v5998
          %v6179 = vunpack.c.h.bf16 %v5998
          %v6180 = vunpack.c.l.bf16 %v5999
          %v6181 = vunpack.c.h.bf16 %v5999
          %v6182 = vunpack.c.l.bf16 %v6000
          %v6183 = vunpack.c.h.bf16 %v6000
          %v6184 = vunpack.c.l.bf16 %v6001
          %v6185 = vunpack.c.h.bf16 %v6001
          %v6186 = vunpack.c.l.bf16 %v6002
          %v6187 = vunpack.c.h.bf16 %v6002
          %v6188 = vunpack.c.l.bf16 %v6003
          %v6189 = vunpack.c.h.bf16 %v6003
          %v6190 = vunpack.c.l.bf16 %v6004
          %v6191 = vunpack.c.h.bf16 %v6004
          %v6192 = vunpack.c.l.bf16 %v6005
          %v6193 = vunpack.c.h.bf16 %v6005
          %v6194 = vunpack.c.l.bf16 %v6006
          %v6195 = vunpack.c.h.bf16 %v6006
          %v6196 = vunpack.c.l.bf16 %v6007
          %v6197 = vunpack.c.h.bf16 %v6007
          %v6198 = vunpack.c.l.bf16 %v6008
          %v6199 = vunpack.c.h.bf16 %v6008
          %v6200 = vunpack.c.l.bf16 %v6009
          %v6201 = vunpack.c.h.bf16 %v6009
          %v6202 = vunpack.c.l.bf16 %v6010
          %v6203 = vunpack.c.h.bf16 %v6010
          %v6204 = vunpack.c.l.bf16 %v6011
          %v6205 = vunpack.c.h.bf16 %v6011
          %v6206 = vunpack.c.l.bf16 %v6012
          %v6207 = vunpack.c.h.bf16 %v6012
          %v6208 = vunpack.c.l.bf16 %v6013
          %v6209 = vunpack.c.h.bf16 %v6013
          %v6210 = vunpack.c.l.bf16 %v6014
          %v6211 = vunpack.c.h.bf16 %v6014
          %v6212 = vunpack.c.l.bf16 %v6015
          %v6213 = vunpack.c.h.bf16 %v6015
          %v6214 = vunpack.c.l.bf16 %v6016
          %v6215 = vunpack.c.h.bf16 %v6016
          %v6216 = vunpack.c.l.bf16 %v6017
          %v6217 = vunpack.c.h.bf16 %v6017
          %v6218 = vunpack.c.l.bf16 %v6018
          %v6219 = vunpack.c.h.bf16 %v6018
          %v6220 = vunpack.c.l.bf16 %v6019
          %v6221 = vunpack.c.h.bf16 %v6019
          %v6222 = vunpack.c.l.bf16 %v6020
          %v6223 = vunpack.c.h.bf16 %v6020
          %v6224 = vunpack.c.l.bf16 %v6021
          %v6225 = vunpack.c.h.bf16 %v6021
          %v6226 = vunpack.c.l.bf16 %v6022
          %v6227 = vunpack.c.h.bf16 %v6022
          %v6228 = vunpack.c.l.bf16 %v6023
          %v6229 = vunpack.c.h.bf16 %v6023
          %v6230 = vunpack.c.l.bf16 %v6024
          %v6231 = vunpack.c.h.bf16 %v6024
          %v6232 = vunpack.c.l.bf16 %v6025
          %v6233 = vunpack.c.h.bf16 %v6025
          %v6234 = vunpack.c.l.bf16 %v6026
          %v6235 = vunpack.c.h.bf16 %v6026
          %v6236 = vunpack.c.l.bf16 %v6027
          %v6237 = vunpack.c.h.bf16 %v6027
          %v6238 = vunpack.c.l.bf16 %v6028
          %v6239 = vunpack.c.h.bf16 %v6028
          %v6240 = vunpack.c.l.bf16 %v6029
          %v6241 = vunpack.c.h.bf16 %v6029
          %v6242 = vunpack.c.l.bf16 %v6030
          %v6243 = vunpack.c.h.bf16 %v6030
          %v6244 = vunpack.c.l.bf16 %v6031
          %v6245 = vunpack.c.h.bf16 %v6031
          %v6246 = vunpack.c.l.bf16 %v6032
          %v6247 = vunpack.c.h.bf16 %v6032
          %v6248 = vunpack.c.l.bf16 %v6033
          %v6249 = vunpack.c.h.bf16 %v6033
          %v6250 = vunpack.c.l.bf16 %v6034
          %v6251 = vunpack.c.h.bf16 %v6034
          %v6252 = vunpack.c.l.bf16 %v6035
          %v6253 = vunpack.c.h.bf16 %v6035
          %v6254 = vunpack.c.l.bf16 %v6036
          %v6255 = vunpack.c.h.bf16 %v6036
          %v6256 = vunpack.c.l.bf16 %v6037
          %v6257 = vunpack.c.h.bf16 %v6037
          %v6258 = vunpack.c.l.bf16 %v6038
          %v6259 = vunpack.c.h.bf16 %v6038
          %v6260 = vunpack.c.l.bf16 %v6039
          %v6261 = vunpack.c.h.bf16 %v6039
          %v6262 = vunpack.c.l.bf16 %v6040
          %v6263 = vunpack.c.h.bf16 %v6040
          %v6264 = vunpack.c.l.bf16 %v6041
          %v6265 = vunpack.c.h.bf16 %v6041
          %v6266 = vunpack.c.l.bf16 %v6042
          %v6267 = vunpack.c.h.bf16 %v6042
          %v6268 = vunpack.c.l.bf16 %v6043
          %v6269 = vunpack.c.h.bf16 %v6043
          %v6270 = vunpack.c.l.bf16 %v6044
          %v6271 = vunpack.c.h.bf16 %v6044
          %v6272 = vunpack.c.l.bf16 %v6045
          %v6273 = vunpack.c.h.bf16 %v6045
          %v6274 = vunpack.c.l.bf16 %v6046
          %v6275 = vunpack.c.h.bf16 %v6046
          %v6276 = vunpack.c.l.bf16 %v6047
          %v6277 = vunpack.c.h.bf16 %v6047
          %v6278 = vunpack.c.l.bf16 %v6048
          %v6279 = vunpack.c.h.bf16 %v6048
          %v6280 = vunpack.c.l.bf16 %v6049
          %v6281 = vunpack.c.h.bf16 %v6049
          %v6282 = vunpack.c.l.bf16 %v6050
          %v6283 = vunpack.c.h.bf16 %v6050
          %v6284 = vunpack.c.l.bf16 %v6051
          %v6285 = vunpack.c.h.bf16 %v6051
          %v6286 = vunpack.c.l.bf16 %v6052
          %v6287 = vunpack.c.h.bf16 %v6052
          %v6288 = vunpack.c.l.bf16 %v6053
          %v6289 = vunpack.c.h.bf16 %v6053
          %v6290 = vunpack.c.l.bf16 %v6054
          %v6291 = vunpack.c.h.bf16 %v6054
          %v6292 = vunpack.c.l.bf16 %v6055
          %v6293 = vunpack.c.h.bf16 %v6055
          %v6294 = vunpack.c.l.bf16 %v6056
          %v6295 = vunpack.c.h.bf16 %v6056
          %v6296 = vunpack.c.l.bf16 %v6057
          %v6297 = vunpack.c.h.bf16 %v6057
          %v6298 = vunpack.c.l.bf16 %v6058
          %v6299 = vunpack.c.h.bf16 %v6058
          %v6300 = vunpack.c.l.bf16 %v6059
          %v6301 = vunpack.c.h.bf16 %v6059
          %v6302 = vunpack.c.l.bf16 %v6060
          %v6303 = vunpack.c.h.bf16 %v6060
          %v6304 = vunpack.c.l.bf16 %v6061
          %v6305 = vunpack.c.h.bf16 %v6061
          %v6306 = vunpack.c.l.bf16 %v6062
          %v6307 = vunpack.c.h.bf16 %v6062
          %v6308 = vunpack.c.l.bf16 %v6063
          %v6309 = vunpack.c.h.bf16 %v6063
          %v6310 = vunpack.c.l.bf16 %v6064
          %v6311 = vunpack.c.h.bf16 %v6064
          %v6312 = vunpack.c.l.bf16 %v6065
          %v6313 = vunpack.c.h.bf16 %v6065
          %v6314 = vunpack.c.l.bf16 %v6066
          %v6315 = vunpack.c.h.bf16 %v6066
          %v6316 = vunpack.c.l.bf16 %v6067
          %v6317 = vunpack.c.h.bf16 %v6067
          %v6318 = vunpack.c.l.bf16 %v6068
          %v6319 = vunpack.c.h.bf16 %v6068
          %v6320 = vunpack.c.l.bf16 %v6069
          %v6321 = vunpack.c.h.bf16 %v6069
          %v6322 = vunpack.c.l.bf16 %v6070
          %v6323 = vunpack.c.h.bf16 %v6070
          %v6324 = vunpack.c.l.bf16 %v6071
          %v6325 = vunpack.c.h.bf16 %v6071
          %v6326 = vunpack.c.l.bf16 %v6072
          %v6327 = vunpack.c.h.bf16 %v6072
          %v6328 = vunpack.c.l.bf16 %v6073
          %v6329 = vunpack.c.h.bf16 %v6073
          %s6330 = scalar_lea.vmem [#allocation3], 96
          %v6331 = vld [vmem:[%s6330] sm:$0xff]
          %v6332 = vld [vmem:[%s6330 + $0x8] sm:$0xff]
          %v6333 = vld [vmem:[%s6330 + $0x10] sm:$0xff]
          %v6334 = vld [vmem:[%s6330 + $0x18] sm:$0xff]
          %6335 = vmatprep.subr.mxu0 %v6075
          %6336 = vmatpush1.msra.mxu0 %v6074
          %6337 = vmatprep.subr.mxu0 %v6079
          %6338 = vmatpush1.msra.mxu0 %v6078
          %6339 = vmatprep.subr.mxu0 %v6083
          %6340 = vmatpush1.msra.mxu0 %v6082
          %6341 = vmatprep.subr.mxu0 %v6087
          %6342 = vmatpush1.msra.mxu0 %v6086
          %6343 = vmatprep.subr.mxu0 %v6091
          %6344 = vmatpush1.msra.mxu0 %v6090
          %6345 = vmatprep.subr.mxu0 %v6095
          %6346 = vmatpush1.msra.mxu0 %v6094
          %6347 = vmatprep.subr.mxu0 %v6099
          %6348 = vmatpush1.msra.mxu0 %v6098
          %6349 = vmatprep.subr.mxu0 %v6103
          %6350 = vmatpush1.msra.mxu0 %v6102
          %6351 = vmatprep.subr.mxu0 %v6107
          %6352 = vmatpush1.msra.mxu0 %v6106
          %6353 = vmatprep.subr.mxu0 %v6111
          %6354 = vmatpush1.msra.mxu0 %v6110
          %6355 = vmatprep.subr.mxu0 %v6115
          %6356 = vmatpush1.msra.mxu0 %v6114
          %6357 = vmatprep.subr.mxu0 %v6119
          %6358 = vmatpush1.msra.mxu0 %v6118
          %6359 = vmatprep.subr.mxu0 %v6123
          %6360 = vmatpush1.msra.mxu0 %v6122
          %6361 = vmatprep.subr.mxu0 %v6127
          %6362 = vmatpush1.msra.mxu0 %v6126
          %6363 = vmatprep.subr.mxu0 %v6131
          %6364 = vmatpush1.msra.mxu0 %v6130
          %6365 = vmatprep.subr.mxu0 %v6135
          %6366 = vmatpush1.msra.mxu0 %v6134
          %6367 = vmatprep.subr.mxu0 %v6139
          %6368 = vmatpush1.msra.mxu0 %v6138
          %6369 = vmatprep.subr.mxu0 %v6143
          %6370 = vmatpush1.msra.mxu0 %v6142
          %6371 = vmatprep.subr.mxu0 %v6147
          %6372 = vmatpush1.msra.mxu0 %v6146
          %6373 = vmatprep.subr.mxu0 %v6151
          %6374 = vmatpush1.msra.mxu0 %v6150
          %6375 = vmatprep.subr.mxu0 %v6155
          %6376 = vmatpush1.msra.mxu0 %v6154
          %6377 = vmatprep.subr.mxu0 %v6159
          %6378 = vmatpush1.msra.mxu0 %v6158
          %6379 = vmatprep.subr.mxu0 %v6163
          %6380 = vmatpush1.msra.mxu0 %v6162
          %6381 = vmatprep.subr.mxu0 %v6167
          %6382 = vmatpush1.msra.mxu0 %v6166
          %6383 = vmatprep.subr.mxu0 %v6171
          %6384 = vmatpush1.msra.mxu0 %v6170
          %6385 = vmatprep.subr.mxu0 %v6175
          %6386 = vmatpush1.msra.mxu0 %v6174
          %6387 = vmatprep.subr.mxu0 %v6179
          %6388 = vmatpush1.msra.mxu0 %v6178
          %6389 = vmatprep.subr.mxu0 %v6183
          %6390 = vmatpush1.msra.mxu0 %v6182
          %6391 = vmatprep.subr.mxu0 %v6187
          %6392 = vmatpush1.msra.mxu0 %v6186
          %6393 = vmatprep.subr.mxu0 %v6191
          %6394 = vmatpush1.msra.mxu0 %v6190
          %6395 = vmatprep.subr.mxu0 %v6195
          %6396 = vmatpush1.msra.mxu0 %v6194
          %6397 = vmatprep.subr.mxu0 %v6199
          %6398 = vmatpush1.msra.mxu0 %v6198
          %6399 = vmatprep.mubr.f32.mxu0 %v6332
          %6400 = vmatmul.mubr.f32.gmra.mrb[0].mxu0 %v6331
          %v6401 = vpop.f32.mrb[0].mxu0
          %v6402 = vadd.f32 0.0, %v6401
          %v6403 = vpop.f32.mrb[0].mxu0
          %v6404 = vadd.f32 0.0, %v6403
          %6405 = vdwg.mxu0
          %6406 = vmatprep.subr.mxu0 %v6203
          %6407 = vmatpush1.msra.mxu0 %v6202
          %6408 = vmatprep.subr.mxu0 %v6207
          %6409 = vmatpush1.msra.mxu0 %v6206
          %6410 = vmatprep.subr.mxu0 %v6211
          %6411 = vmatpush1.msra.mxu0 %v6210
          %6412 = vmatprep.subr.mxu0 %v6215
          %6413 = vmatpush1.msra.mxu0 %v6214
          %6414 = vmatprep.subr.mxu0 %v6219
          %6415 = vmatpush1.msra.mxu0 %v6218
          %6416 = vmatprep.subr.mxu0 %v6223
          %6417 = vmatpush1.msra.mxu0 %v6222
          %6418 = vmatprep.subr.mxu0 %v6227
          %6419 = vmatpush1.msra.mxu0 %v6226
          %6420 = vmatprep.subr.mxu0 %v6231
          %6421 = vmatpush1.msra.mxu0 %v6230
          %6422 = vmatprep.subr.mxu0 %v6235
          %6423 = vmatpush1.msra.mxu0 %v6234
          %6424 = vmatprep.subr.mxu0 %v6239
          %6425 = vmatpush1.msra.mxu0 %v6238
          %6426 = vmatprep.subr.mxu0 %v6243
          %6427 = vmatpush1.msra.mxu0 %v6242
          %6428 = vmatprep.subr.mxu0 %v6247
          %6429 = vmatpush1.msra.mxu0 %v6246
          %6430 = vmatprep.subr.mxu0 %v6251
          %6431 = vmatpush1.msra.mxu0 %v6250
          %6432 = vmatprep.subr.mxu0 %v6255
          %6433 = vmatpush1.msra.mxu0 %v6254
          %6434 = vmatprep.subr.mxu0 %v6259
          %6435 = vmatpush1.msra.mxu0 %v6258
          %6436 = vmatprep.subr.mxu0 %v6263
          %6437 = vmatpush1.msra.mxu0 %v6262
          %6438 = vmatprep.subr.mxu0 %v6267
          %6439 = vmatpush1.msra.mxu0 %v6266
          %6440 = vmatprep.subr.mxu0 %v6271
          %6441 = vmatpush1.msra.mxu0 %v6270
          %6442 = vmatprep.subr.mxu0 %v6275
          %6443 = vmatpush1.msra.mxu0 %v6274
          %6444 = vmatprep.subr.mxu0 %v6279
          %6445 = vmatpush1.msra.mxu0 %v6278
          %6446 = vmatprep.subr.mxu0 %v6283
          %6447 = vmatpush1.msra.mxu0 %v6282
          %6448 = vmatprep.subr.mxu0 %v6287
          %6449 = vmatpush1.msra.mxu0 %v6286
          %6450 = vmatprep.subr.mxu0 %v6291
          %6451 = vmatpush1.msra.mxu0 %v6290
          %6452 = vmatprep.subr.mxu0 %v6295
          %6453 = vmatpush1.msra.mxu0 %v6294
          %6454 = vmatprep.subr.mxu0 %v6299
          %6455 = vmatpush1.msra.mxu0 %v6298
          %6456 = vmatprep.subr.mxu0 %v6303
          %6457 = vmatpush1.msra.mxu0 %v6302
          %6458 = vmatprep.subr.mxu0 %v6307
          %6459 = vmatpush1.msra.mxu0 %v6306
          %6460 = vmatprep.subr.mxu0 %v6311
          %6461 = vmatpush1.msra.mxu0 %v6310
          %6462 = vmatprep.subr.mxu0 %v6315
          %6463 = vmatpush1.msra.mxu0 %v6314
          %6464 = vmatprep.subr.mxu0 %v6319
          %6465 = vmatpush1.msra.mxu0 %v6318
          %6466 = vmatprep.subr.mxu0 %v6323
          %6467 = vmatpush1.msra.mxu0 %v6322
          %6468 = vmatprep.subr.mxu0 %v6327
          %6469 = vmatpush1.msra.mxu0 %v6326
          %6470 = vmatprep.mubr.f32.mxu0 %v6334
          %6471 = vmatmul.mubr.f32.gmra.mrb[0].mxu0 %v6333
          %v6472 = vpop.f32.mrb[0].mxu0
          %v6473 = vadd.f32 %v6402, %v6472
          %v6474 = vpop.f32.mrb[0].mxu0
          %v6475 = vadd.f32 %v6404, %v6474
          %6476 = vdwg.mxu0
          %6477 = vmatprep.subr.mxu0 %v6077
          %6478 = vmatpush1.msra.mxu0 %v6076
          %6479 = vmatprep.subr.mxu0 %v6081
          %6480 = vmatpush1.msra.mxu0 %v6080
          %6481 = vmatprep.subr.mxu0 %v6085
          %6482 = vmatpush1.msra.mxu0 %v6084
          %6483 = vmatprep.subr.mxu0 %v6089
          %6484 = vmatpush1.msra.mxu0 %v6088
          %6485 = vmatprep.subr.mxu0 %v6093
          %6486 = vmatpush1.msra.mxu0 %v6092
          %6487 = vmatprep.subr.mxu0 %v6097
          %6488 = vmatpush1.msra.mxu0 %v6096
          %6489 = vmatprep.subr.mxu0 %v6101
          %6490 = vmatpush1.msra.mxu0 %v6100
          %6491 = vmatprep.subr.mxu0 %v6105
          %6492 = vmatpush1.msra.mxu0 %v6104
          %6493 = vmatprep.subr.mxu0 %v6109
          %6494 = vmatpush1.msra.mxu0 %v6108
          %6495 = vmatprep.subr.mxu0 %v6113
          %6496 = vmatpush1.msra.mxu0 %v6112
          %6497 = vmatprep.subr.mxu0 %v6117
          %6498 = vmatpush1.msra.mxu0 %v6116
          %6499 = vmatprep.subr.mxu0 %v6121
          %6500 = vmatpush1.msra.mxu0 %v6120
          %6501 = vmatprep.subr.mxu0 %v6125
          %6502 = vmatpush1.msra.mxu0 %v6124
          %6503 = vmatprep.subr.mxu0 %v6129
          %6504 = vmatpush1.msra.mxu0 %v6128
          %6505 = vmatprep.subr.mxu0 %v6133
          %6506 = vmatpush1.msra.mxu0 %v6132
          %6507 = vmatprep.subr.mxu0 %v6137
          %6508 = vmatpush1.msra.mxu0 %v6136
          %6509 = vmatprep.subr.mxu0 %v6141
          %6510 = vmatpush1.msra.mxu0 %v6140
          %6511 = vmatprep.subr.mxu0 %v6145
          %6512 = vmatpush1.msra.mxu0 %v6144
          %6513 = vmatprep.subr.mxu0 %v6149
          %6514 = vmatpush1.msra.mxu0 %v6148
          %6515 = vmatprep.subr.mxu0 %v6153
          %6516 = vmatpush1.msra.mxu0 %v6152
          %6517 = vmatprep.subr.mxu0 %v6157
          %6518 = vmatpush1.msra.mxu0 %v6156
          %6519 = vmatprep.subr.mxu0 %v6161
          %6520 = vmatpush1.msra.mxu0 %v6160
          %6521 = vmatprep.subr.mxu0 %v6165
          %6522 = vmatpush1.msra.mxu0 %v6164
          %6523 = vmatprep.subr.mxu0 %v6169
          %6524 = vmatpush1.msra.mxu0 %v6168
          %6525 = vmatprep.subr.mxu0 %v6173
          %6526 = vmatpush1.msra.mxu0 %v6172
          %6527 = vmatprep.subr.mxu0 %v6177
          %6528 = vmatpush1.msra.mxu0 %v6176
          %6529 = vmatprep.subr.mxu0 %v6181
          %6530 = vmatpush1.msra.mxu0 %v6180
          %6531 = vmatprep.subr.mxu0 %v6185
          %6532 = vmatpush1.msra.mxu0 %v6184
          %6533 = vmatprep.subr.mxu0 %v6189
          %6534 = vmatpush1.msra.mxu0 %v6188
          %6535 = vmatprep.subr.mxu0 %v6193
          %6536 = vmatpush1.msra.mxu0 %v6192
          %6537 = vmatprep.subr.mxu0 %v6197
          %6538 = vmatpush1.msra.mxu0 %v6196
          %6539 = vmatprep.subr.mxu0 %v6201
          %6540 = vmatpush1.msra.mxu0 %v6200
          %6541 = vmatprep.mubr.f32.mxu0 %v6332
          %6542 = vmatmul.mubr.f32.gmra.mrb[0].mxu0 %v6331
          %v6543 = vpop.f32.mrb[0].mxu0
          %v6544 = vadd.f32 0.0, %v6543
          %v6545 = vpop.f32.mrb[0].mxu0
          %v6546 = vadd.f32 0.0, %v6545
          %6547 = vdwg.mxu0
          %6548 = vmatprep.subr.mxu0 %v6205
          %6549 = vmatpush1.msra.mxu0 %v6204
          %6550 = vmatprep.subr.mxu0 %v6209
          %6551 = vmatpush1.msra.mxu0 %v6208
          %6552 = vmatprep.subr.mxu0 %v6213
          %6553 = vmatpush1.msra.mxu0 %v6212
          %6554 = vmatprep.subr.mxu0 %v6217
          %6555 = vmatpush1.msra.mxu0 %v6216
          %6556 = vmatprep.subr.mxu0 %v6221
          %6557 = vmatpush1.msra.mxu0 %v6220
          %6558 = vmatprep.subr.mxu0 %v6225
          %6559 = vmatpush1.msra.mxu0 %v6224
          %6560 = vmatprep.subr.mxu0 %v6229
          %6561 = vmatpush1.msra.mxu0 %v6228
          %6562 = vmatprep.subr.mxu0 %v6233
          %6563 = vmatpush1.msra.mxu0 %v6232
          %6564 = vmatprep.subr.mxu0 %v6237
          %6565 = vmatpush1.msra.mxu0 %v6236
          %6566 = vmatprep.subr.mxu0 %v6241
          %6567 = vmatpush1.msra.mxu0 %v6240
          %6568 = vmatprep.subr.mxu0 %v6245
          %6569 = vmatpush1.msra.mxu0 %v6244
          %6570 = vmatprep.subr.mxu0 %v6249
          %6571 = vmatpush1.msra.mxu0 %v6248
          %6572 = vmatprep.subr.mxu0 %v6253
          %6573 = vmatpush1.msra.mxu0 %v6252
          %6574 = vmatprep.subr.mxu0 %v6257
          %6575 = vmatpush1.msra.mxu0 %v6256
          %6576 = vmatprep.subr.mxu0 %v6261
          %6577 = vmatpush1.msra.mxu0 %v6260
          %6578 = vmatprep.subr.mxu0 %v6265
          %6579 = vmatpush1.msra.mxu0 %v6264
          %6580 = vmatprep.subr.mxu0 %v6269
          %6581 = vmatpush1.msra.mxu0 %v6268
          %6582 = vmatprep.subr.mxu0 %v6273
          %6583 = vmatpush1.msra.mxu0 %v6272
          %6584 = vmatprep.subr.mxu0 %v6277
          %6585 = vmatpush1.msra.mxu0 %v6276
          %6586 = vmatprep.subr.mxu0 %v6281
          %6587 = vmatpush1.msra.mxu0 %v6280
          %6588 = vmatprep.subr.mxu0 %v6285
          %6589 = vmatpush1.msra.mxu0 %v6284
          %6590 = vmatprep.subr.mxu0 %v6289
          %6591 = vmatpush1.msra.mxu0 %v6288
          %6592 = vmatprep.subr.mxu0 %v6293
          %6593 = vmatpush1.msra.mxu0 %v6292
          %6594 = vmatprep.subr.mxu0 %v6297
          %6595 = vmatpush1.msra.mxu0 %v6296
          %6596 = vmatprep.subr.mxu0 %v6301
          %6597 = vmatpush1.msra.mxu0 %v6300
          %6598 = vmatprep.subr.mxu0 %v6305
          %6599 = vmatpush1.msra.mxu0 %v6304
          %6600 = vmatprep.subr.mxu0 %v6309
          %6601 = vmatpush1.msra.mxu0 %v6308
          %6602 = vmatprep.subr.mxu0 %v6313
          %6603 = vmatpush1.msra.mxu0 %v6312
          %6604 = vmatprep.subr.mxu0 %v6317
          %6605 = vmatpush1.msra.mxu0 %v6316
          %6606 = vmatprep.subr.mxu0 %v6321
          %6607 = vmatpush1.msra.mxu0 %v6320
          %6608 = vmatprep.subr.mxu0 %v6325
          %6609 = vmatpush1.msra.mxu0 %v6324
          %6610 = vmatprep.subr.mxu0 %v6329
          %6611 = vmatpush1.msra.mxu0 %v6328
          %6612 = vmatprep.mubr.f32.mxu0 %v6334
          %6613 = vmatmul.mubr.f32.gmra.mrb[0].mxu0 %v6333
          %v6614 = vpop.f32.mrb[0].mxu0
          %v6615 = vadd.f32 %v6544, %v6614
          %v6616 = vpop.f32.mrb[0].mxu0
          %v6617 = vadd.f32 %v6546, %v6616
          %6618 = vdwg.mxu0
          %v6619 = vadd.f32 %v5942, %v6473
          %v6620 = vadd.f32 %v5943, %v6475
          %v6621 = vadd.f32 %v5944, %v6615
          %v6622 = vadd.f32 %v5945, %v6617
          %v6623 = vld [vmem:[%s354] sm:$0xf]
          %v6625 = vlaneseq
          %v6626 = vshrl.u32 %v6625, 7
          %v6627 = vsub.s32 0, %v6626
          %v6628 = vrot.slane %v6623, %v6627
          %v6629 = vlaneseq
          %v6630 = vshrl.u32 %v6629, 7
          %v6631 = vsub.s32 1, %v6630
          %v6632 = vrot.slane %v6623, %v6631
          %v6633 = vlaneseq
          %v6634 = vshrl.u32 %v6633, 7
          %v6635 = vsub.s32 2, %v6634
          %v6636 = vrot.slane %v6623, %v6635
          %v6637 = vlaneseq
          %v6638 = vshrl.u32 %v6637, 7
          %v6639 = vsub.s32 3, %v6638
          %v6640 = vrot.slane %v6623, %v6639
          %v6645 = vadd.f32 %v6619, %v6628
          %v6646 = vadd.f32 %v6620, %v6632
          %v6647 = vadd.f32 %v6621, %v6636
          %v6648 = vadd.f32 %v6622, %v6640
          %v6649 = vmax.f32 %v6645, 0.0
          %v6650 = vmax.f32 %v6646, 0.0
          %v6651 = vmax.f32 %v6647, 0.0
          %v6652 = vmax.f32 %v6648, 0.0
          %s6653 = smul.u32 %s27, 4
          %s6654 = smul.addr %s6653, 8
          %s6655 = scalar_lea.vmem [#allocation2], %s6654
          %6656 = vst [vmem:[%s6655] sm:$0xff] %v6649
          %6657 = vst [vmem:[%s6655 + $0x8] sm:$0xff] %v6650
          %6658 = vst [vmem:[%s6655 + $0x10] sm:$0xff] %v6651
          %6659 = vst [vmem:[%s6655 + $0x18] sm:$0xff] %v6652
          %p6660 = scmp.eq.s32.totalorder %s26, 3
          // Predicated region
          $region85: #{multiple_regression_forward.1} parent=83 // pred_check
            %p6661 = pneg %p6660
          $region86: #{multiple_regression_forward.1} parent=83 // pred_check_branch
            %6663 = sbr.rel (%p6661) target = $region88
          $region87: #{multiple_regression_forward.1} parent=83 // pred_region
            %v6664 = vld [vmem:[#allocation4] sm:$0xff]
            %v6665 = vld [vmem:[%s363] sm:$0xf]
            %v6667 = vlaneseq
            %v6668 = vshrl.u32 %v6667, 7
            %v6669 = vsub.s32 0, %v6668
            %v6670 = vrot.slane %v6665, %v6669
            %v6671 = vlaneseq
            %v6672 = vshrl.u32 %v6671, 7
            %v6673 = vsub.s32 1, %v6672
            %v6674 = vrot.slane %v6665, %v6673
            %v6675 = vlaneseq
            %v6676 = vshrl.u32 %v6675, 7
            %v6677 = vsub.s32 2, %v6676
            %v6678 = vrot.slane %v6665, %v6677
            %v6679 = vlaneseq
            %v6680 = vshrl.u32 %v6679, 7
            %v6681 = vsub.s32 3, %v6680
            %v6682 = vrot.slane %v6665, %v6681
            %v6687 = vmul.f32 %v6649, %v6670
            %v6688 = vmul.f32 %v6650, %v6674
            %v6689 = vmul.f32 %v6651, %v6678
            %v6690 = vmul.f32 %v6652, %v6682
            %v6691 = vadd.f32 %v6687, %v6688
            %v6692 = vadd.f32 %v6691, %v6689
            %v6693 = vadd.f32 %v6692, %v6690
            %6694 = vadd.xlane.f32.xlu0 %v6693
            %v6695 = vpop.xlane.xlu0 %6694
            %v6696 = vadd.f32 %v6664, %v6695
            %vm6697 = vcmask 7168
            %6698 = vst.msk [vmem:[#allocation4] sm:$0xff] %vm6697, %v6696
          $region88: #{multiple_regression_forward.1} parent=83 // pred_fallthru
            _
        $region84: #{multiple_regression_forward.1} parent=47 // pred_fallthru
          _
        %p6699 = scmp.eq.s32.totalorder %s26, 3
        %p6700 = scmp.eq.s32.totalorder %s27, 3
        %p6701 = pnand %p6699, %p6700
        %p6702 = pneg %p6701
        // Predicated region
        $region89: #{multiple_regression_forward.1} parent=47 // pred_check
          _
        $region90: #{multiple_regression_forward.1} parent=47 // pred_check_branch
          %6704 = sbr.rel (%p6701) target = $region92
        $region91: #{multiple_regression_forward.1} parent=47 // pred_region
          %v6705 = vld [vmem:[#allocation4] sm:$0xff]
          %vm6706 = vcmask 7168
          %6707 = vst.msk [vmem:[%s7] sm:$0xff] %vm6706, %v6705
        $region92: #{multiple_regression_forward.1} parent=47 // pred_fallthru
          _
        // Predicated region
        $region93: #{multiple_regression_forward.1} parent=47 // pred_check
          %p6708 = pneg %p213
        $region94: #{multiple_regression_forward.1} parent=47 // pred_check_branch
          %6710 = sbr.rel (%p6708) target = $region96
        $region95: #{multiple_regression_forward.1} parent=47 // pred_region
          _
        $region96: #{multiple_regression_forward.1} parent=47 // pred_fallthru
          _
        // Predicated region
        $region97: #{multiple_regression_forward.1} parent=47 // pred_check
          %p6711 = pneg %p213
        $region98: #{multiple_regression_forward.1} parent=47 // pred_check_branch
          %6713 = sbr.rel (%p6711) target = $region100
        $region99: #{multiple_regression_forward.1} parent=47 // pred_region
          _
        $region100: #{multiple_regression_forward.1} parent=47 // pred_fallthru
          _
      $region48: #{multiple_regression_forward.1} parent=5 // pred_fallthru
        _
      %p6714 = scmp.le.s32.totalorder 2, %s17
      // Predicated region
      $region101: #{multiple_regression_forward.1} parent=5 // pred_check
        %p6715 = pneg %p6714
      $region102: #{multiple_regression_forward.1} parent=5 // pred_check_branch
        %6717 = sbr.rel (%p6715) target = $region104
      $region103: #{multiple_regression_forward.1} parent=5 // pred_region
        %s6718 = ssub.s32 %s17, 2
      $region104: #{multiple_regression_forward.1} parent=5 // pred_fallthru
        _
    $region6: #{multiple_regression_forward.1} parent=1 // loop_footer
      %s21 = sadd.s32 1, %s17
    $region7: #{multiple_regression_forward.1} parent=1 // loop_footer_branch
      %16 = sbr.rel target = $region3
    $region8: #{multiple_regression_forward.1} parent=1 // loop_exit
      _
    %6719 = vsyncpa [#allocation7], 1
    %s6720 = scalar_lea.sflag [#allocation7], 1
    %6721 = vsyncpa %s6720, 1
    %6722 = vsyncpa [#allocation9], 1

</llo_original>
